<compile_context>
chip_gen: v5e
topology: v5e:2x2
jax: 0.10.0
libtpu: 0.0.40
codegen_flags: <defaults>
</compile_context>

<pallas_src>
from functools import partial

import jax
import jax.numpy as jnp
from jax.experimental import pallas as pl
from jax.experimental.pallas import tpu as pltpu

BN_EPS = 1e-5
BN_SCALE = 1.0 / (1.0 + BN_EPS) ** 0.5


def _rup(a, m):
    return ((a + m - 1) // m) * m


# ---------------------------------------------------------------------------
# Fused Pallas kernel
# ---------------------------------------------------------------------------

def _fused_resnet_kernel(
    x_ref,                                   # (NB*R0p, 8)  f32 padded-wide input (C padded 3->8)
    w0_ref, b0_ref,                          # (72,16) bf16, (1,16) f32
    w1a_ref, w1b_ref,                        # rb1: (144,64)=[conv1|1x1 ds], (288,32) bf16
    w2a_ref, w2b_ref,                        # rb2: (288,128)=[conv1|1x1 ds], (576,64) bf16
    wd1_ref, bd1_ref,                        # dec1: (576,128) bf16 (4 phases), (1,128) f32
    wd2_ref, bd2_ref,                        # dec2: (288,64)  bf16 (4 phases), (1,64)  f32
    wd3_ref, bd3_ref,                        # dec3: (144,1)   bf16,            (1,1)   f32
    o_ref,                                   # (NB*L0, 1) f32
    s_p0, s_r1a, s_p1, s_r2a, s_h2, s_d1, s_d2, tmp0, tmp1,
    *, H, W, NB,
):
    f32, bf16 = jnp.float32, jnp.bfloat16
    H2, W2, H4, W4 = H // 2, W // 2, H // 4, W // 4
    wp0, wp1, wp2 = _rup(W + 2, 8), _rup(W2 + 2, 8), _rup(W4 + 2, 8)
    R0p = x_ref.shape[0] // NB
    R0, R1, R2 = (H + 2) * wp0 + 2, (H2 + 2) * wp1 + 2, (H4 + 2) * wp2 + 2
    L0, L1, L2 = H * wp0, H2 * wp1, H4 * wp2

    def tapcat(src, stride, h, wp):
        """(NB*h*wp, 9*Cin) bf16 LHS: the nine shifted 3x3 tap slices of every image
        in the block, concatenated along K (one MXU matmul per conv)."""
        L = h * wp
        imgs = []
        for b in range(NB):
            base = b * stride
            parts = [
                src[pl.ds(base + 1 + (dy + 1) * wp + dx, L), :].astype(bf16)
                for dy in (-1, 0, 1) for dx in (-1, 0, 1)
            ]
            imgs.append(jnp.concatenate(parts, axis=1))
        return jnp.concatenate(imgs, axis=0) if NB > 1 else imgs[0]

    def interior_mask(wp, w, L):
        col = jax.lax.broadcasted_iota(jnp.int32, (NB * L, 1), 0) % wp
        return jnp.logical_and(col >= 1, col <= w)

    def store_interior(dst, stride, val, h, wp):
        """Store one full-pitch interior block per image (wrap cols already zeroed)."""
        L = h * wp
        for b in range(NB):
            dst[pl.ds(b * stride + wp + 1, L), :] = val[b * L:(b + 1) * L, :]

    def zero_halo(dst, stride, h, wp):
        """Zero only the top/bottom padding strips (interior rows incl. wrap columns
        are fully rewritten by store_interior every step)."""
        z = jnp.zeros((wp + 1, dst.shape[-1]), dst.dtype)
        for b in range(NB):
            dst[pl.ds(b * stride, wp + 1), :] = z
            dst[pl.ds(b * stride + (h + 1) * wp + 1, wp + 1), :] = z

    def maxpool(val, tmp, tstride, dst, dstride, h, wp, w, wpo):
        """2x2/2 max pool of the conv output value `val`; result written into the
        interior of the next level's padded buffer `dst`."""
        L, Lv = h * wp, (h - 1) * wp
        ho, wo = h // 2, w // 2
        for b in range(NB):                                   # vertical max, full plane
            vb = val[b * L:(b + 1) * L, :]
            tmp[pl.ds(b * tstride, Lv), :] = jnp.maximum(vb[:Lv, :], vb[wp:, :])
        for b in range(NB):                                   # horizontal strided max
            tb, db = b * tstride, b * dstride
            for yo in range(ho):
                a = tmp[pl.ds(tb + 2 * yo * wp + 1, wo, stride=2), :]
                c = tmp[pl.ds(tb + 2 * yo * wp + 2, wo, stride=2), :]
                dst[pl.ds(db + (yo + 1) * wpo + 2, wo), :] = jnp.maximum(a, c)

    def deconv(src, sstride, w_ref, b_ref, h, wp, w, dst, dstride, wpo, cout):
        """ConvTranspose2d(k=4, s=2, p=1) + ReLU: a single matmul computes all four
        sub-pixel phases; phases are scattered into the 2x-resolution padded buffer."""
        res = jnp.dot(tapcat(src, sstride, h, wp), w_ref[...],
                      preferred_element_type=f32)
        res = jnp.maximum(res + b_ref[...], 0.0)
        L = h * wp
        for b in range(NB):
            for pidx, (py, px) in enumerate(((0, 0), (0, 1), (1, 0), (1, 1))):
                ph = res[b * L:(b + 1) * L, pidx * cout:(pidx + 1) * cout]
                for y in range(h):
                    dst[pl.ds(b * dstride + (2 * y + py + 1) * wpo + px + 2, w,
                              stride=2), :] = ph[y * wp + 1: y * wp + 1 + w, :]

    # --- zero only padding cells that are not rewritten this step (megacore safe) ---
    s_p0[...] = jnp.zeros(s_p0.shape, f32)
    s_p1[...] = jnp.zeros(s_p1.shape, f32)
    s_d1[...] = jnp.zeros(s_d1.shape, f32)
    s_d2[...] = jnp.zeros(s_d2.shape, f32)
    zero_halo(s_r1a, R1, H2, wp1)
    zero_halo(s_r2a, R2, H4, wp2)
    zero_halo(s_h2, R2, H4, wp2)

    # --- initial: conv3x3(3->16) + bias + ReLU, maxpool 2x2 --------------------------
    h0 = jnp.maximum(
        jnp.dot(tapcat(x_ref, R0p, H, wp0), w0_ref[...],
                preferred_element_type=f32) + b0_ref[...], 0.0)
    maxpool(h0, tmp0, (H - 1) * wp0, s_p0, R1, H, wp0, W, wp1)

    # --- res_block1 (16 -> 32): conv1 and 1x1 downsample fused in one matmul ---------
    m1 = interior_mask(wp1, W2, L1)
    r = jnp.dot(tapcat(s_p0, R1, H2, wp1), w1a_ref[...], preferred_element_type=f32)
    h1a = jnp.where(m1, jnp.maximum(r[:, :32], 0.0), 0.0)
    ds1 = r[:, 32:]
    store_interior(s_r1a, R1, h1a, H2, wp1)
    h1 = jnp.maximum(
        jnp.dot(tapcat(s_r1a, R1, H2, wp1), w1b_ref[...],
                preferred_element_type=f32) + ds1, 0.0)
    maxpool(h1, tmp1, (H2 - 1) * wp1, s_p1, R2, H2, wp1, W2, wp2)

    # --- res_block2 (32 -> 64) --------------------------------------------------------
    m2 = interior_mask(wp2, W4, L2)
    r = jnp.dot(tapcat(s_p1, R2, H4, wp2), w2a_ref[...], preferred_element_type=f32)
    h2a = jnp.where(m2, jnp.maximum(r[:, :64], 0.0), 0.0)
    ds2 = r[:, 64:]
    store_interior(s_r2a, R2, h2a, H4, wp2)
    h2 = jnp.maximum(
        jnp.dot(tapcat(s_r2a, R2, H4, wp2), w2b_ref[...],
                preferred_element_type=f32) + ds2, 0.0)
    store_interior(s_h2, R2, jnp.where(m2, h2, 0.0), H4, wp2)

    # --- decoder ------------------------------------------------------------------------
    deconv(s_h2, R2, wd1_ref, bd1_ref, H4, wp2, W4, s_d1, R1, wp1, 32)   # 4x4 -> 8x8
    deconv(s_d1, R1, wd2_ref, bd2_ref, H2, wp1, W2, s_d2, R0, wp0, 16)   # 8x8 -> 16x16
    o_ref[...] = jnp.dot(tapcat(s_d2, R0, H, wp0), wd3_ref[...],
                         preferred_element_type=f32) + bd3_ref[...]


# ---------------------------------------------------------------------------
# Trace-time weight preparation (BN-scale folding, tap concatenation, bf16 cast)
# ---------------------------------------------------------------------------

def _conv_cat(w_oihw, scale=None):
    """Conv2d OIHW -> tap-concatenated matmul weight (kh*kw*Cin, Cout)."""
    co, ci, kh, kw = w_oihw.shape
    if scale is not None:
        w_oihw = w_oihw * scale[:, None, None, None]
    mats = [w_oihw[:, :, ky, kx].T for ky in range(kh) for kx in range(kw)]
    return jnp.concatenate(mats, axis=0)


def _resblock_w1_cat(w3, w1, scale):
    """Fuse the 3x3 conv1 and the 1x1 downsample (same center-tap LHS slice)
    along Cout: (9*Cin, 2*Cout) bf16."""
    cout, cin = w3.shape[0], w3.shape[1]
    ds = jnp.zeros((9 * cin, cout), jnp.float32)
    ds = ds.at[4 * cin:5 * cin, :].set((w1[:, :, 0, 0] * scale[:, None]).T)
    return jnp.concatenate([_conv_cat(w3, scale), ds], axis=1).astype(jnp.bfloat16)


def _convT_s1_cat(w_ct):
    """ConvTranspose2d (Cin,Cout,3,3), stride 1, pad 1 == flipped-kernel conv."""
    k = w_ct.shape[-1]
    mats = [w_ct[:, :, k - 1 - ky, k - 1 - kx] for ky in range(k) for kx in range(k)]
    return jnp.concatenate(mats, axis=0).astype(jnp.bfloat16)


def _convT_s2_cat(w_ct):
    """ConvTranspose2d (Cin,Cout,4,4), stride 2, pad 1: all four sub-pixel output
    phases as extra output columns of one (9*Cin, 4*Cout) matmul weight."""
    cin, cout = w_ct.shape[0], w_ct.shape[1]
    wmat = jnp.zeros((9 * cin, 4 * cout), jnp.float32)
    for pidx, (py, px) in enumerate(((0, 0), (0, 1), (1, 0), (1, 1))):
        for ty in range(2):
            for tx in range(2):
                s = (py + ty) * 3 + (px + tx)
                tap = w_ct[:, :, 3 - (py + 2 * ty), 3 - (px + 2 * tx)]
                wmat = wmat.at[s * cin:(s + 1) * cin,
                               pidx * cout:(pidx + 1) * cout].set(tap)
    return wmat.astype(jnp.bfloat16)


# ---------------------------------------------------------------------------
# Parameters (deterministic, PyTorch-like fan-in uniform init)
# ---------------------------------------------------------------------------

def _uniform(key, shape, fan_in):
    bound = 1.0 / jnp.sqrt(jnp.float32(fan_in))
    return jax.random.uniform(key, shape, jnp.float32, -bound, bound)


def init_params(key):
    ks = jax.random.split(key, 16)
    p = {}
    p["init_w"] = _uniform(ks[0], (16, 3, 3, 3), 3 * 9)
    p["init_b"] = _uniform(ks[1], (16,), 3 * 9)
    p["rb1_w1"] = _uniform(ks[2], (32, 16, 3, 3), 16 * 9)
    p["rb1_w2"] = _uniform(ks[3], (32, 32, 3, 3), 32 * 9)
    p["rb1_wd"] = _uniform(ks[4], (32, 16, 1, 1), 16)
    p["rb2_w1"] = _uniform(ks[5], (64, 32, 3, 3), 32 * 9)
    p["rb2_w2"] = _uniform(ks[6], (64, 64, 3, 3), 64 * 9)
    p["rb2_wd"] = _uniform(ks[7], (64, 32, 1, 1), 32)
    p["dec_w1"] = _uniform(ks[8], (64, 32, 4, 4), 64 * 16)
    p["dec_b1"] = _uniform(ks[9], (32,), 64 * 16)
    p["dec_w2"] = _uniform(ks[10], (32, 16, 4, 4), 32 * 16)
    p["dec_b2"] = _uniform(ks[11], (16,), 32 * 16)
    p["dec_w3"] = _uniform(ks[12], (16, 1, 3, 3), 16 * 9)
    p["dec_b3"] = _uniform(ks[13], (1,), 16 * 9)
    return p


# ---------------------------------------------------------------------------
# Forward pass
# ---------------------------------------------------------------------------

def _pick_block_n(n):
    for nb in (4, 2, 1):
        if n % nb == 0 and n // nb >= 2:
            return nb
    return 1


@jax.jit
def resnet_forward(x_nchw, params):
    p = params
    N, C, H, W = x_nchw.shape
    assert C == 3 and H % 4 == 0 and W % 4 == 0, "expects NCHW, C=3, H%4==0, W%4==0"
    NB = _pick_block_n(N)

    H2, W2, H4, W4 = H // 2, W // 2, H // 4, W // 4
    wp0, wp1, wp2 = _rup(W + 2, 8), _rup(W2 + 2, 8), _rup(W4 + 2, 8)
    R0, R1, R2 = (H + 2) * wp0 + 2, (H2 + 2) * wp1 + 2, (H4 + 2) * wp2 + 2
    R0p = _rup(R0, 8)
    L0 = H * wp0

    # NCHW -> zero-padded, 8-aligned-pitch, flattened wide layout (N*R0p, 8)
    x = jnp.transpose(x_nchw, (0, 2, 3, 1)).astype(jnp.float32)
    x = jnp.pad(x, ((0, 0), (1, 1), (1, wp0 - W - 1), (0, 5)))        # pad C 3 -> 8
    x = x.reshape(N, (H + 2) * wp0, 8)
    x = jnp.pad(x, ((0, 0), (1, R0p - (H + 2) * wp0 - 1), (0, 0)))
    xw = x.reshape(N * R0p, 8)

    s32 = jnp.full((32,), BN_SCALE, jnp.float32)
    s64 = jnp.full((64,), BN_SCALE, jnp.float32)

    w0 = _conv_cat(jnp.pad(p["init_w"], ((0, 0), (0, 5), (0, 0), (0, 0)))
                   ).astype(jnp.bfloat16)                              # (72, 16)
    b0 = p["init_b"].reshape(1, 16)
    w1a = _resblock_w1_cat(p["rb1_w1"], p["rb1_wd"], s32)              # (144, 64)
    w1b = _conv_cat(p["rb1_w2"], s32).astype(jnp.bfloat16)             # (288, 32)
    w2a = _resblock_w1_cat(p["rb2_w1"], p["rb2_wd"], s64)              # (288, 128)
    w2b = _conv_cat(p["rb2_w2"], s64).astype(jnp.bfloat16)             # (576, 64)
    wd1 = _convT_s2_cat(p["dec_w1"])                                    # (576, 128)
    bd1 = jnp.tile(p["dec_b1"], 4).reshape(1, 128)
    wd2 = _convT_s2_cat(p["dec_w2"])                                    # (288, 64)
    bd2 = jnp.tile(p["dec_b2"], 4).reshape(1, 64)
    wd3 = _convT_s1_cat(p["dec_w3"])                                    # (144, 1)
    bd3 = p["dec_b3"].reshape(1, 1)

    operands = (xw, w0, b0, w1a, w1b, w2a, w2b, wd1, bd1, wd2, bd2, wd3, bd3)

    in_specs = [pl.BlockSpec((NB * R0p, 8), lambda n: (n, 0))]
    in_specs += [pl.BlockSpec(op.shape, lambda n: (0, 0)) for op in operands[1:]]
    out_specs = pl.BlockSpec((NB * L0, 1), lambda n: (n, 0))

    scratch = [
        pltpu.VMEM((NB * R1, 16), jnp.float32),              # s_p0
        pltpu.VMEM((NB * R1, 32), jnp.float32),              # s_r1a
        pltpu.VMEM((NB * R2, 32), jnp.float32),              # s_p1
        pltpu.VMEM((NB * R2, 64), jnp.float32),              # s_r2a
        pltpu.VMEM((NB * R2, 64), jnp.float32),              # s_h2
        pltpu.VMEM((NB * R1, 32), jnp.float32),              # s_d1
        pltpu.VMEM((NB * R0, 16), jnp.float32),              # s_d2
        pltpu.VMEM((NB * (H - 1) * wp0, 16), jnp.float32),   # tmp0 (pool-1 vertical max)
        pltpu.VMEM((NB * (H2 - 1) * wp1, 32), jnp.float32),  # tmp1 (pool-2 vertical max)
    ]

    out_wide = pl.pallas_call(
        partial(_fused_resnet_kernel, H=H, W=W, NB=NB),
        out_shape=jax.ShapeDtypeStruct((N * L0, 1), jnp.float32),
        grid_spec=pltpu.PrefetchScalarGridSpec(
            num_scalar_prefetch=0,
            grid=(N // NB,),
            in_specs=in_specs,
            out_specs=out_specs,
            scratch_shapes=scratch,
        ),
        compiler_params=pltpu.CompilerParams(
            dimension_semantics=("parallel",)),
    )(*operands)

    out = out_wide.reshape(N, H, wp0)[:, :, 1:W + 1]   # strip wide-grid pad columns
    return out[:, None, :, :]                          # (N, 1, H, W)


# ---------------------------------------------------------------------------
# Pure-JAX golden reference (same eval-mode BN folding as the kernel)
# ---------------------------------------------------------------------------

def resnet_reference(x_nchw, params):
    f32 = jnp.float32
    hi = jax.lax.Precision.HIGHEST

    def q(w):                                   # mimic the kernel's bf16 weight rounding
        return w.astype(jnp.bfloat16).astype(f32)

    def conv(x, w, b=None, pad=1):
        y = jax.lax.conv_general_dilated(
            x, q(w), (1, 1), [(pad, pad)] * 2,
            dimension_numbers=("NCHW", "OIHW", "NCHW"), precision=hi)
        return y if b is None else y + b[None, :, None, None]

    def convT(x, w_pt, b, k, stride, pad):
        w = jnp.transpose(w_pt, (1, 0, 2, 3))[:, :, ::-1, ::-1]
        y = jax.lax.conv_general_dilated(
            x, q(w), (1, 1), [(k - 1 - pad,) * 2] * 2, lhs_dilation=(stride, stride),
            dimension_numbers=("NCHW", "OIHW", "NCHW"), precision=hi)
        return y + b[None, :, None, None]

    def pool(x):
        return jax.lax.reduce_window(x, -jnp.inf, jax.lax.max,
                                     (1, 1, 2, 2), (1, 1, 2, 2), "VALID")

    relu = lambda t: jnp.maximum(t, 0.0)
    bn = lambda t: t * BN_SCALE
    p = params

    x = x_nchw.astype(jnp.bfloat16).astype(f32)
    h = pool(relu(conv(x, p["init_w"], p["init_b"])))
    r = bn(conv(h, p["rb1_wd"], pad=0))
    h = relu(bn(conv(relu(bn(conv(h, p["rb1_w1"]))), p["rb1_w2"])) + r)
    h = pool(h)
    r = bn(conv(h, p["rb2_wd"], pad=0))
    h = relu(bn(conv(relu(bn(conv(h, p["rb2_w1"]))), p["rb2_w2"])) + r)
    h = relu(convT(h, p["dec_w1"], p["dec_b1"], 4, 2, 1))
    h = relu(convT(h, p["dec_w2"], p["dec_b2"], 4, 2, 1))
    return convT(h, p["dec_w3"], p["dec_b3"], 3, 1, 1)


if __name__ == "__main__":
    key = jax.random.PRNGKey(0)
    pkey, xkey = jax.random.split(key)
    params = init_params(pkey)
    x = jax.random.normal(xkey, (2, 3, 16, 16), jnp.float32)  # NCHW input

    out = jax.block_until_ready(resnet_forward(x, params))

    assert out.shape == (2, 1, 16, 16), out.shape
    assert out.dtype == jnp.float32
    assert bool(jnp.all(jnp.isfinite(out)))

    ref = resnet_reference(x, params)
    err = float(jnp.max(jnp.abs(out - ref)))
    assert err < 2e-2, f"max |kernel - reference| = {err}"

    print("KERNEL_OK")
</pallas_src>

<mosaic_0001>
module attributes {stable_mosaic.version = 11 : i64} {
  func.func @_fused_resnet_kernel(%arg0: i32, %arg1: memref<440x8xf32, #tpu.memory_space<vmem>>, %arg2: memref<72x16xbf16, #tpu.memory_space<vmem>>, %arg3: memref<1x16xf32, #tpu.memory_space<vmem>>, %arg4: memref<144x64xbf16, #tpu.memory_space<vmem>>, %arg5: memref<288x32xbf16, #tpu.memory_space<vmem>>, %arg6: memref<288x128xbf16, #tpu.memory_space<vmem>>, %arg7: memref<576x64xbf16, #tpu.memory_space<vmem>>, %arg8: memref<576x128xbf16, #tpu.memory_space<vmem>>, %arg9: memref<1x128xf32, #tpu.memory_space<vmem>>, %arg10: memref<288x64xbf16, #tpu.memory_space<vmem>>, %arg11: memref<1x64xf32, #tpu.memory_space<vmem>>, %arg12: memref<144x1xbf16, #tpu.memory_space<vmem>>, %arg13: memref<1x1xf32, #tpu.memory_space<vmem>>, %arg14: memref<384x1xf32, #tpu.memory_space<vmem>>, %arg15: memref<162x16xf32, #tpu.memory_space<vmem>>, %arg16: memref<162x32xf32, #tpu.memory_space<vmem>>, %arg17: memref<50x32xf32, #tpu.memory_space<vmem>>, %arg18: memref<50x64xf32, #tpu.memory_space<vmem>>, %arg19: memref<50x64xf32, #tpu.memory_space<vmem>>, %arg20: memref<162x32xf32, #tpu.memory_space<vmem>>, %arg21: memref<434x16xf32, #tpu.memory_space<vmem>>, %arg22: memref<360x16xf32, #tpu.memory_space<vmem>>, %arg23: memref<112x32xf32, #tpu.memory_space<vmem>>) attributes {dimension_semantics = [#tpu.dimension_semantics<parallel>], iteration_bounds = array<i64: 2>, scalar_prefetch = 0 : i64, scratch_operands = 9 : i64, tpu.core_type = #tpu.core_type<tc>, window_params = [{transform_indices = @transform_0, window_bounds = array<i64: 440, 8>}, {pipeline_mode = #tpu.pipeline_mode<synchronous>, transform_indices = @transform_1, window_bounds = array<i64: 72, 16>}, {pipeline_mode = #tpu.pipeline_mode<synchronous>, transform_indices = @transform_2, window_bounds = array<i64: 1, 16>}, {pipeline_mode = #tpu.pipeline_mode<synchronous>, transform_indices = @transform_3, window_bounds = array<i64: 144, 64>}, {pipeline_mode = #tpu.pipeline_mode<synchronous>, transform_indices = @transform_4, window_bounds = array<i64: 288, 32>}, {pipeline_mode = #tpu.pipeline_mode<synchronous>, transform_indices = @transform_5, window_bounds = array<i64: 288, 128>}, {pipeline_mode = #tpu.pipeline_mode<synchronous>, transform_indices = @transform_6, window_bounds = array<i64: 576, 64>}, {pipeline_mode = #tpu.pipeline_mode<synchronous>, transform_indices = @transform_7, window_bounds = array<i64: 576, 128>}, {pipeline_mode = #tpu.pipeline_mode<synchronous>, transform_indices = @transform_8, window_bounds = array<i64: 1, 128>}, {pipeline_mode = #tpu.pipeline_mode<synchronous>, transform_indices = @transform_9, window_bounds = array<i64: 288, 64>}, {pipeline_mode = #tpu.pipeline_mode<synchronous>, transform_indices = @transform_10, window_bounds = array<i64: 1, 64>}, {pipeline_mode = #tpu.pipeline_mode<synchronous>, transform_indices = @transform_11, window_bounds = array<i64: 144, 1>}, {pipeline_mode = #tpu.pipeline_mode<synchronous>, transform_indices = @transform_12, window_bounds = array<i64: 1, 1>}, {transform_indices = @transform_13, window_bounds = array<i64: 384, 1>}]} {
    %cst = arith.constant 0.000000e+00 : f32
    %0 = vector.broadcast %cst : f32 to vector<162x16xf32>
    %c0 = arith.constant 0 : index
    %c0_0 = arith.constant 0 : index
    %1 = vector.load %arg15[%c0, %c0_0] : memref<162x16xf32, #tpu.memory_space<vmem>>, vector<162x16xf32>
    tpu.vector_store %arg15[%c0, %c0_0], %0 {strides = array<i32>} : memref<162x16xf32, #tpu.memory_space<vmem>>, vector<162x16xf32>,
    %cst_1 = arith.constant 0.000000e+00 : f32
    %2 = vector.broadcast %cst_1 : f32 to vector<50x32xf32>
    %c0_2 = arith.constant 0 : index
    %c0_3 = arith.constant 0 : index
    %3 = vector.load %arg17[%c0_2, %c0_3] : memref<50x32xf32, #tpu.memory_space<vmem>>, vector<50x32xf32>
    tpu.vector_store %arg17[%c0_2, %c0_3], %2 {strides = array<i32>} : memref<50x32xf32, #tpu.memory_space<vmem>>, vector<50x32xf32>,
    %cst_4 = arith.constant 0.000000e+00 : f32
    %4 = vector.broadcast %cst_4 : f32 to vector<162x32xf32>
    %c0_5 = arith.constant 0 : index
    %c0_6 = arith.constant 0 : index
    %5 = vector.load %arg20[%c0_5, %c0_6] : memref<162x32xf32, #tpu.memory_space<vmem>>, vector<162x32xf32>
    tpu.vector_store %arg20[%c0_5, %c0_6], %4 {strides = array<i32>} : memref<162x32xf32, #tpu.memory_space<vmem>>, vector<162x32xf32>,
    %cst_7 = arith.constant 0.000000e+00 : f32
    %6 = vector.broadcast %cst_7 : f32 to vector<434x16xf32>
    %c0_8 = arith.constant 0 : index
    %c0_9 = arith.constant 0 : index
    %7 = vector.load %arg21[%c0_8, %c0_9] : memref<434x16xf32, #tpu.memory_space<vmem>>, vector<434x16xf32>
    tpu.vector_store %arg21[%c0_8, %c0_9], %6 {strides = array<i32>} : memref<434x16xf32, #tpu.memory_space<vmem>>, vector<434x16xf32>,
    %cst_10 = arith.constant 0.000000e+00 : f32
    %8 = vector.broadcast %cst_10 : f32 to vector<17x32xf32>
    %c0_11 = arith.constant 0 : index
    %c0_12 = arith.constant 0 : index
    %9 = vector.load %arg16[%c0_11, %c0_12] : memref<162x32xf32, #tpu.memory_space<vmem>>, vector<17x32xf32>
    tpu.vector_store %arg16[%c0_11, %c0_12], %8 {strides = array<i32>} : memref<162x32xf32, #tpu.memory_space<vmem>>, vector<17x32xf32>,
    %c145 = arith.constant 145 : index
    %c0_13 = arith.constant 0 : index
    %10 = vector.load %arg16[%c145, %c0_13] : memref<162x32xf32, #tpu.memory_space<vmem>>, vector<17x32xf32>
    tpu.vector_store %arg16[%c145, %c0_13], %8 {strides = array<i32>} : memref<162x32xf32, #tpu.memory_space<vmem>>, vector<17x32xf32>,
    %cst_14 = arith.constant 0.000000e+00 : f32
    %11 = vector.broadcast %cst_14 : f32 to vector<9x64xf32>
    %c0_15 = arith.constant 0 : index
    %c0_16 = arith.constant 0 : index
    %12 = vector.load %arg18[%c0_15, %c0_16] : memref<50x64xf32, #tpu.memory_space<vmem>>, vector<9x64xf32>
    tpu.vector_store %arg18[%c0_15, %c0_16], %11 {strides = array<i32>} : memref<50x64xf32, #tpu.memory_space<vmem>>, vector<9x64xf32>,
    %c41 = arith.constant 41 : index
    %c0_17 = arith.constant 0 : index
    %13 = vector.load %arg18[%c41, %c0_17] : memref<50x64xf32, #tpu.memory_space<vmem>>, vector<9x64xf32>
    tpu.vector_store %arg18[%c41, %c0_17], %11 {strides = array<i32>} : memref<50x64xf32, #tpu.memory_space<vmem>>, vector<9x64xf32>,
    %cst_18 = arith.constant 0.000000e+00 : f32
    %14 = vector.broadcast %cst_18 : f32 to vector<9x64xf32>
    %c0_19 = arith.constant 0 : index
    %c0_20 = arith.constant 0 : index
    %15 = vector.load %arg19[%c0_19, %c0_20] : memref<50x64xf32, #tpu.memory_space<vmem>>, vector<9x64xf32>
    tpu.vector_store %arg19[%c0_19, %c0_20], %14 {strides = array<i32>} : memref<50x64xf32, #tpu.memory_space<vmem>>, vector<9x64xf32>,
    %c41_21 = arith.constant 41 : index
    %c0_22 = arith.constant 0 : index
    %16 = vector.load %arg19[%c41_21, %c0_22] : memref<50x64xf32, #tpu.memory_space<vmem>>, vector<9x64xf32>
    tpu.vector_store %arg19[%c41_21, %c0_22], %14 {strides = array<i32>} : memref<50x64xf32, #tpu.memory_space<vmem>>, vector<9x64xf32>,
    %c0_23 = arith.constant 0 : index
    %c0_24 = arith.constant 0 : index
    %17 = vector.load %arg1[%c0_23, %c0_24] : memref<440x8xf32, #tpu.memory_space<vmem>>, vector<384x8xf32>
    %18 = arith.truncf %17 : vector<384x8xf32> to vector<384x8xbf16>
    %c1 = arith.constant 1 : index
    %c0_25 = arith.constant 0 : index
    %19 = vector.load %arg1[%c1, %c0_25] : memref<440x8xf32, #tpu.memory_space<vmem>>, vector<384x8xf32>
    %20 = arith.truncf %19 : vector<384x8xf32> to vector<384x8xbf16>
    %c2 = arith.constant 2 : index
    %c0_26 = arith.constant 0 : index
    %21 = vector.load %arg1[%c2, %c0_26] : memref<440x8xf32, #tpu.memory_space<vmem>>, vector<384x8xf32>
    %22 = arith.truncf %21 : vector<384x8xf32> to vector<384x8xbf16>
    %c24 = arith.constant 24 : index
    %c0_27 = arith.constant 0 : index
    %23 = vector.load %arg1[%c24, %c0_27] : memref<440x8xf32, #tpu.memory_space<vmem>>, vector<384x8xf32>
    %24 = arith.truncf %23 : vector<384x8xf32> to vector<384x8xbf16>
    %c25 = arith.constant 25 : index
    %c0_28 = arith.constant 0 : index
    %25 = vector.load %arg1[%c25, %c0_28] : memref<440x8xf32, #tpu.memory_space<vmem>>, vector<384x8xf32>
    %26 = arith.truncf %25 : vector<384x8xf32> to vector<384x8xbf16>
    %c26 = arith.constant 26 : index
    %c0_29 = arith.constant 0 : index
    %27 = vector.load %arg1[%c26, %c0_29] : memref<440x8xf32, #tpu.memory_space<vmem>>, vector<384x8xf32>
    %28 = arith.truncf %27 : vector<384x8xf32> to vector<384x8xbf16>
    %c48 = arith.constant 48 : index
    %c0_30 = arith.constant 0 : index
    %29 = vector.load %arg1[%c48, %c0_30] : memref<440x8xf32, #tpu.memory_space<vmem>>, vector<384x8xf32>
    %30 = arith.truncf %29 : vector<384x8xf32> to vector<384x8xbf16>
    %c49 = arith.constant 49 : index
    %c0_31 = arith.constant 0 : index
    %31 = vector.load %arg1[%c49, %c0_31] : memref<440x8xf32, #tpu.memory_space<vmem>>, vector<384x8xf32>
    %32 = arith.truncf %31 : vector<384x8xf32> to vector<384x8xbf16>
    %c50 = arith.constant 50 : index
    %c0_32 = arith.constant 0 : index
    %33 = vector.load %arg1[%c50, %c0_32] : memref<440x8xf32, #tpu.memory_space<vmem>>, vector<384x8xf32>
    %34 = arith.truncf %33 : vector<384x8xf32> to vector<384x8xbf16>
    %35 = tpu.concatenate %18, %20, %22, %24, %26, %28, %30, %32, %34 in 1 : vector<384x8xbf16>, vector<384x8xbf16>, vector<384x8xbf16>, vector<384x8xbf16>, vector<384x8xbf16>, vector<384x8xbf16>, vector<384x8xbf16>, vector<384x8xbf16>, vector<384x8xbf16> -> vector<384x72xbf16>
    %c0_33 = arith.constant 0 : index
    %c0_34 = arith.constant 0 : index
    %36 = vector.load %arg2[%c0_33, %c0_34] : memref<72x16xbf16, #tpu.memory_space<vmem>>, vector<72x16xbf16>
    %cst_35 = arith.constant dense<0.000000e+00> : vector<384x16xf32>
    %37 = tpu.matmul %35, %36, %cst_35 {dimension_numbers = #tpu.dot_dimension_numbers<[1], [0], [0], [1], [0, 0, 1, 1], [], []>} : vector<384x72xbf16>, vector<72x16xbf16>, vector<384x16xf32> -> vector<384x16xf32>
    %c0_36 = arith.constant 0 : index
    %c0_37 = arith.constant 0 : index
    %38 = vector.load %arg3[%c0_36, %c0_37] : memref<1x16xf32, #tpu.memory_space<vmem>>, vector<1x16xf32>
    %39 = vector.broadcast %38 : vector<1x16xf32> to vector<384x16xf32>
    %40 = arith.addf %37, %39 : vector<384x16xf32>
    %cst_38 = arith.constant 0.000000e+00 : f32
    %41 = vector.broadcast %cst_38 : f32 to vector<384x16xf32>
    %42 = arith.maximumf %40, %41 : vector<384x16xf32>
    %43 = vector.extract_strided_slice %42 {offsets = [0, 0], sizes = [360, 16], strides = [1, 1]} : vector<384x16xf32> to vector<360x16xf32>
    %44 = vector.extract_strided_slice %42 {offsets = [24, 0], sizes = [360, 16], strides = [1, 1]} : vector<384x16xf32> to vector<360x16xf32>
    %45 = arith.maximumf %43, %44 : vector<360x16xf32>
    %c0_39 = arith.constant 0 : index
    %c0_40 = arith.constant 0 : index
    %46 = vector.load %arg22[%c0_39, %c0_40] : memref<360x16xf32, #tpu.memory_space<vmem>>, vector<360x16xf32>
    tpu.vector_store %arg22[%c0_39, %c0_40], %45 {strides = array<i32>} : memref<360x16xf32, #tpu.memory_space<vmem>>, vector<360x16xf32>,
    %c1_41 = arith.constant 1 : index
    %c0_42 = arith.constant 0 : index
    %47 = tpu.strided_load %arg22[%c1_41, %c0_42] {strides = array<i32: 2, 1>} : memref<360x16xf32, #tpu.memory_space<vmem>>, vector<8x16xf32>
    %c2_43 = arith.constant 2 : index
    %c0_44 = arith.constant 0 : index
    %48 = tpu.strided_load %arg22[%c2_43, %c0_44] {strides = array<i32: 2, 1>} : memref<360x16xf32, #tpu.memory_space<vmem>>, vector<8x16xf32>
    %49 = arith.maximumf %47, %48 : vector<8x16xf32>
    %c18 = arith.constant 18 : index
    %c0_45 = arith.constant 0 : index
    %50 = vector.load %arg15[%c18, %c0_45] : memref<162x16xf32, #tpu.memory_space<vmem>>, vector<8x16xf32>
    tpu.vector_store %arg15[%c18, %c0_45], %49 {strides = array<i32>} : memref<162x16xf32, #tpu.memory_space<vmem>>, vector<8x16xf32>,
    %c49_46 = arith.constant 49 : index
    %c0_47 = arith.constant 0 : index
    %51 = tpu.strided_load %arg22[%c49_46, %c0_47] {strides = array<i32: 2, 1>} : memref<360x16xf32, #tpu.memory_space<vmem>>, vector<8x16xf32>
    %c50_48 = arith.constant 50 : index
    %c0_49 = arith.constant 0 : index
    %52 = tpu.strided_load %arg22[%c50_48, %c0_49] {strides = array<i32: 2, 1>} : memref<360x16xf32, #tpu.memory_space<vmem>>, vector<8x16xf32>
    %53 = arith.maximumf %51, %52 : vector<8x16xf32>
    %c34 = arith.constant 34 : index
    %c0_50 = arith.constant 0 : index
    %54 = vector.load %arg15[%c34, %c0_50] : memref<162x16xf32, #tpu.memory_space<vmem>>, vector<8x16xf32>
    tpu.vector_store %arg15[%c34, %c0_50], %53 {strides = array<i32>} : memref<162x16xf32, #tpu.memory_space<vmem>>, vector<8x16xf32>,
    %c97 = arith.constant 97 : index
    %c0_51 = arith.constant 0 : index
    %55 = tpu.strided_load %arg22[%c97, %c0_51] {strides = array<i32: 2, 1>} : memref<360x16xf32, #tpu.memory_space<vmem>>, vector<8x16xf32>
    %c98 = arith.constant 98 : index
    %c0_52 = arith.constant 0 : index
    %56 = tpu.strided_load %arg22[%c98, %c0_52] {strides = array<i32: 2, 1>} : memref<360x16xf32, #tpu.memory_space<vmem>>, vector<8x16xf32>
    %57 = arith.maximumf %55, %56 : vector<8x16xf32>
    %c50_53 = arith.constant 50 : index
    %c0_54 = arith.constant 0 : index
    %58 = vector.load %arg15[%c50_53, %c0_54] : memref<162x16xf32, #tpu.memory_space<vmem>>, vector<8x16xf32>
    tpu.vector_store %arg15[%c50_53, %c0_54], %57 {strides = array<i32>} : memref<162x16xf32, #tpu.memory_space<vmem>>, vector<8x16xf32>,
    %c145_55 = arith.constant 145 : index
    %c0_56 = arith.constant 0 : index
    %59 = tpu.strided_load %arg22[%c145_55, %c0_56] {strides = array<i32: 2, 1>} : memref<360x16xf32, #tpu.memory_space<vmem>>, vector<8x16xf32>
    %c146 = arith.constant 146 : index
    %c0_57 = arith.constant 0 : index
    %60 = tpu.strided_load %arg22[%c146, %c0_57] {strides = array<i32: 2, 1>} : memref<360x16xf32, #tpu.memory_space<vmem>>, vector<8x16xf32>
    %61 = arith.maximumf %59, %60 : vector<8x16xf32>
    %c66 = arith.constant 66 : index
    %c0_58 = arith.constant 0 : index
    %62 = vector.load %arg15[%c66, %c0_58] : memref<162x16xf32, #tpu.memory_space<vmem>>, vector<8x16xf32>
    tpu.vector_store %arg15[%c66, %c0_58], %61 {strides = array<i32>} : memref<162x16xf32, #tpu.memory_space<vmem>>, vector<8x16xf32>,
    %c193 = arith.constant 193 : index
    %c0_59 = arith.constant 0 : index
    %63 = tpu.strided_load %arg22[%c193, %c0_59] {strides = array<i32: 2, 1>} : memref<360x16xf32, #tpu.memory_space<vmem>>, vector<8x16xf32>
    %c194 = arith.constant 194 : index
    %c0_60 = arith.constant 0 : index
    %64 = tpu.strided_load %arg22[%c194, %c0_60] {strides = array<i32: 2, 1>} : memref<360x16xf32, #tpu.memory_space<vmem>>, vector<8x16xf32>
    %65 = arith.maximumf %63, %64 : vector<8x16xf32>
    %c82 = arith.constant 82 : index
    %c0_61 = arith.constant 0 : index
    %66 = vector.load %arg15[%c82, %c0_61] : memref<162x16xf32, #tpu.memory_space<vmem>>, vector<8x16xf32>
    tpu.vector_store %arg15[%c82, %c0_61], %65 {strides = array<i32>} : memref<162x16xf32, #tpu.memory_space<vmem>>, vector<8x16xf32>,
    %c241 = arith.constant 241 : index
    %c0_62 = arith.constant 0 : index
    %67 = tpu.strided_load %arg22[%c241, %c0_62] {strides = array<i32: 2, 1>} : memref<360x16xf32, #tpu.memory_space<vmem>>, vector<8x16xf32>
    %c242 = arith.constant 242 : index
    %c0_63 = arith.constant 0 : index
    %68 = tpu.strided_load %arg22[%c242, %c0_63] {strides = array<i32: 2, 1>} : memref<360x16xf32, #tpu.memory_space<vmem>>, vector<8x16xf32>
    %69 = arith.maximumf %67, %68 : vector<8x16xf32>
    %c98_64 = arith.constant 98 : index
    %c0_65 = arith.constant 0 : index
    %70 = vector.load %arg15[%c98_64, %c0_65] : memref<162x16xf32, #tpu.memory_space<vmem>>, vector<8x16xf32>
    tpu.vector_store %arg15[%c98_64, %c0_65], %69 {strides = array<i32>} : memref<162x16xf32, #tpu.memory_space<vmem>>, vector<8x16xf32>,
    %c289 = arith.constant 289 : index
    %c0_66 = arith.constant 0 : index
    %71 = tpu.strided_load %arg22[%c289, %c0_66] {strides = array<i32: 2, 1>} : memref<360x16xf32, #tpu.memory_space<vmem>>, vector<8x16xf32>
    %c290 = arith.constant 290 : index
    %c0_67 = arith.constant 0 : index
    %72 = tpu.strided_load %arg22[%c290, %c0_67] {strides = array<i32: 2, 1>} : memref<360x16xf32, #tpu.memory_space<vmem>>, vector<8x16xf32>
    %73 = arith.maximumf %71, %72 : vector<8x16xf32>
    %c114 = arith.constant 114 : index
    %c0_68 = arith.constant 0 : index
    %74 = vector.load %arg15[%c114, %c0_68] : memref<162x16xf32, #tpu.memory_space<vmem>>, vector<8x16xf32>
    tpu.vector_store %arg15[%c114, %c0_68], %73 {strides = array<i32>} : memref<162x16xf32, #tpu.memory_space<vmem>>, vector<8x16xf32>,
    %c337 = arith.constant 337 : index
    %c0_69 = arith.constant 0 : index
    %75 = tpu.strided_load %arg22[%c337, %c0_69] {strides = array<i32: 2, 1>} : memref<360x16xf32, #tpu.memory_space<vmem>>, vector<8x16xf32>
    %c338 = arith.constant 338 : index
    %c0_70 = arith.constant 0 : index
    %76 = tpu.strided_load %arg22[%c338, %c0_70] {strides = array<i32: 2, 1>} : memref<360x16xf32, #tpu.memory_space<vmem>>, vector<8x16xf32>
    %77 = arith.maximumf %75, %76 : vector<8x16xf32>
    %c130 = arith.constant 130 : index
    %c0_71 = arith.constant 0 : index
    %78 = vector.load %arg15[%c130, %c0_71] : memref<162x16xf32, #tpu.memory_space<vmem>>, vector<8x16xf32>
    tpu.vector_store %arg15[%c130, %c0_71], %77 {strides = array<i32>} : memref<162x16xf32, #tpu.memory_space<vmem>>, vector<8x16xf32>,
    %79 = tpu.iota {dimensions = array<i32: 0>} : vector<128x1xi32>
    %c16_i32 = arith.constant 16 : i32
    %c0_i32 = arith.constant 0 : i32
    %80 = arith.cmpi eq, %c16_i32, %c0_i32 : i32
    %c1_i32 = arith.constant 1 : i32
    %81 = arith.select %80, %c1_i32, %c16_i32 : i32
    %82 = vector.broadcast %81 : i32 to vector<128x1xi32>
    %83 = arith.remsi %79, %82 : vector<128x1xi32>
    %c0_i32_72 = arith.constant 0 : i32
    %84 = vector.broadcast %c0_i32_72 : i32 to vector<128x1xi32>
    %85 = arith.cmpi ne, %83, %84 : vector<128x1xi32>
    %c0_i32_73 = arith.constant 0 : i32
    %86 = vector.broadcast %c0_i32_73 : i32 to vector<128x1xi32>
    %87 = arith.cmpi slt, %83, %86 : vector<128x1xi32>
    %c0_i32_74 = arith.constant 0 : i32
    %88 = arith.cmpi slt, %81, %c0_i32_74 : i32
    %89 = vector.broadcast %88 : i1 to vector<128x1xi1>
    %90 = vector.broadcast %89 : vector<128x1xi1> to vector<128x1xi1>
    %91 = arith.xori %87, %90 : vector<128x1xi1>
    %92 = arith.andi %91, %85 : vector<128x1xi1>
    %93 = vector.broadcast %81 : i32 to vector<128x1xi32>
    %94 = arith.addi %83, %93 : vector<128x1xi32>
    %95 = arith.select %92, %94, %83 : vector<128x1xi1>, vector<128x1xi32>
    %c1_i32_75 = arith.constant 1 : i32
    %96 = vector.broadcast %c1_i32_75 : i32 to vector<128x1xi32>
    %97 = arith.cmpi sge, %95, %96 : vector<128x1xi32>
    %c8_i32 = arith.constant 8 : i32
    %98 = vector.broadcast %c8_i32 : i32 to vector<128x1xi32>
    %99 = arith.cmpi sle, %95, %98 : vector<128x1xi32>
    %100 = arith.andi %97, %99 : vector<128x1xi1>
    %c0_76 = arith.constant 0 : index
    %c0_77 = arith.constant 0 : index
    %101 = vector.load %arg15[%c0_76, %c0_77] : memref<162x16xf32, #tpu.memory_space<vmem>>, vector<128x16xf32>
    %102 = arith.truncf %101 : vector<128x16xf32> to vector<128x16xbf16>
    %c1_78 = arith.constant 1 : index
    %c0_79 = arith.constant 0 : index
    %103 = vector.load %arg15[%c1_78, %c0_79] : memref<162x16xf32, #tpu.memory_space<vmem>>, vector<128x16xf32>
    %104 = arith.truncf %103 : vector<128x16xf32> to vector<128x16xbf16>
    %c2_80 = arith.constant 2 : index
    %c0_81 = arith.constant 0 : index
    %105 = vector.load %arg15[%c2_80, %c0_81] : memref<162x16xf32, #tpu.memory_space<vmem>>, vector<128x16xf32>
    %106 = arith.truncf %105 : vector<128x16xf32> to vector<128x16xbf16>
    %c16 = arith.constant 16 : index
    %c0_82 = arith.constant 0 : index
    %107 = vector.load %arg15[%c16, %c0_82] : memref<162x16xf32, #tpu.memory_space<vmem>>, vector<128x16xf32>
    %108 = arith.truncf %107 : vector<128x16xf32> to vector<128x16xbf16>
    %c17 = arith.constant 17 : index
    %c0_83 = arith.constant 0 : index
    %109 = vector.load %arg15[%c17, %c0_83] : memref<162x16xf32, #tpu.memory_space<vmem>>, vector<128x16xf32>
    %110 = arith.truncf %109 : vector<128x16xf32> to vector<128x16xbf16>
    %c18_84 = arith.constant 18 : index
    %c0_85 = arith.constant 0 : index
    %111 = vector.load %arg15[%c18_84, %c0_85] : memref<162x16xf32, #tpu.memory_space<vmem>>, vector<128x16xf32>
    %112 = arith.truncf %111 : vector<128x16xf32> to vector<128x16xbf16>
    %c32 = arith.constant 32 : index
    %c0_86 = arith.constant 0 : index
    %113 = vector.load %arg15[%c32, %c0_86] : memref<162x16xf32, #tpu.memory_space<vmem>>, vector<128x16xf32>
    %114 = arith.truncf %113 : vector<128x16xf32> to vector<128x16xbf16>
    %c33 = arith.constant 33 : index
    %c0_87 = arith.constant 0 : index
    %115 = vector.load %arg15[%c33, %c0_87] : memref<162x16xf32, #tpu.memory_space<vmem>>, vector<128x16xf32>
    %116 = arith.truncf %115 : vector<128x16xf32> to vector<128x16xbf16>
    %c34_88 = arith.constant 34 : index
    %c0_89 = arith.constant 0 : index
    %117 = vector.load %arg15[%c34_88, %c0_89] : memref<162x16xf32, #tpu.memory_space<vmem>>, vector<128x16xf32>
    %118 = arith.truncf %117 : vector<128x16xf32> to vector<128x16xbf16>
    %119 = tpu.concatenate %102, %104, %106, %108, %110, %112, %114, %116, %118 in 1 : vector<128x16xbf16>, vector<128x16xbf16>, vector<128x16xbf16>, vector<128x16xbf16>, vector<128x16xbf16>, vector<128x16xbf16>, vector<128x16xbf16>, vector<128x16xbf16>, vector<128x16xbf16> -> vector<128x144xbf16>
    %c0_90 = arith.constant 0 : index
    %c0_91 = arith.constant 0 : index
    %120 = vector.load %arg4[%c0_90, %c0_91] : memref<144x64xbf16, #tpu.memory_space<vmem>>, vector<144x64xbf16>
    %cst_92 = arith.constant dense<0.000000e+00> : vector<128x64xf32>
    %121 = tpu.matmul %119, %120, %cst_92 {dimension_numbers = #tpu.dot_dimension_numbers<[1], [0], [0], [1], [0, 0, 1, 1], [], []>} : vector<128x144xbf16>, vector<144x64xbf16>, vector<128x64xf32> -> vector<128x64xf32>
    %122 = vector.extract_strided_slice %121 {offsets = [0, 0], sizes = [128, 32], strides = [1, 1]} : vector<128x64xf32> to vector<128x32xf32>
    %cst_93 = arith.constant 0.000000e+00 : f32
    %123 = vector.broadcast %cst_93 : f32 to vector<128x32xf32>
    %124 = arith.maximumf %122, %123 : vector<128x32xf32>
    %cst_94 = arith.constant 0.000000e+00 : f32
    %125 = vector.shape_cast %100 : vector<128x1xi1> to vector<128x1xi1>
    %126 = vector.broadcast %125 : vector<128x1xi1> to vector<128x32xi1>
    %127 = vector.broadcast %cst_94 : f32 to vector<128x32xf32>
    %128 = arith.select %126, %124, %127 : vector<128x32xi1>, vector<128x32xf32>
    %129 = vector.extract_strided_slice %121 {offsets = [0, 32], sizes = [128, 32], strides = [1, 1]} : vector<128x64xf32> to vector<128x32xf32>
    %c17_95 = arith.constant 17 : index
    %c0_96 = arith.constant 0 : index
    %130 = vector.load %arg16[%c17_95, %c0_96] : memref<162x32xf32, #tpu.memory_space<vmem>>, vector<128x32xf32>
    tpu.vector_store %arg16[%c17_95, %c0_96], %128 {strides = array<i32>} : memref<162x32xf32, #tpu.memory_space<vmem>>, vector<128x32xf32>,
    %c0_97 = arith.constant 0 : index
    %c0_98 = arith.constant 0 : index
    %131 = vector.load %arg16[%c0_97, %c0_98] : memref<162x32xf32, #tpu.memory_space<vmem>>, vector<128x32xf32>
    %132 = arith.truncf %131 : vector<128x32xf32> to vector<128x32xbf16>
    %c1_99 = arith.constant 1 : index
    %c0_100 = arith.constant 0 : index
    %133 = vector.load %arg16[%c1_99, %c0_100] : memref<162x32xf32, #tpu.memory_space<vmem>>, vector<128x32xf32>
    %134 = arith.truncf %133 : vector<128x32xf32> to vector<128x32xbf16>
    %c2_101 = arith.constant 2 : index
    %c0_102 = arith.constant 0 : index
    %135 = vector.load %arg16[%c2_101, %c0_102] : memref<162x32xf32, #tpu.memory_space<vmem>>, vector<128x32xf32>
    %136 = arith.truncf %135 : vector<128x32xf32> to vector<128x32xbf16>
    %c16_103 = arith.constant 16 : index
    %c0_104 = arith.constant 0 : index
    %137 = vector.load %arg16[%c16_103, %c0_104] : memref<162x32xf32, #tpu.memory_space<vmem>>, vector<128x32xf32>
    %138 = arith.truncf %137 : vector<128x32xf32> to vector<128x32xbf16>
    %c17_105 = arith.constant 17 : index
    %c0_106 = arith.constant 0 : index
    %139 = vector.load %arg16[%c17_105, %c0_106] : memref<162x32xf32, #tpu.memory_space<vmem>>, vector<128x32xf32>
    %140 = arith.truncf %139 : vector<128x32xf32> to vector<128x32xbf16>
    %c18_107 = arith.constant 18 : index
    %c0_108 = arith.constant 0 : index
    %141 = vector.load %arg16[%c18_107, %c0_108] : memref<162x32xf32, #tpu.memory_space<vmem>>, vector<128x32xf32>
    %142 = arith.truncf %141 : vector<128x32xf32> to vector<128x32xbf16>
    %c32_109 = arith.constant 32 : index
    %c0_110 = arith.constant 0 : index
    %143 = vector.load %arg16[%c32_109, %c0_110] : memref<162x32xf32, #tpu.memory_space<vmem>>, vector<128x32xf32>
    %144 = arith.truncf %143 : vector<128x32xf32> to vector<128x32xbf16>
    %c33_111 = arith.constant 33 : index
    %c0_112 = arith.constant 0 : index
    %145 = vector.load %arg16[%c33_111, %c0_112] : memref<162x32xf32, #tpu.memory_space<vmem>>, vector<128x32xf32>
    %146 = arith.truncf %145 : vector<128x32xf32> to vector<128x32xbf16>
    %c34_113 = arith.constant 34 : index
    %c0_114 = arith.constant 0 : index
    %147 = vector.load %arg16[%c34_113, %c0_114] : memref<162x32xf32, #tpu.memory_space<vmem>>, vector<128x32xf32>
    %148 = arith.truncf %147 : vector<128x32xf32> to vector<128x32xbf16>
    %149 = tpu.concatenate %132, %134, %136, %138, %140, %142, %144, %146, %148 in 1 : vector<128x32xbf16>, vector<128x32xbf16>, vector<128x32xbf16>, vector<128x32xbf16>, vector<128x32xbf16>, vector<128x32xbf16>, vector<128x32xbf16>, vector<128x32xbf16>, vector<128x32xbf16> -> vector<128x288xbf16>
    %c0_115 = arith.constant 0 : index
    %c0_116 = arith.constant 0 : index
    %150 = vector.load %arg5[%c0_115, %c0_116] : memref<288x32xbf16, #tpu.memory_space<vmem>>, vector<288x32xbf16>
    %cst_117 = arith.constant dense<0.000000e+00> : vector<128x32xf32>
    %151 = tpu.matmul %149, %150, %cst_117 {dimension_numbers = #tpu.dot_dimension_numbers<[1], [0], [0], [1], [0, 0, 1, 1], [], []>} : vector<128x288xbf16>, vector<288x32xbf16>, vector<128x32xf32> -> vector<128x32xf32>
    %152 = arith.addf %151, %129 : vector<128x32xf32>
    %cst_118 = arith.constant 0.000000e+00 : f32
    %153 = vector.broadcast %cst_118 : f32 to vector<128x32xf32>
    %154 = arith.maximumf %152, %153 : vector<128x32xf32>
    %155 = vector.extract_strided_slice %154 {offsets = [0, 0], sizes = [112, 32], strides = [1, 1]} : vector<128x32xf32> to vector<112x32xf32>
    %156 = vector.extract_strided_slice %154 {offsets = [16, 0], sizes = [112, 32], strides = [1, 1]} : vector<128x32xf32> to vector<112x32xf32>
    %157 = arith.maximumf %155, %156 : vector<112x32xf32>
    %c0_119 = arith.constant 0 : index
    %c0_120 = arith.constant 0 : index
    %158 = vector.load %arg23[%c0_119, %c0_120] : memref<112x32xf32, #tpu.memory_space<vmem>>, vector<112x32xf32>
    tpu.vector_store %arg23[%c0_119, %c0_120], %157 {strides = array<i32>} : memref<112x32xf32, #tpu.memory_space<vmem>>, vector<112x32xf32>,
    %c1_121 = arith.constant 1 : index
    %c0_122 = arith.constant 0 : index
    %159 = tpu.strided_load %arg23[%c1_121, %c0_122] {strides = array<i32: 2, 1>} : memref<112x32xf32, #tpu.memory_space<vmem>>, vector<4x32xf32>
    %c2_123 = arith.constant 2 : index
    %c0_124 = arith.constant 0 : index
    %160 = tpu.strided_load %arg23[%c2_123, %c0_124] {strides = array<i32: 2, 1>} : memref<112x32xf32, #tpu.memory_space<vmem>>, vector<4x32xf32>
    %161 = arith.maximumf %159, %160 : vector<4x32xf32>
    %c10 = arith.constant 10 : index
    %c0_125 = arith.constant 0 : index
    %162 = vector.load %arg17[%c10, %c0_125] : memref<50x32xf32, #tpu.memory_space<vmem>>, vector<4x32xf32>
    tpu.vector_store %arg17[%c10, %c0_125], %161 {strides = array<i32>} : memref<50x32xf32, #tpu.memory_space<vmem>>, vector<4x32xf32>,
    %c33_126 = arith.constant 33 : index
    %c0_127 = arith.constant 0 : index
    %163 = tpu.strided_load %arg23[%c33_126, %c0_127] {strides = array<i32: 2, 1>} : memref<112x32xf32, #tpu.memory_space<vmem>>, vector<4x32xf32>
    %c34_128 = arith.constant 34 : index
    %c0_129 = arith.constant 0 : index
    %164 = tpu.strided_load %arg23[%c34_128, %c0_129] {strides = array<i32: 2, 1>} : memref<112x32xf32, #tpu.memory_space<vmem>>, vector<4x32xf32>
    %165 = arith.maximumf %163, %164 : vector<4x32xf32>
    %c18_130 = arith.constant 18 : index
    %c0_131 = arith.constant 0 : index
    %166 = vector.load %arg17[%c18_130, %c0_131] : memref<50x32xf32, #tpu.memory_space<vmem>>, vector<4x32xf32>
    tpu.vector_store %arg17[%c18_130, %c0_131], %165 {strides = array<i32>} : memref<50x32xf32, #tpu.memory_space<vmem>>, vector<4x32xf32>,
    %c65 = arith.constant 65 : index
    %c0_132 = arith.constant 0 : index
    %167 = tpu.strided_load %arg23[%c65, %c0_132] {strides = array<i32: 2, 1>} : memref<112x32xf32, #tpu.memory_space<vmem>>, vector<4x32xf32>
    %c66_133 = arith.constant 66 : index
    %c0_134 = arith.constant 0 : index
    %168 = tpu.strided_load %arg23[%c66_133, %c0_134] {strides = array<i32: 2, 1>} : memref<112x32xf32, #tpu.memory_space<vmem>>, vector<4x32xf32>
    %169 = arith.maximumf %167, %168 : vector<4x32xf32>
    %c26_135 = arith.constant 26 : index
    %c0_136 = arith.constant 0 : index
    %170 = vector.load %arg17[%c26_135, %c0_136] : memref<50x32xf32, #tpu.memory_space<vmem>>, vector<4x32xf32>
    tpu.vector_store %arg17[%c26_135, %c0_136], %169 {strides = array<i32>} : memref<50x32xf32, #tpu.memory_space<vmem>>, vector<4x32xf32>,
    %c97_137 = arith.constant 97 : index
    %c0_138 = arith.constant 0 : index
    %171 = tpu.strided_load %arg23[%c97_137, %c0_138] {strides = array<i32: 2, 1>} : memref<112x32xf32, #tpu.memory_space<vmem>>, vector<4x32xf32>
    %c98_139 = arith.constant 98 : index
    %c0_140 = arith.constant 0 : index
    %172 = tpu.strided_load %arg23[%c98_139, %c0_140] {strides = array<i32: 2, 1>} : memref<112x32xf32, #tpu.memory_space<vmem>>, vector<4x32xf32>
    %173 = arith.maximumf %171, %172 : vector<4x32xf32>
    %c34_141 = arith.constant 34 : index
    %c0_142 = arith.constant 0 : index
    %174 = vector.load %arg17[%c34_141, %c0_142] : memref<50x32xf32, #tpu.memory_space<vmem>>, vector<4x32xf32>
    tpu.vector_store %arg17[%c34_141, %c0_142], %173 {strides = array<i32>} : memref<50x32xf32, #tpu.memory_space<vmem>>, vector<4x32xf32>,
    %175 = tpu.iota {dimensions = array<i32: 0>} : vector<32x1xi32>
    %c8_i32_143 = arith.constant 8 : i32
    %c0_i32_144 = arith.constant 0 : i32
    %176 = arith.cmpi eq, %c8_i32_143, %c0_i32_144 : i32
    %c1_i32_145 = arith.constant 1 : i32
    %177 = arith.select %176, %c1_i32_145, %c8_i32_143 : i32
    %178 = vector.broadcast %177 : i32 to vector<32x1xi32>
    %179 = arith.remsi %175, %178 : vector<32x1xi32>
    %c0_i32_146 = arith.constant 0 : i32
    %180 = vector.broadcast %c0_i32_146 : i32 to vector<32x1xi32>
    %181 = arith.cmpi ne, %179, %180 : vector<32x1xi32>
    %c0_i32_147 = arith.constant 0 : i32
    %182 = vector.broadcast %c0_i32_147 : i32 to vector<32x1xi32>
    %183 = arith.cmpi slt, %179, %182 : vector<32x1xi32>
    %c0_i32_148 = arith.constant 0 : i32
    %184 = arith.cmpi slt, %177, %c0_i32_148 : i32
    %185 = vector.broadcast %184 : i1 to vector<32x1xi1>
    %186 = vector.broadcast %185 : vector<32x1xi1> to vector<32x1xi1>
    %187 = arith.xori %183, %186 : vector<32x1xi1>
    %188 = arith.andi %187, %181 : vector<32x1xi1>
    %189 = vector.broadcast %177 : i32 to vector<32x1xi32>
    %190 = arith.addi %179, %189 : vector<32x1xi32>
    %191 = arith.select %188, %190, %179 : vector<32x1xi1>, vector<32x1xi32>
    %c1_i32_149 = arith.constant 1 : i32
    %192 = vector.broadcast %c1_i32_149 : i32 to vector<32x1xi32>
    %193 = arith.cmpi sge, %191, %192 : vector<32x1xi32>
    %c4_i32 = arith.constant 4 : i32
    %194 = vector.broadcast %c4_i32 : i32 to vector<32x1xi32>
    %195 = arith.cmpi sle, %191, %194 : vector<32x1xi32>
    %196 = arith.andi %193, %195 : vector<32x1xi1>
    %c0_150 = arith.constant 0 : index
    %c0_151 = arith.constant 0 : index
    %197 = vector.load %arg17[%c0_150, %c0_151] : memref<50x32xf32, #tpu.memory_space<vmem>>, vector<32x32xf32>
    %198 = arith.truncf %197 : vector<32x32xf32> to vector<32x32xbf16>
    %c1_152 = arith.constant 1 : index
    %c0_153 = arith.constant 0 : index
    %199 = vector.load %arg17[%c1_152, %c0_153] : memref<50x32xf32, #tpu.memory_space<vmem>>, vector<32x32xf32>
    %200 = arith.truncf %199 : vector<32x32xf32> to vector<32x32xbf16>
    %c2_154 = arith.constant 2 : index
    %c0_155 = arith.constant 0 : index
    %201 = vector.load %arg17[%c2_154, %c0_155] : memref<50x32xf32, #tpu.memory_space<vmem>>, vector<32x32xf32>
    %202 = arith.truncf %201 : vector<32x32xf32> to vector<32x32xbf16>
    %c8 = arith.constant 8 : index
    %c0_156 = arith.constant 0 : index
    %203 = vector.load %arg17[%c8, %c0_156] : memref<50x32xf32, #tpu.memory_space<vmem>>, vector<32x32xf32>
    %204 = arith.truncf %203 : vector<32x32xf32> to vector<32x32xbf16>
    %c9 = arith.constant 9 : index
    %c0_157 = arith.constant 0 : index
    %205 = vector.load %arg17[%c9, %c0_157] : memref<50x32xf32, #tpu.memory_space<vmem>>, vector<32x32xf32>
    %206 = arith.truncf %205 : vector<32x32xf32> to vector<32x32xbf16>
    %c10_158 = arith.constant 10 : index
    %c0_159 = arith.constant 0 : index
    %207 = vector.load %arg17[%c10_158, %c0_159] : memref<50x32xf32, #tpu.memory_space<vmem>>, vector<32x32xf32>
    %208 = arith.truncf %207 : vector<32x32xf32> to vector<32x32xbf16>
    %c16_160 = arith.constant 16 : index
    %c0_161 = arith.constant 0 : index
    %209 = vector.load %arg17[%c16_160, %c0_161] : memref<50x32xf32, #tpu.memory_space<vmem>>, vector<32x32xf32>
    %210 = arith.truncf %209 : vector<32x32xf32> to vector<32x32xbf16>
    %c17_162 = arith.constant 17 : index
    %c0_163 = arith.constant 0 : index
    %211 = vector.load %arg17[%c17_162, %c0_163] : memref<50x32xf32, #tpu.memory_space<vmem>>, vector<32x32xf32>
    %212 = arith.truncf %211 : vector<32x32xf32> to vector<32x32xbf16>
    %c18_164 = arith.constant 18 : index
    %c0_165 = arith.constant 0 : index
    %213 = vector.load %arg17[%c18_164, %c0_165] : memref<50x32xf32, #tpu.memory_space<vmem>>, vector<32x32xf32>
    %214 = arith.truncf %213 : vector<32x32xf32> to vector<32x32xbf16>
    %215 = tpu.concatenate %198, %200, %202, %204, %206, %208, %210, %212, %214 in 1 : vector<32x32xbf16>, vector<32x32xbf16>, vector<32x32xbf16>, vector<32x32xbf16>, vector<32x32xbf16>, vector<32x32xbf16>, vector<32x32xbf16>, vector<32x32xbf16>, vector<32x32xbf16> -> vector<32x288xbf16>
    %c0_166 = arith.constant 0 : index
    %c0_167 = arith.constant 0 : index
    %216 = vector.load %arg6[%c0_166, %c0_167] : memref<288x128xbf16, #tpu.memory_space<vmem>>, vector<288x128xbf16>
    %cst_168 = arith.constant dense<0.000000e+00> : vector<32x128xf32>
    %217 = tpu.matmul %215, %216, %cst_168 {dimension_numbers = #tpu.dot_dimension_numbers<[1], [0], [0], [1], [0, 0, 1, 1], [], []>} : vector<32x288xbf16>, vector<288x128xbf16>, vector<32x128xf32> -> vector<32x128xf32>
    %218 = vector.extract_strided_slice %217 {offsets = [0, 0], sizes = [32, 64], strides = [1, 1]} : vector<32x128xf32> to vector<32x64xf32>
    %cst_169 = arith.constant 0.000000e+00 : f32
    %219 = vector.broadcast %cst_169 : f32 to vector<32x64xf32>
    %220 = arith.maximumf %218, %219 : vector<32x64xf32>
    %cst_170 = arith.constant 0.000000e+00 : f32
    %221 = vector.shape_cast %196 : vector<32x1xi1> to vector<32x1xi1>
    %222 = vector.broadcast %221 : vector<32x1xi1> to vector<32x64xi1>
    %223 = vector.broadcast %cst_170 : f32 to vector<32x64xf32>
    %224 = arith.select %222, %220, %223 : vector<32x64xi1>, vector<32x64xf32>
    %225 = vector.extract_strided_slice %217 {offsets = [0, 64], sizes = [32, 64], strides = [1, 1]} : vector<32x128xf32> to vector<32x64xf32>
    %c9_171 = arith.constant 9 : index
    %c0_172 = arith.constant 0 : index
    %226 = vector.load %arg18[%c9_171, %c0_172] : memref<50x64xf32, #tpu.memory_space<vmem>>, vector<32x64xf32>
    tpu.vector_store %arg18[%c9_171, %c0_172], %224 {strides = array<i32>} : memref<50x64xf32, #tpu.memory_space<vmem>>, vector<32x64xf32>,
    %c0_173 = arith.constant 0 : index
    %c0_174 = arith.constant 0 : index
    %227 = vector.load %arg18[%c0_173, %c0_174] : memref<50x64xf32, #tpu.memory_space<vmem>>, vector<32x64xf32>
    %228 = arith.truncf %227 : vector<32x64xf32> to vector<32x64xbf16>
    %c1_175 = arith.constant 1 : index
    %c0_176 = arith.constant 0 : index
    %229 = vector.load %arg18[%c1_175, %c0_176] : memref<50x64xf32, #tpu.memory_space<vmem>>, vector<32x64xf32>
    %230 = arith.truncf %229 : vector<32x64xf32> to vector<32x64xbf16>
    %c2_177 = arith.constant 2 : index
    %c0_178 = arith.constant 0 : index
    %231 = vector.load %arg18[%c2_177, %c0_178] : memref<50x64xf32, #tpu.memory_space<vmem>>, vector<32x64xf32>
    %232 = arith.truncf %231 : vector<32x64xf32> to vector<32x64xbf16>
    %c8_179 = arith.constant 8 : index
    %c0_180 = arith.constant 0 : index
    %233 = vector.load %arg18[%c8_179, %c0_180] : memref<50x64xf32, #tpu.memory_space<vmem>>, vector<32x64xf32>
    %234 = arith.truncf %233 : vector<32x64xf32> to vector<32x64xbf16>
    %c9_181 = arith.constant 9 : index
    %c0_182 = arith.constant 0 : index
    %235 = vector.load %arg18[%c9_181, %c0_182] : memref<50x64xf32, #tpu.memory_space<vmem>>, vector<32x64xf32>
    %236 = arith.truncf %235 : vector<32x64xf32> to vector<32x64xbf16>
    %c10_183 = arith.constant 10 : index
    %c0_184 = arith.constant 0 : index
    %237 = vector.load %arg18[%c10_183, %c0_184] : memref<50x64xf32, #tpu.memory_space<vmem>>, vector<32x64xf32>
    %238 = arith.truncf %237 : vector<32x64xf32> to vector<32x64xbf16>
    %c16_185 = arith.constant 16 : index
    %c0_186 = arith.constant 0 : index
    %239 = vector.load %arg18[%c16_185, %c0_186] : memref<50x64xf32, #tpu.memory_space<vmem>>, vector<32x64xf32>
    %240 = arith.truncf %239 : vector<32x64xf32> to vector<32x64xbf16>
    %c17_187 = arith.constant 17 : index
    %c0_188 = arith.constant 0 : index
    %241 = vector.load %arg18[%c17_187, %c0_188] : memref<50x64xf32, #tpu.memory_space<vmem>>, vector<32x64xf32>
    %242 = arith.truncf %241 : vector<32x64xf32> to vector<32x64xbf16>
    %c18_189 = arith.constant 18 : index
    %c0_190 = arith.constant 0 : index
    %243 = vector.load %arg18[%c18_189, %c0_190] : memref<50x64xf32, #tpu.memory_space<vmem>>, vector<32x64xf32>
    %244 = arith.truncf %243 : vector<32x64xf32> to vector<32x64xbf16>
    %245 = tpu.concatenate %228, %230, %232, %234, %236, %238, %240, %242, %244 in 1 : vector<32x64xbf16>, vector<32x64xbf16>, vector<32x64xbf16>, vector<32x64xbf16>, vector<32x64xbf16>, vector<32x64xbf16>, vector<32x64xbf16>, vector<32x64xbf16>, vector<32x64xbf16> -> vector<32x576xbf16>
    %c0_191 = arith.constant 0 : index
    %c0_192 = arith.constant 0 : index
    %246 = vector.load %arg7[%c0_191, %c0_192] : memref<576x64xbf16, #tpu.memory_space<vmem>>, vector<576x64xbf16>
    %cst_193 = arith.constant dense<0.000000e+00> : vector<32x64xf32>
    %247 = tpu.matmul %245, %246, %cst_193 {dimension_numbers = #tpu.dot_dimension_numbers<[1], [0], [0], [1], [0, 0, 1, 1], [], []>} : vector<32x576xbf16>, vector<576x64xbf16>, vector<32x64xf32> -> vector<32x64xf32>
    %248 = arith.addf %247, %225 : vector<32x64xf32>
    %cst_194 = arith.constant 0.000000e+00 : f32
    %249 = vector.broadcast %cst_194 : f32 to vector<32x64xf32>
    %250 = arith.maximumf %248, %249 : vector<32x64xf32>
    %cst_195 = arith.constant 0.000000e+00 : f32
    %251 = vector.shape_cast %196 : vector<32x1xi1> to vector<32x1xi1>
    %252 = vector.broadcast %251 : vector<32x1xi1> to vector<32x64xi1>
    %253 = vector.broadcast %cst_195 : f32 to vector<32x64xf32>
    %254 = arith.select %252, %250, %253 : vector<32x64xi1>, vector<32x64xf32>
    %c9_196 = arith.constant 9 : index
    %c0_197 = arith.constant 0 : index
    %255 = vector.load %arg19[%c9_196, %c0_197] : memref<50x64xf32, #tpu.memory_space<vmem>>, vector<32x64xf32>
    tpu.vector_store %arg19[%c9_196, %c0_197], %254 {strides = array<i32>} : memref<50x64xf32, #tpu.memory_space<vmem>>, vector<32x64xf32>,
    %c0_198 = arith.constant 0 : index
    %c0_199 = arith.constant 0 : index
    %256 = vector.load %arg19[%c0_198, %c0_199] : memref<50x64xf32, #tpu.memory_space<vmem>>, vector<32x64xf32>
    %257 = arith.truncf %256 : vector<32x64xf32> to vector<32x64xbf16>
    %c1_200 = arith.constant 1 : index
    %c0_201 = arith.constant 0 : index
    %258 = vector.load %arg19[%c1_200, %c0_201] : memref<50x64xf32, #tpu.memory_space<vmem>>, vector<32x64xf32>
    %259 = arith.truncf %258 : vector<32x64xf32> to vector<32x64xbf16>
    %c2_202 = arith.constant 2 : index
    %c0_203 = arith.constant 0 : index
    %260 = vector.load %arg19[%c2_202, %c0_203] : memref<50x64xf32, #tpu.memory_space<vmem>>, vector<32x64xf32>
    %261 = arith.truncf %260 : vector<32x64xf32> to vector<32x64xbf16>
    %c8_204 = arith.constant 8 : index
    %c0_205 = arith.constant 0 : index
    %262 = vector.load %arg19[%c8_204, %c0_205] : memref<50x64xf32, #tpu.memory_space<vmem>>, vector<32x64xf32>
    %263 = arith.truncf %262 : vector<32x64xf32> to vector<32x64xbf16>
    %c9_206 = arith.constant 9 : index
    %c0_207 = arith.constant 0 : index
    %264 = vector.load %arg19[%c9_206, %c0_207] : memref<50x64xf32, #tpu.memory_space<vmem>>, vector<32x64xf32>
    %265 = arith.truncf %264 : vector<32x64xf32> to vector<32x64xbf16>
    %c10_208 = arith.constant 10 : index
    %c0_209 = arith.constant 0 : index
    %266 = vector.load %arg19[%c10_208, %c0_209] : memref<50x64xf32, #tpu.memory_space<vmem>>, vector<32x64xf32>
    %267 = arith.truncf %266 : vector<32x64xf32> to vector<32x64xbf16>
    %c16_210 = arith.constant 16 : index
    %c0_211 = arith.constant 0 : index
    %268 = vector.load %arg19[%c16_210, %c0_211] : memref<50x64xf32, #tpu.memory_space<vmem>>, vector<32x64xf32>
    %269 = arith.truncf %268 : vector<32x64xf32> to vector<32x64xbf16>
    %c17_212 = arith.constant 17 : index
    %c0_213 = arith.constant 0 : index
    %270 = vector.load %arg19[%c17_212, %c0_213] : memref<50x64xf32, #tpu.memory_space<vmem>>, vector<32x64xf32>
    %271 = arith.truncf %270 : vector<32x64xf32> to vector<32x64xbf16>
    %c18_214 = arith.constant 18 : index
    %c0_215 = arith.constant 0 : index
    %272 = vector.load %arg19[%c18_214, %c0_215] : memref<50x64xf32, #tpu.memory_space<vmem>>, vector<32x64xf32>
    %273 = arith.truncf %272 : vector<32x64xf32> to vector<32x64xbf16>
    %274 = tpu.concatenate %257, %259, %261, %263, %265, %267, %269, %271, %273 in 1 : vector<32x64xbf16>, vector<32x64xbf16>, vector<32x64xbf16>, vector<32x64xbf16>, vector<32x64xbf16>, vector<32x64xbf16>, vector<32x64xbf16>, vector<32x64xbf16>, vector<32x64xbf16> -> vector<32x576xbf16>
    %c0_216 = arith.constant 0 : index
    %c0_217 = arith.constant 0 : index
    %275 = vector.load %arg8[%c0_216, %c0_217] : memref<576x128xbf16, #tpu.memory_space<vmem>>, vector<576x128xbf16>
    %cst_218 = arith.constant dense<0.000000e+00> : vector<32x128xf32>
    %276 = tpu.matmul %274, %275, %cst_218 {dimension_numbers = #tpu.dot_dimension_numbers<[1], [0], [0], [1], [0, 0, 1, 1], [], []>} : vector<32x576xbf16>, vector<576x128xbf16>, vector<32x128xf32> -> vector<32x128xf32>
    %c0_219 = arith.constant 0 : index
    %c0_220 = arith.constant 0 : index
    %277 = vector.load %arg9[%c0_219, %c0_220] : memref<1x128xf32, #tpu.memory_space<vmem>>, vector<1x128xf32>
    %278 = vector.broadcast %277 : vector<1x128xf32> to vector<32x128xf32>
    %279 = arith.addf %276, %278 : vector<32x128xf32>
    %cst_221 = arith.constant 0.000000e+00 : f32
    %280 = vector.broadcast %cst_221 : f32 to vector<32x128xf32>
    %281 = arith.maximumf %279, %280 : vector<32x128xf32>
    %282 = vector.extract_strided_slice %281 {offsets = [0, 0], sizes = [32, 32], strides = [1, 1]} : vector<32x128xf32> to vector<32x32xf32>
    %283 = vector.extract_strided_slice %282 {offsets = [1, 0], sizes = [4, 32], strides = [1, 1]} : vector<32x32xf32> to vector<4x32xf32>
    %c18_222 = arith.constant 18 : index
    %c0_223 = arith.constant 0 : index
    %284 = tpu.strided_load %arg20[%c18_222, %c0_223] {strides = array<i32: 2, 1>} : memref<162x32xf32, #tpu.memory_space<vmem>>, vector<4x32xf32>
    tpu.strided_store %arg20[%c18_222, %c0_223], %283 {strides = array<i32: 2, 1>} : memref<162x32xf32, #tpu.memory_space<vmem>>, vector<4x32xf32>
    %285 = vector.extract_strided_slice %282 {offsets = [9, 0], sizes = [4, 32], strides = [1, 1]} : vector<32x32xf32> to vector<4x32xf32>
    %c50_224 = arith.constant 50 : index
    %c0_225 = arith.constant 0 : index
    %286 = tpu.strided_load %arg20[%c50_224, %c0_225] {strides = array<i32: 2, 1>} : memref<162x32xf32, #tpu.memory_space<vmem>>, vector<4x32xf32>
    tpu.strided_store %arg20[%c50_224, %c0_225], %285 {strides = array<i32: 2, 1>} : memref<162x32xf32, #tpu.memory_space<vmem>>, vector<4x32xf32>
    %287 = vector.extract_strided_slice %282 {offsets = [17, 0], sizes = [4, 32], strides = [1, 1]} : vector<32x32xf32> to vector<4x32xf32>
    %c82_226 = arith.constant 82 : index
    %c0_227 = arith.constant 0 : index
    %288 = tpu.strided_load %arg20[%c82_226, %c0_227] {strides = array<i32: 2, 1>} : memref<162x32xf32, #tpu.memory_space<vmem>>, vector<4x32xf32>
    tpu.strided_store %arg20[%c82_226, %c0_227], %287 {strides = array<i32: 2, 1>} : memref<162x32xf32, #tpu.memory_space<vmem>>, vector<4x32xf32>
    %289 = vector.extract_strided_slice %282 {offsets = [25, 0], sizes = [4, 32], strides = [1, 1]} : vector<32x32xf32> to vector<4x32xf32>
    %c114_228 = arith.constant 114 : index
    %c0_229 = arith.constant 0 : index
    %290 = tpu.strided_load %arg20[%c114_228, %c0_229] {strides = array<i32: 2, 1>} : memref<162x32xf32, #tpu.memory_space<vmem>>, vector<4x32xf32>
    tpu.strided_store %arg20[%c114_228, %c0_229], %289 {strides = array<i32: 2, 1>} : memref<162x32xf32, #tpu.memory_space<vmem>>, vector<4x32xf32>
    %291 = vector.extract_strided_slice %281 {offsets = [0, 32], sizes = [32, 32], strides = [1, 1]} : vector<32x128xf32> to vector<32x32xf32>
    %292 = vector.extract_strided_slice %291 {offsets = [1, 0], sizes = [4, 32], strides = [1, 1]} : vector<32x32xf32> to vector<4x32xf32>
    %c19 = arith.constant 19 : index
    %c0_230 = arith.constant 0 : index
    %293 = tpu.strided_load %arg20[%c19, %c0_230] {strides = array<i32: 2, 1>} : memref<162x32xf32, #tpu.memory_space<vmem>>, vector<4x32xf32>
    tpu.strided_store %arg20[%c19, %c0_230], %292 {strides = array<i32: 2, 1>} : memref<162x32xf32, #tpu.memory_space<vmem>>, vector<4x32xf32>
    %294 = vector.extract_strided_slice %291 {offsets = [9, 0], sizes = [4, 32], strides = [1, 1]} : vector<32x32xf32> to vector<4x32xf32>
    %c51 = arith.constant 51 : index
    %c0_231 = arith.constant 0 : index
    %295 = tpu.strided_load %arg20[%c51, %c0_231] {strides = array<i32: 2, 1>} : memref<162x32xf32, #tpu.memory_space<vmem>>, vector<4x32xf32>
    tpu.strided_store %arg20[%c51, %c0_231], %294 {strides = array<i32: 2, 1>} : memref<162x32xf32, #tpu.memory_space<vmem>>, vector<4x32xf32>
    %296 = vector.extract_strided_slice %291 {offsets = [17, 0], sizes = [4, 32], strides = [1, 1]} : vector<32x32xf32> to vector<4x32xf32>
    %c83 = arith.constant 83 : index
    %c0_232 = arith.constant 0 : index
    %297 = tpu.strided_load %arg20[%c83, %c0_232] {strides = array<i32: 2, 1>} : memref<162x32xf32, #tpu.memory_space<vmem>>, vector<4x32xf32>
    tpu.strided_store %arg20[%c83, %c0_232], %296 {strides = array<i32: 2, 1>} : memref<162x32xf32, #tpu.memory_space<vmem>>, vector<4x32xf32>
    %298 = vector.extract_strided_slice %291 {offsets = [25, 0], sizes = [4, 32], strides = [1, 1]} : vector<32x32xf32> to vector<4x32xf32>
    %c115 = arith.constant 115 : index
    %c0_233 = arith.constant 0 : index
    %299 = tpu.strided_load %arg20[%c115, %c0_233] {strides = array<i32: 2, 1>} : memref<162x32xf32, #tpu.memory_space<vmem>>, vector<4x32xf32>
    tpu.strided_store %arg20[%c115, %c0_233], %298 {strides = array<i32: 2, 1>} : memref<162x32xf32, #tpu.memory_space<vmem>>, vector<4x32xf32>
    %300 = vector.extract_strided_slice %281 {offsets = [0, 64], sizes = [32, 32], strides = [1, 1]} : vector<32x128xf32> to vector<32x32xf32>
    %301 = vector.extract_strided_slice %300 {offsets = [1, 0], sizes = [4, 32], strides = [1, 1]} : vector<32x32xf32> to vector<4x32xf32>
    %c34_234 = arith.constant 34 : index
    %c0_235 = arith.constant 0 : index
    %302 = tpu.strided_load %arg20[%c34_234, %c0_235] {strides = array<i32: 2, 1>} : memref<162x32xf32, #tpu.memory_space<vmem>>, vector<4x32xf32>
    tpu.strided_store %arg20[%c34_234, %c0_235], %301 {strides = array<i32: 2, 1>} : memref<162x32xf32, #tpu.memory_space<vmem>>, vector<4x32xf32>
    %303 = vector.extract_strided_slice %300 {offsets = [9, 0], sizes = [4, 32], strides = [1, 1]} : vector<32x32xf32> to vector<4x32xf32>
    %c66_236 = arith.constant 66 : index
    %c0_237 = arith.constant 0 : index
    %304 = tpu.strided_load %arg20[%c66_236, %c0_237] {strides = array<i32: 2, 1>} : memref<162x32xf32, #tpu.memory_space<vmem>>, vector<4x32xf32>
    tpu.strided_store %arg20[%c66_236, %c0_237], %303 {strides = array<i32: 2, 1>} : memref<162x32xf32, #tpu.memory_space<vmem>>, vector<4x32xf32>
    %305 = vector.extract_strided_slice %300 {offsets = [17, 0], sizes = [4, 32], strides = [1, 1]} : vector<32x32xf32> to vector<4x32xf32>
    %c98_238 = arith.constant 98 : index
    %c0_239 = arith.constant 0 : index
    %306 = tpu.strided_load %arg20[%c98_238, %c0_239] {strides = array<i32: 2, 1>} : memref<162x32xf32, #tpu.memory_space<vmem>>, vector<4x32xf32>
    tpu.strided_store %arg20[%c98_238, %c0_239], %305 {strides = array<i32: 2, 1>} : memref<162x32xf32, #tpu.memory_space<vmem>>, vector<4x32xf32>
    %307 = vector.extract_strided_slice %300 {offsets = [25, 0], sizes = [4, 32], strides = [1, 1]} : vector<32x32xf32> to vector<4x32xf32>
    %c130_240 = arith.constant 130 : index
    %c0_241 = arith.constant 0 : index
    %308 = tpu.strided_load %arg20[%c130_240, %c0_241] {strides = array<i32: 2, 1>} : memref<162x32xf32, #tpu.memory_space<vmem>>, vector<4x32xf32>
    tpu.strided_store %arg20[%c130_240, %c0_241], %307 {strides = array<i32: 2, 1>} : memref<162x32xf32, #tpu.memory_space<vmem>>, vector<4x32xf32>
    %309 = vector.extract_strided_slice %281 {offsets = [0, 96], sizes = [32, 32], strides = [1, 1]} : vector<32x128xf32> to vector<32x32xf32>
    %310 = vector.extract_strided_slice %309 {offsets = [1, 0], sizes = [4, 32], strides = [1, 1]} : vector<32x32xf32> to vector<4x32xf32>
    %c35 = arith.constant 35 : index
    %c0_242 = arith.constant 0 : index
    %311 = tpu.strided_load %arg20[%c35, %c0_242] {strides = array<i32: 2, 1>} : memref<162x32xf32, #tpu.memory_space<vmem>>, vector<4x32xf32>
    tpu.strided_store %arg20[%c35, %c0_242], %310 {strides = array<i32: 2, 1>} : memref<162x32xf32, #tpu.memory_space<vmem>>, vector<4x32xf32>
    %312 = vector.extract_strided_slice %309 {offsets = [9, 0], sizes = [4, 32], strides = [1, 1]} : vector<32x32xf32> to vector<4x32xf32>
    %c67 = arith.constant 67 : index
    %c0_243 = arith.constant 0 : index
    %313 = tpu.strided_load %arg20[%c67, %c0_243] {strides = array<i32: 2, 1>} : memref<162x32xf32, #tpu.memory_space<vmem>>, vector<4x32xf32>
    tpu.strided_store %arg20[%c67, %c0_243], %312 {strides = array<i32: 2, 1>} : memref<162x32xf32, #tpu.memory_space<vmem>>, vector<4x32xf32>
    %314 = vector.extract_strided_slice %309 {offsets = [17, 0], sizes = [4, 32], strides = [1, 1]} : vector<32x32xf32> to vector<4x32xf32>
    %c99 = arith.constant 99 : index
    %c0_244 = arith.constant 0 : index
    %315 = tpu.strided_load %arg20[%c99, %c0_244] {strides = array<i32: 2, 1>} : memref<162x32xf32, #tpu.memory_space<vmem>>, vector<4x32xf32>
    tpu.strided_store %arg20[%c99, %c0_244], %314 {strides = array<i32: 2, 1>} : memref<162x32xf32, #tpu.memory_space<vmem>>, vector<4x32xf32>
    %316 = vector.extract_strided_slice %309 {offsets = [25, 0], sizes = [4, 32], strides = [1, 1]} : vector<32x32xf32> to vector<4x32xf32>
    %c131 = arith.constant 131 : index
    %c0_245 = arith.constant 0 : index
    %317 = tpu.strided_load %arg20[%c131, %c0_245] {strides = array<i32: 2, 1>} : memref<162x32xf32, #tpu.memory_space<vmem>>, vector<4x32xf32>
    tpu.strided_store %arg20[%c131, %c0_245], %316 {strides = array<i32: 2, 1>} : memref<162x32xf32, #tpu.memory_space<vmem>>, vector<4x32xf32>
    %c0_246 = arith.constant 0 : index
    %c0_247 = arith.constant 0 : index
    %318 = vector.load %arg20[%c0_246, %c0_247] : memref<162x32xf32, #tpu.memory_space<vmem>>, vector<128x32xf32>
    %319 = arith.truncf %318 : vector<128x32xf32> to vector<128x32xbf16>
    %c1_248 = arith.constant 1 : index
    %c0_249 = arith.constant 0 : index
    %320 = vector.load %arg20[%c1_248, %c0_249] : memref<162x32xf32, #tpu.memory_space<vmem>>, vector<128x32xf32>
    %321 = arith.truncf %320 : vector<128x32xf32> to vector<128x32xbf16>
    %c2_250 = arith.constant 2 : index
    %c0_251 = arith.constant 0 : index
    %322 = vector.load %arg20[%c2_250, %c0_251] : memref<162x32xf32, #tpu.memory_space<vmem>>, vector<128x32xf32>
    %323 = arith.truncf %322 : vector<128x32xf32> to vector<128x32xbf16>
    %c16_252 = arith.constant 16 : index
    %c0_253 = arith.constant 0 : index
    %324 = vector.load %arg20[%c16_252, %c0_253] : memref<162x32xf32, #tpu.memory_space<vmem>>, vector<128x32xf32>
    %325 = arith.truncf %324 : vector<128x32xf32> to vector<128x32xbf16>
    %c17_254 = arith.constant 17 : index
    %c0_255 = arith.constant 0 : index
    %326 = vector.load %arg20[%c17_254, %c0_255] : memref<162x32xf32, #tpu.memory_space<vmem>>, vector<128x32xf32>
    %327 = arith.truncf %326 : vector<128x32xf32> to vector<128x32xbf16>
    %c18_256 = arith.constant 18 : index
    %c0_257 = arith.constant 0 : index
    %328 = vector.load %arg20[%c18_256, %c0_257] : memref<162x32xf32, #tpu.memory_space<vmem>>, vector<128x32xf32>
    %329 = arith.truncf %328 : vector<128x32xf32> to vector<128x32xbf16>
    %c32_258 = arith.constant 32 : index
    %c0_259 = arith.constant 0 : index
    %330 = vector.load %arg20[%c32_258, %c0_259] : memref<162x32xf32, #tpu.memory_space<vmem>>, vector<128x32xf32>
    %331 = arith.truncf %330 : vector<128x32xf32> to vector<128x32xbf16>
    %c33_260 = arith.constant 33 : index
    %c0_261 = arith.constant 0 : index
    %332 = vector.load %arg20[%c33_260, %c0_261] : memref<162x32xf32, #tpu.memory_space<vmem>>, vector<128x32xf32>
    %333 = arith.truncf %332 : vector<128x32xf32> to vector<128x32xbf16>
    %c34_262 = arith.constant 34 : index
    %c0_263 = arith.constant 0 : index
    %334 = vector.load %arg20[%c34_262, %c0_263] : memref<162x32xf32, #tpu.memory_space<vmem>>, vector<128x32xf32>
    %335 = arith.truncf %334 : vector<128x32xf32> to vector<128x32xbf16>
    %336 = tpu.concatenate %319, %321, %323, %325, %327, %329, %331, %333, %335 in 1 : vector<128x32xbf16>, vector<128x32xbf16>, vector<128x32xbf16>, vector<128x32xbf16>, vector<128x32xbf16>, vector<128x32xbf16>, vector<128x32xbf16>, vector<128x32xbf16>, vector<128x32xbf16> -> vector<128x288xbf16>
    %c0_264 = arith.constant 0 : index
    %c0_265 = arith.constant 0 : index
    %337 = vector.load %arg10[%c0_264, %c0_265] : memref<288x64xbf16, #tpu.memory_space<vmem>>, vector<288x64xbf16>
    %cst_266 = arith.constant dense<0.000000e+00> : vector<128x64xf32>
    %338 = tpu.matmul %336, %337, %cst_266 {dimension_numbers = #tpu.dot_dimension_numbers<[1], [0], [0], [1], [0, 0, 1, 1], [], []>} : vector<128x288xbf16>, vector<288x64xbf16>, vector<128x64xf32> -> vector<128x64xf32>
    %c0_267 = arith.constant 0 : index
    %c0_268 = arith.constant 0 : index
    %339 = vector.load %arg11[%c0_267, %c0_268] : memref<1x64xf32, #tpu.memory_space<vmem>>, vector<1x64xf32>
    %340 = vector.broadcast %339 : vector<1x64xf32> to vector<128x64xf32>
    %341 = arith.addf %338, %340 : vector<128x64xf32>
    %cst_269 = arith.constant 0.000000e+00 : f32
    %342 = vector.broadcast %cst_269 : f32 to vector<128x64xf32>
    %343 = arith.maximumf %341, %342 : vector<128x64xf32>
    %344 = vector.extract_strided_slice %343 {offsets = [0, 0], sizes = [128, 16], strides = [1, 1]} : vector<128x64xf32> to vector<128x16xf32>
    %345 = vector.extract_strided_slice %344 {offsets = [1, 0], sizes = [8, 16], strides = [1, 1]} : vector<128x16xf32> to vector<8x16xf32>
    %c26_270 = arith.constant 26 : index
    %c0_271 = arith.constant 0 : index
    %346 = tpu.strided_load %arg21[%c26_270, %c0_271] {strides = array<i32: 2, 1>} : memref<434x16xf32, #tpu.memory_space<vmem>>, vector<8x16xf32>
    tpu.strided_store %arg21[%c26_270, %c0_271], %345 {strides = array<i32: 2, 1>} : memref<434x16xf32, #tpu.memory_space<vmem>>, vector<8x16xf32>
    %347 = vector.extract_strided_slice %344 {offsets = [17, 0], sizes = [8, 16], strides = [1, 1]} : vector<128x16xf32> to vector<8x16xf32>
    %c74 = arith.constant 74 : index
    %c0_272 = arith.constant 0 : index
    %348 = tpu.strided_load %arg21[%c74, %c0_272] {strides = array<i32: 2, 1>} : memref<434x16xf32, #tpu.memory_space<vmem>>, vector<8x16xf32>
    tpu.strided_store %arg21[%c74, %c0_272], %347 {strides = array<i32: 2, 1>} : memref<434x16xf32, #tpu.memory_space<vmem>>, vector<8x16xf32>
    %349 = vector.extract_strided_slice %344 {offsets = [33, 0], sizes = [8, 16], strides = [1, 1]} : vector<128x16xf32> to vector<8x16xf32>
    %c122 = arith.constant 122 : index
    %c0_273 = arith.constant 0 : index
    %350 = tpu.strided_load %arg21[%c122, %c0_273] {strides = array<i32: 2, 1>} : memref<434x16xf32, #tpu.memory_space<vmem>>, vector<8x16xf32>
    tpu.strided_store %arg21[%c122, %c0_273], %349 {strides = array<i32: 2, 1>} : memref<434x16xf32, #tpu.memory_space<vmem>>, vector<8x16xf32>
    %351 = vector.extract_strided_slice %344 {offsets = [49, 0], sizes = [8, 16], strides = [1, 1]} : vector<128x16xf32> to vector<8x16xf32>
    %c170 = arith.constant 170 : index
    %c0_274 = arith.constant 0 : index
    %352 = tpu.strided_load %arg21[%c170, %c0_274] {strides = array<i32: 2, 1>} : memref<434x16xf32, #tpu.memory_space<vmem>>, vector<8x16xf32>
    tpu.strided_store %arg21[%c170, %c0_274], %351 {strides = array<i32: 2, 1>} : memref<434x16xf32, #tpu.memory_space<vmem>>, vector<8x16xf32>
    %353 = vector.extract_strided_slice %344 {offsets = [65, 0], sizes = [8, 16], strides = [1, 1]} : vector<128x16xf32> to vector<8x16xf32>
    %c218 = arith.constant 218 : index
    %c0_275 = arith.constant 0 : index
    %354 = tpu.strided_load %arg21[%c218, %c0_275] {strides = array<i32: 2, 1>} : memref<434x16xf32, #tpu.memory_space<vmem>>, vector<8x16xf32>
    tpu.strided_store %arg21[%c218, %c0_275], %353 {strides = array<i32: 2, 1>} : memref<434x16xf32, #tpu.memory_space<vmem>>, vector<8x16xf32>
    %355 = vector.extract_strided_slice %344 {offsets = [81, 0], sizes = [8, 16], strides = [1, 1]} : vector<128x16xf32> to vector<8x16xf32>
    %c266 = arith.constant 266 : index
    %c0_276 = arith.constant 0 : index
    %356 = tpu.strided_load %arg21[%c266, %c0_276] {strides = array<i32: 2, 1>} : memref<434x16xf32, #tpu.memory_space<vmem>>, vector<8x16xf32>
    tpu.strided_store %arg21[%c266, %c0_276], %355 {strides = array<i32: 2, 1>} : memref<434x16xf32, #tpu.memory_space<vmem>>, vector<8x16xf32>
    %357 = vector.extract_strided_slice %344 {offsets = [97, 0], sizes = [8, 16], strides = [1, 1]} : vector<128x16xf32> to vector<8x16xf32>
    %c314 = arith.constant 314 : index
    %c0_277 = arith.constant 0 : index
    %358 = tpu.strided_load %arg21[%c314, %c0_277] {strides = array<i32: 2, 1>} : memref<434x16xf32, #tpu.memory_space<vmem>>, vector<8x16xf32>
    tpu.strided_store %arg21[%c314, %c0_277], %357 {strides = array<i32: 2, 1>} : memref<434x16xf32, #tpu.memory_space<vmem>>, vector<8x16xf32>
    %359 = vector.extract_strided_slice %344 {offsets = [113, 0], sizes = [8, 16], strides = [1, 1]} : vector<128x16xf32> to vector<8x16xf32>
    %c362 = arith.constant 362 : index
    %c0_278 = arith.constant 0 : index
    %360 = tpu.strided_load %arg21[%c362, %c0_278] {strides = array<i32: 2, 1>} : memref<434x16xf32, #tpu.memory_space<vmem>>, vector<8x16xf32>
    tpu.strided_store %arg21[%c362, %c0_278], %359 {strides = array<i32: 2, 1>} : memref<434x16xf32, #tpu.memory_space<vmem>>, vector<8x16xf32>
    %361 = vector.extract_strided_slice %343 {offsets = [0, 16], sizes = [128, 16], strides = [1, 1]} : vector<128x64xf32> to vector<128x16xf32>
    %362 = vector.extract_strided_slice %361 {offsets = [1, 0], sizes = [8, 16], strides = [1, 1]} : vector<128x16xf32> to vector<8x16xf32>
    %c27 = arith.constant 27 : index
    %c0_279 = arith.constant 0 : index
    %363 = tpu.strided_load %arg21[%c27, %c0_279] {strides = array<i32: 2, 1>} : memref<434x16xf32, #tpu.memory_space<vmem>>, vector<8x16xf32>
    tpu.strided_store %arg21[%c27, %c0_279], %362 {strides = array<i32: 2, 1>} : memref<434x16xf32, #tpu.memory_space<vmem>>, vector<8x16xf32>
    %364 = vector.extract_strided_slice %361 {offsets = [17, 0], sizes = [8, 16], strides = [1, 1]} : vector<128x16xf32> to vector<8x16xf32>
    %c75 = arith.constant 75 : index
    %c0_280 = arith.constant 0 : index
    %365 = tpu.strided_load %arg21[%c75, %c0_280] {strides = array<i32: 2, 1>} : memref<434x16xf32, #tpu.memory_space<vmem>>, vector<8x16xf32>
    tpu.strided_store %arg21[%c75, %c0_280], %364 {strides = array<i32: 2, 1>} : memref<434x16xf32, #tpu.memory_space<vmem>>, vector<8x16xf32>
    %366 = vector.extract_strided_slice %361 {offsets = [33, 0], sizes = [8, 16], strides = [1, 1]} : vector<128x16xf32> to vector<8x16xf32>
    %c123 = arith.constant 123 : index
    %c0_281 = arith.constant 0 : index
    %367 = tpu.strided_load %arg21[%c123, %c0_281] {strides = array<i32: 2, 1>} : memref<434x16xf32, #tpu.memory_space<vmem>>, vector<8x16xf32>
    tpu.strided_store %arg21[%c123, %c0_281], %366 {strides = array<i32: 2, 1>} : memref<434x16xf32, #tpu.memory_space<vmem>>, vector<8x16xf32>
    %368 = vector.extract_strided_slice %361 {offsets = [49, 0], sizes = [8, 16], strides = [1, 1]} : vector<128x16xf32> to vector<8x16xf32>
    %c171 = arith.constant 171 : index
    %c0_282 = arith.constant 0 : index
    %369 = tpu.strided_load %arg21[%c171, %c0_282] {strides = array<i32: 2, 1>} : memref<434x16xf32, #tpu.memory_space<vmem>>, vector<8x16xf32>
    tpu.strided_store %arg21[%c171, %c0_282], %368 {strides = array<i32: 2, 1>} : memref<434x16xf32, #tpu.memory_space<vmem>>, vector<8x16xf32>
    %370 = vector.extract_strided_slice %361 {offsets = [65, 0], sizes = [8, 16], strides = [1, 1]} : vector<128x16xf32> to vector<8x16xf32>
    %c219 = arith.constant 219 : index
    %c0_283 = arith.constant 0 : index
    %371 = tpu.strided_load %arg21[%c219, %c0_283] {strides = array<i32: 2, 1>} : memref<434x16xf32, #tpu.memory_space<vmem>>, vector<8x16xf32>
    tpu.strided_store %arg21[%c219, %c0_283], %370 {strides = array<i32: 2, 1>} : memref<434x16xf32, #tpu.memory_space<vmem>>, vector<8x16xf32>
    %372 = vector.extract_strided_slice %361 {offsets = [81, 0], sizes = [8, 16], strides = [1, 1]} : vector<128x16xf32> to vector<8x16xf32>
    %c267 = arith.constant 267 : index
    %c0_284 = arith.constant 0 : index
    %373 = tpu.strided_load %arg21[%c267, %c0_284] {strides = array<i32: 2, 1>} : memref<434x16xf32, #tpu.memory_space<vmem>>, vector<8x16xf32>
    tpu.strided_store %arg21[%c267, %c0_284], %372 {strides = array<i32: 2, 1>} : memref<434x16xf32, #tpu.memory_space<vmem>>, vector<8x16xf32>
    %374 = vector.extract_strided_slice %361 {offsets = [97, 0], sizes = [8, 16], strides = [1, 1]} : vector<128x16xf32> to vector<8x16xf32>
    %c315 = arith.constant 315 : index
    %c0_285 = arith.constant 0 : index
    %375 = tpu.strided_load %arg21[%c315, %c0_285] {strides = array<i32: 2, 1>} : memref<434x16xf32, #tpu.memory_space<vmem>>, vector<8x16xf32>
    tpu.strided_store %arg21[%c315, %c0_285], %374 {strides = array<i32: 2, 1>} : memref<434x16xf32, #tpu.memory_space<vmem>>, vector<8x16xf32>
    %376 = vector.extract_strided_slice %361 {offsets = [113, 0], sizes = [8, 16], strides = [1, 1]} : vector<128x16xf32> to vector<8x16xf32>
    %c363 = arith.constant 363 : index
    %c0_286 = arith.constant 0 : index
    %377 = tpu.strided_load %arg21[%c363, %c0_286] {strides = array<i32: 2, 1>} : memref<434x16xf32, #tpu.memory_space<vmem>>, vector<8x16xf32>
    tpu.strided_store %arg21[%c363, %c0_286], %376 {strides = array<i32: 2, 1>} : memref<434x16xf32, #tpu.memory_space<vmem>>, vector<8x16xf32>
    %378 = vector.extract_strided_slice %343 {offsets = [0, 32], sizes = [128, 16], strides = [1, 1]} : vector<128x64xf32> to vector<128x16xf32>
    %379 = vector.extract_strided_slice %378 {offsets = [1, 0], sizes = [8, 16], strides = [1, 1]} : vector<128x16xf32> to vector<8x16xf32>
    %c50_287 = arith.constant 50 : index
    %c0_288 = arith.constant 0 : index
    %380 = tpu.strided_load %arg21[%c50_287, %c0_288] {strides = array<i32: 2, 1>} : memref<434x16xf32, #tpu.memory_space<vmem>>, vector<8x16xf32>
    tpu.strided_store %arg21[%c50_287, %c0_288], %379 {strides = array<i32: 2, 1>} : memref<434x16xf32, #tpu.memory_space<vmem>>, vector<8x16xf32>
    %381 = vector.extract_strided_slice %378 {offsets = [17, 0], sizes = [8, 16], strides = [1, 1]} : vector<128x16xf32> to vector<8x16xf32>
    %c98_289 = arith.constant 98 : index
    %c0_290 = arith.constant 0 : index
    %382 = tpu.strided_load %arg21[%c98_289, %c0_290] {strides = array<i32: 2, 1>} : memref<434x16xf32, #tpu.memory_space<vmem>>, vector<8x16xf32>
    tpu.strided_store %arg21[%c98_289, %c0_290], %381 {strides = array<i32: 2, 1>} : memref<434x16xf32, #tpu.memory_space<vmem>>, vector<8x16xf32>
    %383 = vector.extract_strided_slice %378 {offsets = [33, 0], sizes = [8, 16], strides = [1, 1]} : vector<128x16xf32> to vector<8x16xf32>
    %c146_291 = arith.constant 146 : index
    %c0_292 = arith.constant 0 : index
    %384 = tpu.strided_load %arg21[%c146_291, %c0_292] {strides = array<i32: 2, 1>} : memref<434x16xf32, #tpu.memory_space<vmem>>, vector<8x16xf32>
    tpu.strided_store %arg21[%c146_291, %c0_292], %383 {strides = array<i32: 2, 1>} : memref<434x16xf32, #tpu.memory_space<vmem>>, vector<8x16xf32>
    %385 = vector.extract_strided_slice %378 {offsets = [49, 0], sizes = [8, 16], strides = [1, 1]} : vector<128x16xf32> to vector<8x16xf32>
    %c194_293 = arith.constant 194 : index
    %c0_294 = arith.constant 0 : index
    %386 = tpu.strided_load %arg21[%c194_293, %c0_294] {strides = array<i32: 2, 1>} : memref<434x16xf32, #tpu.memory_space<vmem>>, vector<8x16xf32>
    tpu.strided_store %arg21[%c194_293, %c0_294], %385 {strides = array<i32: 2, 1>} : memref<434x16xf32, #tpu.memory_space<vmem>>, vector<8x16xf32>
    %387 = vector.extract_strided_slice %378 {offsets = [65, 0], sizes = [8, 16], strides = [1, 1]} : vector<128x16xf32> to vector<8x16xf32>
    %c242_295 = arith.constant 242 : index
    %c0_296 = arith.constant 0 : index
    %388 = tpu.strided_load %arg21[%c242_295, %c0_296] {strides = array<i32: 2, 1>} : memref<434x16xf32, #tpu.memory_space<vmem>>, vector<8x16xf32>
    tpu.strided_store %arg21[%c242_295, %c0_296], %387 {strides = array<i32: 2, 1>} : memref<434x16xf32, #tpu.memory_space<vmem>>, vector<8x16xf32>
    %389 = vector.extract_strided_slice %378 {offsets = [81, 0], sizes = [8, 16], strides = [1, 1]} : vector<128x16xf32> to vector<8x16xf32>
    %c290_297 = arith.constant 290 : index
    %c0_298 = arith.constant 0 : index
    %390 = tpu.strided_load %arg21[%c290_297, %c0_298] {strides = array<i32: 2, 1>} : memref<434x16xf32, #tpu.memory_space<vmem>>, vector<8x16xf32>
    tpu.strided_store %arg21[%c290_297, %c0_298], %389 {strides = array<i32: 2, 1>} : memref<434x16xf32, #tpu.memory_space<vmem>>, vector<8x16xf32>
    %391 = vector.extract_strided_slice %378 {offsets = [97, 0], sizes = [8, 16], strides = [1, 1]} : vector<128x16xf32> to vector<8x16xf32>
    %c338_299 = arith.constant 338 : index
    %c0_300 = arith.constant 0 : index
    %392 = tpu.strided_load %arg21[%c338_299, %c0_300] {strides = array<i32: 2, 1>} : memref<434x16xf32, #tpu.memory_space<vmem>>, vector<8x16xf32>
    tpu.strided_store %arg21[%c338_299, %c0_300], %391 {strides = array<i32: 2, 1>} : memref<434x16xf32, #tpu.memory_space<vmem>>, vector<8x16xf32>
    %393 = vector.extract_strided_slice %378 {offsets = [113, 0], sizes = [8, 16], strides = [1, 1]} : vector<128x16xf32> to vector<8x16xf32>
    %c386 = arith.constant 386 : index
    %c0_301 = arith.constant 0 : index
    %394 = tpu.strided_load %arg21[%c386, %c0_301] {strides = array<i32: 2, 1>} : memref<434x16xf32, #tpu.memory_space<vmem>>, vector<8x16xf32>
    tpu.strided_store %arg21[%c386, %c0_301], %393 {strides = array<i32: 2, 1>} : memref<434x16xf32, #tpu.memory_space<vmem>>, vector<8x16xf32>
    %395 = vector.extract_strided_slice %343 {offsets = [0, 48], sizes = [128, 16], strides = [1, 1]} : vector<128x64xf32> to vector<128x16xf32>
    %396 = vector.extract_strided_slice %395 {offsets = [1, 0], sizes = [8, 16], strides = [1, 1]} : vector<128x16xf32> to vector<8x16xf32>
    %c51_302 = arith.constant 51 : index
    %c0_303 = arith.constant 0 : index
    %397 = tpu.strided_load %arg21[%c51_302, %c0_303] {strides = array<i32: 2, 1>} : memref<434x16xf32, #tpu.memory_space<vmem>>, vector<8x16xf32>
    tpu.strided_store %arg21[%c51_302, %c0_303], %396 {strides = array<i32: 2, 1>} : memref<434x16xf32, #tpu.memory_space<vmem>>, vector<8x16xf32>
    %398 = vector.extract_strided_slice %395 {offsets = [17, 0], sizes = [8, 16], strides = [1, 1]} : vector<128x16xf32> to vector<8x16xf32>
    %c99_304 = arith.constant 99 : index
    %c0_305 = arith.constant 0 : index
    %399 = tpu.strided_load %arg21[%c99_304, %c0_305] {strides = array<i32: 2, 1>} : memref<434x16xf32, #tpu.memory_space<vmem>>, vector<8x16xf32>
    tpu.strided_store %arg21[%c99_304, %c0_305], %398 {strides = array<i32: 2, 1>} : memref<434x16xf32, #tpu.memory_space<vmem>>, vector<8x16xf32>
    %400 = vector.extract_strided_slice %395 {offsets = [33, 0], sizes = [8, 16], strides = [1, 1]} : vector<128x16xf32> to vector<8x16xf32>
    %c147 = arith.constant 147 : index
    %c0_306 = arith.constant 0 : index
    %401 = tpu.strided_load %arg21[%c147, %c0_306] {strides = array<i32: 2, 1>} : memref<434x16xf32, #tpu.memory_space<vmem>>, vector<8x16xf32>
    tpu.strided_store %arg21[%c147, %c0_306], %400 {strides = array<i32: 2, 1>} : memref<434x16xf32, #tpu.memory_space<vmem>>, vector<8x16xf32>
    %402 = vector.extract_strided_slice %395 {offsets = [49, 0], sizes = [8, 16], strides = [1, 1]} : vector<128x16xf32> to vector<8x16xf32>
    %c195 = arith.constant 195 : index
    %c0_307 = arith.constant 0 : index
    %403 = tpu.strided_load %arg21[%c195, %c0_307] {strides = array<i32: 2, 1>} : memref<434x16xf32, #tpu.memory_space<vmem>>, vector<8x16xf32>
    tpu.strided_store %arg21[%c195, %c0_307], %402 {strides = array<i32: 2, 1>} : memref<434x16xf32, #tpu.memory_space<vmem>>, vector<8x16xf32>
    %404 = vector.extract_strided_slice %395 {offsets = [65, 0], sizes = [8, 16], strides = [1, 1]} : vector<128x16xf32> to vector<8x16xf32>
    %c243 = arith.constant 243 : index
    %c0_308 = arith.constant 0 : index
    %405 = tpu.strided_load %arg21[%c243, %c0_308] {strides = array<i32: 2, 1>} : memref<434x16xf32, #tpu.memory_space<vmem>>, vector<8x16xf32>
    tpu.strided_store %arg21[%c243, %c0_308], %404 {strides = array<i32: 2, 1>} : memref<434x16xf32, #tpu.memory_space<vmem>>, vector<8x16xf32>
    %406 = vector.extract_strided_slice %395 {offsets = [81, 0], sizes = [8, 16], strides = [1, 1]} : vector<128x16xf32> to vector<8x16xf32>
    %c291 = arith.constant 291 : index
    %c0_309 = arith.constant 0 : index
    %407 = tpu.strided_load %arg21[%c291, %c0_309] {strides = array<i32: 2, 1>} : memref<434x16xf32, #tpu.memory_space<vmem>>, vector<8x16xf32>
    tpu.strided_store %arg21[%c291, %c0_309], %406 {strides = array<i32: 2, 1>} : memref<434x16xf32, #tpu.memory_space<vmem>>, vector<8x16xf32>
    %408 = vector.extract_strided_slice %395 {offsets = [97, 0], sizes = [8, 16], strides = [1, 1]} : vector<128x16xf32> to vector<8x16xf32>
    %c339 = arith.constant 339 : index
    %c0_310 = arith.constant 0 : index
    %409 = tpu.strided_load %arg21[%c339, %c0_310] {strides = array<i32: 2, 1>} : memref<434x16xf32, #tpu.memory_space<vmem>>, vector<8x16xf32>
    tpu.strided_store %arg21[%c339, %c0_310], %408 {strides = array<i32: 2, 1>} : memref<434x16xf32, #tpu.memory_space<vmem>>, vector<8x16xf32>
    %410 = vector.extract_strided_slice %395 {offsets = [113, 0], sizes = [8, 16], strides = [1, 1]} : vector<128x16xf32> to vector<8x16xf32>
    %c387 = arith.constant 387 : index
    %c0_311 = arith.constant 0 : index
    %411 = tpu.strided_load %arg21[%c387, %c0_311] {strides = array<i32: 2, 1>} : memref<434x16xf32, #tpu.memory_space<vmem>>, vector<8x16xf32>
    tpu.strided_store %arg21[%c387, %c0_311], %410 {strides = array<i32: 2, 1>} : memref<434x16xf32, #tpu.memory_space<vmem>>, vector<8x16xf32>
    %c0_312 = arith.constant 0 : index
    %c0_313 = arith.constant 0 : index
    %412 = vector.load %arg21[%c0_312, %c0_313] : memref<434x16xf32, #tpu.memory_space<vmem>>, vector<384x16xf32>
    %413 = arith.truncf %412 : vector<384x16xf32> to vector<384x16xbf16>
    %c1_314 = arith.constant 1 : index
    %c0_315 = arith.constant 0 : index
    %414 = vector.load %arg21[%c1_314, %c0_315] : memref<434x16xf32, #tpu.memory_space<vmem>>, vector<384x16xf32>
    %415 = arith.truncf %414 : vector<384x16xf32> to vector<384x16xbf16>
    %c2_316 = arith.constant 2 : index
    %c0_317 = arith.constant 0 : index
    %416 = vector.load %arg21[%c2_316, %c0_317] : memref<434x16xf32, #tpu.memory_space<vmem>>, vector<384x16xf32>
    %417 = arith.truncf %416 : vector<384x16xf32> to vector<384x16xbf16>
    %c24_318 = arith.constant 24 : index
    %c0_319 = arith.constant 0 : index
    %418 = vector.load %arg21[%c24_318, %c0_319] : memref<434x16xf32, #tpu.memory_space<vmem>>, vector<384x16xf32>
    %419 = arith.truncf %418 : vector<384x16xf32> to vector<384x16xbf16>
    %c25_320 = arith.constant 25 : index
    %c0_321 = arith.constant 0 : index
    %420 = vector.load %arg21[%c25_320, %c0_321] : memref<434x16xf32, #tpu.memory_space<vmem>>, vector<384x16xf32>
    %421 = arith.truncf %420 : vector<384x16xf32> to vector<384x16xbf16>
    %c26_322 = arith.constant 26 : index
    %c0_323 = arith.constant 0 : index
    %422 = vector.load %arg21[%c26_322, %c0_323] : memref<434x16xf32, #tpu.memory_space<vmem>>, vector<384x16xf32>
    %423 = arith.truncf %422 : vector<384x16xf32> to vector<384x16xbf16>
    %c48_324 = arith.constant 48 : index
    %c0_325 = arith.constant 0 : index
    %424 = vector.load %arg21[%c48_324, %c0_325] : memref<434x16xf32, #tpu.memory_space<vmem>>, vector<384x16xf32>
    %425 = arith.truncf %424 : vector<384x16xf32> to vector<384x16xbf16>
    %c49_326 = arith.constant 49 : index
    %c0_327 = arith.constant 0 : index
    %426 = vector.load %arg21[%c49_326, %c0_327] : memref<434x16xf32, #tpu.memory_space<vmem>>, vector<384x16xf32>
    %427 = arith.truncf %426 : vector<384x16xf32> to vector<384x16xbf16>
    %c50_328 = arith.constant 50 : index
    %c0_329 = arith.constant 0 : index
    %428 = vector.load %arg21[%c50_328, %c0_329] : memref<434x16xf32, #tpu.memory_space<vmem>>, vector<384x16xf32>
    %429 = arith.truncf %428 : vector<384x16xf32> to vector<384x16xbf16>
    %430 = tpu.concatenate %413, %415, %417, %419, %421, %423, %425, %427, %429 in 1 : vector<384x16xbf16>, vector<384x16xbf16>, vector<384x16xbf16>, vector<384x16xbf16>, vector<384x16xbf16>, vector<384x16xbf16>, vector<384x16xbf16>, vector<384x16xbf16>, vector<384x16xbf16> -> vector<384x144xbf16>
    %c0_330 = arith.constant 0 : index
    %c0_331 = arith.constant 0 : index
    %431 = vector.load %arg12[%c0_330, %c0_331] : memref<144x1xbf16, #tpu.memory_space<vmem>>, vector<144x1xbf16>
    %cst_332 = arith.constant dense<0.000000e+00> : vector<384x1xf32>
    %432 = tpu.matmul %430, %431, %cst_332 {dimension_numbers = #tpu.dot_dimension_numbers<[1], [0], [0], [1], [0, 0, 1, 1], [], []>} : vector<384x144xbf16>, vector<144x1xbf16>, vector<384x1xf32> -> vector<384x1xf32>
    %c0_333 = arith.constant 0 : index
    %c0_334 = arith.constant 0 : index
    %433 = vector.load %arg13[%c0_333, %c0_334] : memref<1x1xf32, #tpu.memory_space<vmem>>, vector<1x1xf32>
    %434 = vector.broadcast %433 : vector<1x1xf32> to vector<384x1xf32>
    %435 = arith.addf %432, %434 : vector<384x1xf32>
    %c0_335 = arith.constant 0 : index
    %c0_336 = arith.constant 0 : index
    %436 = vector.load %arg14[%c0_335, %c0_336] : memref<384x1xf32, #tpu.memory_space<vmem>>, vector<384x1xf32>
    tpu.vector_store %arg14[%c0_335, %c0_336], %435 {strides = array<i32>} : memref<384x1xf32, #tpu.memory_space<vmem>>, vector<384x1xf32>,
    return
  }
  func.func @transform_0(%arg0: i32) -> (i32, i32) {
    %c0_i32 = arith.constant 0 : i32
    %c0_i32_0 = arith.constant 0 : i32
    return %arg0, %c0_i32 : i32, i32
  }
  func.func @transform_1(%arg0: i32) -> (i32, i32) {
    %c0_i32 = arith.constant 0 : i32
    %c0_i32_0 = arith.constant 0 : i32
    %c0_i32_1 = arith.constant 0 : i32
    return %c0_i32, %c0_i32_0 : i32, i32
  }
  func.func @transform_2(%arg0: i32) -> (i32, i32) {
    %c0_i32 = arith.constant 0 : i32
    %c0_i32_0 = arith.constant 0 : i32
    %c0_i32_1 = arith.constant 0 : i32
    return %c0_i32, %c0_i32_0 : i32, i32
  }
  func.func @transform_3(%arg0: i32) -> (i32, i32) {
    %c0_i32 = arith.constant 0 : i32
    %c0_i32_0 = arith.constant 0 : i32
    %c0_i32_1 = arith.constant 0 : i32
    return %c0_i32, %c0_i32_0 : i32, i32
  }
  func.func @transform_4(%arg0: i32) -> (i32, i32) {
    %c0_i32 = arith.constant 0 : i32
    %c0_i32_0 = arith.constant 0 : i32
    %c0_i32_1 = arith.constant 0 : i32
    return %c0_i32, %c0_i32_0 : i32, i32
  }
  func.func @transform_5(%arg0: i32) -> (i32, i32) {
    %c0_i32 = arith.constant 0 : i32
    %c0_i32_0 = arith.constant 0 : i32
    %c0_i32_1 = arith.constant 0 : i32
    return %c0_i32, %c0_i32_0 : i32, i32
  }
  func.func @transform_6(%arg0: i32) -> (i32, i32) {
    %c0_i32 = arith.constant 0 : i32
    %c0_i32_0 = arith.constant 0 : i32
    %c0_i32_1 = arith.constant 0 : i32
    return %c0_i32, %c0_i32_0 : i32, i32
  }
  func.func @transform_7(%arg0: i32) -> (i32, i32) {
    %c0_i32 = arith.constant 0 : i32
    %c0_i32_0 = arith.constant 0 : i32
    %c0_i32_1 = arith.constant 0 : i32
    return %c0_i32, %c0_i32_0 : i32, i32
  }
  func.func @transform_8(%arg0: i32) -> (i32, i32) {
    %c0_i32 = arith.constant 0 : i32
    %c0_i32_0 = arith.constant 0 : i32
    %c0_i32_1 = arith.constant 0 : i32
    return %c0_i32, %c0_i32_0 : i32, i32
  }
  func.func @transform_9(%arg0: i32) -> (i32, i32) {
    %c0_i32 = arith.constant 0 : i32
    %c0_i32_0 = arith.constant 0 : i32
    %c0_i32_1 = arith.constant 0 : i32
    return %c0_i32, %c0_i32_0 : i32, i32
  }
  func.func @transform_10(%arg0: i32) -> (i32, i32) {
    %c0_i32 = arith.constant 0 : i32
    %c0_i32_0 = arith.constant 0 : i32
    %c0_i32_1 = arith.constant 0 : i32
    return %c0_i32, %c0_i32_0 : i32, i32
  }
  func.func @transform_11(%arg0: i32) -> (i32, i32) {
    %c0_i32 = arith.constant 0 : i32
    %c0_i32_0 = arith.constant 0 : i32
    %c0_i32_1 = arith.constant 0 : i32
    return %c0_i32, %c0_i32_0 : i32, i32
  }
  func.func @transform_12(%arg0: i32) -> (i32, i32) {
    %c0_i32 = arith.constant 0 : i32
    %c0_i32_0 = arith.constant 0 : i32
    %c0_i32_1 = arith.constant 0 : i32
    return %c0_i32, %c0_i32_0 : i32, i32
  }
  func.func @transform_13(%arg0: i32) -> (i32, i32) {
    %c0_i32 = arith.constant 0 : i32
    %c0_i32_0 = arith.constant 0 : i32
    return %arg0, %c0_i32 : i32, i32
  }
}

</mosaic_0001>

<llo_original>
// kernel: tile.19
$region0: #{tile.19}
  %s0 = inlined_call_operand.vmem [shape: f32[4,16], index: 0, kind: input, shape index: {}]
  %s1 = inlined_call_operand.vmem [shape: f32[1,64], index: 1, kind: output, shape index: {}]
  $region1: #{tile.19} parent=0
    #allocation0 [shape = 'u8[4096]{0}', space=vmem, size = 0x1000, scoped, tag = 'scoped mem for output reshape']
    #allocation1 [shape = 'u8[4096]{0}', space=vmem, size = 0x1000, scoped, tag = 'scoped mem for input reshape']
    %s3 = ssub.s32 16, 1
    %v4 = vld [vmem:[%s0] sm:%s3]
    %5 = vst [vmem:[#allocation1] sm:%s3] %v4
    %v6 = vld [vmem:[#allocation1] sm:$0x1]
    %vm7 = vcmask 130048
    %8 = vst.msk [vmem:[#allocation0] sm:$0x1] %vm7, %v6
    %s9 = scalar_lea.vmem [#allocation1], 3
    %v10 = vld [vmem:[%s9] sm:$0x1]
    %11 = vrot.lane.b32.xlu0 %v10, 48
    %v12 = vpop.permute.xlu0 %11
    %vm13 = vcmask 523648
    %14 = vst.msk [vmem:[#allocation0] sm:$0x1] %vm13, %v12
    %s15 = scalar_lea.vmem [#allocation1], 2
    %v16 = vld [vmem:[%s15] sm:$0x1]
    %17 = vrot.lane.b32.xlu0 %v16, 32
    %v18 = vpop.permute.xlu0 %17
    %vm19 = vcmask 392448
    %20 = vst.msk [vmem:[#allocation0] sm:$0x1] %vm19, %v18
    %s21 = scalar_lea.vmem [#allocation1], 1
    %v22 = vld [vmem:[%s21] sm:$0x1]
    %23 = vrot.lane.b32.xlu0 %v22, 16
    %v24 = vpop.permute.xlu0 %23
    %vm25 = vcmask 261248
    %26 = vst.msk [vmem:[#allocation0] sm:$0x1] %vm25, %v24
    %s28 = ssub.s32 2, 1
    %v29 = vld [vmem:[#allocation0] sm:%s28]
    %s31 = ssub.s32 2, 1
    %32 = vst [vmem:[%s1] sm:%s31] %v29

// kernel: tile.14
$region0: #{tile.14}
  %s0 = inlined_call_operand.vmem [shape: f32[4,32], index: 0, kind: input, shape index: {}]
  %s1 = inlined_call_operand.vmem [shape: f32[1,128], index: 1, kind: output, shape index: {}]
  $region1: #{tile.14} parent=0
    #allocation0 [shape = 'u8[4096]{0}', space=vmem, size = 0x1000, scoped, tag = 'scoped mem for output reshape']
    #allocation1 [shape = 'u8[4096]{0}', space=vmem, size = 0x1000, scoped, tag = 'scoped mem for input reshape']
    %s3 = ssub.s32 16, 1
    %v4 = vld [vmem:[%s0] sm:%s3]
    %5 = vst [vmem:[#allocation1] sm:%s3] %v4
    %v6 = vld [vmem:[#allocation1] sm:$0x1]
    %vm7 = vcmask 261120
    %8 = vst.msk [vmem:[#allocation0] sm:$0x1] %vm7, %v6
    %s9 = scalar_lea.vmem [#allocation1], 3
    %v10 = vld [vmem:[%s9] sm:$0x1]
    %11 = vrot.lane.b32.xlu0 %v10, 96
    %v12 = vpop.permute.xlu0 %11
    %vm13 = vcmask 1048320
    %14 = vst.msk [vmem:[#allocation0] sm:$0x1] %vm13, %v12
    %s15 = scalar_lea.vmem [#allocation1], 2
    %v16 = vld [vmem:[%s15] sm:$0x1]
    %17 = vrot.lane.b32.xlu0 %v16, 64
    %v18 = vpop.permute.xlu0 %17
    %vm19 = vcmask 785920
    %20 = vst.msk [vmem:[#allocation0] sm:$0x1] %vm19, %v18
    %s21 = scalar_lea.vmem [#allocation1], 1
    %v22 = vld [vmem:[%s21] sm:$0x1]
    %23 = vrot.lane.b32.xlu0 %v22, 32
    %v24 = vpop.permute.xlu0 %23
    %vm25 = vcmask 523520
    %26 = vst.msk [vmem:[#allocation0] sm:$0x1] %vm25, %v24
    %s28 = ssub.s32 2, 1
    %v29 = vld [vmem:[#allocation0] sm:%s28]
    %s31 = ssub.s32 2, 1
    %32 = vst [vmem:[%s1] sm:%s31] %v29

// kernel: tile.13
$region0: #{tile.13}
  #allocation2 [shape = 's32[1]{0}', space=sflag, size = 0x4, scoped, tag = 'scoped memory for tile.13']
  %s0 = inlined_call_operand.hbm [shape: f32[32], index: 0, kind: input, shape index: {}]
  %s1 = inlined_call_operand.vmem [shape: f32[4,32], index: 1, kind: output, shape index: {}]
  $region1: #{tile.13} parent=0
    #allocation0 [shape = 'u8[512]{0}', space=vmem, size = 0x400, scoped, tag = 'operand span for operand 0']
    #allocation1 [shape = 's32[1]{0}', space=sflag, size = 0x4, scoped, tag = 'scoped memory for tile.13']
    %2 = vsyncpa [#allocation1], 0
    // Predicated region
    $region2: #{tile.13} parent=1 // pred_check
      _
    $region3: #{tile.13} parent=1 // pred_check_branch
      %4 = sbr.rel (0) target = $region5
    $region4: #{tile.13} parent=1 // pred_region
      %6 = vsyncadd [#allocation1], 0
      %s8 = sshll.u32 %s0, 4
      %s9 = int_to_ptr.hbm [resolvable:$true] %s8
      %s10 = sshll.u32 [#allocation0], 4
      %s11 = int_to_ptr.vmem [resolvable:$true] %s10
      %13 = dma.hbm_to_vmem [thread:$0]  %s9, 16, %s11, [#allocation1]
    $region5: #{tile.13} parent=1 // pred_fallthru
      _
    // Predicated region
    $region6: #{tile.13} parent=1 // pred_check
      _
    $region7: #{tile.13} parent=1 // pred_check_branch
      %15 = sbr.rel (0) target = $region9
    $region8: #{tile.13} parent=1 // pred_region
      %17 = dma.done [#allocation1], 16
    $region9: #{tile.13} parent=1 // pred_fallthru
      _
    %v18 = vld [vmem:[#allocation0] ss:$0 sm:$0xff]
    %19 = vst [vmem:[%s1] sm:$0xf] %v18
    %20 = vsyncpa [#allocation1], 1

// kernel: tile.18
$region0: #{tile.18}
  #allocation2 [shape = 's32[1]{0}', space=sflag, size = 0x4, scoped, tag = 'scoped memory for tile.18']
  %s0 = inlined_call_operand.hbm [shape: f32[16], index: 0, kind: input, shape index: {}]
  %s1 = inlined_call_operand.vmem [shape: f32[4,16], index: 1, kind: output, shape index: {}]
  $region1: #{tile.18} parent=0
    #allocation0 [shape = 'u8[512]{0}', space=vmem, size = 0x400, scoped, tag = 'operand span for operand 0']
    #allocation1 [shape = 's32[1]{0}', space=sflag, size = 0x4, scoped, tag = 'scoped memory for tile.18']
    %2 = vsyncpa [#allocation1], 0
    // Predicated region
    $region2: #{tile.18} parent=1 // pred_check
      _
    $region3: #{tile.18} parent=1 // pred_check_branch
      %4 = sbr.rel (0) target = $region5
    $region4: #{tile.18} parent=1 // pred_region
      %6 = vsyncadd [#allocation1], 0
      %s8 = sshll.u32 %s0, 4
      %s9 = int_to_ptr.hbm [resolvable:$true] %s8
      %s10 = sshll.u32 [#allocation0], 4
      %s11 = int_to_ptr.vmem [resolvable:$true] %s10
      %13 = dma.hbm_to_vmem [thread:$0]  %s9, 16, %s11, [#allocation1]
    $region5: #{tile.18} parent=1 // pred_fallthru
      _
    // Predicated region
    $region6: #{tile.18} parent=1 // pred_check
      _
    $region7: #{tile.18} parent=1 // pred_check_branch
      %15 = sbr.rel (0) target = $region9
    $region8: #{tile.18} parent=1 // pred_region
      %17 = dma.done [#allocation1], 16
    $region9: #{tile.18} parent=1 // pred_fallthru
      _
    %v18 = vld [vmem:[#allocation0] ss:$0 sm:$0xff]
    %19 = vst [vmem:[%s1] sm:$0xf] %v18
    %20 = vsyncpa [#allocation1], 1

// kernel: resnet_forward.1
$region0: #{resnet_forward.1}
  #allocation0 [shape = 'u32[]', space=smem, size = 0x4, offset = 0x4, fixed_abs, tag = 'smem constant byte address 0x4 - core index']
  #allocation1 [shape = 'u32[72,128]{1,0:T(1,128)}', space=vmem, size = 0x9000, scoped, tag = 'internal scratch']
  #allocation2 [shape = 'f32[162,16]{1,0:T(8,128)}', space=vmem, size = 0x15000, scoped, tag = 'scratch operand']
  #allocation3 [shape = 'f32[162,32]{1,0:T(8,128)}', space=vmem, size = 0x15000, scoped, tag = 'scratch operand']
  #allocation4 [shape = 'f32[50,32]{1,0:T(8,128)}', space=vmem, size = 0x7000, scoped, tag = 'scratch operand']
  #allocation5 [shape = 'f32[50,64]{1,0:T(8,128)}', space=vmem, size = 0x7000, scoped, tag = 'scratch operand']
  #allocation6 [shape = 'f32[50,64]{1,0:T(8,128)}', space=vmem, size = 0x7000, scoped, tag = 'scratch operand']
  #allocation7 [shape = 'f32[162,32]{1,0:T(8,128)}', space=vmem, size = 0x15000, scoped, tag = 'scratch operand']
  #allocation8 [shape = 'f32[434,16]{1,0:T(8,128)}', space=vmem, size = 0x37000, scoped, tag = 'scratch operand']
  #allocation9 [shape = 'f32[360,16]{1,0:T(8,128)}', space=vmem, size = 0x2d000, scoped, tag = 'scratch operand']
  #allocation10 [shape = 'f32[112,32]{1,0:T(8,128)}', space=vmem, size = 0xe000, scoped, tag = 'scratch operand']
  #allocation11 [shape = 'f32[1,1]{1,0:T(1,128)S(1)}', space=vmem, size = 0x200, scoped, tag = 'scoped memory for resnet_forward.1']
  %s0 = inlined_call_operand.vmem [shape: f32[880,8], index: 0, kind: input, shape index: {}]
  %s1 = inlined_call_operand.vmem [shape: bf16[72,16], index: 1, kind: input, shape index: {}]
  %s2 = inlined_call_operand.vmem [shape: f32[1,16], index: 2, kind: input, shape index: {}]
  %s3 = inlined_call_operand.vmem [shape: bf16[144,64], index: 3, kind: input, shape index: {}]
  %s4 = inlined_call_operand.vmem [shape: bf16[288,32], index: 4, kind: input, shape index: {}]
  %s5 = inlined_call_operand.vmem [shape: bf16[288,128], index: 5, kind: input, shape index: {}]
  %s6 = inlined_call_operand.vmem [shape: bf16[576,64], index: 6, kind: input, shape index: {}]
  %s7 = inlined_call_operand.vmem [shape: bf16[576,128], index: 7, kind: input, shape index: {}]
  %s8 = inlined_call_operand.vmem [shape: f32[1,128], index: 8, kind: input, shape index: {}]
  %s9 = inlined_call_operand.vmem [shape: bf16[288,64], index: 9, kind: input, shape index: {}]
  %s10 = inlined_call_operand.vmem [shape: f32[1,64], index: 10, kind: input, shape index: {}]
  %s11 = inlined_call_operand.vmem [shape: bf16[144,1], index: 11, kind: input, shape index: {}]
  %s12 = inlined_call_operand.<no memory space> [shape: f32[1,1], index: 12, kind: input, shape index: {}]
  %s13 = inlined_call_operand.vmem [shape: f32[768,1], index: 13, kind: output, shape index: {}]
  %s14 = sld [smem:[#allocation0]]
  $region85: #{resnet_forward.1} parent=0
    _
  %s16 = ssub.s32 1, %s14
  %s17 = scalar_select 0, %s16, %s14
  %v18 = vstv %s12
  %19 = vst [vmem:[#allocation11] sm:$0x1] %v18
  loop: start=0, step=1, limit=4
  $region2: #{resnet_forward.1} parent=0 // loop_pre_header
    _
  $region3: #{resnet_forward.1} parent=0 // loop_header
    %s21 = sphi 0, %s25
    %p22 = scmp.ge.s32.totalorder %s21, 4
    %s31 = sphi 0, %s33
    %s34 = sphi 0, %s31
    %s35 = sphi 0, %s34
    %s51 = sphi 0, %s35
    %s55 = sphi 0, %s55
    %s57 = sphi 0, %s55
    %s58 = sphi 0, %s57
    %s72 = sphi 0, %s58
    %s76 = sphi 0, %s76
    %s78 = sphi 0, %s76
    %s79 = sphi 0, %s78
    %s93 = sphi 0, %s79
    %s97 = sphi 0, %s97
    %s99 = sphi 0, %s97
    %s100 = sphi 0, %s99
    %s114 = sphi 0, %s100
    %s118 = sphi 0, %s118
    %s120 = sphi 0, %s118
    %s121 = sphi 0, %s120
    %s135 = sphi 0, %s121
    %s139 = sphi 0, %s139
    %s141 = sphi 0, %s139
    %s142 = sphi 0, %s141
    %s156 = sphi 0, %s142
    %s160 = sphi 0, %s160
    %s162 = sphi 0, %s160
    %s163 = sphi 0, %s162
    %s177 = sphi 0, %s163
    %s181 = sphi 0, %s181
    %s183 = sphi 0, %s181
    %s184 = sphi 0, %s183
    %s198 = sphi 0, %s184
    %s202 = sphi 0, %s202
    %s204 = sphi 0, %s202
    %s205 = sphi 0, %s204
    %s219 = sphi 0, %s205
    %s223 = sphi 0, %s223
    %s225 = sphi 0, %s223
    %s226 = sphi 0, %s225
    %s240 = sphi 0, %s226
    %s244 = sphi 0, %s244
    %s246 = sphi 0, %s244
    %s247 = sphi 0, %s246
    %s261 = sphi 0, %s247
    %s265 = sphi 0, %s265
    %s267 = sphi 0, %s265
    %s268 = sphi 0, %s267
    %s282 = sphi 0, %s268
    %s286 = sphi 0, %s286
    %s288 = sphi 0, %s286
    %s289 = sphi 0, %s288
    %s303 = sphi 0, %s289
    %s309 = sphi 0, %s311
    %s312 = sphi 0, %s309
    %s313 = sphi 0, %s312
    %s329 = sphi 0, %s313
  $region4: #{resnet_forward.1} parent=0 // loop_header_branch
    %24 = sbr.rel (%p22) target = $region8
  $region5: #{resnet_forward.1} parent=0 // loop_body
    %s26 = ssub.s32 %s21, 1
    %s27 = ssub.s32 %s21, 2
    %s28 = sadd.s32 %s21, 1
    %s29 = ssub.s32 %s21, %s28
    %p30 = scmp.eq.s32.totalorder %s29, 0
    %s32 = sadd.s32 %s31, 1
    %s33 = scalar_select %p30, %s31, %s32
    %p36 = pneg %p30
    %p37 = scmp.eq.s32.totalorder %s21, 1
    %p38 = por %p36, %p37
    %p39 = scmp.ne.s32.totalorder %s31, %s34
    %p40 = scmp.eq.s32.totalorder %s21, 0
    %p41 = por %p39, %p40
    %p42 = scmp.ne.s32.totalorder %s31, %s34
    %p43 = scmp.eq.s32.totalorder %s26, 1
    %p44 = por %p42, %p43
    %p45 = scmp.ne.s32.totalorder %s34, %s35
    %p46 = scmp.eq.s32.totalorder %s26, 0
    %p47 = por %p45, %p46
    %p48 = scmp.ne.s32.totalorder %s34, %s35
    %p49 = scmp.eq.s32.totalorder %s27, 1
    %p50 = por %p48, %p49
    %p52 = scmp.ne.s32.totalorder %s35, %s51
    %p53 = scmp.eq.s32.totalorder %s27, 0
    %p54 = por %p52, %p53
    %s56 = sadd.s32 %s55, 1
    %p59 = scmp.eq.s32.totalorder %s21, 1
    %p60 = scmp.ne.s32.totalorder %s55, %s57
    %p61 = scmp.eq.s32.totalorder %s21, 0
    %p62 = por %p60, %p61
    %p63 = scmp.ne.s32.totalorder %s55, %s57
    %p64 = scmp.eq.s32.totalorder %s26, 1
    %p65 = por %p63, %p64
    %p66 = scmp.ne.s32.totalorder %s57, %s58
    %p67 = scmp.eq.s32.totalorder %s26, 0
    %p68 = por %p66, %p67
    %p69 = scmp.ne.s32.totalorder %s57, %s58
    %p70 = scmp.eq.s32.totalorder %s27, 1
    %p71 = por %p69, %p70
    %p73 = scmp.ne.s32.totalorder %s58, %s72
    %p74 = scmp.eq.s32.totalorder %s27, 0
    %p75 = por %p73, %p74
    %s77 = sadd.s32 %s76, 1
    %p80 = scmp.eq.s32.totalorder %s21, 1
    %p81 = scmp.ne.s32.totalorder %s76, %s78
    %p82 = scmp.eq.s32.totalorder %s21, 0
    %p83 = por %p81, %p82
    %p84 = scmp.ne.s32.totalorder %s76, %s78
    %p85 = scmp.eq.s32.totalorder %s26, 1
    %p86 = por %p84, %p85
    %p87 = scmp.ne.s32.totalorder %s78, %s79
    %p88 = scmp.eq.s32.totalorder %s26, 0
    %p89 = por %p87, %p88
    %p90 = scmp.ne.s32.totalorder %s78, %s79
    %p91 = scmp.eq.s32.totalorder %s27, 1
    %p92 = por %p90, %p91
    %p94 = scmp.ne.s32.totalorder %s79, %s93
    %p95 = scmp.eq.s32.totalorder %s27, 0
    %p96 = por %p94, %p95
    %s98 = sadd.s32 %s97, 1
    %p101 = scmp.eq.s32.totalorder %s21, 1
    %p102 = scmp.ne.s32.totalorder %s97, %s99
    %p103 = scmp.eq.s32.totalorder %s21, 0
    %p104 = por %p102, %p103
    %p105 = scmp.ne.s32.totalorder %s97, %s99
    %p106 = scmp.eq.s32.totalorder %s26, 1
    %p107 = por %p105, %p106
    %p108 = scmp.ne.s32.totalorder %s99, %s100
    %p109 = scmp.eq.s32.totalorder %s26, 0
    %p110 = por %p108, %p109
    %p111 = scmp.ne.s32.totalorder %s99, %s100
    %p112 = scmp.eq.s32.totalorder %s27, 1
    %p113 = por %p111, %p112
    %p115 = scmp.ne.s32.totalorder %s100, %s114
    %p116 = scmp.eq.s32.totalorder %s27, 0
    %p117 = por %p115, %p116
    %s119 = sadd.s32 %s118, 1
    %p122 = scmp.eq.s32.totalorder %s21, 1
    %p123 = scmp.ne.s32.totalorder %s118, %s120
    %p124 = scmp.eq.s32.totalorder %s21, 0
    %p125 = por %p123, %p124
    %p126 = scmp.ne.s32.totalorder %s118, %s120
    %p127 = scmp.eq.s32.totalorder %s26, 1
    %p128 = por %p126, %p127
    %p129 = scmp.ne.s32.totalorder %s120, %s121
    %p130 = scmp.eq.s32.totalorder %s26, 0
    %p131 = por %p129, %p130
    %p132 = scmp.ne.s32.totalorder %s120, %s121
    %p133 = scmp.eq.s32.totalorder %s27, 1
    %p134 = por %p132, %p133
    %p136 = scmp.ne.s32.totalorder %s121, %s135
    %p137 = scmp.eq.s32.totalorder %s27, 0
    %p138 = por %p136, %p137
    %s140 = sadd.s32 %s139, 1
    %p143 = scmp.eq.s32.totalorder %s21, 1
    %p144 = scmp.ne.s32.totalorder %s139, %s141
    %p145 = scmp.eq.s32.totalorder %s21, 0
    %p146 = por %p144, %p145
    %p147 = scmp.ne.s32.totalorder %s139, %s141
    %p148 = scmp.eq.s32.totalorder %s26, 1
    %p149 = por %p147, %p148
    %p150 = scmp.ne.s32.totalorder %s141, %s142
    %p151 = scmp.eq.s32.totalorder %s26, 0
    %p152 = por %p150, %p151
    %p153 = scmp.ne.s32.totalorder %s141, %s142
    %p154 = scmp.eq.s32.totalorder %s27, 1
    %p155 = por %p153, %p154
    %p157 = scmp.ne.s32.totalorder %s142, %s156
    %p158 = scmp.eq.s32.totalorder %s27, 0
    %p159 = por %p157, %p158
    %s161 = sadd.s32 %s160, 1
    %p164 = scmp.eq.s32.totalorder %s21, 1
    %p165 = scmp.ne.s32.totalorder %s160, %s162
    %p166 = scmp.eq.s32.totalorder %s21, 0
    %p167 = por %p165, %p166
    %p168 = scmp.ne.s32.totalorder %s160, %s162
    %p169 = scmp.eq.s32.totalorder %s26, 1
    %p170 = por %p168, %p169
    %p171 = scmp.ne.s32.totalorder %s162, %s163
    %p172 = scmp.eq.s32.totalorder %s26, 0
    %p173 = por %p171, %p172
    %p174 = scmp.ne.s32.totalorder %s162, %s163
    %p175 = scmp.eq.s32.totalorder %s27, 1
    %p176 = por %p174, %p175
    %p178 = scmp.ne.s32.totalorder %s163, %s177
    %p179 = scmp.eq.s32.totalorder %s27, 0
    %p180 = por %p178, %p179
    %s182 = sadd.s32 %s181, 1
    %p185 = scmp.eq.s32.totalorder %s21, 1
    %p186 = scmp.ne.s32.totalorder %s181, %s183
    %p187 = scmp.eq.s32.totalorder %s21, 0
    %p188 = por %p186, %p187
    %p189 = scmp.ne.s32.totalorder %s181, %s183
    %p190 = scmp.eq.s32.totalorder %s26, 1
    %p191 = por %p189, %p190
    %p192 = scmp.ne.s32.totalorder %s183, %s184
    %p193 = scmp.eq.s32.totalorder %s26, 0
    %p194 = por %p192, %p193
    %p195 = scmp.ne.s32.totalorder %s183, %s184
    %p196 = scmp.eq.s32.totalorder %s27, 1
    %p197 = por %p195, %p196
    %p199 = scmp.ne.s32.totalorder %s184, %s198
    %p200 = scmp.eq.s32.totalorder %s27, 0
    %p201 = por %p199, %p200
    %s203 = sadd.s32 %s202, 1
    %p206 = scmp.eq.s32.totalorder %s21, 1
    %p207 = scmp.ne.s32.totalorder %s202, %s204
    %p208 = scmp.eq.s32.totalorder %s21, 0
    %p209 = por %p207, %p208
    %p210 = scmp.ne.s32.totalorder %s202, %s204
    %p211 = scmp.eq.s32.totalorder %s26, 1
    %p212 = por %p210, %p211
    %p213 = scmp.ne.s32.totalorder %s204, %s205
    %p214 = scmp.eq.s32.totalorder %s26, 0
    %p215 = por %p213, %p214
    %p216 = scmp.ne.s32.totalorder %s204, %s205
    %p217 = scmp.eq.s32.totalorder %s27, 1
    %p218 = por %p216, %p217
    %p220 = scmp.ne.s32.totalorder %s205, %s219
    %p221 = scmp.eq.s32.totalorder %s27, 0
    %p222 = por %p220, %p221
    %s224 = sadd.s32 %s223, 1
    %p227 = scmp.eq.s32.totalorder %s21, 1
    %p228 = scmp.ne.s32.totalorder %s223, %s225
    %p229 = scmp.eq.s32.totalorder %s21, 0
    %p230 = por %p228, %p229
    %p231 = scmp.ne.s32.totalorder %s223, %s225
    %p232 = scmp.eq.s32.totalorder %s26, 1
    %p233 = por %p231, %p232
    %p234 = scmp.ne.s32.totalorder %s225, %s226
    %p235 = scmp.eq.s32.totalorder %s26, 0
    %p236 = por %p234, %p235
    %p237 = scmp.ne.s32.totalorder %s225, %s226
    %p238 = scmp.eq.s32.totalorder %s27, 1
    %p239 = por %p237, %p238
    %p241 = scmp.ne.s32.totalorder %s226, %s240
    %p242 = scmp.eq.s32.totalorder %s27, 0
    %p243 = por %p241, %p242
    %s245 = sadd.s32 %s244, 1
    %p248 = scmp.eq.s32.totalorder %s21, 1
    %p249 = scmp.ne.s32.totalorder %s244, %s246
    %p250 = scmp.eq.s32.totalorder %s21, 0
    %p251 = por %p249, %p250
    %p252 = scmp.ne.s32.totalorder %s244, %s246
    %p253 = scmp.eq.s32.totalorder %s26, 1
    %p254 = por %p252, %p253
    %p255 = scmp.ne.s32.totalorder %s246, %s247
    %p256 = scmp.eq.s32.totalorder %s26, 0
    %p257 = por %p255, %p256
    %p258 = scmp.ne.s32.totalorder %s246, %s247
    %p259 = scmp.eq.s32.totalorder %s27, 1
    %p260 = por %p258, %p259
    %p262 = scmp.ne.s32.totalorder %s247, %s261
    %p263 = scmp.eq.s32.totalorder %s27, 0
    %p264 = por %p262, %p263
    %s266 = sadd.s32 %s265, 1
    %p269 = scmp.eq.s32.totalorder %s21, 1
    %p270 = scmp.ne.s32.totalorder %s265, %s267
    %p271 = scmp.eq.s32.totalorder %s21, 0
    %p272 = por %p270, %p271
    %p273 = scmp.ne.s32.totalorder %s265, %s267
    %p274 = scmp.eq.s32.totalorder %s26, 1
    %p275 = por %p273, %p274
    %p276 = scmp.ne.s32.totalorder %s267, %s268
    %p277 = scmp.eq.s32.totalorder %s26, 0
    %p278 = por %p276, %p277
    %p279 = scmp.ne.s32.totalorder %s267, %s268
    %p280 = scmp.eq.s32.totalorder %s27, 1
    %p281 = por %p279, %p280
    %p283 = scmp.ne.s32.totalorder %s268, %s282
    %p284 = scmp.eq.s32.totalorder %s27, 0
    %p285 = por %p283, %p284
    %s287 = sadd.s32 %s286, 1
    %p290 = scmp.eq.s32.totalorder %s21, 1
    %p291 = scmp.ne.s32.totalorder %s286, %s288
    %p292 = scmp.eq.s32.totalorder %s21, 0
    %p293 = por %p291, %p292
    %p294 = scmp.ne.s32.totalorder %s286, %s288
    %p295 = scmp.eq.s32.totalorder %s26, 1
    %p296 = por %p294, %p295
    %p297 = scmp.ne.s32.totalorder %s288, %s289
    %p298 = scmp.eq.s32.totalorder %s26, 0
    %p299 = por %p297, %p298
    %p300 = scmp.ne.s32.totalorder %s288, %s289
    %p301 = scmp.eq.s32.totalorder %s27, 1
    %p302 = por %p300, %p301
    %p304 = scmp.ne.s32.totalorder %s289, %s303
    %p305 = scmp.eq.s32.totalorder %s27, 0
    %p306 = por %p304, %p305
    %s307 = ssub.s32 %s21, %s28
    %p308 = scmp.eq.s32.totalorder %s307, 0
    %s310 = sadd.s32 %s309, 1
    %s311 = scalar_select %p308, %s309, %s310
    %p314 = pneg %p308
    %p315 = scmp.eq.s32.totalorder %s21, 1
    %p316 = por %p314, %p315
    %p317 = scmp.ne.s32.totalorder %s309, %s312
    %p318 = scmp.eq.s32.totalorder %s21, 0
    %p319 = por %p317, %p318
    %p320 = scmp.ne.s32.totalorder %s309, %s312
    %p321 = scmp.eq.s32.totalorder %s26, 1
    %p322 = por %p320, %p321
    %p323 = scmp.ne.s32.totalorder %s312, %s313
    %p324 = scmp.eq.s32.totalorder %s26, 0
    %p325 = por %p323, %p324
    %p326 = scmp.ne.s32.totalorder %s312, %s313
    %p327 = scmp.eq.s32.totalorder %s27, 1
    %p328 = por %p326, %p327
    %p330 = scmp.ne.s32.totalorder %s313, %s329
    %p331 = scmp.eq.s32.totalorder %s27, 0
    %p332 = por %p330, %p331
    %p333 = scmp.le.s32.totalorder 1, %s21
    %p334 = scmp.lt.s32.totalorder %s21, 3
    %p335 = pnand %p333, %p334
    %p336 = pneg %p335
    // Predicated region
    $region9: #{resnet_forward.1} parent=5 // pred_check
      _
    $region10: #{resnet_forward.1} parent=5 // pred_check_branch
      %338 = sbr.rel (%p335) target = $region12
    $region11: #{resnet_forward.1} parent=5 // pred_region
      %s339 = ssub.s32 %s21, 1
      // Predicated region
      $region13: #{resnet_forward.1} parent=11 // pred_check
        %p340 = pneg %p68
      $region14: #{resnet_forward.1} parent=11 // pred_check_branch
        %342 = sbr.rel (%p340) target = $region16
      $region15: #{resnet_forward.1} parent=11 // pred_region
        _
      $region16: #{resnet_forward.1} parent=11 // pred_fallthru
        _
      // Predicated region
      $region17: #{resnet_forward.1} parent=11 // pred_check
        %p343 = pneg %p89
      $region18: #{resnet_forward.1} parent=11 // pred_check_branch
        %345 = sbr.rel (%p343) target = $region20
      $region19: #{resnet_forward.1} parent=11 // pred_region
        _
      $region20: #{resnet_forward.1} parent=11 // pred_fallthru
        _
      // Predicated region
      $region21: #{resnet_forward.1} parent=11 // pred_check
        %p346 = pneg %p110
      $region22: #{resnet_forward.1} parent=11 // pred_check_branch
        %348 = sbr.rel (%p346) target = $region24
      $region23: #{resnet_forward.1} parent=11 // pred_region
        _
      $region24: #{resnet_forward.1} parent=11 // pred_fallthru
        _
      // Predicated region
      $region25: #{resnet_forward.1} parent=11 // pred_check
        %p349 = pneg %p131
      $region26: #{resnet_forward.1} parent=11 // pred_check_branch
        %351 = sbr.rel (%p349) target = $region28
      $region27: #{resnet_forward.1} parent=11 // pred_region
        _
      $region28: #{resnet_forward.1} parent=11 // pred_fallthru
        _
      // Predicated region
      $region29: #{resnet_forward.1} parent=11 // pred_check
        %p352 = pneg %p152
      $region30: #{resnet_forward.1} parent=11 // pred_check_branch
        %354 = sbr.rel (%p352) target = $region32
      $region31: #{resnet_forward.1} parent=11 // pred_region
        _
      $region32: #{resnet_forward.1} parent=11 // pred_fallthru
        _
      // Predicated region
      $region33: #{resnet_forward.1} parent=11 // pred_check
        %p355 = pneg %p173
      $region34: #{resnet_forward.1} parent=11 // pred_check_branch
        %357 = sbr.rel (%p355) target = $region36
      $region35: #{resnet_forward.1} parent=11 // pred_region
        _
      $region36: #{resnet_forward.1} parent=11 // pred_fallthru
        _
      // Predicated region
      $region37: #{resnet_forward.1} parent=11 // pred_check
        %p358 = pneg %p194
      $region38: #{resnet_forward.1} parent=11 // pred_check_branch
        %360 = sbr.rel (%p358) target = $region40
      $region39: #{resnet_forward.1} parent=11 // pred_region
        _
      $region40: #{resnet_forward.1} parent=11 // pred_fallthru
        _
      // Predicated region
      $region41: #{resnet_forward.1} parent=11 // pred_check
        %p361 = pneg %p215
      $region42: #{resnet_forward.1} parent=11 // pred_check_branch
        %363 = sbr.rel (%p361) target = $region44
      $region43: #{resnet_forward.1} parent=11 // pred_region
        _
      $region44: #{resnet_forward.1} parent=11 // pred_fallthru
        _
      // Predicated region
      $region45: #{resnet_forward.1} parent=11 // pred_check
        %p364 = pneg %p236
      $region46: #{resnet_forward.1} parent=11 // pred_check_branch
        %366 = sbr.rel (%p364) target = $region48
      $region47: #{resnet_forward.1} parent=11 // pred_region
        _
      $region48: #{resnet_forward.1} parent=11 // pred_fallthru
        _
      // Predicated region
      $region49: #{resnet_forward.1} parent=11 // pred_check
        %p367 = pneg %p257
      $region50: #{resnet_forward.1} parent=11 // pred_check_branch
        %369 = sbr.rel (%p367) target = $region52
      $region51: #{resnet_forward.1} parent=11 // pred_region
        _
      $region52: #{resnet_forward.1} parent=11 // pred_fallthru
        _
      // Predicated region
      $region53: #{resnet_forward.1} parent=11 // pred_check
        %p370 = pneg %p278
      $region54: #{resnet_forward.1} parent=11 // pred_check_branch
        %372 = sbr.rel (%p370) target = $region56
      $region55: #{resnet_forward.1} parent=11 // pred_region
        _
      $region56: #{resnet_forward.1} parent=11 // pred_fallthru
        _
      // Predicated region
      $region57: #{resnet_forward.1} parent=11 // pred_check
        %p373 = pneg %p299
      $region58: #{resnet_forward.1} parent=11 // pred_check_branch
        %375 = sbr.rel (%p373) target = $region60
      $region59: #{resnet_forward.1} parent=11 // pred_region
        _
      $region60: #{resnet_forward.1} parent=11 // pred_fallthru
        _
    $region12: #{resnet_forward.1} parent=5 // pred_fallthru
      _
    %p376 = scmp.lt.s32.totalorder %s21, 2
    // Predicated region
    $region61: #{resnet_forward.1} parent=5 // pred_check
      %p377 = pneg %p376
    $region62: #{resnet_forward.1} parent=5 // pred_check_branch
      %379 = sbr.rel (%p377) target = $region64
    $region63: #{resnet_forward.1} parent=5 // pred_region
      // Predicated region
      $region65: #{resnet_forward.1} parent=63 // pred_check
        %p380 = pneg %p41
      $region66: #{resnet_forward.1} parent=63 // pred_check_branch
        %382 = sbr.rel (%p380) target = $region68
      $region67: #{resnet_forward.1} parent=63 // pred_region
        %s383 = smul.u32 55, %s21
        %p384 = scmp.lt.s32.totalorder %s383, 109
        %s385 = scalar_select %p384, %s383, 109
        %s386 = smul.addr %s385, 8
        %s387 = scalar_lea.vmem %s0, %s386
        %s388 = smul.u32 55, %s21
      $region68: #{resnet_forward.1} parent=63 // pred_fallthru
        _
    $region64: #{resnet_forward.1} parent=5 // pred_fallthru
      _
    %p389 = scmp.le.s32.totalorder 1, %s21
    %p390 = scmp.lt.s32.totalorder %s21, 3
    %p391 = pnand %p389, %p390
    %p392 = pneg %p391
    // Predicated region
    $region69: #{resnet_forward.1} parent=5 // pred_check
      _
    $region70: #{resnet_forward.1} parent=5 // pred_check_branch
      %394 = sbr.rel (%p391) target = $region72
    $region71: #{resnet_forward.1} parent=5 // pred_region
      %s395 = ssub.s32 %s21, 1
      %s396 = smul.u32 55, %s26
      %p397 = scmp.lt.s32.totalorder %s396, 109
      %s398 = scalar_select %p397, %s396, 109
      %s399 = smul.addr %s398, 8
      %s400 = scalar_lea.vmem %s0, %s399
      %p401 = pneg %p47
      %p402 = pneg %p44
      %p403 = pneg %p68
      %p404 = pneg %p65
      %p405 = pneg %p89
      %p406 = pneg %p86
      %p407 = pneg %p110
      %p408 = pneg %p107
      %p409 = pneg %p131
      %p410 = pneg %p128
      %p411 = pneg %p152
      %p412 = pneg %p149
      %p413 = pneg %p173
      %p414 = pneg %p170
      %p415 = pneg %p194
      %p416 = pneg %p191
      %p417 = pneg %p215
      %p418 = pneg %p212
      %p419 = pneg %p236
      %p420 = pneg %p233
      %p421 = pneg %p257
      %p422 = pneg %p254
      %p423 = pneg %p278
      %p424 = pneg %p275
      %p425 = pneg %p299
      %p426 = pneg %p296
      %p427 = pneg %p325
      %p428 = pneg %p322
      %s429 = smul.u32 48, %s26
      %p430 = scmp.lt.s32.totalorder %s429, 95
      %s431 = scalar_select %p430, %s429, 95
      %s432 = smul.addr %s431, 8
      %s433 = scalar_lea.vmem %s13, %s432
      %s434 = smul.u32 55, %s26
      %p435 = scmp.lt.s32.totalorder %s434, 109
      %s436 = scalar_select %p435, %s434, 109
      %s437 = smul.addr %s436, 8
      %s438 = scalar_lea.vmem %s0, %s437
      %s439 = smul.u32 55, %s26
      %s440 = smul.u32 48, %s26
      %p441 = scmp.lt.s32.totalorder %s440, 95
      %s442 = scalar_select %p441, %s440, 95
      %s443 = smul.addr %s442, 8
      %s444 = scalar_lea.vmem %s13, %s443
      %s445 = smul.u32 48, %s26
      %vm447 = vcmask 130048
      %448 = vst.msk [vmem:[#allocation2] sm:$0xff] %vm447, 0.0
      %449 = vst.msk [vmem:[#allocation2 + $0x8] sm:$0xff] %vm447, 0.0
      %450 = vst.msk [vmem:[#allocation2 + $0x10] sm:$0xff] %vm447, 0.0
      %451 = vst.msk [vmem:[#allocation2 + $0x18] sm:$0xff] %vm447, 0.0
      %452 = vst.msk [vmem:[#allocation2 + $0x20] sm:$0xff] %vm447, 0.0
      %453 = vst.msk [vmem:[#allocation2 + $0x28] sm:$0xff] %vm447, 0.0
      %454 = vst.msk [vmem:[#allocation2 + $0x30] sm:$0xff] %vm447, 0.0
      %455 = vst.msk [vmem:[#allocation2 + $0x38] sm:$0xff] %vm447, 0.0
      %456 = vst.msk [vmem:[#allocation2 + $0x40] sm:$0xff] %vm447, 0.0
      %457 = vst.msk [vmem:[#allocation2 + $0x48] sm:$0xff] %vm447, 0.0
      %458 = vst.msk [vmem:[#allocation2 + $0x50] sm:$0xff] %vm447, 0.0
      %459 = vst.msk [vmem:[#allocation2 + $0x58] sm:$0xff] %vm447, 0.0
      %460 = vst.msk [vmem:[#allocation2 + $0x60] sm:$0xff] %vm447, 0.0
      %461 = vst.msk [vmem:[#allocation2 + $0x68] sm:$0xff] %vm447, 0.0
      %462 = vst.msk [vmem:[#allocation2 + $0x70] sm:$0xff] %vm447, 0.0
      %463 = vst.msk [vmem:[#allocation2 + $0x78] sm:$0xff] %vm447, 0.0
      %464 = vst.msk [vmem:[#allocation2 + $0x80] sm:$0xff] %vm447, 0.0
      %465 = vst.msk [vmem:[#allocation2 + $0x88] sm:$0xff] %vm447, 0.0
      %466 = vst.msk [vmem:[#allocation2 + $0x90] sm:$0xff] %vm447, 0.0
      %467 = vst.msk [vmem:[#allocation2 + $0x98] sm:$0xff] %vm447, 0.0
      %vm468 = vcmask 123904
      %469 = vst.msk [vmem:[#allocation2 + $0xa0] sm:$0x3] %vm468, 0.0
      %vm470 = vcmask 261120
      %471 = vst.msk [vmem:[#allocation4] sm:$0xff] %vm470, 0.0
      %472 = vst.msk [vmem:[#allocation4 + $0x8] sm:$0xff] %vm470, 0.0
      %473 = vst.msk [vmem:[#allocation4 + $0x10] sm:$0xff] %vm470, 0.0
      %474 = vst.msk [vmem:[#allocation4 + $0x18] sm:$0xff] %vm470, 0.0
      %475 = vst.msk [vmem:[#allocation4 + $0x20] sm:$0xff] %vm470, 0.0
      %476 = vst.msk [vmem:[#allocation4 + $0x28] sm:$0xff] %vm470, 0.0
      %vm477 = vcmask 254976
      %478 = vst.msk [vmem:[#allocation4 + $0x30] sm:$0x3] %vm477, 0.0
      %479 = vst.msk [vmem:[#allocation7] sm:$0xff] %vm470, 0.0
      %480 = vst.msk [vmem:[#allocation7 + $0x8] sm:$0xff] %vm470, 0.0
      %481 = vst.msk [vmem:[#allocation7 + $0x10] sm:$0xff] %vm470, 0.0
      %482 = vst.msk [vmem:[#allocation7 + $0x18] sm:$0xff] %vm470, 0.0
      %483 = vst.msk [vmem:[#allocation7 + $0x20] sm:$0xff] %vm470, 0.0
      %484 = vst.msk [vmem:[#allocation7 + $0x28] sm:$0xff] %vm470, 0.0
      %485 = vst.msk [vmem:[#allocation7 + $0x30] sm:$0xff] %vm470, 0.0
      %486 = vst.msk [vmem:[#allocation7 + $0x38] sm:$0xff] %vm470, 0.0
      %487 = vst.msk [vmem:[#allocation7 + $0x40] sm:$0xff] %vm470, 0.0
      %488 = vst.msk [vmem:[#allocation7 + $0x48] sm:$0xff] %vm470, 0.0
      %489 = vst.msk [vmem:[#allocation7 + $0x50] sm:$0xff] %vm470, 0.0
      %490 = vst.msk [vmem:[#allocation7 + $0x58] sm:$0xff] %vm470, 0.0
      %491 = vst.msk [vmem:[#allocation7 + $0x60] sm:$0xff] %vm470, 0.0
      %492 = vst.msk [vmem:[#allocation7 + $0x68] sm:$0xff] %vm470, 0.0
      %493 = vst.msk [vmem:[#allocation7 + $0x70] sm:$0xff] %vm470, 0.0
      %494 = vst.msk [vmem:[#allocation7 + $0x78] sm:$0xff] %vm470, 0.0
      %495 = vst.msk [vmem:[#allocation7 + $0x80] sm:$0xff] %vm470, 0.0
      %496 = vst.msk [vmem:[#allocation7 + $0x88] sm:$0xff] %vm470, 0.0
      %497 = vst.msk [vmem:[#allocation7 + $0x90] sm:$0xff] %vm470, 0.0
      %498 = vst.msk [vmem:[#allocation7 + $0x98] sm:$0xff] %vm470, 0.0
      %499 = vst.msk [vmem:[#allocation7 + $0xa0] sm:$0x3] %vm477, 0.0
      %500 = vst.msk [vmem:[#allocation8] sm:$0xff] %vm447, 0.0
      %501 = vst.msk [vmem:[#allocation8 + $0x8] sm:$0xff] %vm447, 0.0
      %502 = vst.msk [vmem:[#allocation8 + $0x10] sm:$0xff] %vm447, 0.0
      %503 = vst.msk [vmem:[#allocation8 + $0x18] sm:$0xff] %vm447, 0.0
      %504 = vst.msk [vmem:[#allocation8 + $0x20] sm:$0xff] %vm447, 0.0
      %505 = vst.msk [vmem:[#allocation8 + $0x28] sm:$0xff] %vm447, 0.0
      %506 = vst.msk [vmem:[#allocation8 + $0x30] sm:$0xff] %vm447, 0.0
      %507 = vst.msk [vmem:[#allocation8 + $0x38] sm:$0xff] %vm447, 0.0
      %508 = vst.msk [vmem:[#allocation8 + $0x40] sm:$0xff] %vm447, 0.0
      %509 = vst.msk [vmem:[#allocation8 + $0x48] sm:$0xff] %vm447, 0.0
      %510 = vst.msk [vmem:[#allocation8 + $0x50] sm:$0xff] %vm447, 0.0
      %511 = vst.msk [vmem:[#allocation8 + $0x58] sm:$0xff] %vm447, 0.0
      %512 = vst.msk [vmem:[#allocation8 + $0x60] sm:$0xff] %vm447, 0.0
      %513 = vst.msk [vmem:[#allocation8 + $0x68] sm:$0xff] %vm447, 0.0
      %514 = vst.msk [vmem:[#allocation8 + $0x70] sm:$0xff] %vm447, 0.0
      %515 = vst.msk [vmem:[#allocation8 + $0x78] sm:$0xff] %vm447, 0.0
      %516 = vst.msk [vmem:[#allocation8 + $0x80] sm:$0xff] %vm447, 0.0
      %517 = vst.msk [vmem:[#allocation8 + $0x88] sm:$0xff] %vm447, 0.0
      %518 = vst.msk [vmem:[#allocation8 + $0x90] sm:$0xff] %vm447, 0.0
      %519 = vst.msk [vmem:[#allocation8 + $0x98] sm:$0xff] %vm447, 0.0
      %520 = vst.msk [vmem:[#allocation8 + $0xa0] sm:$0xff] %vm447, 0.0
      %521 = vst.msk [vmem:[#allocation8 + $0xa8] sm:$0xff] %vm447, 0.0
      %522 = vst.msk [vmem:[#allocation8 + $0xb0] sm:$0xff] %vm447, 0.0
      %523 = vst.msk [vmem:[#allocation8 + $0xb8] sm:$0xff] %vm447, 0.0
      %524 = vst.msk [vmem:[#allocation8 + $0xc0] sm:$0xff] %vm447, 0.0
      %525 = vst.msk [vmem:[#allocation8 + $0xc8] sm:$0xff] %vm447, 0.0
      %526 = vst.msk [vmem:[#allocation8 + $0xd0] sm:$0xff] %vm447, 0.0
      %527 = vst.msk [vmem:[#allocation8 + $0xd8] sm:$0xff] %vm447, 0.0
      %528 = vst.msk [vmem:[#allocation8 + $0xe0] sm:$0xff] %vm447, 0.0
      %529 = vst.msk [vmem:[#allocation8 + $0xe8] sm:$0xff] %vm447, 0.0
      %530 = vst.msk [vmem:[#allocation8 + $0xf0] sm:$0xff] %vm447, 0.0
      %531 = vst.msk [vmem:[#allocation8 + $0xf8] sm:$0xff] %vm447, 0.0
      %532 = vst.msk [vmem:[#allocation8 + $0x100] sm:$0xff] %vm447, 0.0
      %533 = vst.msk [vmem:[#allocation8 + $0x108] sm:$0xff] %vm447, 0.0
      %534 = vst.msk [vmem:[#allocation8 + $0x110] sm:$0xff] %vm447, 0.0
      %535 = vst.msk [vmem:[#allocation8 + $0x118] sm:$0xff] %vm447, 0.0
      %536 = vst.msk [vmem:[#allocation8 + $0x120] sm:$0xff] %vm447, 0.0
      %537 = vst.msk [vmem:[#allocation8 + $0x128] sm:$0xff] %vm447, 0.0
      %538 = vst.msk [vmem:[#allocation8 + $0x130] sm:$0xff] %vm447, 0.0
      %539 = vst.msk [vmem:[#allocation8 + $0x138] sm:$0xff] %vm447, 0.0
      %540 = vst.msk [vmem:[#allocation8 + $0x140] sm:$0xff] %vm447, 0.0
      %541 = vst.msk [vmem:[#allocation8 + $0x148] sm:$0xff] %vm447, 0.0
      %542 = vst.msk [vmem:[#allocation8 + $0x150] sm:$0xff] %vm447, 0.0
      %543 = vst.msk [vmem:[#allocation8 + $0x158] sm:$0xff] %vm447, 0.0
      %544 = vst.msk [vmem:[#allocation8 + $0x160] sm:$0xff] %vm447, 0.0
      %545 = vst.msk [vmem:[#allocation8 + $0x168] sm:$0xff] %vm447, 0.0
      %546 = vst.msk [vmem:[#allocation8 + $0x170] sm:$0xff] %vm447, 0.0
      %547 = vst.msk [vmem:[#allocation8 + $0x178] sm:$0xff] %vm447, 0.0
      %548 = vst.msk [vmem:[#allocation8 + $0x180] sm:$0xff] %vm447, 0.0
      %549 = vst.msk [vmem:[#allocation8 + $0x188] sm:$0xff] %vm447, 0.0
      %550 = vst.msk [vmem:[#allocation8 + $0x190] sm:$0xff] %vm447, 0.0
      %551 = vst.msk [vmem:[#allocation8 + $0x198] sm:$0xff] %vm447, 0.0
      %552 = vst.msk [vmem:[#allocation8 + $0x1a0] sm:$0xff] %vm447, 0.0
      %553 = vst.msk [vmem:[#allocation8 + $0x1a8] sm:$0xff] %vm447, 0.0
      %554 = vst.msk [vmem:[#allocation8 + $0x1b0] sm:$0x3] %vm468, 0.0
      %555 = vst.msk [vmem:[#allocation3] sm:$0xff] %vm470, 0.0
      %556 = vst.msk [vmem:[#allocation3 + $0x8] sm:$0xff] %vm470, 0.0
      %vm557 = vcmask 253952
      %558 = vst.msk [vmem:[#allocation3 + $0x10] sm:$0x1] %vm557, 0.0
      %559 = vst.msk [vmem:[#allocation3 + $0x91] sm:$0xff] %vm470, 0.0
      %560 = vst.msk [vmem:[#allocation3 + $0x99] sm:$0xff] %vm470, 0.0
      %561 = vst.msk [vmem:[#allocation3 + $0xa1] sm:$0x1] %vm557, 0.0
      %vm562 = vcmask 523264
      %563 = vst.msk [vmem:[#allocation5] sm:$0xff] %vm562, 0.0
      %vm564 = vcmask 516096
      %565 = vst.msk [vmem:[#allocation5 + $0x8] sm:$0x1] %vm564, 0.0
      %566 = vst.msk [vmem:[#allocation5 + $0x29] sm:$0xff] %vm562, 0.0
      %567 = vst.msk [vmem:[#allocation5 + $0x31] sm:$0x1] %vm564, 0.0
      %568 = vst.msk [vmem:[#allocation6] sm:$0xff] %vm562, 0.0
      %569 = vst.msk [vmem:[#allocation6 + $0x8] sm:$0x1] %vm564, 0.0
      %570 = vst.msk [vmem:[#allocation6 + $0x29] sm:$0xff] %vm562, 0.0
      %571 = vst.msk [vmem:[#allocation6 + $0x31] sm:$0x1] %vm564, 0.0
      %v572 = vld [vmem:[%s438] sm:$0xff]
      %v573 = vld [vmem:[%s438 + $0x8] sm:$0xff]
      %v574 = vld [vmem:[%s438 + $0x10] sm:$0xff]
      %v575 = vld [vmem:[%s438 + $0x18] sm:$0xff]
      %v576 = vld [vmem:[%s438 + $0x20] sm:$0xff]
      %v577 = vld [vmem:[%s438 + $0x28] sm:$0xff]
      %v578 = vld [vmem:[%s438 + $0x30] sm:$0xff]
      %v579 = vld [vmem:[%s438 + $0x38] sm:$0xff]
      %v580 = vld [vmem:[%s438 + $0x40] sm:$0xff]
      %v581 = vld [vmem:[%s438 + $0x48] sm:$0xff]
      %v582 = vld [vmem:[%s438 + $0x50] sm:$0xff]
      %v583 = vld [vmem:[%s438 + $0x58] sm:$0xff]
      %v584 = vld [vmem:[%s438 + $0x60] sm:$0xff]
      %v585 = vld [vmem:[%s438 + $0x68] sm:$0xff]
      %v586 = vld [vmem:[%s438 + $0x70] sm:$0xff]
      %v587 = vld [vmem:[%s438 + $0x78] sm:$0xff]
      %v588 = vld [vmem:[%s438 + $0x80] sm:$0xff]
      %v589 = vld [vmem:[%s438 + $0x88] sm:$0xff]
      %v590 = vld [vmem:[%s438 + $0x90] sm:$0xff]
      %v591 = vld [vmem:[%s438 + $0x98] sm:$0xff]
      %v592 = vld [vmem:[%s438 + $0xa0] sm:$0xff]
      %v593 = vld [vmem:[%s438 + $0xa8] sm:$0xff]
      %v594 = vld [vmem:[%s438 + $0xb0] sm:$0xff]
      %v595 = vld [vmem:[%s438 + $0xb8] sm:$0xff]
      %v596 = vld [vmem:[%s438 + $0xc0] sm:$0xff]
      %v597 = vld [vmem:[%s438 + $0xc8] sm:$0xff]
      %v598 = vld [vmem:[%s438 + $0xd0] sm:$0xff]
      %v599 = vld [vmem:[%s438 + $0xd8] sm:$0xff]
      %v600 = vld [vmem:[%s438 + $0xe0] sm:$0xff]
      %v601 = vld [vmem:[%s438 + $0xe8] sm:$0xff]
      %v602 = vld [vmem:[%s438 + $0xf0] sm:$0xff]
      %v603 = vld [vmem:[%s438 + $0xf8] sm:$0xff]
      %v604 = vld [vmem:[%s438 + $0x100] sm:$0xff]
      %v605 = vld [vmem:[%s438 + $0x108] sm:$0xff]
      %v606 = vld [vmem:[%s438 + $0x110] sm:$0xff]
      %v607 = vld [vmem:[%s438 + $0x118] sm:$0xff]
      %v608 = vld [vmem:[%s438 + $0x120] sm:$0xff]
      %v609 = vld [vmem:[%s438 + $0x128] sm:$0xff]
      %v610 = vld [vmem:[%s438 + $0x130] sm:$0xff]
      %v611 = vld [vmem:[%s438 + $0x138] sm:$0xff]
      %v612 = vld [vmem:[%s438 + $0x140] sm:$0xff]
      %v613 = vld [vmem:[%s438 + $0x148] sm:$0xff]
      %v614 = vld [vmem:[%s438 + $0x150] sm:$0xff]
      %v615 = vld [vmem:[%s438 + $0x158] sm:$0xff]
      %v616 = vld [vmem:[%s438 + $0x160] sm:$0xff]
      %v617 = vld [vmem:[%s438 + $0x168] sm:$0xff]
      %v618 = vld [vmem:[%s438 + $0x170] sm:$0xff]
      %v619 = vld [vmem:[%s438 + $0x178] sm:$0xff]
      %v620 = vpack.c.bf16 %v572, %v572
      %v621 = vpack.c.bf16 %v573, %v573
      %v622 = vpack.c.bf16 %v574, %v574
      %v623 = vpack.c.bf16 %v575, %v575
      %v624 = vpack.c.bf16 %v576, %v576
      %v625 = vpack.c.bf16 %v577, %v577
      %v626 = vpack.c.bf16 %v578, %v578
      %v627 = vpack.c.bf16 %v579, %v579
      %v628 = vpack.c.bf16 %v580, %v580
      %v629 = vpack.c.bf16 %v581, %v581
      %v630 = vpack.c.bf16 %v582, %v582
      %v631 = vpack.c.bf16 %v583, %v583
      %v632 = vpack.c.bf16 %v584, %v584
      %v633 = vpack.c.bf16 %v585, %v585
      %v634 = vpack.c.bf16 %v586, %v586
      %v635 = vpack.c.bf16 %v587, %v587
      %v636 = vpack.c.bf16 %v588, %v588
      %v637 = vpack.c.bf16 %v589, %v589
      %v638 = vpack.c.bf16 %v590, %v590
      %v639 = vpack.c.bf16 %v591, %v591
      %v640 = vpack.c.bf16 %v592, %v592
      %v641 = vpack.c.bf16 %v593, %v593
      %v642 = vpack.c.bf16 %v594, %v594
      %v643 = vpack.c.bf16 %v595, %v595
      %v644 = vpack.c.bf16 %v596, %v596
      %v645 = vpack.c.bf16 %v597, %v597
      %v646 = vpack.c.bf16 %v598, %v598
      %v647 = vpack.c.bf16 %v599, %v599
      %v648 = vpack.c.bf16 %v600, %v600
      %v649 = vpack.c.bf16 %v601, %v601
      %v650 = vpack.c.bf16 %v602, %v602
      %v651 = vpack.c.bf16 %v603, %v603
      %v652 = vpack.c.bf16 %v604, %v604
      %v653 = vpack.c.bf16 %v605, %v605
      %v654 = vpack.c.bf16 %v606, %v606
      %v655 = vpack.c.bf16 %v607, %v607
      %v656 = vpack.c.bf16 %v608, %v608
      %v657 = vpack.c.bf16 %v609, %v609
      %v658 = vpack.c.bf16 %v610, %v610
      %v659 = vpack.c.bf16 %v611, %v611
      %v660 = vpack.c.bf16 %v612, %v612
      %v661 = vpack.c.bf16 %v613, %v613
      %v662 = vpack.c.bf16 %v614, %v614
      %v663 = vpack.c.bf16 %v615, %v615
      %v664 = vpack.c.bf16 %v616, %v616
      %v665 = vpack.c.bf16 %v617, %v617
      %v666 = vpack.c.bf16 %v618, %v618
      %v667 = vpack.c.bf16 %v619, %v619
      %v668 = vld [vmem:[%s438 + $0x1] sm:$0xff]
      %v669 = vld [vmem:[%s438 + $0x9] sm:$0xff]
      %v670 = vld [vmem:[%s438 + $0x11] sm:$0xff]
      %v671 = vld [vmem:[%s438 + $0x19] sm:$0xff]
      %v672 = vld [vmem:[%s438 + $0x21] sm:$0xff]
      %v673 = vld [vmem:[%s438 + $0x29] sm:$0xff]
      %v674 = vld [vmem:[%s438 + $0x31] sm:$0xff]
      %v675 = vld [vmem:[%s438 + $0x39] sm:$0xff]
      %v676 = vld [vmem:[%s438 + $0x41] sm:$0xff]
      %v677 = vld [vmem:[%s438 + $0x49] sm:$0xff]
      %v678 = vld [vmem:[%s438 + $0x51] sm:$0xff]
      %v679 = vld [vmem:[%s438 + $0x59] sm:$0xff]
      %v680 = vld [vmem:[%s438 + $0x61] sm:$0xff]
      %v681 = vld [vmem:[%s438 + $0x69] sm:$0xff]
      %v682 = vld [vmem:[%s438 + $0x71] sm:$0xff]
      %v683 = vld [vmem:[%s438 + $0x79] sm:$0xff]
      %v684 = vld [vmem:[%s438 + $0x81] sm:$0xff]
      %v685 = vld [vmem:[%s438 + $0x89] sm:$0xff]
      %v686 = vld [vmem:[%s438 + $0x91] sm:$0xff]
      %v687 = vld [vmem:[%s438 + $0x99] sm:$0xff]
      %v688 = vld [vmem:[%s438 + $0xa1] sm:$0xff]
      %v689 = vld [vmem:[%s438 + $0xa9] sm:$0xff]
      %v690 = vld [vmem:[%s438 + $0xb1] sm:$0xff]
      %v691 = vld [vmem:[%s438 + $0xb9] sm:$0xff]
      %v692 = vld [vmem:[%s438 + $0xc1] sm:$0xff]
      %v693 = vld [vmem:[%s438 + $0xc9] sm:$0xff]
      %v694 = vld [vmem:[%s438 + $0xd1] sm:$0xff]
      %v695 = vld [vmem:[%s438 + $0xd9] sm:$0xff]
      %v696 = vld [vmem:[%s438 + $0xe1] sm:$0xff]
      %v697 = vld [vmem:[%s438 + $0xe9] sm:$0xff]
      %v698 = vld [vmem:[%s438 + $0xf1] sm:$0xff]
      %v699 = vld [vmem:[%s438 + $0xf9] sm:$0xff]
      %v700 = vld [vmem:[%s438 + $0x101] sm:$0xff]
      %v701 = vld [vmem:[%s438 + $0x109] sm:$0xff]
      %v702 = vld [vmem:[%s438 + $0x111] sm:$0xff]
      %v703 = vld [vmem:[%s438 + $0x119] sm:$0xff]
      %v704 = vld [vmem:[%s438 + $0x121] sm:$0xff]
      %v705 = vld [vmem:[%s438 + $0x129] sm:$0xff]
      %v706 = vld [vmem:[%s438 + $0x131] sm:$0xff]
      %v707 = vld [vmem:[%s438 + $0x139] sm:$0xff]
      %v708 = vld [vmem:[%s438 + $0x141] sm:$0xff]
      %v709 = vld [vmem:[%s438 + $0x149] sm:$0xff]
      %v710 = vld [vmem:[%s438 + $0x151] sm:$0xff]
      %v711 = vld [vmem:[%s438 + $0x159] sm:$0xff]
      %v712 = vld [vmem:[%s438 + $0x161] sm:$0xff]
      %v713 = vld [vmem:[%s438 + $0x169] sm:$0xff]
      %v714 = vld [vmem:[%s438 + $0x171] sm:$0xff]
      %v715 = vld [vmem:[%s438 + $0x179] sm:$0xff]
      %v716 = vpack.c.bf16 %v668, %v668
      %v717 = vpack.c.bf16 %v669, %v669
      %v718 = vpack.c.bf16 %v670, %v670
      %v719 = vpack.c.bf16 %v671, %v671
      %v720 = vpack.c.bf16 %v672, %v672
      %v721 = vpack.c.bf16 %v673, %v673
      %v722 = vpack.c.bf16 %v674, %v674
      %v723 = vpack.c.bf16 %v675, %v675
      %v724 = vpack.c.bf16 %v676, %v676
      %v725 = vpack.c.bf16 %v677, %v677
      %v726 = vpack.c.bf16 %v678, %v678
      %v727 = vpack.c.bf16 %v679, %v679
      %v728 = vpack.c.bf16 %v680, %v680
      %v729 = vpack.c.bf16 %v681, %v681
      %v730 = vpack.c.bf16 %v682, %v682
      %v731 = vpack.c.bf16 %v683, %v683
      %v732 = vpack.c.bf16 %v684, %v684
      %v733 = vpack.c.bf16 %v685, %v685
      %v734 = vpack.c.bf16 %v686, %v686
      %v735 = vpack.c.bf16 %v687, %v687
      %v736 = vpack.c.bf16 %v688, %v688
      %v737 = vpack.c.bf16 %v689, %v689
      %v738 = vpack.c.bf16 %v690, %v690
      %v739 = vpack.c.bf16 %v691, %v691
      %v740 = vpack.c.bf16 %v692, %v692
      %v741 = vpack.c.bf16 %v693, %v693
      %v742 = vpack.c.bf16 %v694, %v694
      %v743 = vpack.c.bf16 %v695, %v695
      %v744 = vpack.c.bf16 %v696, %v696
      %v745 = vpack.c.bf16 %v697, %v697
      %v746 = vpack.c.bf16 %v698, %v698
      %v747 = vpack.c.bf16 %v699, %v699
      %v748 = vpack.c.bf16 %v700, %v700
      %v749 = vpack.c.bf16 %v701, %v701
      %v750 = vpack.c.bf16 %v702, %v702
      %v751 = vpack.c.bf16 %v703, %v703
      %v752 = vpack.c.bf16 %v704, %v704
      %v753 = vpack.c.bf16 %v705, %v705
      %v754 = vpack.c.bf16 %v706, %v706
      %v755 = vpack.c.bf16 %v707, %v707
      %v756 = vpack.c.bf16 %v708, %v708
      %v757 = vpack.c.bf16 %v709, %v709
      %v758 = vpack.c.bf16 %v710, %v710
      %v759 = vpack.c.bf16 %v711, %v711
      %v760 = vpack.c.bf16 %v712, %v712
      %v761 = vpack.c.bf16 %v713, %v713
      %v762 = vpack.c.bf16 %v714, %v714
      %v763 = vpack.c.bf16 %v715, %v715
      %v764 = vld [vmem:[%s438 + $0x2] sm:$0xff]
      %v765 = vld [vmem:[%s438 + $0xa] sm:$0xff]
      %v766 = vld [vmem:[%s438 + $0x12] sm:$0xff]
      %v767 = vld [vmem:[%s438 + $0x1a] sm:$0xff]
      %v768 = vld [vmem:[%s438 + $0x22] sm:$0xff]
      %v769 = vld [vmem:[%s438 + $0x2a] sm:$0xff]
      %v770 = vld [vmem:[%s438 + $0x32] sm:$0xff]
      %v771 = vld [vmem:[%s438 + $0x3a] sm:$0xff]
      %v772 = vld [vmem:[%s438 + $0x42] sm:$0xff]
      %v773 = vld [vmem:[%s438 + $0x4a] sm:$0xff]
      %v774 = vld [vmem:[%s438 + $0x52] sm:$0xff]
      %v775 = vld [vmem:[%s438 + $0x5a] sm:$0xff]
      %v776 = vld [vmem:[%s438 + $0x62] sm:$0xff]
      %v777 = vld [vmem:[%s438 + $0x6a] sm:$0xff]
      %v778 = vld [vmem:[%s438 + $0x72] sm:$0xff]
      %v779 = vld [vmem:[%s438 + $0x7a] sm:$0xff]
      %v780 = vld [vmem:[%s438 + $0x82] sm:$0xff]
      %v781 = vld [vmem:[%s438 + $0x8a] sm:$0xff]
      %v782 = vld [vmem:[%s438 + $0x92] sm:$0xff]
      %v783 = vld [vmem:[%s438 + $0x9a] sm:$0xff]
      %v784 = vld [vmem:[%s438 + $0xa2] sm:$0xff]
      %v785 = vld [vmem:[%s438 + $0xaa] sm:$0xff]
      %v786 = vld [vmem:[%s438 + $0xb2] sm:$0xff]
      %v787 = vld [vmem:[%s438 + $0xba] sm:$0xff]
      %v788 = vld [vmem:[%s438 + $0xc2] sm:$0xff]
      %v789 = vld [vmem:[%s438 + $0xca] sm:$0xff]
      %v790 = vld [vmem:[%s438 + $0xd2] sm:$0xff]
      %v791 = vld [vmem:[%s438 + $0xda] sm:$0xff]
      %v792 = vld [vmem:[%s438 + $0xe2] sm:$0xff]
      %v793 = vld [vmem:[%s438 + $0xea] sm:$0xff]
      %v794 = vld [vmem:[%s438 + $0xf2] sm:$0xff]
      %v795 = vld [vmem:[%s438 + $0xfa] sm:$0xff]
      %v796 = vld [vmem:[%s438 + $0x102] sm:$0xff]
      %v797 = vld [vmem:[%s438 + $0x10a] sm:$0xff]
      %v798 = vld [vmem:[%s438 + $0x112] sm:$0xff]
      %v799 = vld [vmem:[%s438 + $0x11a] sm:$0xff]
      %v800 = vld [vmem:[%s438 + $0x122] sm:$0xff]
      %v801 = vld [vmem:[%s438 + $0x12a] sm:$0xff]
      %v802 = vld [vmem:[%s438 + $0x132] sm:$0xff]
      %v803 = vld [vmem:[%s438 + $0x13a] sm:$0xff]
      %v804 = vld [vmem:[%s438 + $0x142] sm:$0xff]
      %v805 = vld [vmem:[%s438 + $0x14a] sm:$0xff]
      %v806 = vld [vmem:[%s438 + $0x152] sm:$0xff]
      %v807 = vld [vmem:[%s438 + $0x15a] sm:$0xff]
      %v808 = vld [vmem:[%s438 + $0x162] sm:$0xff]
      %v809 = vld [vmem:[%s438 + $0x16a] sm:$0xff]
      %v810 = vld [vmem:[%s438 + $0x172] sm:$0xff]
      %v811 = vld [vmem:[%s438 + $0x17a] sm:$0xff]
      %v812 = vpack.c.bf16 %v764, %v764
      %v813 = vpack.c.bf16 %v765, %v765
      %v814 = vpack.c.bf16 %v766, %v766
      %v815 = vpack.c.bf16 %v767, %v767
      %v816 = vpack.c.bf16 %v768, %v768
      %v817 = vpack.c.bf16 %v769, %v769
      %v818 = vpack.c.bf16 %v770, %v770
      %v819 = vpack.c.bf16 %v771, %v771
      %v820 = vpack.c.bf16 %v772, %v772
      %v821 = vpack.c.bf16 %v773, %v773
      %v822 = vpack.c.bf16 %v774, %v774
      %v823 = vpack.c.bf16 %v775, %v775
      %v824 = vpack.c.bf16 %v776, %v776
      %v825 = vpack.c.bf16 %v777, %v777
      %v826 = vpack.c.bf16 %v778, %v778
      %v827 = vpack.c.bf16 %v779, %v779
      %v828 = vpack.c.bf16 %v780, %v780
      %v829 = vpack.c.bf16 %v781, %v781
      %v830 = vpack.c.bf16 %v782, %v782
      %v831 = vpack.c.bf16 %v783, %v783
      %v832 = vpack.c.bf16 %v784, %v784
      %v833 = vpack.c.bf16 %v785, %v785
      %v834 = vpack.c.bf16 %v786, %v786
      %v835 = vpack.c.bf16 %v787, %v787
      %v836 = vpack.c.bf16 %v788, %v788
      %v837 = vpack.c.bf16 %v789, %v789
      %v838 = vpack.c.bf16 %v790, %v790
      %v839 = vpack.c.bf16 %v791, %v791
      %v840 = vpack.c.bf16 %v792, %v792
      %v841 = vpack.c.bf16 %v793, %v793
      %v842 = vpack.c.bf16 %v794, %v794
      %v843 = vpack.c.bf16 %v795, %v795
      %v844 = vpack.c.bf16 %v796, %v796
      %v845 = vpack.c.bf16 %v797, %v797
      %v846 = vpack.c.bf16 %v798, %v798
      %v847 = vpack.c.bf16 %v799, %v799
      %v848 = vpack.c.bf16 %v800, %v800
      %v849 = vpack.c.bf16 %v801, %v801
      %v850 = vpack.c.bf16 %v802, %v802
      %v851 = vpack.c.bf16 %v803, %v803
      %v852 = vpack.c.bf16 %v804, %v804
      %v853 = vpack.c.bf16 %v805, %v805
      %v854 = vpack.c.bf16 %v806, %v806
      %v855 = vpack.c.bf16 %v807, %v807
      %v856 = vpack.c.bf16 %v808, %v808
      %v857 = vpack.c.bf16 %v809, %v809
      %v858 = vpack.c.bf16 %v810, %v810
      %v859 = vpack.c.bf16 %v811, %v811
      %v860 = vld [vmem:[%s438 + $0x180] sm:$0xff]
      %v861 = vld [vmem:[%s438 + $0x188] sm:$0xff]
      %v862 = vld [vmem:[%s438 + $0x190] sm:$0xff]
      %v863 = vpack.c.bf16 %v860, %v860
      %v864 = vpack.c.bf16 %v861, %v861
      %v865 = vpack.c.bf16 %v862, %v862
      %v866 = vld [vmem:[%s438 + $0x181] sm:$0xff]
      %v867 = vld [vmem:[%s438 + $0x189] sm:$0xff]
      %v868 = vld [vmem:[%s438 + $0x191] sm:$0xff]
      %v869 = vpack.c.bf16 %v866, %v866
      %v870 = vpack.c.bf16 %v867, %v867
      %v871 = vpack.c.bf16 %v868, %v868
      %v872 = vld [vmem:[%s438 + $0x182] sm:$0xff]
      %v873 = vld [vmem:[%s438 + $0x18a] sm:$0xff]
      %v874 = vld [vmem:[%s438 + $0x192] sm:$0xff]
      %v875 = vpack.c.bf16 %v872, %v872
      %v876 = vpack.c.bf16 %v873, %v873
      %v877 = vpack.c.bf16 %v874, %v874
      %v878 = vld [vmem:[%s438 + $0x198] sm:$0xff]
      %v879 = vld [vmem:[%s438 + $0x1a0] sm:$0xff]
      %v880 = vld [vmem:[%s438 + $0x1a8] sm:$0xff]
      %v881 = vpack.c.bf16 %v878, %v878
      %v882 = vpack.c.bf16 %v879, %v879
      %v883 = vpack.c.bf16 %v880, %v880
      %v884 = vld [vmem:[%s438 + $0x199] sm:$0xff]
      %v885 = vld [vmem:[%s438 + $0x1a1] sm:$0xff]
      %v886 = vld [vmem:[%s438 + $0x1a9] sm:$0xff]
      %v887 = vpack.c.bf16 %v884, %v884
      %v888 = vpack.c.bf16 %v885, %v885
      %v889 = vpack.c.bf16 %v886, %v886
      %v890 = vld [vmem:[%s438 + $0x19a] sm:$0xff]
      %v891 = vld [vmem:[%s438 + $0x1a2] sm:$0xff]
      %v892 = vld [vmem:[%s438 + $0x1aa] sm:$0xff]
      %v893 = vpack.c.bf16 %v890, %v890
      %v894 = vpack.c.bf16 %v891, %v891
      %v895 = vpack.c.bf16 %v892, %v892
      %v944 = vunpack.c.l.b16 %v620
      %v945 = vunpack.c.l.b16 %v621
      %v946 = vunpack.c.l.b16 %v622
      %v947 = vunpack.c.l.b16 %v623
      %v948 = vunpack.c.l.b16 %v624
      %v949 = vunpack.c.l.b16 %v625
      %v950 = vunpack.c.l.b16 %v626
      %v951 = vunpack.c.l.b16 %v627
      %v952 = vunpack.c.l.b16 %v628
      %v953 = vunpack.c.l.b16 %v629
      %v954 = vunpack.c.l.b16 %v630
      %v955 = vunpack.c.l.b16 %v631
      %v956 = vunpack.c.l.b16 %v632
      %v957 = vunpack.c.l.b16 %v633
      %v958 = vunpack.c.l.b16 %v634
      %v959 = vunpack.c.l.b16 %v635
      %v960 = vunpack.c.l.b16 %v636
      %v961 = vunpack.c.l.b16 %v637
      %v962 = vunpack.c.l.b16 %v638
      %v963 = vunpack.c.l.b16 %v639
      %v964 = vunpack.c.l.b16 %v640
      %v965 = vunpack.c.l.b16 %v641
      %v966 = vunpack.c.l.b16 %v642
      %v967 = vunpack.c.l.b16 %v643
      %v968 = vunpack.c.l.b16 %v644
      %v969 = vunpack.c.l.b16 %v645
      %v970 = vunpack.c.l.b16 %v646
      %v971 = vunpack.c.l.b16 %v647
      %v972 = vunpack.c.l.b16 %v648
      %v973 = vunpack.c.l.b16 %v649
      %v974 = vunpack.c.l.b16 %v650
      %v975 = vunpack.c.l.b16 %v651
      %v976 = vunpack.c.l.b16 %v652
      %v977 = vunpack.c.l.b16 %v653
      %v978 = vunpack.c.l.b16 %v654
      %v979 = vunpack.c.l.b16 %v655
      %v980 = vunpack.c.l.b16 %v656
      %v981 = vunpack.c.l.b16 %v657
      %v982 = vunpack.c.l.b16 %v658
      %v983 = vunpack.c.l.b16 %v659
      %v984 = vunpack.c.l.b16 %v660
      %v985 = vunpack.c.l.b16 %v661
      %v986 = vunpack.c.l.b16 %v662
      %v987 = vunpack.c.l.b16 %v663
      %v988 = vunpack.c.l.b16 %v664
      %v989 = vunpack.c.l.b16 %v665
      %v990 = vunpack.c.l.b16 %v666
      %v991 = vunpack.c.l.b16 %v667
      %v992 = vpack.c.b16 %v945, %v944
      %v993 = vpack.c.b16 %v947, %v946
      %v994 = vpack.c.b16 %v949, %v948
      %v995 = vpack.c.b16 %v951, %v950
      %v996 = vpack.c.b16 %v953, %v952
      %v997 = vpack.c.b16 %v955, %v954
      %v998 = vpack.c.b16 %v957, %v956
      %v999 = vpack.c.b16 %v959, %v958
      %v1000 = vpack.c.b16 %v961, %v960
      %v1001 = vpack.c.b16 %v963, %v962
      %v1002 = vpack.c.b16 %v965, %v964
      %v1003 = vpack.c.b16 %v967, %v966
      %v1004 = vpack.c.b16 %v969, %v968
      %v1005 = vpack.c.b16 %v971, %v970
      %v1006 = vpack.c.b16 %v973, %v972
      %v1007 = vpack.c.b16 %v975, %v974
      %v1008 = vpack.c.b16 %v977, %v976
      %v1009 = vpack.c.b16 %v979, %v978
      %v1010 = vpack.c.b16 %v981, %v980
      %v1011 = vpack.c.b16 %v983, %v982
      %v1012 = vpack.c.b16 %v985, %v984
      %v1013 = vpack.c.b16 %v987, %v986
      %v1014 = vpack.c.b16 %v989, %v988
      %v1015 = vpack.c.b16 %v991, %v990
      %v1064 = vunpack.c.l.b16 %v716
      %v1065 = vunpack.c.l.b16 %v717
      %v1066 = vunpack.c.l.b16 %v718
      %v1067 = vunpack.c.l.b16 %v719
      %v1068 = vunpack.c.l.b16 %v720
      %v1069 = vunpack.c.l.b16 %v721
      %v1070 = vunpack.c.l.b16 %v722
      %v1071 = vunpack.c.l.b16 %v723
      %v1072 = vunpack.c.l.b16 %v724
      %v1073 = vunpack.c.l.b16 %v725
      %v1074 = vunpack.c.l.b16 %v726
      %v1075 = vunpack.c.l.b16 %v727
      %v1076 = vunpack.c.l.b16 %v728
      %v1077 = vunpack.c.l.b16 %v729
      %v1078 = vunpack.c.l.b16 %v730
      %v1079 = vunpack.c.l.b16 %v731
      %v1080 = vunpack.c.l.b16 %v732
      %v1081 = vunpack.c.l.b16 %v733
      %v1082 = vunpack.c.l.b16 %v734
      %v1083 = vunpack.c.l.b16 %v735
      %v1084 = vunpack.c.l.b16 %v736
      %v1085 = vunpack.c.l.b16 %v737
      %v1086 = vunpack.c.l.b16 %v738
      %v1087 = vunpack.c.l.b16 %v739
      %v1088 = vunpack.c.l.b16 %v740
      %v1089 = vunpack.c.l.b16 %v741
      %v1090 = vunpack.c.l.b16 %v742
      %v1091 = vunpack.c.l.b16 %v743
      %v1092 = vunpack.c.l.b16 %v744
      %v1093 = vunpack.c.l.b16 %v745
      %v1094 = vunpack.c.l.b16 %v746
      %v1095 = vunpack.c.l.b16 %v747
      %v1096 = vunpack.c.l.b16 %v748
      %v1097 = vunpack.c.l.b16 %v749
      %v1098 = vunpack.c.l.b16 %v750
      %v1099 = vunpack.c.l.b16 %v751
      %v1100 = vunpack.c.l.b16 %v752
      %v1101 = vunpack.c.l.b16 %v753
      %v1102 = vunpack.c.l.b16 %v754
      %v1103 = vunpack.c.l.b16 %v755
      %v1104 = vunpack.c.l.b16 %v756
      %v1105 = vunpack.c.l.b16 %v757
      %v1106 = vunpack.c.l.b16 %v758
      %v1107 = vunpack.c.l.b16 %v759
      %v1108 = vunpack.c.l.b16 %v760
      %v1109 = vunpack.c.l.b16 %v761
      %v1110 = vunpack.c.l.b16 %v762
      %v1111 = vunpack.c.l.b16 %v763
      %v1112 = vpack.c.b16 %v1065, %v1064
      %v1113 = vpack.c.b16 %v1067, %v1066
      %v1114 = vpack.c.b16 %v1069, %v1068
      %v1115 = vpack.c.b16 %v1071, %v1070
      %v1116 = vpack.c.b16 %v1073, %v1072
      %v1117 = vpack.c.b16 %v1075, %v1074
      %v1118 = vpack.c.b16 %v1077, %v1076
      %v1119 = vpack.c.b16 %v1079, %v1078
      %v1120 = vpack.c.b16 %v1081, %v1080
      %v1121 = vpack.c.b16 %v1083, %v1082
      %v1122 = vpack.c.b16 %v1085, %v1084
      %v1123 = vpack.c.b16 %v1087, %v1086
      %v1124 = vpack.c.b16 %v1089, %v1088
      %v1125 = vpack.c.b16 %v1091, %v1090
      %v1126 = vpack.c.b16 %v1093, %v1092
      %v1127 = vpack.c.b16 %v1095, %v1094
      %v1128 = vpack.c.b16 %v1097, %v1096
      %v1129 = vpack.c.b16 %v1099, %v1098
      %v1130 = vpack.c.b16 %v1101, %v1100
      %v1131 = vpack.c.b16 %v1103, %v1102
      %v1132 = vpack.c.b16 %v1105, %v1104
      %v1133 = vpack.c.b16 %v1107, %v1106
      %v1134 = vpack.c.b16 %v1109, %v1108
      %v1135 = vpack.c.b16 %v1111, %v1110
      %1136 = vrot.lane.b32.xlu0 %v1112, 8
      %v1137 = vpop.permute.xlu0 %1136
      %1138 = vrot.lane.b32.xlu0 %v1113, 8
      %v1139 = vpop.permute.xlu0 %1138
      %1140 = vrot.lane.b32.xlu0 %v1114, 8
      %v1141 = vpop.permute.xlu0 %1140
      %1142 = vrot.lane.b32.xlu0 %v1115, 8
      %v1143 = vpop.permute.xlu0 %1142
      %1144 = vrot.lane.b32.xlu0 %v1116, 8
      %v1145 = vpop.permute.xlu0 %1144
      %1146 = vrot.lane.b32.xlu0 %v1117, 8
      %v1147 = vpop.permute.xlu0 %1146
      %1148 = vrot.lane.b32.xlu0 %v1118, 8
      %v1149 = vpop.permute.xlu0 %1148
      %1150 = vrot.lane.b32.xlu0 %v1119, 8
      %v1151 = vpop.permute.xlu0 %1150
      %1152 = vrot.lane.b32.xlu0 %v1120, 8
      %v1153 = vpop.permute.xlu0 %1152
      %1154 = vrot.lane.b32.xlu0 %v1121, 8
      %v1155 = vpop.permute.xlu0 %1154
      %1156 = vrot.lane.b32.xlu0 %v1122, 8
      %v1157 = vpop.permute.xlu0 %1156
      %1158 = vrot.lane.b32.xlu0 %v1123, 8
      %v1159 = vpop.permute.xlu0 %1158
      %1160 = vrot.lane.b32.xlu0 %v1124, 8
      %v1161 = vpop.permute.xlu0 %1160
      %1162 = vrot.lane.b32.xlu0 %v1125, 8
      %v1163 = vpop.permute.xlu0 %1162
      %1164 = vrot.lane.b32.xlu0 %v1126, 8
      %v1165 = vpop.permute.xlu0 %1164
      %1166 = vrot.lane.b32.xlu0 %v1127, 8
      %v1167 = vpop.permute.xlu0 %1166
      %1168 = vrot.lane.b32.xlu0 %v1128, 8
      %v1169 = vpop.permute.xlu0 %1168
      %1170 = vrot.lane.b32.xlu0 %v1129, 8
      %v1171 = vpop.permute.xlu0 %1170
      %1172 = vrot.lane.b32.xlu0 %v1130, 8
      %v1173 = vpop.permute.xlu0 %1172
      %1174 = vrot.lane.b32.xlu0 %v1131, 8
      %v1175 = vpop.permute.xlu0 %1174
      %1176 = vrot.lane.b32.xlu0 %v1132, 8
      %v1177 = vpop.permute.xlu0 %1176
      %1178 = vrot.lane.b32.xlu0 %v1133, 8
      %v1179 = vpop.permute.xlu0 %1178
      %1180 = vrot.lane.b32.xlu0 %v1134, 8
      %v1181 = vpop.permute.xlu0 %1180
      %1182 = vrot.lane.b32.xlu0 %v1135, 8
      %v1183 = vpop.permute.xlu0 %1182
      %v1232 = vunpack.c.l.b16 %v812
      %v1233 = vunpack.c.l.b16 %v813
      %v1234 = vunpack.c.l.b16 %v814
      %v1235 = vunpack.c.l.b16 %v815
      %v1236 = vunpack.c.l.b16 %v816
      %v1237 = vunpack.c.l.b16 %v817
      %v1238 = vunpack.c.l.b16 %v818
      %v1239 = vunpack.c.l.b16 %v819
      %v1240 = vunpack.c.l.b16 %v820
      %v1241 = vunpack.c.l.b16 %v821
      %v1242 = vunpack.c.l.b16 %v822
      %v1243 = vunpack.c.l.b16 %v823
      %v1244 = vunpack.c.l.b16 %v824
      %v1245 = vunpack.c.l.b16 %v825
      %v1246 = vunpack.c.l.b16 %v826
      %v1247 = vunpack.c.l.b16 %v827
      %v1248 = vunpack.c.l.b16 %v828
      %v1249 = vunpack.c.l.b16 %v829
      %v1250 = vunpack.c.l.b16 %v830
      %v1251 = vunpack.c.l.b16 %v831
      %v1252 = vunpack.c.l.b16 %v832
      %v1253 = vunpack.c.l.b16 %v833
      %v1254 = vunpack.c.l.b16 %v834
      %v1255 = vunpack.c.l.b16 %v835
      %v1256 = vunpack.c.l.b16 %v836
      %v1257 = vunpack.c.l.b16 %v837
      %v1258 = vunpack.c.l.b16 %v838
      %v1259 = vunpack.c.l.b16 %v839
      %v1260 = vunpack.c.l.b16 %v840
      %v1261 = vunpack.c.l.b16 %v841
      %v1262 = vunpack.c.l.b16 %v842
      %v1263 = vunpack.c.l.b16 %v843
      %v1264 = vunpack.c.l.b16 %v844
      %v1265 = vunpack.c.l.b16 %v845
      %v1266 = vunpack.c.l.b16 %v846
      %v1267 = vunpack.c.l.b16 %v847
      %v1268 = vunpack.c.l.b16 %v848
      %v1269 = vunpack.c.l.b16 %v849
      %v1270 = vunpack.c.l.b16 %v850
      %v1271 = vunpack.c.l.b16 %v851
      %v1272 = vunpack.c.l.b16 %v852
      %v1273 = vunpack.c.l.b16 %v853
      %v1274 = vunpack.c.l.b16 %v854
      %v1275 = vunpack.c.l.b16 %v855
      %v1276 = vunpack.c.l.b16 %v856
      %v1277 = vunpack.c.l.b16 %v857
      %v1278 = vunpack.c.l.b16 %v858
      %v1279 = vunpack.c.l.b16 %v859
      %v1280 = vpack.c.b16 %v1233, %v1232
      %v1281 = vpack.c.b16 %v1235, %v1234
      %v1282 = vpack.c.b16 %v1237, %v1236
      %v1283 = vpack.c.b16 %v1239, %v1238
      %v1284 = vpack.c.b16 %v1241, %v1240
      %v1285 = vpack.c.b16 %v1243, %v1242
      %v1286 = vpack.c.b16 %v1245, %v1244
      %v1287 = vpack.c.b16 %v1247, %v1246
      %v1288 = vpack.c.b16 %v1249, %v1248
      %v1289 = vpack.c.b16 %v1251, %v1250
      %v1290 = vpack.c.b16 %v1253, %v1252
      %v1291 = vpack.c.b16 %v1255, %v1254
      %v1292 = vpack.c.b16 %v1257, %v1256
      %v1293 = vpack.c.b16 %v1259, %v1258
      %v1294 = vpack.c.b16 %v1261, %v1260
      %v1295 = vpack.c.b16 %v1263, %v1262
      %v1296 = vpack.c.b16 %v1265, %v1264
      %v1297 = vpack.c.b16 %v1267, %v1266
      %v1298 = vpack.c.b16 %v1269, %v1268
      %v1299 = vpack.c.b16 %v1271, %v1270
      %v1300 = vpack.c.b16 %v1273, %v1272
      %v1301 = vpack.c.b16 %v1275, %v1274
      %v1302 = vpack.c.b16 %v1277, %v1276
      %v1303 = vpack.c.b16 %v1279, %v1278
      %1304 = vrot.lane.b32.xlu0 %v1280, 16
      %v1305 = vpop.permute.xlu0 %1304
      %1306 = vrot.lane.b32.xlu0 %v1281, 16
      %v1307 = vpop.permute.xlu0 %1306
      %1308 = vrot.lane.b32.xlu0 %v1282, 16
      %v1309 = vpop.permute.xlu0 %1308
      %1310 = vrot.lane.b32.xlu0 %v1283, 16
      %v1311 = vpop.permute.xlu0 %1310
      %1312 = vrot.lane.b32.xlu0 %v1284, 16
      %v1313 = vpop.permute.xlu0 %1312
      %1314 = vrot.lane.b32.xlu0 %v1285, 16
      %v1315 = vpop.permute.xlu0 %1314
      %1316 = vrot.lane.b32.xlu0 %v1286, 16
      %v1317 = vpop.permute.xlu0 %1316
      %1318 = vrot.lane.b32.xlu0 %v1287, 16
      %v1319 = vpop.permute.xlu0 %1318
      %1320 = vrot.lane.b32.xlu0 %v1288, 16
      %v1321 = vpop.permute.xlu0 %1320
      %1322 = vrot.lane.b32.xlu0 %v1289, 16
      %v1323 = vpop.permute.xlu0 %1322
      %1324 = vrot.lane.b32.xlu0 %v1290, 16
      %v1325 = vpop.permute.xlu0 %1324
      %1326 = vrot.lane.b32.xlu0 %v1291, 16
      %v1327 = vpop.permute.xlu0 %1326
      %1328 = vrot.lane.b32.xlu0 %v1292, 16
      %v1329 = vpop.permute.xlu0 %1328
      %1330 = vrot.lane.b32.xlu0 %v1293, 16
      %v1331 = vpop.permute.xlu0 %1330
      %1332 = vrot.lane.b32.xlu0 %v1294, 16
      %v1333 = vpop.permute.xlu0 %1332
      %1334 = vrot.lane.b32.xlu0 %v1295, 16
      %v1335 = vpop.permute.xlu0 %1334
      %1336 = vrot.lane.b32.xlu0 %v1296, 16
      %v1337 = vpop.permute.xlu0 %1336
      %1338 = vrot.lane.b32.xlu0 %v1297, 16
      %v1339 = vpop.permute.xlu0 %1338
      %1340 = vrot.lane.b32.xlu0 %v1298, 16
      %v1341 = vpop.permute.xlu0 %1340
      %1342 = vrot.lane.b32.xlu0 %v1299, 16
      %v1343 = vpop.permute.xlu0 %1342
      %1344 = vrot.lane.b32.xlu0 %v1300, 16
      %v1345 = vpop.permute.xlu0 %1344
      %1346 = vrot.lane.b32.xlu0 %v1301, 16
      %v1347 = vpop.permute.xlu0 %1346
      %1348 = vrot.lane.b32.xlu0 %v1302, 16
      %v1349 = vpop.permute.xlu0 %1348
      %1350 = vrot.lane.b32.xlu0 %v1303, 16
      %v1351 = vpop.permute.xlu0 %1350
      %v1355 = vunpack.c.l.b16 %v863
      %v1356 = vunpack.c.l.b16 %v864
      %v1357 = vunpack.c.l.b16 %v865
      %v1358 = vpack.c.b16 %v948, %v947
      %v1359 = vpack.c.b16 %v950, %v949
      %v1360 = vpack.c.b16 %v952, %v951
      %v1361 = vpack.c.b16 %v954, %v953
      %v1362 = vpack.c.b16 %v956, %v955
      %v1363 = vpack.c.b16 %v958, %v957
      %v1364 = vpack.c.b16 %v960, %v959
      %v1365 = vpack.c.b16 %v962, %v961
      %v1366 = vpack.c.b16 %v964, %v963
      %v1367 = vpack.c.b16 %v966, %v965
      %v1368 = vpack.c.b16 %v968, %v967
      %v1369 = vpack.c.b16 %v970, %v969
      %v1370 = vpack.c.b16 %v972, %v971
      %v1371 = vpack.c.b16 %v974, %v973
      %v1372 = vpack.c.b16 %v976, %v975
      %v1373 = vpack.c.b16 %v978, %v977
      %v1374 = vpack.c.b16 %v980, %v979
      %v1375 = vpack.c.b16 %v982, %v981
      %v1376 = vpack.c.b16 %v984, %v983
      %v1377 = vpack.c.b16 %v986, %v985
      %v1378 = vpack.c.b16 %v988, %v987
      %v1379 = vpack.c.b16 %v990, %v989
      %v1380 = vpack.c.b16 %v1355, %v991
      %v1381 = vpack.c.b16 %v1357, %v1356
      %1382 = vrot.lane.b32.xlu0 %v1358, 24
      %v1383 = vpop.permute.xlu0 %1382
      %1384 = vrot.lane.b32.xlu0 %v1359, 24
      %v1385 = vpop.permute.xlu0 %1384
      %1386 = vrot.lane.b32.xlu0 %v1360, 24
      %v1387 = vpop.permute.xlu0 %1386
      %1388 = vrot.lane.b32.xlu0 %v1361, 24
      %v1389 = vpop.permute.xlu0 %1388
      %1390 = vrot.lane.b32.xlu0 %v1362, 24
      %v1391 = vpop.permute.xlu0 %1390
      %1392 = vrot.lane.b32.xlu0 %v1363, 24
      %v1393 = vpop.permute.xlu0 %1392
      %1394 = vrot.lane.b32.xlu0 %v1364, 24
      %v1395 = vpop.permute.xlu0 %1394
      %1396 = vrot.lane.b32.xlu0 %v1365, 24
      %v1397 = vpop.permute.xlu0 %1396
      %1398 = vrot.lane.b32.xlu0 %v1366, 24
      %v1399 = vpop.permute.xlu0 %1398
      %1400 = vrot.lane.b32.xlu0 %v1367, 24
      %v1401 = vpop.permute.xlu0 %1400
      %1402 = vrot.lane.b32.xlu0 %v1368, 24
      %v1403 = vpop.permute.xlu0 %1402
      %1404 = vrot.lane.b32.xlu0 %v1369, 24
      %v1405 = vpop.permute.xlu0 %1404
      %1406 = vrot.lane.b32.xlu0 %v1370, 24
      %v1407 = vpop.permute.xlu0 %1406
      %1408 = vrot.lane.b32.xlu0 %v1371, 24
      %v1409 = vpop.permute.xlu0 %1408
      %1410 = vrot.lane.b32.xlu0 %v1372, 24
      %v1411 = vpop.permute.xlu0 %1410
      %1412 = vrot.lane.b32.xlu0 %v1373, 24
      %v1413 = vpop.permute.xlu0 %1412
      %1414 = vrot.lane.b32.xlu0 %v1374, 24
      %v1415 = vpop.permute.xlu0 %1414
      %1416 = vrot.lane.b32.xlu0 %v1375, 24
      %v1417 = vpop.permute.xlu0 %1416
      %1418 = vrot.lane.b32.xlu0 %v1376, 24
      %v1419 = vpop.permute.xlu0 %1418
      %1420 = vrot.lane.b32.xlu0 %v1377, 24
      %v1421 = vpop.permute.xlu0 %1420
      %1422 = vrot.lane.b32.xlu0 %v1378, 24
      %v1423 = vpop.permute.xlu0 %1422
      %1424 = vrot.lane.b32.xlu0 %v1379, 24
      %v1425 = vpop.permute.xlu0 %1424
      %1426 = vrot.lane.b32.xlu0 %v1380, 24
      %v1427 = vpop.permute.xlu0 %1426
      %1428 = vrot.lane.b32.xlu0 %v1381, 24
      %v1429 = vpop.permute.xlu0 %1428
      %v1433 = vunpack.c.l.b16 %v869
      %v1434 = vunpack.c.l.b16 %v870
      %v1435 = vunpack.c.l.b16 %v871
      %v1436 = vpack.c.b16 %v1068, %v1067
      %v1437 = vpack.c.b16 %v1070, %v1069
      %v1438 = vpack.c.b16 %v1072, %v1071
      %v1439 = vpack.c.b16 %v1074, %v1073
      %v1440 = vpack.c.b16 %v1076, %v1075
      %v1441 = vpack.c.b16 %v1078, %v1077
      %v1442 = vpack.c.b16 %v1080, %v1079
      %v1443 = vpack.c.b16 %v1082, %v1081
      %v1444 = vpack.c.b16 %v1084, %v1083
      %v1445 = vpack.c.b16 %v1086, %v1085
      %v1446 = vpack.c.b16 %v1088, %v1087
      %v1447 = vpack.c.b16 %v1090, %v1089
      %v1448 = vpack.c.b16 %v1092, %v1091
      %v1449 = vpack.c.b16 %v1094, %v1093
      %v1450 = vpack.c.b16 %v1096, %v1095
      %v1451 = vpack.c.b16 %v1098, %v1097
      %v1452 = vpack.c.b16 %v1100, %v1099
      %v1453 = vpack.c.b16 %v1102, %v1101
      %v1454 = vpack.c.b16 %v1104, %v1103
      %v1455 = vpack.c.b16 %v1106, %v1105
      %v1456 = vpack.c.b16 %v1108, %v1107
      %v1457 = vpack.c.b16 %v1110, %v1109
      %v1458 = vpack.c.b16 %v1433, %v1111
      %v1459 = vpack.c.b16 %v1435, %v1434
      %1460 = vrot.lane.b32.xlu0 %v1436, 32
      %v1461 = vpop.permute.xlu0 %1460
      %1462 = vrot.lane.b32.xlu0 %v1437, 32
      %v1463 = vpop.permute.xlu0 %1462
      %1464 = vrot.lane.b32.xlu0 %v1438, 32
      %v1465 = vpop.permute.xlu0 %1464
      %1466 = vrot.lane.b32.xlu0 %v1439, 32
      %v1467 = vpop.permute.xlu0 %1466
      %1468 = vrot.lane.b32.xlu0 %v1440, 32
      %v1469 = vpop.permute.xlu0 %1468
      %1470 = vrot.lane.b32.xlu0 %v1441, 32
      %v1471 = vpop.permute.xlu0 %1470
      %1472 = vrot.lane.b32.xlu0 %v1442, 32
      %v1473 = vpop.permute.xlu0 %1472
      %1474 = vrot.lane.b32.xlu0 %v1443, 32
      %v1475 = vpop.permute.xlu0 %1474
      %1476 = vrot.lane.b32.xlu0 %v1444, 32
      %v1477 = vpop.permute.xlu0 %1476
      %1478 = vrot.lane.b32.xlu0 %v1445, 32
      %v1479 = vpop.permute.xlu0 %1478
      %1480 = vrot.lane.b32.xlu0 %v1446, 32
      %v1481 = vpop.permute.xlu0 %1480
      %1482 = vrot.lane.b32.xlu0 %v1447, 32
      %v1483 = vpop.permute.xlu0 %1482
      %1484 = vrot.lane.b32.xlu0 %v1448, 32
      %v1485 = vpop.permute.xlu0 %1484
      %1486 = vrot.lane.b32.xlu0 %v1449, 32
      %v1487 = vpop.permute.xlu0 %1486
      %1488 = vrot.lane.b32.xlu0 %v1450, 32
      %v1489 = vpop.permute.xlu0 %1488
      %1490 = vrot.lane.b32.xlu0 %v1451, 32
      %v1491 = vpop.permute.xlu0 %1490
      %1492 = vrot.lane.b32.xlu0 %v1452, 32
      %v1493 = vpop.permute.xlu0 %1492
      %1494 = vrot.lane.b32.xlu0 %v1453, 32
      %v1495 = vpop.permute.xlu0 %1494
      %1496 = vrot.lane.b32.xlu0 %v1454, 32
      %v1497 = vpop.permute.xlu0 %1496
      %1498 = vrot.lane.b32.xlu0 %v1455, 32
      %v1499 = vpop.permute.xlu0 %1498
      %1500 = vrot.lane.b32.xlu0 %v1456, 32
      %v1501 = vpop.permute.xlu0 %1500
      %1502 = vrot.lane.b32.xlu0 %v1457, 32
      %v1503 = vpop.permute.xlu0 %1502
      %1504 = vrot.lane.b32.xlu0 %v1458, 32
      %v1505 = vpop.permute.xlu0 %1504
      %1506 = vrot.lane.b32.xlu0 %v1459, 32
      %v1507 = vpop.permute.xlu0 %1506
      %v1511 = vunpack.c.l.b16 %v875
      %v1512 = vunpack.c.l.b16 %v876
      %v1513 = vunpack.c.l.b16 %v877
      %v1514 = vpack.c.b16 %v1236, %v1235
      %v1515 = vpack.c.b16 %v1238, %v1237
      %v1516 = vpack.c.b16 %v1240, %v1239
      %v1517 = vpack.c.b16 %v1242, %v1241
      %v1518 = vpack.c.b16 %v1244, %v1243
      %v1519 = vpack.c.b16 %v1246, %v1245
      %v1520 = vpack.c.b16 %v1248, %v1247
      %v1521 = vpack.c.b16 %v1250, %v1249
      %v1522 = vpack.c.b16 %v1252, %v1251
      %v1523 = vpack.c.b16 %v1254, %v1253
      %v1524 = vpack.c.b16 %v1256, %v1255
      %v1525 = vpack.c.b16 %v1258, %v1257
      %v1526 = vpack.c.b16 %v1260, %v1259
      %v1527 = vpack.c.b16 %v1262, %v1261
      %v1528 = vpack.c.b16 %v1264, %v1263
      %v1529 = vpack.c.b16 %v1266, %v1265
      %v1530 = vpack.c.b16 %v1268, %v1267
      %v1531 = vpack.c.b16 %v1270, %v1269
      %v1532 = vpack.c.b16 %v1272, %v1271
      %v1533 = vpack.c.b16 %v1274, %v1273
      %v1534 = vpack.c.b16 %v1276, %v1275
      %v1535 = vpack.c.b16 %v1278, %v1277
      %v1536 = vpack.c.b16 %v1511, %v1279
      %v1537 = vpack.c.b16 %v1513, %v1512
      %1538 = vrot.lane.b32.xlu0 %v1514, 40
      %v1539 = vpop.permute.xlu0 %1538
      %1540 = vrot.lane.b32.xlu0 %v1515, 40
      %v1541 = vpop.permute.xlu0 %1540
      %1542 = vrot.lane.b32.xlu0 %v1516, 40
      %v1543 = vpop.permute.xlu0 %1542
      %1544 = vrot.lane.b32.xlu0 %v1517, 40
      %v1545 = vpop.permute.xlu0 %1544
      %1546 = vrot.lane.b32.xlu0 %v1518, 40
      %v1547 = vpop.permute.xlu0 %1546
      %1548 = vrot.lane.b32.xlu0 %v1519, 40
      %v1549 = vpop.permute.xlu0 %1548
      %1550 = vrot.lane.b32.xlu0 %v1520, 40
      %v1551 = vpop.permute.xlu0 %1550
      %1552 = vrot.lane.b32.xlu0 %v1521, 40
      %v1553 = vpop.permute.xlu0 %1552
      %1554 = vrot.lane.b32.xlu0 %v1522, 40
      %v1555 = vpop.permute.xlu0 %1554
      %1556 = vrot.lane.b32.xlu0 %v1523, 40
      %v1557 = vpop.permute.xlu0 %1556
      %1558 = vrot.lane.b32.xlu0 %v1524, 40
      %v1559 = vpop.permute.xlu0 %1558
      %1560 = vrot.lane.b32.xlu0 %v1525, 40
      %v1561 = vpop.permute.xlu0 %1560
      %1562 = vrot.lane.b32.xlu0 %v1526, 40
      %v1563 = vpop.permute.xlu0 %1562
      %1564 = vrot.lane.b32.xlu0 %v1527, 40
      %v1565 = vpop.permute.xlu0 %1564
      %1566 = vrot.lane.b32.xlu0 %v1528, 40
      %v1567 = vpop.permute.xlu0 %1566
      %1568 = vrot.lane.b32.xlu0 %v1529, 40
      %v1569 = vpop.permute.xlu0 %1568
      %1570 = vrot.lane.b32.xlu0 %v1530, 40
      %v1571 = vpop.permute.xlu0 %1570
      %1572 = vrot.lane.b32.xlu0 %v1531, 40
      %v1573 = vpop.permute.xlu0 %1572
      %1574 = vrot.lane.b32.xlu0 %v1532, 40
      %v1575 = vpop.permute.xlu0 %1574
      %1576 = vrot.lane.b32.xlu0 %v1533, 40
      %v1577 = vpop.permute.xlu0 %1576
      %1578 = vrot.lane.b32.xlu0 %v1534, 40
      %v1579 = vpop.permute.xlu0 %1578
      %1580 = vrot.lane.b32.xlu0 %v1535, 40
      %v1581 = vpop.permute.xlu0 %1580
      %1582 = vrot.lane.b32.xlu0 %v1536, 40
      %v1583 = vpop.permute.xlu0 %1582
      %1584 = vrot.lane.b32.xlu0 %v1537, 40
      %v1585 = vpop.permute.xlu0 %1584
      %v1589 = vunpack.c.l.b16 %v881
      %v1590 = vunpack.c.l.b16 %v882
      %v1591 = vunpack.c.l.b16 %v883
      %v1592 = vpack.c.b16 %v1356, %v1355
      %v1593 = vpack.c.b16 %v1589, %v1357
      %v1594 = vpack.c.b16 %v1591, %v1590
      %1595 = vrot.lane.b32.xlu0 %v995, 48
      %v1596 = vpop.permute.xlu0 %1595
      %1597 = vrot.lane.b32.xlu0 %v996, 48
      %v1598 = vpop.permute.xlu0 %1597
      %1599 = vrot.lane.b32.xlu0 %v997, 48
      %v1600 = vpop.permute.xlu0 %1599
      %1601 = vrot.lane.b32.xlu0 %v998, 48
      %v1602 = vpop.permute.xlu0 %1601
      %1603 = vrot.lane.b32.xlu0 %v999, 48
      %v1604 = vpop.permute.xlu0 %1603
      %1605 = vrot.lane.b32.xlu0 %v1000, 48
      %v1606 = vpop.permute.xlu0 %1605
      %1607 = vrot.lane.b32.xlu0 %v1001, 48
      %v1608 = vpop.permute.xlu0 %1607
      %1609 = vrot.lane.b32.xlu0 %v1002, 48
      %v1610 = vpop.permute.xlu0 %1609
      %1611 = vrot.lane.b32.xlu0 %v1003, 48
      %v1612 = vpop.permute.xlu0 %1611
      %1613 = vrot.lane.b32.xlu0 %v1004, 48
      %v1614 = vpop.permute.xlu0 %1613
      %1615 = vrot.lane.b32.xlu0 %v1005, 48
      %v1616 = vpop.permute.xlu0 %1615
      %1617 = vrot.lane.b32.xlu0 %v1006, 48
      %v1618 = vpop.permute.xlu0 %1617
      %1619 = vrot.lane.b32.xlu0 %v1007, 48
      %v1620 = vpop.permute.xlu0 %1619
      %1621 = vrot.lane.b32.xlu0 %v1008, 48
      %v1622 = vpop.permute.xlu0 %1621
      %1623 = vrot.lane.b32.xlu0 %v1009, 48
      %v1624 = vpop.permute.xlu0 %1623
      %1625 = vrot.lane.b32.xlu0 %v1010, 48
      %v1626 = vpop.permute.xlu0 %1625
      %1627 = vrot.lane.b32.xlu0 %v1011, 48
      %v1628 = vpop.permute.xlu0 %1627
      %1629 = vrot.lane.b32.xlu0 %v1012, 48
      %v1630 = vpop.permute.xlu0 %1629
      %1631 = vrot.lane.b32.xlu0 %v1013, 48
      %v1632 = vpop.permute.xlu0 %1631
      %1633 = vrot.lane.b32.xlu0 %v1014, 48
      %v1634 = vpop.permute.xlu0 %1633
      %1635 = vrot.lane.b32.xlu0 %v1015, 48
      %v1636 = vpop.permute.xlu0 %1635
      %1637 = vrot.lane.b32.xlu0 %v1592, 48
      %v1638 = vpop.permute.xlu0 %1637
      %1639 = vrot.lane.b32.xlu0 %v1593, 48
      %v1640 = vpop.permute.xlu0 %1639
      %1641 = vrot.lane.b32.xlu0 %v1594, 48
      %v1642 = vpop.permute.xlu0 %1641
      %v1646 = vunpack.c.l.b16 %v887
      %v1647 = vunpack.c.l.b16 %v888
      %v1648 = vunpack.c.l.b16 %v889
      %v1649 = vpack.c.b16 %v1434, %v1433
      %v1650 = vpack.c.b16 %v1646, %v1435
      %v1651 = vpack.c.b16 %v1648, %v1647
      %1652 = vrot.lane.b32.xlu0 %v1115, 56
      %v1653 = vpop.permute.xlu0 %1652
      %1654 = vrot.lane.b32.xlu0 %v1116, 56
      %v1655 = vpop.permute.xlu0 %1654
      %1656 = vrot.lane.b32.xlu0 %v1117, 56
      %v1657 = vpop.permute.xlu0 %1656
      %1658 = vrot.lane.b32.xlu0 %v1118, 56
      %v1659 = vpop.permute.xlu0 %1658
      %1660 = vrot.lane.b32.xlu0 %v1119, 56
      %v1661 = vpop.permute.xlu0 %1660
      %1662 = vrot.lane.b32.xlu0 %v1120, 56
      %v1663 = vpop.permute.xlu0 %1662
      %1664 = vrot.lane.b32.xlu0 %v1121, 56
      %v1665 = vpop.permute.xlu0 %1664
      %1666 = vrot.lane.b32.xlu0 %v1122, 56
      %v1667 = vpop.permute.xlu0 %1666
      %1668 = vrot.lane.b32.xlu0 %v1123, 56
      %v1669 = vpop.permute.xlu0 %1668
      %1670 = vrot.lane.b32.xlu0 %v1124, 56
      %v1671 = vpop.permute.xlu0 %1670
      %1672 = vrot.lane.b32.xlu0 %v1125, 56
      %v1673 = vpop.permute.xlu0 %1672
      %1674 = vrot.lane.b32.xlu0 %v1126, 56
      %v1675 = vpop.permute.xlu0 %1674
      %1676 = vrot.lane.b32.xlu0 %v1127, 56
      %v1677 = vpop.permute.xlu0 %1676
      %1678 = vrot.lane.b32.xlu0 %v1128, 56
      %v1679 = vpop.permute.xlu0 %1678
      %1680 = vrot.lane.b32.xlu0 %v1129, 56
      %v1681 = vpop.permute.xlu0 %1680
      %1682 = vrot.lane.b32.xlu0 %v1130, 56
      %v1683 = vpop.permute.xlu0 %1682
      %1684 = vrot.lane.b32.xlu0 %v1131, 56
      %v1685 = vpop.permute.xlu0 %1684
      %1686 = vrot.lane.b32.xlu0 %v1132, 56
      %v1687 = vpop.permute.xlu0 %1686
      %1688 = vrot.lane.b32.xlu0 %v1133, 56
      %v1689 = vpop.permute.xlu0 %1688
      %1690 = vrot.lane.b32.xlu0 %v1134, 56
      %v1691 = vpop.permute.xlu0 %1690
      %1692 = vrot.lane.b32.xlu0 %v1135, 56
      %v1693 = vpop.permute.xlu0 %1692
      %1694 = vrot.lane.b32.xlu0 %v1649, 56
      %v1695 = vpop.permute.xlu0 %1694
      %1696 = vrot.lane.b32.xlu0 %v1650, 56
      %v1697 = vpop.permute.xlu0 %1696
      %1698 = vrot.lane.b32.xlu0 %v1651, 56
      %v1699 = vpop.permute.xlu0 %1698
      %v1703 = vunpack.c.l.b16 %v893
      %v1704 = vunpack.c.l.b16 %v894
      %v1705 = vunpack.c.l.b16 %v895
      %v1706 = vpack.c.b16 %v1512, %v1511
      %v1707 = vpack.c.b16 %v1703, %v1513
      %v1708 = vpack.c.b16 %v1705, %v1704
      %1709 = vrot.lane.b32.xlu0 %v1283, 64
      %v1710 = vpop.permute.xlu0 %1709
      %1711 = vrot.lane.b32.xlu0 %v1284, 64
      %v1712 = vpop.permute.xlu0 %1711
      %1713 = vrot.lane.b32.xlu0 %v1285, 64
      %v1714 = vpop.permute.xlu0 %1713
      %1715 = vrot.lane.b32.xlu0 %v1286, 64
      %v1716 = vpop.permute.xlu0 %1715
      %1717 = vrot.lane.b32.xlu0 %v1287, 64
      %v1718 = vpop.permute.xlu0 %1717
      %1719 = vrot.lane.b32.xlu0 %v1288, 64
      %v1720 = vpop.permute.xlu0 %1719
      %1721 = vrot.lane.b32.xlu0 %v1289, 64
      %v1722 = vpop.permute.xlu0 %1721
      %1723 = vrot.lane.b32.xlu0 %v1290, 64
      %v1724 = vpop.permute.xlu0 %1723
      %1725 = vrot.lane.b32.xlu0 %v1291, 64
      %v1726 = vpop.permute.xlu0 %1725
      %1727 = vrot.lane.b32.xlu0 %v1292, 64
      %v1728 = vpop.permute.xlu0 %1727
      %1729 = vrot.lane.b32.xlu0 %v1293, 64
      %v1730 = vpop.permute.xlu0 %1729
      %1731 = vrot.lane.b32.xlu0 %v1294, 64
      %v1732 = vpop.permute.xlu0 %1731
      %1733 = vrot.lane.b32.xlu0 %v1295, 64
      %v1734 = vpop.permute.xlu0 %1733
      %1735 = vrot.lane.b32.xlu0 %v1296, 64
      %v1736 = vpop.permute.xlu0 %1735
      %1737 = vrot.lane.b32.xlu0 %v1297, 64
      %v1738 = vpop.permute.xlu0 %1737
      %1739 = vrot.lane.b32.xlu0 %v1298, 64
      %v1740 = vpop.permute.xlu0 %1739
      %1741 = vrot.lane.b32.xlu0 %v1299, 64
      %v1742 = vpop.permute.xlu0 %1741
      %1743 = vrot.lane.b32.xlu0 %v1300, 64
      %v1744 = vpop.permute.xlu0 %1743
      %1745 = vrot.lane.b32.xlu0 %v1301, 64
      %v1746 = vpop.permute.xlu0 %1745
      %1747 = vrot.lane.b32.xlu0 %v1302, 64
      %v1748 = vpop.permute.xlu0 %1747
      %1749 = vrot.lane.b32.xlu0 %v1303, 64
      %v1750 = vpop.permute.xlu0 %1749
      %1751 = vrot.lane.b32.xlu0 %v1706, 64
      %v1752 = vpop.permute.xlu0 %1751
      %1753 = vrot.lane.b32.xlu0 %v1707, 64
      %v1754 = vpop.permute.xlu0 %1753
      %1755 = vrot.lane.b32.xlu0 %v1708, 64
      %v1756 = vpop.permute.xlu0 %1755
      %vm1757 = vcmask 64512
      %v1760 = vsel %vm1757, %v992, %v1137
      %v1763 = vsel %vm1757, %v993, %v1139
      %v1766 = vsel %vm1757, %v994, %v1141
      %v1769 = vsel %vm1757, %v995, %v1143
      %v1772 = vsel %vm1757, %v996, %v1145
      %v1775 = vsel %vm1757, %v997, %v1147
      %v1778 = vsel %vm1757, %v998, %v1149
      %v1781 = vsel %vm1757, %v999, %v1151
      %v1784 = vsel %vm1757, %v1000, %v1153
      %v1787 = vsel %vm1757, %v1001, %v1155
      %v1790 = vsel %vm1757, %v1002, %v1157
      %v1793 = vsel %vm1757, %v1003, %v1159
      %v1796 = vsel %vm1757, %v1004, %v1161
      %v1799 = vsel %vm1757, %v1005, %v1163
      %v1802 = vsel %vm1757, %v1006, %v1165
      %v1805 = vsel %vm1757, %v1007, %v1167
      %v1808 = vsel %vm1757, %v1008, %v1169
      %v1811 = vsel %vm1757, %v1009, %v1171
      %v1814 = vsel %vm1757, %v1010, %v1173
      %v1817 = vsel %vm1757, %v1011, %v1175
      %v1820 = vsel %vm1757, %v1012, %v1177
      %v1823 = vsel %vm1757, %v1013, %v1179
      %v1826 = vsel %vm1757, %v1014, %v1181
      %v1829 = vsel %vm1757, %v1015, %v1183
      %v1831 = vsel %vm447, %v1760, %v1305
      %v1833 = vsel %vm447, %v1763, %v1307
      %v1835 = vsel %vm447, %v1766, %v1309
      %v1837 = vsel %vm447, %v1769, %v1311
      %v1839 = vsel %vm447, %v1772, %v1313
      %v1841 = vsel %vm447, %v1775, %v1315
      %v1843 = vsel %vm447, %v1778, %v1317
      %v1845 = vsel %vm447, %v1781, %v1319
      %v1847 = vsel %vm447, %v1784, %v1321
      %v1849 = vsel %vm447, %v1787, %v1323
      %v1851 = vsel %vm447, %v1790, %v1325
      %v1853 = vsel %vm447, %v1793, %v1327
      %v1855 = vsel %vm447, %v1796, %v1329
      %v1857 = vsel %vm447, %v1799, %v1331
      %v1859 = vsel %vm447, %v1802, %v1333
      %v1861 = vsel %vm447, %v1805, %v1335
      %v1863 = vsel %vm447, %v1808, %v1337
      %v1865 = vsel %vm447, %v1811, %v1339
      %v1867 = vsel %vm447, %v1814, %v1341
      %v1869 = vsel %vm447, %v1817, %v1343
      %v1871 = vsel %vm447, %v1820, %v1345
      %v1873 = vsel %vm447, %v1823, %v1347
      %v1875 = vsel %vm447, %v1826, %v1349
      %v1877 = vsel %vm447, %v1829, %v1351
      %vm1878 = vcmask 195584
      %v1880 = vsel %vm1878, %v1831, %v1383
      %v1882 = vsel %vm1878, %v1833, %v1385
      %v1884 = vsel %vm1878, %v1835, %v1387
      %v1886 = vsel %vm1878, %v1837, %v1389
      %v1888 = vsel %vm1878, %v1839, %v1391
      %v1890 = vsel %vm1878, %v1841, %v1393
      %v1892 = vsel %vm1878, %v1843, %v1395
      %v1894 = vsel %vm1878, %v1845, %v1397
      %v1896 = vsel %vm1878, %v1847, %v1399
      %v1898 = vsel %vm1878, %v1849, %v1401
      %v1900 = vsel %vm1878, %v1851, %v1403
      %v1902 = vsel %vm1878, %v1853, %v1405
      %v1904 = vsel %vm1878, %v1855, %v1407
      %v1906 = vsel %vm1878, %v1857, %v1409
      %v1908 = vsel %vm1878, %v1859, %v1411
      %v1910 = vsel %vm1878, %v1861, %v1413
      %v1912 = vsel %vm1878, %v1863, %v1415
      %v1914 = vsel %vm1878, %v1865, %v1417
      %v1916 = vsel %vm1878, %v1867, %v1419
      %v1918 = vsel %vm1878, %v1869, %v1421
      %v1920 = vsel %vm1878, %v1871, %v1423
      %v1922 = vsel %vm1878, %v1873, %v1425
      %v1924 = vsel %vm1878, %v1875, %v1427
      %v1926 = vsel %vm1878, %v1877, %v1429
      %v1928 = vsel %vm470, %v1880, %v1461
      %v1930 = vsel %vm470, %v1882, %v1463
      %v1932 = vsel %vm470, %v1884, %v1465
      %v1934 = vsel %vm470, %v1886, %v1467
      %v1936 = vsel %vm470, %v1888, %v1469
      %v1938 = vsel %vm470, %v1890, %v1471
      %v1940 = vsel %vm470, %v1892, %v1473
      %v1942 = vsel %vm470, %v1894, %v1475
      %v1944 = vsel %vm470, %v1896, %v1477
      %v1946 = vsel %vm470, %v1898, %v1479
      %v1948 = vsel %vm470, %v1900, %v1481
      %v1950 = vsel %vm470, %v1902, %v1483
      %v1952 = vsel %vm470, %v1904, %v1485
      %v1954 = vsel %vm470, %v1906, %v1487
      %v1956 = vsel %vm470, %v1908, %v1489
      %v1958 = vsel %vm470, %v1910, %v1491
      %v1960 = vsel %vm470, %v1912, %v1493
      %v1962 = vsel %vm470, %v1914, %v1495
      %v1964 = vsel %vm470, %v1916, %v1497
      %v1966 = vsel %vm470, %v1918, %v1499
      %v1968 = vsel %vm470, %v1920, %v1501
      %v1970 = vsel %vm470, %v1922, %v1503
      %v1972 = vsel %vm470, %v1924, %v1505
      %v1974 = vsel %vm470, %v1926, %v1507
      %vm1975 = vcmask 326656
      %v1977 = vsel %vm1975, %v1928, %v1539
      %v1979 = vsel %vm1975, %v1930, %v1541
      %v1981 = vsel %vm1975, %v1932, %v1543
      %v1983 = vsel %vm1975, %v1934, %v1545
      %v1985 = vsel %vm1975, %v1936, %v1547
      %v1987 = vsel %vm1975, %v1938, %v1549
      %v1989 = vsel %vm1975, %v1940, %v1551
      %v1991 = vsel %vm1975, %v1942, %v1553
      %v1993 = vsel %vm1975, %v1944, %v1555
      %v1995 = vsel %vm1975, %v1946, %v1557
      %v1997 = vsel %vm1975, %v1948, %v1559
      %v1999 = vsel %vm1975, %v1950, %v1561
      %v2001 = vsel %vm1975, %v1952, %v1563
      %v2003 = vsel %vm1975, %v1954, %v1565
      %v2005 = vsel %vm1975, %v1956, %v1567
      %v2007 = vsel %vm1975, %v1958, %v1569
      %v2009 = vsel %vm1975, %v1960, %v1571
      %v2011 = vsel %vm1975, %v1962, %v1573
      %v2013 = vsel %vm1975, %v1964, %v1575
      %v2015 = vsel %vm1975, %v1966, %v1577
      %v2017 = vsel %vm1975, %v1968, %v1579
      %v2019 = vsel %vm1975, %v1970, %v1581
      %v2021 = vsel %vm1975, %v1972, %v1583
      %v2023 = vsel %vm1975, %v1974, %v1585
      %vm2024 = vcmask 392192
      %v2026 = vsel %vm2024, %v1977, %v1596
      %v2028 = vsel %vm2024, %v1979, %v1598
      %v2030 = vsel %vm2024, %v1981, %v1600
      %v2032 = vsel %vm2024, %v1983, %v1602
      %v2034 = vsel %vm2024, %v1985, %v1604
      %v2036 = vsel %vm2024, %v1987, %v1606
      %v2038 = vsel %vm2024, %v1989, %v1608
      %v2040 = vsel %vm2024, %v1991, %v1610
      %v2042 = vsel %vm2024, %v1993, %v1612
      %v2044 = vsel %vm2024, %v1995, %v1614
      %v2046 = vsel %vm2024, %v1997, %v1616
      %v2048 = vsel %vm2024, %v1999, %v1618
      %v2050 = vsel %vm2024, %v2001, %v1620
      %v2052 = vsel %vm2024, %v2003, %v1622
      %v2054 = vsel %vm2024, %v2005, %v1624
      %v2056 = vsel %vm2024, %v2007, %v1626
      %v2058 = vsel %vm2024, %v2009, %v1628
      %v2060 = vsel %vm2024, %v2011, %v1630
      %v2062 = vsel %vm2024, %v2013, %v1632
      %v2064 = vsel %vm2024, %v2015, %v1634
      %v2066 = vsel %vm2024, %v2017, %v1636
      %v2068 = vsel %vm2024, %v2019, %v1638
      %v2070 = vsel %vm2024, %v2021, %v1640
      %v2072 = vsel %vm2024, %v2023, %v1642
      %vm2073 = vcmask 457728
      %v2075 = vsel %vm2073, %v2026, %v1653
      %v2077 = vsel %vm2073, %v2028, %v1655
      %v2079 = vsel %vm2073, %v2030, %v1657
      %v2081 = vsel %vm2073, %v2032, %v1659
      %v2083 = vsel %vm2073, %v2034, %v1661
      %v2085 = vsel %vm2073, %v2036, %v1663
      %v2087 = vsel %vm2073, %v2038, %v1665
      %v2089 = vsel %vm2073, %v2040, %v1667
      %v2091 = vsel %vm2073, %v2042, %v1669
      %v2093 = vsel %vm2073, %v2044, %v1671
      %v2095 = vsel %vm2073, %v2046, %v1673
      %v2097 = vsel %vm2073, %v2048, %v1675
      %v2099 = vsel %vm2073, %v2050, %v1677
      %v2101 = vsel %vm2073, %v2052, %v1679
      %v2103 = vsel %vm2073, %v2054, %v1681
      %v2105 = vsel %vm2073, %v2056, %v1683
      %v2107 = vsel %vm2073, %v2058, %v1685
      %v2109 = vsel %vm2073, %v2060, %v1687
      %v2111 = vsel %vm2073, %v2062, %v1689
      %v2113 = vsel %vm2073, %v2064, %v1691
      %v2115 = vsel %vm2073, %v2066, %v1693
      %v2117 = vsel %vm2073, %v2068, %v1695
      %v2119 = vsel %vm2073, %v2070, %v1697
      %v2121 = vsel %vm2073, %v2072, %v1699
      %v2123 = vsel %vm562, %v2075, %v1710
      %v2125 = vsel %vm562, %v2077, %v1712
      %v2127 = vsel %vm562, %v2079, %v1714
      %v2129 = vsel %vm562, %v2081, %v1716
      %v2131 = vsel %vm562, %v2083, %v1718
      %v2133 = vsel %vm562, %v2085, %v1720
      %v2135 = vsel %vm562, %v2087, %v1722
      %v2137 = vsel %vm562, %v2089, %v1724
      %v2139 = vsel %vm562, %v2091, %v1726
      %v2141 = vsel %vm562, %v2093, %v1728
      %v2143 = vsel %vm562, %v2095, %v1730
      %v2145 = vsel %vm562, %v2097, %v1732
      %v2147 = vsel %vm562, %v2099, %v1734
      %v2149 = vsel %vm562, %v2101, %v1736
      %v2151 = vsel %vm562, %v2103, %v1738
      %v2153 = vsel %vm562, %v2105, %v1740
      %v2155 = vsel %vm562, %v2107, %v1742
      %v2157 = vsel %vm562, %v2109, %v1744
      %v2159 = vsel %vm562, %v2111, %v1746
      %v2161 = vsel %vm562, %v2113, %v1748
      %v2163 = vsel %vm562, %v2115, %v1750
      %v2165 = vsel %vm562, %v2117, %v1752
      %v2167 = vsel %vm562, %v2119, %v1754
      %v2169 = vsel %vm562, %v2121, %v1756
      %v2170 = vld [vmem:[%s1] sm:$0xf]
      %v2171 = vld [vmem:[%s1 + $0x4] sm:$0xf]
      %v2172 = vld [vmem:[%s1 + $0x8] sm:$0xf]
      %v2173 = vld [vmem:[%s1 + $0xc] sm:$0xf]
      %v2174 = vld [vmem:[%s1 + $0x10] sm:$0xf]
      %v2175 = vld [vmem:[%s1 + $0x14] sm:$0xf]
      %v2176 = vld [vmem:[%s1 + $0x18] sm:$0xf]
      %v2177 = vld [vmem:[%s1 + $0x1c] sm:$0xf]
      %v2178 = vld [vmem:[%s1 + $0x20] sm:$0xf]
      %v2179 = vld [vmem:[%s2] sm:$0x1]
      %v2181 = vperm.slane %v2179, 0
      %v2192 = vunpack.c.l.b16 %v2170
      %v2193 = vunpack.c.l.b16 %v2171
      %v2194 = vunpack.c.l.b16 %v2172
      %v2195 = vunpack.c.l.b16 %v2173
      %v2196 = vunpack.c.l.b16 %v2174
      %v2197 = vunpack.c.l.b16 %v2175
      %v2198 = vunpack.c.l.b16 %v2176
      %v2199 = vunpack.c.l.b16 %v2177
      %v2200 = vunpack.c.l.b16 %v2178
      %v2201 = vpack.c.b16 %v2193, %v2192
      %v2202 = vpack.c.b16 %v2195, %v2194
      %v2203 = vpack.c.b16 %v2197, %v2196
      %v2204 = vpack.c.b16 %v2199, %v2198
      %v2205 = vpack.c.b16 %v2200, %v2200
      %vm2210 = vcmask 588800
      %v2211 = vsel %vm2210, %v2123, 0
      %v2213 = vsel %vm2210, %v2125, 0
      %v2215 = vsel %vm2210, %v2127, 0
      %v2217 = vsel %vm2210, %v2129, 0
      %v2219 = vsel %vm2210, %v2131, 0
      %v2221 = vsel %vm2210, %v2133, 0
      %v2223 = vsel %vm2210, %v2135, 0
      %v2225 = vsel %vm2210, %v2137, 0
      %v2227 = vsel %vm2210, %v2139, 0
      %v2229 = vsel %vm2210, %v2141, 0
      %v2231 = vsel %vm2210, %v2143, 0
      %v2233 = vsel %vm2210, %v2145, 0
      %v2235 = vsel %vm2210, %v2147, 0
      %v2237 = vsel %vm2210, %v2149, 0
      %v2239 = vsel %vm2210, %v2151, 0
      %v2241 = vsel %vm2210, %v2153, 0
      %v2243 = vsel %vm2210, %v2155, 0
      %v2245 = vsel %vm2210, %v2157, 0
      %v2247 = vsel %vm2210, %v2159, 0
      %v2249 = vsel %vm2210, %v2161, 0
      %v2251 = vsel %vm2210, %v2163, 0
      %v2253 = vsel %vm2210, %v2165, 0
      %v2255 = vsel %vm2210, %v2167, 0
      %v2257 = vsel %vm2210, %v2169, 0
      %vm2259 = vcmask 1043456
      %v2261 = vsel %vm2259, %v2205, 0
      %2263 = vmatpush.bf16.msra.mxu0 0
      %2264 = vmatpush.bf16.msra.mxu0 0
      %2265 = vmatpush.bf16.msra.mxu0 0
      %2266 = vmatpush.bf16.msra.mxu0 %v2261
      %2267 = vmatpush.bf16.msra.mxu0 %v2204
      %2268 = vmatpush.bf16.msra.mxu0 %v2203
      %2269 = vmatpush.bf16.msra.mxu0 %v2202
      %2270 = vmatpush.bf16.msra.mxu0 %v2201
      %2271 = vmatmul.bf16.gmra.mxu0 %v2211
      %v2272 = vpop.f32.mrf.mxu0
      %v2273 = vadd.f32 %v2181, %v2272
      %v2274 = vpop.f32.mrf.mxu0
      %v2275 = vadd.f32 %v2181, %v2274
      %2276 = vmatmul.bf16.gmra.mxu0 %v2213
      %v2277 = vpop.f32.mrf.mxu0
      %v2278 = vadd.f32 %v2181, %v2277
      %v2279 = vpop.f32.mrf.mxu0
      %v2280 = vadd.f32 %v2181, %v2279
      %2281 = vmatmul.bf16.gmra.mxu0 %v2215
      %v2282 = vpop.f32.mrf.mxu0
      %v2283 = vadd.f32 %v2181, %v2282
      %v2284 = vpop.f32.mrf.mxu0
      %v2285 = vadd.f32 %v2181, %v2284
      %2286 = vmatmul.bf16.gmra.mxu0 %v2217
      %v2287 = vpop.f32.mrf.mxu0
      %v2288 = vadd.f32 %v2181, %v2287
      %v2289 = vpop.f32.mrf.mxu0
      %v2290 = vadd.f32 %v2181, %v2289
      %2291 = vmatmul.bf16.gmra.mxu0 %v2219
      %v2292 = vpop.f32.mrf.mxu0
      %v2293 = vadd.f32 %v2181, %v2292
      %v2294 = vpop.f32.mrf.mxu0
      %v2295 = vadd.f32 %v2181, %v2294
      %2296 = vmatmul.bf16.gmra.mxu0 %v2221
      %v2297 = vpop.f32.mrf.mxu0
      %v2298 = vadd.f32 %v2181, %v2297
      %v2299 = vpop.f32.mrf.mxu0
      %v2300 = vadd.f32 %v2181, %v2299
      %2301 = vmatmul.bf16.gmra.mxu0 %v2223
      %v2302 = vpop.f32.mrf.mxu0
      %v2303 = vadd.f32 %v2181, %v2302
      %v2304 = vpop.f32.mrf.mxu0
      %v2305 = vadd.f32 %v2181, %v2304
      %2306 = vmatmul.bf16.gmra.mxu0 %v2225
      %v2307 = vpop.f32.mrf.mxu0
      %v2308 = vadd.f32 %v2181, %v2307
      %v2309 = vpop.f32.mrf.mxu0
      %v2310 = vadd.f32 %v2181, %v2309
      %2311 = vmatmul.bf16.gmra.mxu0 %v2227
      %v2312 = vpop.f32.mrf.mxu0
      %v2313 = vadd.f32 %v2181, %v2312
      %v2314 = vpop.f32.mrf.mxu0
      %v2315 = vadd.f32 %v2181, %v2314
      %2316 = vmatmul.bf16.gmra.mxu0 %v2229
      %v2317 = vpop.f32.mrf.mxu0
      %v2318 = vadd.f32 %v2181, %v2317
      %v2319 = vpop.f32.mrf.mxu0
      %v2320 = vadd.f32 %v2181, %v2319
      %2321 = vmatmul.bf16.gmra.mxu0 %v2231
      %v2322 = vpop.f32.mrf.mxu0
      %v2323 = vadd.f32 %v2181, %v2322
      %v2324 = vpop.f32.mrf.mxu0
      %v2325 = vadd.f32 %v2181, %v2324
      %2326 = vmatmul.bf16.gmra.mxu0 %v2233
      %v2327 = vpop.f32.mrf.mxu0
      %v2328 = vadd.f32 %v2181, %v2327
      %v2329 = vpop.f32.mrf.mxu0
      %v2330 = vadd.f32 %v2181, %v2329
      %2331 = vmatmul.bf16.gmra.mxu0 %v2235
      %v2332 = vpop.f32.mrf.mxu0
      %v2333 = vadd.f32 %v2181, %v2332
      %v2334 = vpop.f32.mrf.mxu0
      %v2335 = vadd.f32 %v2181, %v2334
      %2336 = vmatmul.bf16.gmra.mxu0 %v2237
      %v2337 = vpop.f32.mrf.mxu0
      %v2338 = vadd.f32 %v2181, %v2337
      %v2339 = vpop.f32.mrf.mxu0
      %v2340 = vadd.f32 %v2181, %v2339
      %2341 = vmatmul.bf16.gmra.mxu0 %v2239
      %v2342 = vpop.f32.mrf.mxu0
      %v2343 = vadd.f32 %v2181, %v2342
      %v2344 = vpop.f32.mrf.mxu0
      %v2345 = vadd.f32 %v2181, %v2344
      %2346 = vmatmul.bf16.gmra.mxu0 %v2241
      %v2347 = vpop.f32.mrf.mxu0
      %v2348 = vadd.f32 %v2181, %v2347
      %v2349 = vpop.f32.mrf.mxu0
      %v2350 = vadd.f32 %v2181, %v2349
      %2351 = vmatmul.bf16.gmra.mxu0 %v2243
      %v2352 = vpop.f32.mrf.mxu0
      %v2353 = vadd.f32 %v2181, %v2352
      %v2354 = vpop.f32.mrf.mxu0
      %v2355 = vadd.f32 %v2181, %v2354
      %2356 = vmatmul.bf16.gmra.mxu0 %v2245
      %v2357 = vpop.f32.mrf.mxu0
      %v2358 = vadd.f32 %v2181, %v2357
      %v2359 = vpop.f32.mrf.mxu0
      %v2360 = vadd.f32 %v2181, %v2359
      %2361 = vmatmul.bf16.gmra.mxu0 %v2247
      %v2362 = vpop.f32.mrf.mxu0
      %v2363 = vadd.f32 %v2181, %v2362
      %v2364 = vpop.f32.mrf.mxu0
      %v2365 = vadd.f32 %v2181, %v2364
      %2366 = vmatmul.bf16.gmra.mxu0 %v2249
      %v2367 = vpop.f32.mrf.mxu0
      %v2368 = vadd.f32 %v2181, %v2367
      %v2369 = vpop.f32.mrf.mxu0
      %v2370 = vadd.f32 %v2181, %v2369
      %2371 = vmatmul.bf16.gmra.mxu0 %v2251
      %v2372 = vpop.f32.mrf.mxu0
      %v2373 = vadd.f32 %v2181, %v2372
      %v2374 = vpop.f32.mrf.mxu0
      %v2375 = vadd.f32 %v2181, %v2374
      %2376 = vmatmul.bf16.gmra.mxu0 %v2253
      %v2377 = vpop.f32.mrf.mxu0
      %v2378 = vadd.f32 %v2181, %v2377
      %v2379 = vpop.f32.mrf.mxu0
      %v2380 = vadd.f32 %v2181, %v2379
      %2381 = vmatmul.bf16.gmra.mxu0 %v2255
      %v2382 = vpop.f32.mrf.mxu0
      %v2383 = vadd.f32 %v2181, %v2382
      %v2384 = vpop.f32.mrf.mxu0
      %v2385 = vadd.f32 %v2181, %v2384
      %2386 = vmatmul.bf16.gmra.mxu0 %v2257
      %v2387 = vpop.f32.mrf.mxu0
      %v2388 = vadd.f32 %v2181, %v2387
      %v2389 = vpop.f32.mrf.mxu0
      %v2390 = vadd.f32 %v2181, %v2389
      %2391 = vdwg.mxu0
      %v2392 = vmax.f32 %v2273, 0.0
      %v2393 = vmax.f32 %v2275, 0.0
      %v2394 = vmax.f32 %v2278, 0.0
      %v2395 = vmax.f32 %v2280, 0.0
      %v2396 = vmax.f32 %v2283, 0.0
      %v2397 = vmax.f32 %v2285, 0.0
      %v2398 = vmax.f32 %v2288, 0.0
      %v2399 = vmax.f32 %v2290, 0.0
      %v2400 = vmax.f32 %v2293, 0.0
      %v2401 = vmax.f32 %v2295, 0.0
      %v2402 = vmax.f32 %v2298, 0.0
      %v2403 = vmax.f32 %v2300, 0.0
      %v2404 = vmax.f32 %v2303, 0.0
      %v2405 = vmax.f32 %v2305, 0.0
      %v2406 = vmax.f32 %v2308, 0.0
      %v2407 = vmax.f32 %v2310, 0.0
      %v2408 = vmax.f32 %v2313, 0.0
      %v2409 = vmax.f32 %v2315, 0.0
      %v2410 = vmax.f32 %v2318, 0.0
      %v2411 = vmax.f32 %v2320, 0.0
      %v2412 = vmax.f32 %v2323, 0.0
      %v2413 = vmax.f32 %v2325, 0.0
      %v2414 = vmax.f32 %v2328, 0.0
      %v2415 = vmax.f32 %v2330, 0.0
      %v2416 = vmax.f32 %v2333, 0.0
      %v2417 = vmax.f32 %v2335, 0.0
      %v2418 = vmax.f32 %v2338, 0.0
      %v2419 = vmax.f32 %v2340, 0.0
      %v2420 = vmax.f32 %v2343, 0.0
      %v2421 = vmax.f32 %v2345, 0.0
      %v2422 = vmax.f32 %v2348, 0.0
      %v2423 = vmax.f32 %v2350, 0.0
      %v2424 = vmax.f32 %v2353, 0.0
      %v2425 = vmax.f32 %v2355, 0.0
      %v2426 = vmax.f32 %v2358, 0.0
      %v2427 = vmax.f32 %v2360, 0.0
      %v2428 = vmax.f32 %v2363, 0.0
      %v2429 = vmax.f32 %v2365, 0.0
      %v2430 = vmax.f32 %v2368, 0.0
      %v2431 = vmax.f32 %v2370, 0.0
      %v2432 = vmax.f32 %v2373, 0.0
      %v2433 = vmax.f32 %v2375, 0.0
      %v2434 = vmax.f32 %v2378, 0.0
      %v2435 = vmax.f32 %v2380, 0.0
      %v2436 = vmax.f32 %v2383, 0.0
      %v2437 = vmax.f32 %v2385, 0.0
      %v2438 = vmax.f32 %v2388, 0.0
      %v2439 = vmax.f32 %v2390, 0.0
      %v2440 = vmax.f32 %v2392, %v2395
      %v2441 = vmax.f32 %v2393, %v2396
      %v2442 = vmax.f32 %v2394, %v2397
      %v2443 = vmax.f32 %v2395, %v2398
      %v2444 = vmax.f32 %v2396, %v2399
      %v2445 = vmax.f32 %v2397, %v2400
      %v2446 = vmax.f32 %v2398, %v2401
      %v2447 = vmax.f32 %v2399, %v2402
      %v2448 = vmax.f32 %v2400, %v2403
      %v2449 = vmax.f32 %v2401, %v2404
      %v2450 = vmax.f32 %v2402, %v2405
      %v2451 = vmax.f32 %v2403, %v2406
      %v2452 = vmax.f32 %v2404, %v2407
      %v2453 = vmax.f32 %v2405, %v2408
      %v2454 = vmax.f32 %v2406, %v2409
      %v2455 = vmax.f32 %v2407, %v2410
      %v2456 = vmax.f32 %v2408, %v2411
      %v2457 = vmax.f32 %v2409, %v2412
      %v2458 = vmax.f32 %v2410, %v2413
      %v2459 = vmax.f32 %v2411, %v2414
      %v2460 = vmax.f32 %v2412, %v2415
      %v2461 = vmax.f32 %v2413, %v2416
      %v2462 = vmax.f32 %v2414, %v2417
      %v2463 = vmax.f32 %v2415, %v2418
      %v2464 = vmax.f32 %v2416, %v2419
      %v2465 = vmax.f32 %v2417, %v2420
      %v2466 = vmax.f32 %v2418, %v2421
      %v2467 = vmax.f32 %v2419, %v2422
      %v2468 = vmax.f32 %v2420, %v2423
      %v2469 = vmax.f32 %v2421, %v2424
      %v2470 = vmax.f32 %v2422, %v2425
      %v2471 = vmax.f32 %v2423, %v2426
      %v2472 = vmax.f32 %v2424, %v2427
      %v2473 = vmax.f32 %v2425, %v2428
      %v2474 = vmax.f32 %v2426, %v2429
      %v2475 = vmax.f32 %v2427, %v2430
      %v2476 = vmax.f32 %v2428, %v2431
      %v2477 = vmax.f32 %v2429, %v2432
      %v2478 = vmax.f32 %v2430, %v2433
      %v2479 = vmax.f32 %v2431, %v2434
      %v2480 = vmax.f32 %v2432, %v2435
      %v2481 = vmax.f32 %v2433, %v2436
      %v2482 = vmax.f32 %v2434, %v2437
      %v2483 = vmax.f32 %v2435, %v2438
      %v2484 = vmax.f32 %v2436, %v2439
      %2485 = vst.msk [vmem:[#allocation9] sm:$0xff] %vm447, %v2440
      %2486 = vst.msk [vmem:[#allocation9 + $0x8] sm:$0xff] %vm447, %v2441
      %2487 = vst.msk [vmem:[#allocation9 + $0x10] sm:$0xff] %vm447, %v2442
      %2488 = vst.msk [vmem:[#allocation9 + $0x18] sm:$0xff] %vm447, %v2443
      %2489 = vst.msk [vmem:[#allocation9 + $0x20] sm:$0xff] %vm447, %v2444
      %2490 = vst.msk [vmem:[#allocation9 + $0x28] sm:$0xff] %vm447, %v2445
      %2491 = vst.msk [vmem:[#allocation9 + $0x30] sm:$0xff] %vm447, %v2446
      %2492 = vst.msk [vmem:[#allocation9 + $0x38] sm:$0xff] %vm447, %v2447
      %2493 = vst.msk [vmem:[#allocation9 + $0x40] sm:$0xff] %vm447, %v2448
      %2494 = vst.msk [vmem:[#allocation9 + $0x48] sm:$0xff] %vm447, %v2449
      %2495 = vst.msk [vmem:[#allocation9 + $0x50] sm:$0xff] %vm447, %v2450
      %2496 = vst.msk [vmem:[#allocation9 + $0x58] sm:$0xff] %vm447, %v2451
      %2497 = vst.msk [vmem:[#allocation9 + $0x60] sm:$0xff] %vm447, %v2452
      %2498 = vst.msk [vmem:[#allocation9 + $0x68] sm:$0xff] %vm447, %v2453
      %2499 = vst.msk [vmem:[#allocation9 + $0x70] sm:$0xff] %vm447, %v2454
      %2500 = vst.msk [vmem:[#allocation9 + $0x78] sm:$0xff] %vm447, %v2455
      %2501 = vst.msk [vmem:[#allocation9 + $0x80] sm:$0xff] %vm447, %v2456
      %2502 = vst.msk [vmem:[#allocation9 + $0x88] sm:$0xff] %vm447, %v2457
      %2503 = vst.msk [vmem:[#allocation9 + $0x90] sm:$0xff] %vm447, %v2458
      %2504 = vst.msk [vmem:[#allocation9 + $0x98] sm:$0xff] %vm447, %v2459
      %2505 = vst.msk [vmem:[#allocation9 + $0xa0] sm:$0xff] %vm447, %v2460
      %2506 = vst.msk [vmem:[#allocation9 + $0xa8] sm:$0xff] %vm447, %v2461
      %2507 = vst.msk [vmem:[#allocation9 + $0xb0] sm:$0xff] %vm447, %v2462
      %2508 = vst.msk [vmem:[#allocation9 + $0xb8] sm:$0xff] %vm447, %v2463
      %2509 = vst.msk [vmem:[#allocation9 + $0xc0] sm:$0xff] %vm447, %v2464
      %2510 = vst.msk [vmem:[#allocation9 + $0xc8] sm:$0xff] %vm447, %v2465
      %2511 = vst.msk [vmem:[#allocation9 + $0xd0] sm:$0xff] %vm447, %v2466
      %2512 = vst.msk [vmem:[#allocation9 + $0xd8] sm:$0xff] %vm447, %v2467
      %2513 = vst.msk [vmem:[#allocation9 + $0xe0] sm:$0xff] %vm447, %v2468
      %2514 = vst.msk [vmem:[#allocation9 + $0xe8] sm:$0xff] %vm447, %v2469
      %2515 = vst.msk [vmem:[#allocation9 + $0xf0] sm:$0xff] %vm447, %v2470
      %2516 = vst.msk [vmem:[#allocation9 + $0xf8] sm:$0xff] %vm447, %v2471
      %2517 = vst.msk [vmem:[#allocation9 + $0x100] sm:$0xff] %vm447, %v2472
      %2518 = vst.msk [vmem:[#allocation9 + $0x108] sm:$0xff] %vm447, %v2473
      %2519 = vst.msk [vmem:[#allocation9 + $0x110] sm:$0xff] %vm447, %v2474
      %2520 = vst.msk [vmem:[#allocation9 + $0x118] sm:$0xff] %vm447, %v2475
      %2521 = vst.msk [vmem:[#allocation9 + $0x120] sm:$0xff] %vm447, %v2476
      %2522 = vst.msk [vmem:[#allocation9 + $0x128] sm:$0xff] %vm447, %v2477
      %2523 = vst.msk [vmem:[#allocation9 + $0x130] sm:$0xff] %vm447, %v2478
      %2524 = vst.msk [vmem:[#allocation9 + $0x138] sm:$0xff] %vm447, %v2479
      %2525 = vst.msk [vmem:[#allocation9 + $0x140] sm:$0xff] %vm447, %v2480
      %2526 = vst.msk [vmem:[#allocation9 + $0x148] sm:$0xff] %vm447, %v2481
      %2527 = vst.msk [vmem:[#allocation9 + $0x150] sm:$0xff] %vm447, %v2482
      %2528 = vst.msk [vmem:[#allocation9 + $0x158] sm:$0xff] %vm447, %v2483
      %2529 = vst.msk [vmem:[#allocation9 + $0x160] sm:$0xff] %vm447, %v2484
      %s2530 = scalar_lea.vmem [#allocation9], 1
      %v2531 = vld [vmem:[%s2530] ss:$2 sm:$0xff]
      %s2532 = scalar_lea.vmem [#allocation9], 2
      %v2533 = vld [vmem:[%s2532] ss:$2 sm:$0xff]
      %v2534 = vmax.f32 %v2531, %v2533
      %2535 = vst.msk [vmem:[#allocation2 + $0x12] sm:$0xff] %vm447, %v2534
      %s2536 = scalar_lea.vmem [#allocation9], 49
      %v2537 = vld [vmem:[%s2536] ss:$2 sm:$0xff]
      %s2538 = scalar_lea.vmem [#allocation9], 50
      %v2539 = vld [vmem:[%s2538] ss:$2 sm:$0xff]
      %v2540 = vmax.f32 %v2537, %v2539
      %2541 = vst.msk [vmem:[#allocation2 + $0x22] sm:$0xff] %vm447, %v2540
      %s2542 = scalar_lea.vmem [#allocation9], 97
      %v2543 = vld [vmem:[%s2542] ss:$2 sm:$0xff]
      %s2544 = scalar_lea.vmem [#allocation9], 98
      %v2545 = vld [vmem:[%s2544] ss:$2 sm:$0xff]
      %v2546 = vmax.f32 %v2543, %v2545
      %2547 = vst.msk [vmem:[#allocation2 + $0x32] sm:$0xff] %vm447, %v2546
      %s2548 = scalar_lea.vmem [#allocation9], 145
      %v2549 = vld [vmem:[%s2548] ss:$2 sm:$0xff]
      %s2550 = scalar_lea.vmem [#allocation9], 146
      %v2551 = vld [vmem:[%s2550] ss:$2 sm:$0xff]
      %v2552 = vmax.f32 %v2549, %v2551
      %2553 = vst.msk [vmem:[#allocation2 + $0x42] sm:$0xff] %vm447, %v2552
      %s2554 = scalar_lea.vmem [#allocation9], 193
      %v2555 = vld [vmem:[%s2554] ss:$2 sm:$0xff]
      %s2556 = scalar_lea.vmem [#allocation9], 194
      %v2557 = vld [vmem:[%s2556] ss:$2 sm:$0xff]
      %v2558 = vmax.f32 %v2555, %v2557
      %2559 = vst.msk [vmem:[#allocation2 + $0x52] sm:$0xff] %vm447, %v2558
      %s2560 = scalar_lea.vmem [#allocation9], 241
      %v2561 = vld [vmem:[%s2560] ss:$2 sm:$0xff]
      %s2562 = scalar_lea.vmem [#allocation9], 242
      %v2563 = vld [vmem:[%s2562] ss:$2 sm:$0xff]
      %v2564 = vmax.f32 %v2561, %v2563
      %2565 = vst.msk [vmem:[#allocation2 + $0x62] sm:$0xff] %vm447, %v2564
      %s2566 = scalar_lea.vmem [#allocation9], 289
      %v2567 = vld [vmem:[%s2566] ss:$2 sm:$0xff]
      %s2568 = scalar_lea.vmem [#allocation9], 290
      %v2569 = vld [vmem:[%s2568] ss:$2 sm:$0xff]
      %v2570 = vmax.f32 %v2567, %v2569
      %2571 = vst.msk [vmem:[#allocation2 + $0x72] sm:$0xff] %vm447, %v2570
      %s2572 = scalar_lea.vmem [#allocation9], 337
      %v2573 = vld [vmem:[%s2572] ss:$2 sm:$0xff]
      %s2574 = scalar_lea.vmem [#allocation9], 338
      %v2575 = vld [vmem:[%s2574] ss:$2 sm:$0xff]
      %v2576 = vmax.f32 %v2573, %v2575
      %2577 = vst.msk [vmem:[#allocation2 + $0x82] sm:$0xff] %vm447, %v2576
      %v2578 = vlaneseq
      %v2579 = vshrl.u32 %v2578, 7
      %v2580 = vadd.s32 %v2579, 8
      %v2581 = vadd.s32 %v2579, 16
      %v2582 = vadd.s32 %v2579, 24
      %v2583 = vadd.s32 %v2579, 32
      %v2584 = vadd.s32 %v2579, 40
      %v2585 = vadd.s32 %v2579, 48
      %v2586 = vadd.s32 %v2579, 56
      %v2587 = vadd.s32 %v2579, 64
      %v2588 = vadd.s32 %v2579, 72
      %v2589 = vadd.s32 %v2579, 80
      %v2590 = vadd.s32 %v2579, 88
      %v2591 = vadd.s32 %v2579, 96
      %v2592 = vadd.s32 %v2579, 104
      %v2593 = vadd.s32 %v2579, 112
      %v2594 = vadd.s32 %v2579, 120
      %vm2595 = vcmp.lt.s32.totalorder %v2579, 0
      %v2596 = vsub.s32 0, %v2579
      %v2597 = vsel %vm2595, %v2596, %v2579
      %v2598 = vshrl.u32 %v2597, 4
      %v2599 = vand.u32 %v2597, 15
      %v2600 = vsub.s32 0, %v2599
      %v2601 = vsel %vm2595, %v2600, %v2599
      %vm2602 = vcmp.lt.s32.totalorder %v2580, 0
      %v2603 = vsub.s32 0, %v2580
      %v2604 = vsel %vm2602, %v2603, %v2580
      %v2605 = vshrl.u32 %v2604, 4
      %v2606 = vand.u32 %v2604, 15
      %v2607 = vsub.s32 0, %v2606
      %v2608 = vsel %vm2602, %v2607, %v2606
      %vm2609 = vcmp.lt.s32.totalorder %v2581, 0
      %v2610 = vsub.s32 0, %v2581
      %v2611 = vsel %vm2609, %v2610, %v2581
      %v2612 = vshrl.u32 %v2611, 4
      %v2613 = vand.u32 %v2611, 15
      %v2614 = vsub.s32 0, %v2613
      %v2615 = vsel %vm2609, %v2614, %v2613
      %vm2616 = vcmp.lt.s32.totalorder %v2582, 0
      %v2617 = vsub.s32 0, %v2582
      %v2618 = vsel %vm2616, %v2617, %v2582
      %v2619 = vshrl.u32 %v2618, 4
      %v2620 = vand.u32 %v2618, 15
      %v2621 = vsub.s32 0, %v2620
      %v2622 = vsel %vm2616, %v2621, %v2620
      %vm2623 = vcmp.lt.s32.totalorder %v2583, 0
      %v2624 = vsub.s32 0, %v2583
      %v2625 = vsel %vm2623, %v2624, %v2583
      %v2626 = vshrl.u32 %v2625, 4
      %v2627 = vand.u32 %v2625, 15
      %v2628 = vsub.s32 0, %v2627
      %v2629 = vsel %vm2623, %v2628, %v2627
      %vm2630 = vcmp.lt.s32.totalorder %v2584, 0
      %v2631 = vsub.s32 0, %v2584
      %v2632 = vsel %vm2630, %v2631, %v2584
      %v2633 = vshrl.u32 %v2632, 4
      %v2634 = vand.u32 %v2632, 15
      %v2635 = vsub.s32 0, %v2634
      %v2636 = vsel %vm2630, %v2635, %v2634
      %vm2637 = vcmp.lt.s32.totalorder %v2585, 0
      %v2638 = vsub.s32 0, %v2585
      %v2639 = vsel %vm2637, %v2638, %v2585
      %v2640 = vshrl.u32 %v2639, 4
      %v2641 = vand.u32 %v2639, 15
      %v2642 = vsub.s32 0, %v2641
      %v2643 = vsel %vm2637, %v2642, %v2641
      %vm2644 = vcmp.lt.s32.totalorder %v2586, 0
      %v2645 = vsub.s32 0, %v2586
      %v2646 = vsel %vm2644, %v2645, %v2586
      %v2647 = vshrl.u32 %v2646, 4
      %v2648 = vand.u32 %v2646, 15
      %v2649 = vsub.s32 0, %v2648
      %v2650 = vsel %vm2644, %v2649, %v2648
      %vm2651 = vcmp.lt.s32.totalorder %v2587, 0
      %v2652 = vsub.s32 0, %v2587
      %v2653 = vsel %vm2651, %v2652, %v2587
      %v2654 = vshrl.u32 %v2653, 4
      %v2655 = vand.u32 %v2653, 15
      %v2656 = vsub.s32 0, %v2655
      %v2657 = vsel %vm2651, %v2656, %v2655
      %vm2658 = vcmp.lt.s32.totalorder %v2588, 0
      %v2659 = vsub.s32 0, %v2588
      %v2660 = vsel %vm2658, %v2659, %v2588
      %v2661 = vshrl.u32 %v2660, 4
      %v2662 = vand.u32 %v2660, 15
      %v2663 = vsub.s32 0, %v2662
      %v2664 = vsel %vm2658, %v2663, %v2662
      %vm2665 = vcmp.lt.s32.totalorder %v2589, 0
      %v2666 = vsub.s32 0, %v2589
      %v2667 = vsel %vm2665, %v2666, %v2589
      %v2668 = vshrl.u32 %v2667, 4
      %v2669 = vand.u32 %v2667, 15
      %v2670 = vsub.s32 0, %v2669
      %v2671 = vsel %vm2665, %v2670, %v2669
      %vm2672 = vcmp.lt.s32.totalorder %v2590, 0
      %v2673 = vsub.s32 0, %v2590
      %v2674 = vsel %vm2672, %v2673, %v2590
      %v2675 = vshrl.u32 %v2674, 4
      %v2676 = vand.u32 %v2674, 15
      %v2677 = vsub.s32 0, %v2676
      %v2678 = vsel %vm2672, %v2677, %v2676
      %vm2679 = vcmp.lt.s32.totalorder %v2591, 0
      %v2680 = vsub.s32 0, %v2591
      %v2681 = vsel %vm2679, %v2680, %v2591
      %v2682 = vshrl.u32 %v2681, 4
      %v2683 = vand.u32 %v2681, 15
      %v2684 = vsub.s32 0, %v2683
      %v2685 = vsel %vm2679, %v2684, %v2683
      %vm2686 = vcmp.lt.s32.totalorder %v2592, 0
      %v2687 = vsub.s32 0, %v2592
      %v2688 = vsel %vm2686, %v2687, %v2592
      %v2689 = vshrl.u32 %v2688, 4
      %v2690 = vand.u32 %v2688, 15
      %v2691 = vsub.s32 0, %v2690
      %v2692 = vsel %vm2686, %v2691, %v2690
      %vm2693 = vcmp.lt.s32.totalorder %v2593, 0
      %v2694 = vsub.s32 0, %v2593
      %v2695 = vsel %vm2693, %v2694, %v2593
      %v2696 = vshrl.u32 %v2695, 4
      %v2697 = vand.u32 %v2695, 15
      %v2698 = vsub.s32 0, %v2697
      %v2699 = vsel %vm2693, %v2698, %v2697
      %vm2700 = vcmp.lt.s32.totalorder %v2594, 0
      %v2701 = vsub.s32 0, %v2594
      %v2702 = vsel %vm2700, %v2701, %v2594
      %v2703 = vshrl.u32 %v2702, 4
      %v2704 = vand.u32 %v2702, 15
      %v2705 = vsub.s32 0, %v2704
      %v2706 = vsel %vm2700, %v2705, %v2704
      %vm2707 = vcmp.ne.s32.totalorder %v2601, 0
      %vm2708 = vcmp.ne.s32.totalorder %v2608, 0
      %vm2709 = vcmp.ne.s32.totalorder %v2615, 0
      %vm2710 = vcmp.ne.s32.totalorder %v2622, 0
      %vm2711 = vcmp.ne.s32.totalorder %v2629, 0
      %vm2712 = vcmp.ne.s32.totalorder %v2636, 0
      %vm2713 = vcmp.ne.s32.totalorder %v2643, 0
      %vm2714 = vcmp.ne.s32.totalorder %v2650, 0
      %vm2715 = vcmp.ne.s32.totalorder %v2657, 0
      %vm2716 = vcmp.ne.s32.totalorder %v2664, 0
      %vm2717 = vcmp.ne.s32.totalorder %v2671, 0
      %vm2718 = vcmp.ne.s32.totalorder %v2678, 0
      %vm2719 = vcmp.ne.s32.totalorder %v2685, 0
      %vm2720 = vcmp.ne.s32.totalorder %v2692, 0
      %vm2721 = vcmp.ne.s32.totalorder %v2699, 0
      %vm2722 = vcmp.ne.s32.totalorder %v2706, 0
      %vm2723 = vcmp.lt.s32.totalorder %v2601, 0
      %vm2724 = vcmp.lt.s32.totalorder %v2608, 0
      %vm2725 = vcmp.lt.s32.totalorder %v2615, 0
      %vm2726 = vcmp.lt.s32.totalorder %v2622, 0
      %vm2727 = vcmp.lt.s32.totalorder %v2629, 0
      %vm2728 = vcmp.lt.s32.totalorder %v2636, 0
      %vm2729 = vcmp.lt.s32.totalorder %v2643, 0
      %vm2730 = vcmp.lt.s32.totalorder %v2650, 0
      %vm2731 = vcmp.lt.s32.totalorder %v2657, 0
      %vm2732 = vcmp.lt.s32.totalorder %v2664, 0
      %vm2733 = vcmp.lt.s32.totalorder %v2671, 0
      %vm2734 = vcmp.lt.s32.totalorder %v2678, 0
      %vm2735 = vcmp.lt.s32.totalorder %v2685, 0
      %vm2736 = vcmp.lt.s32.totalorder %v2692, 0
      %vm2737 = vcmp.lt.s32.totalorder %v2699, 0
      %vm2738 = vcmp.lt.s32.totalorder %v2706, 0
      %vm2739 = vmand %vm2723, %vm2707
      %vm2740 = vmand %vm2724, %vm2708
      %vm2741 = vmand %vm2725, %vm2709
      %vm2742 = vmand %vm2726, %vm2710
      %vm2743 = vmand %vm2727, %vm2711
      %vm2744 = vmand %vm2728, %vm2712
      %vm2745 = vmand %vm2729, %vm2713
      %vm2746 = vmand %vm2730, %vm2714
      %vm2747 = vmand %vm2731, %vm2715
      %vm2748 = vmand %vm2732, %vm2716
      %vm2749 = vmand %vm2733, %vm2717
      %vm2750 = vmand %vm2734, %vm2718
      %vm2751 = vmand %vm2735, %vm2719
      %vm2752 = vmand %vm2736, %vm2720
      %vm2753 = vmand %vm2737, %vm2721
      %vm2754 = vmand %vm2738, %vm2722
      %v2755 = vadd.s32 %v2601, 16
      %v2756 = vadd.s32 %v2608, 16
      %v2757 = vadd.s32 %v2615, 16
      %v2758 = vadd.s32 %v2622, 16
      %v2759 = vadd.s32 %v2629, 16
      %v2760 = vadd.s32 %v2636, 16
      %v2761 = vadd.s32 %v2643, 16
      %v2762 = vadd.s32 %v2650, 16
      %v2763 = vadd.s32 %v2657, 16
      %v2764 = vadd.s32 %v2664, 16
      %v2765 = vadd.s32 %v2671, 16
      %v2766 = vadd.s32 %v2678, 16
      %v2767 = vadd.s32 %v2685, 16
      %v2768 = vadd.s32 %v2692, 16
      %v2769 = vadd.s32 %v2699, 16
      %v2770 = vadd.s32 %v2706, 16
      %v2771 = vsel %vm2739, %v2755, %v2601
      %v2772 = vsel %vm2740, %v2756, %v2608
      %v2773 = vsel %vm2741, %v2757, %v2615
      %v2774 = vsel %vm2742, %v2758, %v2622
      %v2775 = vsel %vm2743, %v2759, %v2629
      %v2776 = vsel %vm2744, %v2760, %v2636
      %v2777 = vsel %vm2745, %v2761, %v2643
      %v2778 = vsel %vm2746, %v2762, %v2650
      %v2779 = vsel %vm2747, %v2763, %v2657
      %v2780 = vsel %vm2748, %v2764, %v2664
      %v2781 = vsel %vm2749, %v2765, %v2671
      %v2782 = vsel %vm2750, %v2766, %v2678
      %v2783 = vsel %vm2751, %v2767, %v2685
      %v2784 = vsel %vm2752, %v2768, %v2692
      %v2785 = vsel %vm2753, %v2769, %v2699
      %v2786 = vsel %vm2754, %v2770, %v2706
      %vm2787 = vcmp.ge.s32.totalorder %v2771, 1
      %vm2788 = vcmp.ge.s32.totalorder %v2772, 1
      %vm2789 = vcmp.ge.s32.totalorder %v2773, 1
      %vm2790 = vcmp.ge.s32.totalorder %v2774, 1
      %vm2791 = vcmp.ge.s32.totalorder %v2775, 1
      %vm2792 = vcmp.ge.s32.totalorder %v2776, 1
      %vm2793 = vcmp.ge.s32.totalorder %v2777, 1
      %vm2794 = vcmp.ge.s32.totalorder %v2778, 1
      %vm2795 = vcmp.ge.s32.totalorder %v2779, 1
      %vm2796 = vcmp.ge.s32.totalorder %v2780, 1
      %vm2797 = vcmp.ge.s32.totalorder %v2781, 1
      %vm2798 = vcmp.ge.s32.totalorder %v2782, 1
      %vm2799 = vcmp.ge.s32.totalorder %v2783, 1
      %vm2800 = vcmp.ge.s32.totalorder %v2784, 1
      %vm2801 = vcmp.ge.s32.totalorder %v2785, 1
      %vm2802 = vcmp.ge.s32.totalorder %v2786, 1
      %vm2803 = vcmp.le.s32.totalorder %v2771, 8
      %vm2804 = vcmp.le.s32.totalorder %v2772, 8
      %vm2805 = vcmp.le.s32.totalorder %v2773, 8
      %vm2806 = vcmp.le.s32.totalorder %v2774, 8
      %vm2807 = vcmp.le.s32.totalorder %v2775, 8
      %vm2808 = vcmp.le.s32.totalorder %v2776, 8
      %vm2809 = vcmp.le.s32.totalorder %v2777, 8
      %vm2810 = vcmp.le.s32.totalorder %v2778, 8
      %vm2811 = vcmp.le.s32.totalorder %v2779, 8
      %vm2812 = vcmp.le.s32.totalorder %v2780, 8
      %vm2813 = vcmp.le.s32.totalorder %v2781, 8
      %vm2814 = vcmp.le.s32.totalorder %v2782, 8
      %vm2815 = vcmp.le.s32.totalorder %v2783, 8
      %vm2816 = vcmp.le.s32.totalorder %v2784, 8
      %vm2817 = vcmp.le.s32.totalorder %v2785, 8
      %vm2818 = vcmp.le.s32.totalorder %v2786, 8
      %vm2819 = vmand %vm2787, %vm2803
      %vm2820 = vmand %vm2788, %vm2804
      %vm2821 = vmand %vm2789, %vm2805
      %vm2822 = vmand %vm2790, %vm2806
      %vm2823 = vmand %vm2791, %vm2807
      %vm2824 = vmand %vm2792, %vm2808
      %vm2825 = vmand %vm2793, %vm2809
      %vm2826 = vmand %vm2794, %vm2810
      %vm2827 = vmand %vm2795, %vm2811
      %vm2828 = vmand %vm2796, %vm2812
      %vm2829 = vmand %vm2797, %vm2813
      %vm2830 = vmand %vm2798, %vm2814
      %vm2831 = vmand %vm2799, %vm2815
      %vm2832 = vmand %vm2800, %vm2816
      %vm2833 = vmand %vm2801, %vm2817
      %vm2834 = vmand %vm2802, %vm2818
      %v2835 = vld [vmem:[#allocation2] sm:$0xff]
      %v2836 = vld [vmem:[#allocation2 + $0x8] sm:$0xff]
      %v2837 = vld [vmem:[#allocation2 + $0x10] sm:$0xff]
      %v2838 = vld [vmem:[#allocation2 + $0x18] sm:$0xff]
      %v2839 = vld [vmem:[#allocation2 + $0x20] sm:$0xff]
      %v2840 = vld [vmem:[#allocation2 + $0x28] sm:$0xff]
      %v2841 = vld [vmem:[#allocation2 + $0x30] sm:$0xff]
      %v2842 = vld [vmem:[#allocation2 + $0x38] sm:$0xff]
      %v2843 = vld [vmem:[#allocation2 + $0x40] sm:$0xff]
      %v2844 = vld [vmem:[#allocation2 + $0x48] sm:$0xff]
      %v2845 = vld [vmem:[#allocation2 + $0x50] sm:$0xff]
      %v2846 = vld [vmem:[#allocation2 + $0x58] sm:$0xff]
      %v2847 = vld [vmem:[#allocation2 + $0x60] sm:$0xff]
      %v2848 = vld [vmem:[#allocation2 + $0x68] sm:$0xff]
      %v2849 = vld [vmem:[#allocation2 + $0x70] sm:$0xff]
      %v2850 = vld [vmem:[#allocation2 + $0x78] sm:$0xff]
      %v2851 = vpack.c.bf16 %v2835, %v2835
      %v2852 = vpack.c.bf16 %v2836, %v2836
      %v2853 = vpack.c.bf16 %v2837, %v2837
      %v2854 = vpack.c.bf16 %v2838, %v2838
      %v2855 = vpack.c.bf16 %v2839, %v2839
      %v2856 = vpack.c.bf16 %v2840, %v2840
      %v2857 = vpack.c.bf16 %v2841, %v2841
      %v2858 = vpack.c.bf16 %v2842, %v2842
      %v2859 = vpack.c.bf16 %v2843, %v2843
      %v2860 = vpack.c.bf16 %v2844, %v2844
      %v2861 = vpack.c.bf16 %v2845, %v2845
      %v2862 = vpack.c.bf16 %v2846, %v2846
      %v2863 = vpack.c.bf16 %v2847, %v2847
      %v2864 = vpack.c.bf16 %v2848, %v2848
      %v2865 = vpack.c.bf16 %v2849, %v2849
      %v2866 = vpack.c.bf16 %v2850, %v2850
      %v2867 = vld [vmem:[#allocation2 + $0x1] sm:$0xff]
      %v2868 = vld [vmem:[#allocation2 + $0x9] sm:$0xff]
      %v2869 = vld [vmem:[#allocation2 + $0x11] sm:$0xff]
      %v2870 = vld [vmem:[#allocation2 + $0x19] sm:$0xff]
      %v2871 = vld [vmem:[#allocation2 + $0x21] sm:$0xff]
      %v2872 = vld [vmem:[#allocation2 + $0x29] sm:$0xff]
      %v2873 = vld [vmem:[#allocation2 + $0x31] sm:$0xff]
      %v2874 = vld [vmem:[#allocation2 + $0x39] sm:$0xff]
      %v2875 = vld [vmem:[#allocation2 + $0x41] sm:$0xff]
      %v2876 = vld [vmem:[#allocation2 + $0x49] sm:$0xff]
      %v2877 = vld [vmem:[#allocation2 + $0x51] sm:$0xff]
      %v2878 = vld [vmem:[#allocation2 + $0x59] sm:$0xff]
      %v2879 = vld [vmem:[#allocation2 + $0x61] sm:$0xff]
      %v2880 = vld [vmem:[#allocation2 + $0x69] sm:$0xff]
      %v2881 = vld [vmem:[#allocation2 + $0x71] sm:$0xff]
      %v2882 = vld [vmem:[#allocation2 + $0x79] sm:$0xff]
      %v2883 = vpack.c.bf16 %v2867, %v2867
      %v2884 = vpack.c.bf16 %v2868, %v2868
      %v2885 = vpack.c.bf16 %v2869, %v2869
      %v2886 = vpack.c.bf16 %v2870, %v2870
      %v2887 = vpack.c.bf16 %v2871, %v2871
      %v2888 = vpack.c.bf16 %v2872, %v2872
      %v2889 = vpack.c.bf16 %v2873, %v2873
      %v2890 = vpack.c.bf16 %v2874, %v2874
      %v2891 = vpack.c.bf16 %v2875, %v2875
      %v2892 = vpack.c.bf16 %v2876, %v2876
      %v2893 = vpack.c.bf16 %v2877, %v2877
      %v2894 = vpack.c.bf16 %v2878, %v2878
      %v2895 = vpack.c.bf16 %v2879, %v2879
      %v2896 = vpack.c.bf16 %v2880, %v2880
      %v2897 = vpack.c.bf16 %v2881, %v2881
      %v2898 = vpack.c.bf16 %v2882, %v2882
      %v2899 = vld [vmem:[#allocation2 + $0x2] sm:$0xff]
      %v2900 = vld [vmem:[#allocation2 + $0xa] sm:$0xff]
      %v2901 = vld [vmem:[#allocation2 + $0x12] sm:$0xff]
      %v2902 = vld [vmem:[#allocation2 + $0x1a] sm:$0xff]
      %v2903 = vld [vmem:[#allocation2 + $0x22] sm:$0xff]
      %v2904 = vld [vmem:[#allocation2 + $0x2a] sm:$0xff]
      %v2905 = vld [vmem:[#allocation2 + $0x32] sm:$0xff]
      %v2906 = vld [vmem:[#allocation2 + $0x3a] sm:$0xff]
      %v2907 = vld [vmem:[#allocation2 + $0x42] sm:$0xff]
      %v2908 = vld [vmem:[#allocation2 + $0x4a] sm:$0xff]
      %v2909 = vld [vmem:[#allocation2 + $0x52] sm:$0xff]
      %v2910 = vld [vmem:[#allocation2 + $0x5a] sm:$0xff]
      %v2911 = vld [vmem:[#allocation2 + $0x62] sm:$0xff]
      %v2912 = vld [vmem:[#allocation2 + $0x6a] sm:$0xff]
      %v2913 = vld [vmem:[#allocation2 + $0x72] sm:$0xff]
      %v2914 = vld [vmem:[#allocation2 + $0x7a] sm:$0xff]
      %v2915 = vpack.c.bf16 %v2899, %v2899
      %v2916 = vpack.c.bf16 %v2900, %v2900
      %v2917 = vpack.c.bf16 %v2901, %v2901
      %v2918 = vpack.c.bf16 %v2902, %v2902
      %v2919 = vpack.c.bf16 %v2903, %v2903
      %v2920 = vpack.c.bf16 %v2904, %v2904
      %v2921 = vpack.c.bf16 %v2905, %v2905
      %v2922 = vpack.c.bf16 %v2906, %v2906
      %v2923 = vpack.c.bf16 %v2907, %v2907
      %v2924 = vpack.c.bf16 %v2908, %v2908
      %v2925 = vpack.c.bf16 %v2909, %v2909
      %v2926 = vpack.c.bf16 %v2910, %v2910
      %v2927 = vpack.c.bf16 %v2911, %v2911
      %v2928 = vpack.c.bf16 %v2912, %v2912
      %v2929 = vpack.c.bf16 %v2913, %v2913
      %v2930 = vpack.c.bf16 %v2914, %v2914
      %v2931 = vld [vmem:[#allocation2 + $0x80] sm:$0xff]
      %v2932 = vld [vmem:[#allocation2 + $0x88] sm:$0xff]
      %v2933 = vpack.c.bf16 %v2931, %v2931
      %v2934 = vpack.c.bf16 %v2932, %v2932
      %v2935 = vld [vmem:[#allocation2 + $0x81] sm:$0xff]
      %v2936 = vld [vmem:[#allocation2 + $0x89] sm:$0xff]
      %v2937 = vpack.c.bf16 %v2935, %v2935
      %v2938 = vpack.c.bf16 %v2936, %v2936
      %v2939 = vld [vmem:[#allocation2 + $0x82] sm:$0xff]
      %v2940 = vld [vmem:[#allocation2 + $0x8a] sm:$0xff]
      %v2941 = vpack.c.bf16 %v2939, %v2939
      %v2942 = vpack.c.bf16 %v2940, %v2940
      %v2943 = vld [vmem:[#allocation2 + $0x90] sm:$0xff]
      %v2944 = vld [vmem:[#allocation2 + $0x98] sm:$0xff]
      %v2945 = vpack.c.bf16 %v2943, %v2943
      %v2946 = vpack.c.bf16 %v2944, %v2944
      %v2947 = vld [vmem:[#allocation2 + $0x91] sm:$0xff]
      %v2948 = vld [vmem:[#allocation2 + $0x99] sm:$0xff]
      %v2949 = vpack.c.bf16 %v2947, %v2947
      %v2950 = vpack.c.bf16 %v2948, %v2948
      %v2951 = vld [vmem:[#allocation2 + $0x92] sm:$0xff]
      %v2952 = vld [vmem:[#allocation2 + $0x9a] sm:$0xff]
      %v2953 = vpack.c.bf16 %v2951, %v2951
      %v2954 = vpack.c.bf16 %v2952, %v2952
      %v2971 = vunpack.c.l.b16 %v2851
      %v2972 = vunpack.c.l.b16 %v2852
      %v2973 = vunpack.c.l.b16 %v2853
      %v2974 = vunpack.c.l.b16 %v2854
      %v2975 = vunpack.c.l.b16 %v2855
      %v2976 = vunpack.c.l.b16 %v2856
      %v2977 = vunpack.c.l.b16 %v2857
      %v2978 = vunpack.c.l.b16 %v2858
      %v2979 = vunpack.c.l.b16 %v2859
      %v2980 = vunpack.c.l.b16 %v2860
      %v2981 = vunpack.c.l.b16 %v2861
      %v2982 = vunpack.c.l.b16 %v2862
      %v2983 = vunpack.c.l.b16 %v2863
      %v2984 = vunpack.c.l.b16 %v2864
      %v2985 = vunpack.c.l.b16 %v2865
      %v2986 = vunpack.c.l.b16 %v2866
      %v2987 = vpack.c.b16 %v2972, %v2971
      %v2988 = vpack.c.b16 %v2974, %v2973
      %v2989 = vpack.c.b16 %v2976, %v2975
      %v2990 = vpack.c.b16 %v2978, %v2977
      %v2991 = vpack.c.b16 %v2980, %v2979
      %v2992 = vpack.c.b16 %v2982, %v2981
      %v2993 = vpack.c.b16 %v2984, %v2983
      %v2994 = vpack.c.b16 %v2986, %v2985
      %v3011 = vunpack.c.l.b16 %v2883
      %v3012 = vunpack.c.l.b16 %v2884
      %v3013 = vunpack.c.l.b16 %v2885
      %v3014 = vunpack.c.l.b16 %v2886
      %v3015 = vunpack.c.l.b16 %v2887
      %v3016 = vunpack.c.l.b16 %v2888
      %v3017 = vunpack.c.l.b16 %v2889
      %v3018 = vunpack.c.l.b16 %v2890
      %v3019 = vunpack.c.l.b16 %v2891
      %v3020 = vunpack.c.l.b16 %v2892
      %v3021 = vunpack.c.l.b16 %v2893
      %v3022 = vunpack.c.l.b16 %v2894
      %v3023 = vunpack.c.l.b16 %v2895
      %v3024 = vunpack.c.l.b16 %v2896
      %v3025 = vunpack.c.l.b16 %v2897
      %v3026 = vunpack.c.l.b16 %v2898
      %v3027 = vpack.c.b16 %v3012, %v3011
      %v3028 = vpack.c.b16 %v3014, %v3013
      %v3029 = vpack.c.b16 %v3016, %v3015
      %v3030 = vpack.c.b16 %v3018, %v3017
      %v3031 = vpack.c.b16 %v3020, %v3019
      %v3032 = vpack.c.b16 %v3022, %v3021
      %v3033 = vpack.c.b16 %v3024, %v3023
      %v3034 = vpack.c.b16 %v3026, %v3025
      %3035 = vrot.lane.b32.xlu0 %v3027, 16
      %v3036 = vpop.permute.xlu0 %3035
      %3037 = vrot.lane.b32.xlu0 %v3028, 16
      %v3038 = vpop.permute.xlu0 %3037
      %3039 = vrot.lane.b32.xlu0 %v3029, 16
      %v3040 = vpop.permute.xlu0 %3039
      %3041 = vrot.lane.b32.xlu0 %v3030, 16
      %v3042 = vpop.permute.xlu0 %3041
      %3043 = vrot.lane.b32.xlu0 %v3031, 16
      %v3044 = vpop.permute.xlu0 %3043
      %3045 = vrot.lane.b32.xlu0 %v3032, 16
      %v3046 = vpop.permute.xlu0 %3045
      %3047 = vrot.lane.b32.xlu0 %v3033, 16
      %v3048 = vpop.permute.xlu0 %3047
      %3049 = vrot.lane.b32.xlu0 %v3034, 16
      %v3050 = vpop.permute.xlu0 %3049
      %v3067 = vunpack.c.l.b16 %v2915
      %v3068 = vunpack.c.l.b16 %v2916
      %v3069 = vunpack.c.l.b16 %v2917
      %v3070 = vunpack.c.l.b16 %v2918
      %v3071 = vunpack.c.l.b16 %v2919
      %v3072 = vunpack.c.l.b16 %v2920
      %v3073 = vunpack.c.l.b16 %v2921
      %v3074 = vunpack.c.l.b16 %v2922
      %v3075 = vunpack.c.l.b16 %v2923
      %v3076 = vunpack.c.l.b16 %v2924
      %v3077 = vunpack.c.l.b16 %v2925
      %v3078 = vunpack.c.l.b16 %v2926
      %v3079 = vunpack.c.l.b16 %v2927
      %v3080 = vunpack.c.l.b16 %v2928
      %v3081 = vunpack.c.l.b16 %v2929
      %v3082 = vunpack.c.l.b16 %v2930
      %v3083 = vpack.c.b16 %v3068, %v3067
      %v3084 = vpack.c.b16 %v3070, %v3069
      %v3085 = vpack.c.b16 %v3072, %v3071
      %v3086 = vpack.c.b16 %v3074, %v3073
      %v3087 = vpack.c.b16 %v3076, %v3075
      %v3088 = vpack.c.b16 %v3078, %v3077
      %v3089 = vpack.c.b16 %v3080, %v3079
      %v3090 = vpack.c.b16 %v3082, %v3081
      %3091 = vrot.lane.b32.xlu0 %v3083, 32
      %v3092 = vpop.permute.xlu0 %3091
      %3093 = vrot.lane.b32.xlu0 %v3084, 32
      %v3094 = vpop.permute.xlu0 %3093
      %3095 = vrot.lane.b32.xlu0 %v3085, 32
      %v3096 = vpop.permute.xlu0 %3095
      %3097 = vrot.lane.b32.xlu0 %v3086, 32
      %v3098 = vpop.permute.xlu0 %3097
      %3099 = vrot.lane.b32.xlu0 %v3087, 32
      %v3100 = vpop.permute.xlu0 %3099
      %3101 = vrot.lane.b32.xlu0 %v3088, 32
      %v3102 = vpop.permute.xlu0 %3101
      %3103 = vrot.lane.b32.xlu0 %v3089, 32
      %v3104 = vpop.permute.xlu0 %3103
      %3105 = vrot.lane.b32.xlu0 %v3090, 32
      %v3106 = vpop.permute.xlu0 %3105
      %v3109 = vunpack.c.l.b16 %v2933
      %v3110 = vunpack.c.l.b16 %v2934
      %v3111 = vpack.c.b16 %v3110, %v3109
      %3112 = vrot.lane.b32.xlu0 %v2988, 48
      %v3113 = vpop.permute.xlu0 %3112
      %3114 = vrot.lane.b32.xlu0 %v2989, 48
      %v3115 = vpop.permute.xlu0 %3114
      %3116 = vrot.lane.b32.xlu0 %v2990, 48
      %v3117 = vpop.permute.xlu0 %3116
      %3118 = vrot.lane.b32.xlu0 %v2991, 48
      %v3119 = vpop.permute.xlu0 %3118
      %3120 = vrot.lane.b32.xlu0 %v2992, 48
      %v3121 = vpop.permute.xlu0 %3120
      %3122 = vrot.lane.b32.xlu0 %v2993, 48
      %v3123 = vpop.permute.xlu0 %3122
      %3124 = vrot.lane.b32.xlu0 %v2994, 48
      %v3125 = vpop.permute.xlu0 %3124
      %3126 = vrot.lane.b32.xlu0 %v3111, 48
      %v3127 = vpop.permute.xlu0 %3126
      %v3130 = vunpack.c.l.b16 %v2937
      %v3131 = vunpack.c.l.b16 %v2938
      %v3132 = vpack.c.b16 %v3131, %v3130
      %3133 = vrot.lane.b32.xlu0 %v3028, 64
      %v3134 = vpop.permute.xlu0 %3133
      %3135 = vrot.lane.b32.xlu0 %v3029, 64
      %v3136 = vpop.permute.xlu0 %3135
      %3137 = vrot.lane.b32.xlu0 %v3030, 64
      %v3138 = vpop.permute.xlu0 %3137
      %3139 = vrot.lane.b32.xlu0 %v3031, 64
      %v3140 = vpop.permute.xlu0 %3139
      %3141 = vrot.lane.b32.xlu0 %v3032, 64
      %v3142 = vpop.permute.xlu0 %3141
      %3143 = vrot.lane.b32.xlu0 %v3033, 64
      %v3144 = vpop.permute.xlu0 %3143
      %3145 = vrot.lane.b32.xlu0 %v3034, 64
      %v3146 = vpop.permute.xlu0 %3145
      %3147 = vrot.lane.b32.xlu0 %v3132, 64
      %v3148 = vpop.permute.xlu0 %3147
      %v3151 = vunpack.c.l.b16 %v2941
      %v3152 = vunpack.c.l.b16 %v2942
      %v3153 = vpack.c.b16 %v3152, %v3151
      %3154 = vrot.lane.b32.xlu0 %v3084, 80
      %v3155 = vpop.permute.xlu0 %3154
      %3156 = vrot.lane.b32.xlu0 %v3085, 80
      %v3157 = vpop.permute.xlu0 %3156
      %3158 = vrot.lane.b32.xlu0 %v3086, 80
      %v3159 = vpop.permute.xlu0 %3158
      %3160 = vrot.lane.b32.xlu0 %v3087, 80
      %v3161 = vpop.permute.xlu0 %3160
      %3162 = vrot.lane.b32.xlu0 %v3088, 80
      %v3163 = vpop.permute.xlu0 %3162
      %3164 = vrot.lane.b32.xlu0 %v3089, 80
      %v3165 = vpop.permute.xlu0 %3164
      %3166 = vrot.lane.b32.xlu0 %v3090, 80
      %v3167 = vpop.permute.xlu0 %3166
      %3168 = vrot.lane.b32.xlu0 %v3153, 80
      %v3169 = vpop.permute.xlu0 %3168
      %v3172 = vunpack.c.l.b16 %v2945
      %v3173 = vunpack.c.l.b16 %v2946
      %v3174 = vpack.c.b16 %v3173, %v3172
      %3175 = vrot.lane.b32.xlu0 %v2989, 96
      %v3176 = vpop.permute.xlu0 %3175
      %3177 = vrot.lane.b32.xlu0 %v2990, 96
      %v3178 = vpop.permute.xlu0 %3177
      %3179 = vrot.lane.b32.xlu0 %v2991, 96
      %v3180 = vpop.permute.xlu0 %3179
      %3181 = vrot.lane.b32.xlu0 %v2992, 96
      %v3182 = vpop.permute.xlu0 %3181
      %3183 = vrot.lane.b32.xlu0 %v2993, 96
      %v3184 = vpop.permute.xlu0 %3183
      %3185 = vrot.lane.b32.xlu0 %v2994, 96
      %v3186 = vpop.permute.xlu0 %3185
      %3187 = vrot.lane.b32.xlu0 %v3111, 96
      %v3188 = vpop.permute.xlu0 %3187
      %3189 = vrot.lane.b32.xlu0 %v3174, 96
      %v3190 = vpop.permute.xlu0 %3189
      %v3193 = vunpack.c.l.b16 %v2949
      %v3194 = vunpack.c.l.b16 %v2950
      %v3195 = vpack.c.b16 %v3194, %v3193
      %3196 = vrot.lane.b32.xlu0 %v3029, 112
      %v3197 = vpop.permute.xlu0 %3196
      %3198 = vrot.lane.b32.xlu0 %v3030, 112
      %v3199 = vpop.permute.xlu0 %3198
      %3200 = vrot.lane.b32.xlu0 %v3031, 112
      %v3201 = vpop.permute.xlu0 %3200
      %3202 = vrot.lane.b32.xlu0 %v3032, 112
      %v3203 = vpop.permute.xlu0 %3202
      %3204 = vrot.lane.b32.xlu0 %v3033, 112
      %v3205 = vpop.permute.xlu0 %3204
      %3206 = vrot.lane.b32.xlu0 %v3034, 112
      %v3207 = vpop.permute.xlu0 %3206
      %3208 = vrot.lane.b32.xlu0 %v3132, 112
      %v3209 = vpop.permute.xlu0 %3208
      %3210 = vrot.lane.b32.xlu0 %v3195, 112
      %v3211 = vpop.permute.xlu0 %3210
      %v3214 = vunpack.c.l.b16 %v2953
      %v3215 = vunpack.c.l.b16 %v2954
      %v3216 = vpack.c.b16 %v3215, %v3214
      %v3219 = vsel %vm447, %v2987, %v3036
      %v3222 = vsel %vm447, %v2988, %v3038
      %v3225 = vsel %vm447, %v2989, %v3040
      %v3228 = vsel %vm447, %v2990, %v3042
      %v3231 = vsel %vm447, %v2991, %v3044
      %v3234 = vsel %vm447, %v2992, %v3046
      %v3237 = vsel %vm447, %v2993, %v3048
      %v3240 = vsel %vm447, %v2994, %v3050
      %v3242 = vsel %vm470, %v3219, %v3092
      %v3244 = vsel %vm470, %v3222, %v3094
      %v3246 = vsel %vm470, %v3225, %v3096
      %v3248 = vsel %vm470, %v3228, %v3098
      %v3250 = vsel %vm470, %v3231, %v3100
      %v3252 = vsel %vm470, %v3234, %v3102
      %v3254 = vsel %vm470, %v3237, %v3104
      %v3256 = vsel %vm470, %v3240, %v3106
      %v3258 = vsel %vm2024, %v3242, %v3113
      %v3260 = vsel %vm2024, %v3244, %v3115
      %v3262 = vsel %vm2024, %v3246, %v3117
      %v3264 = vsel %vm2024, %v3248, %v3119
      %v3266 = vsel %vm2024, %v3250, %v3121
      %v3268 = vsel %vm2024, %v3252, %v3123
      %v3270 = vsel %vm2024, %v3254, %v3125
      %v3272 = vsel %vm2024, %v3256, %v3127
      %v3274 = vsel %vm562, %v3258, %v3134
      %v3276 = vsel %vm562, %v3260, %v3136
      %v3278 = vsel %vm562, %v3262, %v3138
      %v3280 = vsel %vm562, %v3264, %v3140
      %v3282 = vsel %vm562, %v3266, %v3142
      %v3284 = vsel %vm562, %v3268, %v3144
      %v3286 = vsel %vm562, %v3270, %v3146
      %v3288 = vsel %vm562, %v3272, %v3148
      %vm3289 = vcmask 654336
      %v3291 = vsel %vm3289, %v3274, %v3155
      %v3293 = vsel %vm3289, %v3276, %v3157
      %v3295 = vsel %vm3289, %v3278, %v3159
      %v3297 = vsel %vm3289, %v3280, %v3161
      %v3299 = vsel %vm3289, %v3282, %v3163
      %v3301 = vsel %vm3289, %v3284, %v3165
      %v3303 = vsel %vm3289, %v3286, %v3167
      %v3305 = vsel %vm3289, %v3288, %v3169
      %vm3306 = vcmask 785408
      %v3308 = vsel %vm3306, %v3291, %v3176
      %v3310 = vsel %vm3306, %v3293, %v3178
      %v3312 = vsel %vm3306, %v3295, %v3180
      %v3314 = vsel %vm3306, %v3297, %v3182
      %v3316 = vsel %vm3306, %v3299, %v3184
      %v3318 = vsel %vm3306, %v3301, %v3186
      %v3320 = vsel %vm3306, %v3303, %v3188
      %v3322 = vsel %vm3306, %v3305, %v3190
      %vm3323 = vcmask 916480
      %v3325 = vsel %vm3323, %v3308, %v3197
      %v3328 = vsel %vm3323, %v3310, %v3199
      %v3331 = vsel %vm3323, %v3312, %v3201
      %v3334 = vsel %vm3323, %v3314, %v3203
      %v3337 = vsel %vm3323, %v3316, %v3205
      %v3340 = vsel %vm3323, %v3318, %v3207
      %v3343 = vsel %vm3323, %v3320, %v3209
      %v3346 = vsel %vm3323, %v3322, %v3211
      %v3348 = vld [vmem:[%s3] sm:$0xf]
      %v3349 = vld [vmem:[%s3 + $0x4] sm:$0xf]
      %v3350 = vld [vmem:[%s3 + $0x8] sm:$0xf]
      %v3351 = vld [vmem:[%s3 + $0xc] sm:$0xf]
      %v3352 = vld [vmem:[%s3 + $0x10] sm:$0xf]
      %v3353 = vld [vmem:[%s3 + $0x14] sm:$0xf]
      %v3354 = vld [vmem:[%s3 + $0x18] sm:$0xf]
      %v3355 = vld [vmem:[%s3 + $0x1c] sm:$0xf]
      %v3356 = vld [vmem:[%s3 + $0x20] sm:$0xf]
      %v3357 = vld [vmem:[%s3 + $0x24] sm:$0xf]
      %v3358 = vld [vmem:[%s3 + $0x28] sm:$0xf]
      %v3359 = vld [vmem:[%s3 + $0x2c] sm:$0xf]
      %v3360 = vld [vmem:[%s3 + $0x30] sm:$0xf]
      %v3361 = vld [vmem:[%s3 + $0x34] sm:$0xf]
      %v3362 = vld [vmem:[%s3 + $0x38] sm:$0xf]
      %v3363 = vld [vmem:[%s3 + $0x3c] sm:$0xf]
      %v3364 = vld [vmem:[%s3 + $0x40] sm:$0xf]
      %v3365 = vld [vmem:[%s3 + $0x44] sm:$0xf]
      %v3384 = vunpack.c.l.b16 %v3348
      %v3385 = vunpack.c.l.b16 %v3349
      %v3386 = vunpack.c.l.b16 %v3350
      %v3387 = vunpack.c.l.b16 %v3351
      %v3388 = vunpack.c.l.b16 %v3352
      %v3389 = vunpack.c.l.b16 %v3353
      %v3390 = vunpack.c.l.b16 %v3354
      %v3391 = vunpack.c.l.b16 %v3355
      %v3392 = vunpack.c.l.b16 %v3356
      %v3393 = vunpack.c.l.b16 %v3357
      %v3394 = vunpack.c.l.b16 %v3358
      %v3395 = vunpack.c.l.b16 %v3359
      %v3396 = vunpack.c.l.b16 %v3360
      %v3397 = vunpack.c.l.b16 %v3361
      %v3398 = vunpack.c.l.b16 %v3362
      %v3399 = vunpack.c.l.b16 %v3363
      %v3400 = vunpack.c.l.b16 %v3364
      %v3401 = vunpack.c.l.b16 %v3365
      %v3402 = vpack.c.b16 %v3385, %v3384
      %v3403 = vpack.c.b16 %v3387, %v3386
      %v3404 = vpack.c.b16 %v3389, %v3388
      %v3405 = vpack.c.b16 %v3391, %v3390
      %v3406 = vpack.c.b16 %v3393, %v3392
      %v3407 = vpack.c.b16 %v3395, %v3394
      %v3408 = vpack.c.b16 %v3397, %v3396
      %v3409 = vpack.c.b16 %v3399, %v3398
      %v3410 = vpack.c.b16 %v3401, %v3400
      %v3421 = vsel %vm447, %v3085, 0
      %v3424 = vsel %vm447, %v3086, 0
      %v3427 = vsel %vm447, %v3087, 0
      %v3430 = vsel %vm447, %v3088, 0
      %v3433 = vsel %vm447, %v3089, 0
      %v3436 = vsel %vm447, %v3090, 0
      %v3439 = vsel %vm447, %v3153, 0
      %v3442 = vsel %vm447, %v3216, 0
      %3444 = vmatpush.bf16.msra.mxu0 %v3409
      %3445 = vmatpush.bf16.msra.mxu0 %v3408
      %3446 = vmatpush.bf16.msra.mxu0 %v3407
      %3447 = vmatpush.bf16.msra.mxu0 %v3406
      %3448 = vmatpush.bf16.msra.mxu0 %v3405
      %3449 = vmatpush.bf16.msra.mxu0 %v3404
      %3450 = vmatpush.bf16.msra.mxu0 %v3403
      %3451 = vmatpush.bf16.msra.mxu0 %v3402
      %3452 = vmatmul.bf16.gmra.mxu0 %v3325
      %v3453 = vpop.f32.mrf.mxu0
      %v3454 = vadd.f32 0.0, %v3453
      %v3455 = vpop.f32.mrf.mxu0
      %v3456 = vadd.f32 0.0, %v3455
      %3457 = vmatmul.bf16.gmra.mxu0 %v3328
      %v3458 = vpop.f32.mrf.mxu0
      %v3459 = vadd.f32 0.0, %v3458
      %v3460 = vpop.f32.mrf.mxu0
      %v3461 = vadd.f32 0.0, %v3460
      %3462 = vmatmul.bf16.gmra.mxu0 %v3331
      %v3463 = vpop.f32.mrf.mxu0
      %v3464 = vadd.f32 0.0, %v3463
      %v3465 = vpop.f32.mrf.mxu0
      %v3466 = vadd.f32 0.0, %v3465
      %3467 = vmatmul.bf16.gmra.mxu0 %v3334
      %v3468 = vpop.f32.mrf.mxu0
      %v3469 = vadd.f32 0.0, %v3468
      %v3470 = vpop.f32.mrf.mxu0
      %v3471 = vadd.f32 0.0, %v3470
      %3472 = vmatmul.bf16.gmra.mxu0 %v3337
      %v3473 = vpop.f32.mrf.mxu0
      %v3474 = vadd.f32 0.0, %v3473
      %v3475 = vpop.f32.mrf.mxu0
      %v3476 = vadd.f32 0.0, %v3475
      %3477 = vmatmul.bf16.gmra.mxu0 %v3340
      %v3478 = vpop.f32.mrf.mxu0
      %v3479 = vadd.f32 0.0, %v3478
      %v3480 = vpop.f32.mrf.mxu0
      %v3481 = vadd.f32 0.0, %v3480
      %3482 = vmatmul.bf16.gmra.mxu0 %v3343
      %v3483 = vpop.f32.mrf.mxu0
      %v3484 = vadd.f32 0.0, %v3483
      %v3485 = vpop.f32.mrf.mxu0
      %v3486 = vadd.f32 0.0, %v3485
      %3487 = vmatmul.bf16.gmra.mxu0 %v3346
      %v3488 = vpop.f32.mrf.mxu0
      %v3489 = vadd.f32 0.0, %v3488
      %v3490 = vpop.f32.mrf.mxu0
      %v3491 = vadd.f32 0.0, %v3490
      %3492 = vdwg.mxu0
      %3493 = vmatpush.bf16.msra.mxu0 0
      %3494 = vmatpush.bf16.msra.mxu0 0
      %3495 = vmatpush.bf16.msra.mxu0 0
      %3496 = vmatpush.bf16.msra.mxu0 0
      %3497 = vmatpush.bf16.msra.mxu0 0
      %3498 = vmatpush.bf16.msra.mxu0 0
      %3499 = vmatpush.bf16.msra.mxu0 0
      %3500 = vmatpush.bf16.msra.mxu0 %v3410
      %3501 = vmatmul.bf16.gmra.mxu0 %v3421
      %v3502 = vpop.f32.mrf.mxu0
      %v3503 = vadd.f32 %v3454, %v3502
      %v3504 = vpop.f32.mrf.mxu0
      %v3505 = vadd.f32 %v3456, %v3504
      %3506 = vmatmul.bf16.gmra.mxu0 %v3424
      %v3507 = vpop.f32.mrf.mxu0
      %v3508 = vadd.f32 %v3459, %v3507
      %v3509 = vpop.f32.mrf.mxu0
      %v3510 = vadd.f32 %v3461, %v3509
      %3511 = vmatmul.bf16.gmra.mxu0 %v3427
      %v3512 = vpop.f32.mrf.mxu0
      %v3513 = vadd.f32 %v3464, %v3512
      %v3514 = vpop.f32.mrf.mxu0
      %v3515 = vadd.f32 %v3466, %v3514
      %3516 = vmatmul.bf16.gmra.mxu0 %v3430
      %v3517 = vpop.f32.mrf.mxu0
      %v3518 = vadd.f32 %v3469, %v3517
      %v3519 = vpop.f32.mrf.mxu0
      %v3520 = vadd.f32 %v3471, %v3519
      %3521 = vmatmul.bf16.gmra.mxu0 %v3433
      %v3522 = vpop.f32.mrf.mxu0
      %v3523 = vadd.f32 %v3474, %v3522
      %v3524 = vpop.f32.mrf.mxu0
      %v3525 = vadd.f32 %v3476, %v3524
      %3526 = vmatmul.bf16.gmra.mxu0 %v3436
      %v3527 = vpop.f32.mrf.mxu0
      %v3528 = vadd.f32 %v3479, %v3527
      %v3529 = vpop.f32.mrf.mxu0
      %v3530 = vadd.f32 %v3481, %v3529
      %3531 = vmatmul.bf16.gmra.mxu0 %v3439
      %v3532 = vpop.f32.mrf.mxu0
      %v3533 = vadd.f32 %v3484, %v3532
      %v3534 = vpop.f32.mrf.mxu0
      %v3535 = vadd.f32 %v3486, %v3534
      %3536 = vmatmul.bf16.gmra.mxu0 %v3442
      %v3537 = vpop.f32.mrf.mxu0
      %v3538 = vadd.f32 %v3489, %v3537
      %v3539 = vpop.f32.mrf.mxu0
      %v3540 = vadd.f32 %v3491, %v3539
      %3541 = vdwg.mxu0
      %v3542 = vmax.f32 %v3503, 0.0
      %v3543 = vmax.f32 %v3505, 0.0
      %v3544 = vmax.f32 %v3508, 0.0
      %v3545 = vmax.f32 %v3510, 0.0
      %v3546 = vmax.f32 %v3513, 0.0
      %v3547 = vmax.f32 %v3515, 0.0
      %v3548 = vmax.f32 %v3518, 0.0
      %v3549 = vmax.f32 %v3520, 0.0
      %v3550 = vmax.f32 %v3523, 0.0
      %v3551 = vmax.f32 %v3525, 0.0
      %v3552 = vmax.f32 %v3528, 0.0
      %v3553 = vmax.f32 %v3530, 0.0
      %v3554 = vmax.f32 %v3533, 0.0
      %v3555 = vmax.f32 %v3535, 0.0
      %v3556 = vmax.f32 %v3538, 0.0
      %v3557 = vmax.f32 %v3540, 0.0
      %v3558 = vsel %vm2819, 1, 0
      %v3559 = vsel %vm2820, 1, 0
      %v3560 = vsel %vm2821, 1, 0
      %v3561 = vsel %vm2822, 1, 0
      %v3562 = vsel %vm2823, 1, 0
      %v3563 = vsel %vm2824, 1, 0
      %v3564 = vsel %vm2825, 1, 0
      %v3565 = vsel %vm2826, 1, 0
      %v3566 = vsel %vm2827, 1, 0
      %v3567 = vsel %vm2828, 1, 0
      %v3568 = vsel %vm2829, 1, 0
      %v3569 = vsel %vm2830, 1, 0
      %v3570 = vsel %vm2831, 1, 0
      %v3571 = vsel %vm2832, 1, 0
      %v3572 = vsel %vm2833, 1, 0
      %v3573 = vsel %vm2834, 1, 0
      %vm3574 = vcmp.eq.s32.totalorder %v3558, 1
      %vm3575 = vcmp.eq.s32.totalorder %v3559, 1
      %vm3576 = vcmp.eq.s32.totalorder %v3560, 1
      %vm3577 = vcmp.eq.s32.totalorder %v3561, 1
      %vm3578 = vcmp.eq.s32.totalorder %v3562, 1
      %vm3579 = vcmp.eq.s32.totalorder %v3563, 1
      %vm3580 = vcmp.eq.s32.totalorder %v3564, 1
      %vm3581 = vcmp.eq.s32.totalorder %v3565, 1
      %vm3582 = vcmp.eq.s32.totalorder %v3566, 1
      %vm3583 = vcmp.eq.s32.totalorder %v3567, 1
      %vm3584 = vcmp.eq.s32.totalorder %v3568, 1
      %vm3585 = vcmp.eq.s32.totalorder %v3569, 1
      %vm3586 = vcmp.eq.s32.totalorder %v3570, 1
      %vm3587 = vcmp.eq.s32.totalorder %v3571, 1
      %vm3588 = vcmp.eq.s32.totalorder %v3572, 1
      %vm3589 = vcmp.eq.s32.totalorder %v3573, 1
      %v3590 = vsel %vm3574, %v3542, 0.0
      %v3591 = vsel %vm3575, %v3543, 0.0
      %v3592 = vsel %vm3576, %v3544, 0.0
      %v3593 = vsel %vm3577, %v3545, 0.0
      %v3594 = vsel %vm3578, %v3546, 0.0
      %v3595 = vsel %vm3579, %v3547, 0.0
      %v3596 = vsel %vm3580, %v3548, 0.0
      %v3597 = vsel %vm3581, %v3549, 0.0
      %v3598 = vsel %vm3582, %v3550, 0.0
      %v3599 = vsel %vm3583, %v3551, 0.0
      %v3600 = vsel %vm3584, %v3552, 0.0
      %v3601 = vsel %vm3585, %v3553, 0.0
      %v3602 = vsel %vm3586, %v3554, 0.0
      %v3603 = vsel %vm3587, %v3555, 0.0
      %v3604 = vsel %vm3588, %v3556, 0.0
      %v3605 = vsel %vm3589, %v3557, 0.0
      %3606 = vst.msk [vmem:[#allocation3 + $0x11] sm:$0xff] %vm470, %v3590
      %3607 = vst.msk [vmem:[#allocation3 + $0x19] sm:$0xff] %vm470, %v3591
      %3608 = vst.msk [vmem:[#allocation3 + $0x21] sm:$0xff] %vm470, %v3592
      %3609 = vst.msk [vmem:[#allocation3 + $0x29] sm:$0xff] %vm470, %v3593
      %3610 = vst.msk [vmem:[#allocation3 + $0x31] sm:$0xff] %vm470, %v3594
      %3611 = vst.msk [vmem:[#allocation3 + $0x39] sm:$0xff] %vm470, %v3595
      %3612 = vst.msk [vmem:[#allocation3 + $0x41] sm:$0xff] %vm470, %v3596
      %3613 = vst.msk [vmem:[#allocation3 + $0x49] sm:$0xff] %vm470, %v3597
      %3614 = vst.msk [vmem:[#allocation3 + $0x51] sm:$0xff] %vm470, %v3598
      %3615 = vst.msk [vmem:[#allocation3 + $0x59] sm:$0xff] %vm470, %v3599
      %3616 = vst.msk [vmem:[#allocation3 + $0x61] sm:$0xff] %vm470, %v3600
      %3617 = vst.msk [vmem:[#allocation3 + $0x69] sm:$0xff] %vm470, %v3601
      %3618 = vst.msk [vmem:[#allocation3 + $0x71] sm:$0xff] %vm470, %v3602
      %3619 = vst.msk [vmem:[#allocation3 + $0x79] sm:$0xff] %vm470, %v3603
      %3620 = vst.msk [vmem:[#allocation3 + $0x81] sm:$0xff] %vm470, %v3604
      %3621 = vst.msk [vmem:[#allocation3 + $0x89] sm:$0xff] %vm470, %v3605
      %v3622 = vld [vmem:[#allocation3] sm:$0xff]
      %v3623 = vld [vmem:[#allocation3 + $0x8] sm:$0xff]
      %v3624 = vld [vmem:[#allocation3 + $0x10] sm:$0xff]
      %v3625 = vld [vmem:[#allocation3 + $0x18] sm:$0xff]
      %v3626 = vld [vmem:[#allocation3 + $0x20] sm:$0xff]
      %v3627 = vld [vmem:[#allocation3 + $0x28] sm:$0xff]
      %v3628 = vld [vmem:[#allocation3 + $0x30] sm:$0xff]
      %v3629 = vld [vmem:[#allocation3 + $0x38] sm:$0xff]
      %v3630 = vld [vmem:[#allocation3 + $0x40] sm:$0xff]
      %v3631 = vld [vmem:[#allocation3 + $0x48] sm:$0xff]
      %v3632 = vld [vmem:[#allocation3 + $0x50] sm:$0xff]
      %v3633 = vld [vmem:[#allocation3 + $0x58] sm:$0xff]
      %v3634 = vld [vmem:[#allocation3 + $0x60] sm:$0xff]
      %v3635 = vld [vmem:[#allocation3 + $0x68] sm:$0xff]
      %v3636 = vld [vmem:[#allocation3 + $0x70] sm:$0xff]
      %v3637 = vld [vmem:[#allocation3 + $0x78] sm:$0xff]
      %v3638 = vpack.c.bf16 %v3622, %v3622
      %v3639 = vpack.c.bf16 %v3623, %v3623
      %v3640 = vpack.c.bf16 %v3624, %v3624
      %v3641 = vpack.c.bf16 %v3625, %v3625
      %v3642 = vpack.c.bf16 %v3626, %v3626
      %v3643 = vpack.c.bf16 %v3627, %v3627
      %v3644 = vpack.c.bf16 %v3628, %v3628
      %v3645 = vpack.c.bf16 %v3629, %v3629
      %v3646 = vpack.c.bf16 %v3630, %v3630
      %v3647 = vpack.c.bf16 %v3631, %v3631
      %v3648 = vpack.c.bf16 %v3632, %v3632
      %v3649 = vpack.c.bf16 %v3633, %v3633
      %v3650 = vpack.c.bf16 %v3634, %v3634
      %v3651 = vpack.c.bf16 %v3635, %v3635
      %v3652 = vpack.c.bf16 %v3636, %v3636
      %v3653 = vpack.c.bf16 %v3637, %v3637
      %v3654 = vld [vmem:[#allocation3 + $0x1] sm:$0xff]
      %v3655 = vld [vmem:[#allocation3 + $0x9] sm:$0xff]
      %v3656 = vld [vmem:[#allocation3 + $0x11] sm:$0xff]
      %v3657 = vld [vmem:[#allocation3 + $0x19] sm:$0xff]
      %v3658 = vld [vmem:[#allocation3 + $0x21] sm:$0xff]
      %v3659 = vld [vmem:[#allocation3 + $0x29] sm:$0xff]
      %v3660 = vld [vmem:[#allocation3 + $0x31] sm:$0xff]
      %v3661 = vld [vmem:[#allocation3 + $0x39] sm:$0xff]
      %v3662 = vld [vmem:[#allocation3 + $0x41] sm:$0xff]
      %v3663 = vld [vmem:[#allocation3 + $0x49] sm:$0xff]
      %v3664 = vld [vmem:[#allocation3 + $0x51] sm:$0xff]
      %v3665 = vld [vmem:[#allocation3 + $0x59] sm:$0xff]
      %v3666 = vld [vmem:[#allocation3 + $0x61] sm:$0xff]
      %v3667 = vld [vmem:[#allocation3 + $0x69] sm:$0xff]
      %v3668 = vld [vmem:[#allocation3 + $0x71] sm:$0xff]
      %v3669 = vld [vmem:[#allocation3 + $0x79] sm:$0xff]
      %v3670 = vpack.c.bf16 %v3654, %v3654
      %v3671 = vpack.c.bf16 %v3655, %v3655
      %v3672 = vpack.c.bf16 %v3656, %v3656
      %v3673 = vpack.c.bf16 %v3657, %v3657
      %v3674 = vpack.c.bf16 %v3658, %v3658
      %v3675 = vpack.c.bf16 %v3659, %v3659
      %v3676 = vpack.c.bf16 %v3660, %v3660
      %v3677 = vpack.c.bf16 %v3661, %v3661
      %v3678 = vpack.c.bf16 %v3662, %v3662
      %v3679 = vpack.c.bf16 %v3663, %v3663
      %v3680 = vpack.c.bf16 %v3664, %v3664
      %v3681 = vpack.c.bf16 %v3665, %v3665
      %v3682 = vpack.c.bf16 %v3666, %v3666
      %v3683 = vpack.c.bf16 %v3667, %v3667
      %v3684 = vpack.c.bf16 %v3668, %v3668
      %v3685 = vpack.c.bf16 %v3669, %v3669
      %v3686 = vld [vmem:[#allocation3 + $0x2] sm:$0xff]
      %v3687 = vld [vmem:[#allocation3 + $0xa] sm:$0xff]
      %v3688 = vld [vmem:[#allocation3 + $0x12] sm:$0xff]
      %v3689 = vld [vmem:[#allocation3 + $0x1a] sm:$0xff]
      %v3690 = vld [vmem:[#allocation3 + $0x22] sm:$0xff]
      %v3691 = vld [vmem:[#allocation3 + $0x2a] sm:$0xff]
      %v3692 = vld [vmem:[#allocation3 + $0x32] sm:$0xff]
      %v3693 = vld [vmem:[#allocation3 + $0x3a] sm:$0xff]
      %v3694 = vld [vmem:[#allocation3 + $0x42] sm:$0xff]
      %v3695 = vld [vmem:[#allocation3 + $0x4a] sm:$0xff]
      %v3696 = vld [vmem:[#allocation3 + $0x52] sm:$0xff]
      %v3697 = vld [vmem:[#allocation3 + $0x5a] sm:$0xff]
      %v3698 = vld [vmem:[#allocation3 + $0x62] sm:$0xff]
      %v3699 = vld [vmem:[#allocation3 + $0x6a] sm:$0xff]
      %v3700 = vld [vmem:[#allocation3 + $0x72] sm:$0xff]
      %v3701 = vld [vmem:[#allocation3 + $0x7a] sm:$0xff]
      %v3702 = vpack.c.bf16 %v3686, %v3686
      %v3703 = vpack.c.bf16 %v3687, %v3687
      %v3704 = vpack.c.bf16 %v3688, %v3688
      %v3705 = vpack.c.bf16 %v3689, %v3689
      %v3706 = vpack.c.bf16 %v3690, %v3690
      %v3707 = vpack.c.bf16 %v3691, %v3691
      %v3708 = vpack.c.bf16 %v3692, %v3692
      %v3709 = vpack.c.bf16 %v3693, %v3693
      %v3710 = vpack.c.bf16 %v3694, %v3694
      %v3711 = vpack.c.bf16 %v3695, %v3695
      %v3712 = vpack.c.bf16 %v3696, %v3696
      %v3713 = vpack.c.bf16 %v3697, %v3697
      %v3714 = vpack.c.bf16 %v3698, %v3698
      %v3715 = vpack.c.bf16 %v3699, %v3699
      %v3716 = vpack.c.bf16 %v3700, %v3700
      %v3717 = vpack.c.bf16 %v3701, %v3701
      %v3718 = vld [vmem:[#allocation3 + $0x80] sm:$0xff]
      %v3719 = vld [vmem:[#allocation3 + $0x88] sm:$0xff]
      %v3720 = vpack.c.bf16 %v3718, %v3718
      %v3721 = vpack.c.bf16 %v3719, %v3719
      %v3722 = vld [vmem:[#allocation3 + $0x81] sm:$0xff]
      %v3723 = vld [vmem:[#allocation3 + $0x89] sm:$0xff]
      %v3724 = vpack.c.bf16 %v3722, %v3722
      %v3725 = vpack.c.bf16 %v3723, %v3723
      %v3726 = vld [vmem:[#allocation3 + $0x82] sm:$0xff]
      %v3727 = vld [vmem:[#allocation3 + $0x8a] sm:$0xff]
      %v3728 = vpack.c.bf16 %v3726, %v3726
      %v3729 = vpack.c.bf16 %v3727, %v3727
      %v3730 = vld [vmem:[#allocation3 + $0x90] sm:$0xff]
      %v3731 = vld [vmem:[#allocation3 + $0x98] sm:$0xff]
      %v3732 = vpack.c.bf16 %v3730, %v3730
      %v3733 = vpack.c.bf16 %v3731, %v3731
      %v3734 = vld [vmem:[#allocation3 + $0x91] sm:$0xff]
      %v3735 = vld [vmem:[#allocation3 + $0x99] sm:$0xff]
      %v3736 = vpack.c.bf16 %v3734, %v3734
      %v3737 = vpack.c.bf16 %v3735, %v3735
      %v3738 = vld [vmem:[#allocation3 + $0x92] sm:$0xff]
      %v3739 = vld [vmem:[#allocation3 + $0x9a] sm:$0xff]
      %v3740 = vpack.c.bf16 %v3738, %v3738
      %v3741 = vpack.c.bf16 %v3739, %v3739
      %v3758 = vunpack.c.l.b16 %v3638
      %v3759 = vunpack.c.l.b16 %v3639
      %v3760 = vunpack.c.l.b16 %v3640
      %v3761 = vunpack.c.l.b16 %v3641
      %v3762 = vunpack.c.l.b16 %v3642
      %v3763 = vunpack.c.l.b16 %v3643
      %v3764 = vunpack.c.l.b16 %v3644
      %v3765 = vunpack.c.l.b16 %v3645
      %v3766 = vunpack.c.l.b16 %v3646
      %v3767 = vunpack.c.l.b16 %v3647
      %v3768 = vunpack.c.l.b16 %v3648
      %v3769 = vunpack.c.l.b16 %v3649
      %v3770 = vunpack.c.l.b16 %v3650
      %v3771 = vunpack.c.l.b16 %v3651
      %v3772 = vunpack.c.l.b16 %v3652
      %v3773 = vunpack.c.l.b16 %v3653
      %v3774 = vpack.c.b16 %v3759, %v3758
      %v3775 = vpack.c.b16 %v3761, %v3760
      %v3776 = vpack.c.b16 %v3763, %v3762
      %v3777 = vpack.c.b16 %v3765, %v3764
      %v3778 = vpack.c.b16 %v3767, %v3766
      %v3779 = vpack.c.b16 %v3769, %v3768
      %v3780 = vpack.c.b16 %v3771, %v3770
      %v3781 = vpack.c.b16 %v3773, %v3772
      %v3798 = vunpack.c.l.b16 %v3670
      %v3799 = vunpack.c.l.b16 %v3671
      %v3800 = vunpack.c.l.b16 %v3672
      %v3801 = vunpack.c.l.b16 %v3673
      %v3802 = vunpack.c.l.b16 %v3674
      %v3803 = vunpack.c.l.b16 %v3675
      %v3804 = vunpack.c.l.b16 %v3676
      %v3805 = vunpack.c.l.b16 %v3677
      %v3806 = vunpack.c.l.b16 %v3678
      %v3807 = vunpack.c.l.b16 %v3679
      %v3808 = vunpack.c.l.b16 %v3680
      %v3809 = vunpack.c.l.b16 %v3681
      %v3810 = vunpack.c.l.b16 %v3682
      %v3811 = vunpack.c.l.b16 %v3683
      %v3812 = vunpack.c.l.b16 %v3684
      %v3813 = vunpack.c.l.b16 %v3685
      %v3814 = vpack.c.b16 %v3799, %v3798
      %v3815 = vpack.c.b16 %v3801, %v3800
      %v3816 = vpack.c.b16 %v3803, %v3802
      %v3817 = vpack.c.b16 %v3805, %v3804
      %v3818 = vpack.c.b16 %v3807, %v3806
      %v3819 = vpack.c.b16 %v3809, %v3808
      %v3820 = vpack.c.b16 %v3811, %v3810
      %v3821 = vpack.c.b16 %v3813, %v3812
      %3822 = vrot.lane.b32.xlu0 %v3814, 32
      %v3823 = vpop.permute.xlu0 %3822
      %3824 = vrot.lane.b32.xlu0 %v3815, 32
      %v3825 = vpop.permute.xlu0 %3824
      %3826 = vrot.lane.b32.xlu0 %v3816, 32
      %v3827 = vpop.permute.xlu0 %3826
      %3828 = vrot.lane.b32.xlu0 %v3817, 32
      %v3829 = vpop.permute.xlu0 %3828
      %3830 = vrot.lane.b32.xlu0 %v3818, 32
      %v3831 = vpop.permute.xlu0 %3830
      %3832 = vrot.lane.b32.xlu0 %v3819, 32
      %v3833 = vpop.permute.xlu0 %3832
      %3834 = vrot.lane.b32.xlu0 %v3820, 32
      %v3835 = vpop.permute.xlu0 %3834
      %3836 = vrot.lane.b32.xlu0 %v3821, 32
      %v3837 = vpop.permute.xlu0 %3836
      %v3854 = vunpack.c.l.b16 %v3702
      %v3855 = vunpack.c.l.b16 %v3703
      %v3856 = vunpack.c.l.b16 %v3704
      %v3857 = vunpack.c.l.b16 %v3705
      %v3858 = vunpack.c.l.b16 %v3706
      %v3859 = vunpack.c.l.b16 %v3707
      %v3860 = vunpack.c.l.b16 %v3708
      %v3861 = vunpack.c.l.b16 %v3709
      %v3862 = vunpack.c.l.b16 %v3710
      %v3863 = vunpack.c.l.b16 %v3711
      %v3864 = vunpack.c.l.b16 %v3712
      %v3865 = vunpack.c.l.b16 %v3713
      %v3866 = vunpack.c.l.b16 %v3714
      %v3867 = vunpack.c.l.b16 %v3715
      %v3868 = vunpack.c.l.b16 %v3716
      %v3869 = vunpack.c.l.b16 %v3717
      %v3870 = vpack.c.b16 %v3855, %v3854
      %v3871 = vpack.c.b16 %v3857, %v3856
      %v3872 = vpack.c.b16 %v3859, %v3858
      %v3873 = vpack.c.b16 %v3861, %v3860
      %v3874 = vpack.c.b16 %v3863, %v3862
      %v3875 = vpack.c.b16 %v3865, %v3864
      %v3876 = vpack.c.b16 %v3867, %v3866
      %v3877 = vpack.c.b16 %v3869, %v3868
      %3878 = vrot.lane.b32.xlu0 %v3870, 64
      %v3879 = vpop.permute.xlu0 %3878
      %3880 = vrot.lane.b32.xlu0 %v3871, 64
      %v3881 = vpop.permute.xlu0 %3880
      %3882 = vrot.lane.b32.xlu0 %v3872, 64
      %v3883 = vpop.permute.xlu0 %3882
      %3884 = vrot.lane.b32.xlu0 %v3873, 64
      %v3885 = vpop.permute.xlu0 %3884
      %3886 = vrot.lane.b32.xlu0 %v3874, 64
      %v3887 = vpop.permute.xlu0 %3886
      %3888 = vrot.lane.b32.xlu0 %v3875, 64
      %v3889 = vpop.permute.xlu0 %3888
      %3890 = vrot.lane.b32.xlu0 %v3876, 64
      %v3891 = vpop.permute.xlu0 %3890
      %3892 = vrot.lane.b32.xlu0 %v3877, 64
      %v3893 = vpop.permute.xlu0 %3892
      %v3896 = vunpack.c.l.b16 %v3720
      %v3897 = vunpack.c.l.b16 %v3721
      %v3898 = vpack.c.b16 %v3897, %v3896
      %3899 = vrot.lane.b32.xlu0 %v3775, 96
      %v3900 = vpop.permute.xlu0 %3899
      %3901 = vrot.lane.b32.xlu0 %v3776, 96
      %v3902 = vpop.permute.xlu0 %3901
      %3903 = vrot.lane.b32.xlu0 %v3777, 96
      %v3904 = vpop.permute.xlu0 %3903
      %3905 = vrot.lane.b32.xlu0 %v3778, 96
      %v3906 = vpop.permute.xlu0 %3905
      %3907 = vrot.lane.b32.xlu0 %v3779, 96
      %v3908 = vpop.permute.xlu0 %3907
      %3909 = vrot.lane.b32.xlu0 %v3780, 96
      %v3910 = vpop.permute.xlu0 %3909
      %3911 = vrot.lane.b32.xlu0 %v3781, 96
      %v3912 = vpop.permute.xlu0 %3911
      %3913 = vrot.lane.b32.xlu0 %v3898, 96
      %v3914 = vpop.permute.xlu0 %3913
      %v3917 = vunpack.c.l.b16 %v3724
      %v3918 = vunpack.c.l.b16 %v3725
      %v3919 = vpack.c.b16 %v3918, %v3917
      %v3922 = vunpack.c.l.b16 %v3728
      %v3923 = vunpack.c.l.b16 %v3729
      %v3924 = vpack.c.b16 %v3923, %v3922
      %3925 = vrot.lane.b32.xlu0 %v3871, 32
      %v3926 = vpop.permute.xlu0 %3925
      %3927 = vrot.lane.b32.xlu0 %v3872, 32
      %v3928 = vpop.permute.xlu0 %3927
      %3929 = vrot.lane.b32.xlu0 %v3873, 32
      %v3930 = vpop.permute.xlu0 %3929
      %3931 = vrot.lane.b32.xlu0 %v3874, 32
      %v3932 = vpop.permute.xlu0 %3931
      %3933 = vrot.lane.b32.xlu0 %v3875, 32
      %v3934 = vpop.permute.xlu0 %3933
      %3935 = vrot.lane.b32.xlu0 %v3876, 32
      %v3936 = vpop.permute.xlu0 %3935
      %3937 = vrot.lane.b32.xlu0 %v3877, 32
      %v3938 = vpop.permute.xlu0 %3937
      %3939 = vrot.lane.b32.xlu0 %v3924, 32
      %v3940 = vpop.permute.xlu0 %3939
      %v3943 = vunpack.c.l.b16 %v3732
      %v3944 = vunpack.c.l.b16 %v3733
      %v3945 = vpack.c.b16 %v3944, %v3943
      %3946 = vrot.lane.b32.xlu0 %v3776, 64
      %v3947 = vpop.permute.xlu0 %3946
      %3948 = vrot.lane.b32.xlu0 %v3777, 64
      %v3949 = vpop.permute.xlu0 %3948
      %3950 = vrot.lane.b32.xlu0 %v3778, 64
      %v3951 = vpop.permute.xlu0 %3950
      %3952 = vrot.lane.b32.xlu0 %v3779, 64
      %v3953 = vpop.permute.xlu0 %3952
      %3954 = vrot.lane.b32.xlu0 %v3780, 64
      %v3955 = vpop.permute.xlu0 %3954
      %3956 = vrot.lane.b32.xlu0 %v3781, 64
      %v3957 = vpop.permute.xlu0 %3956
      %3958 = vrot.lane.b32.xlu0 %v3898, 64
      %v3959 = vpop.permute.xlu0 %3958
      %3960 = vrot.lane.b32.xlu0 %v3945, 64
      %v3961 = vpop.permute.xlu0 %3960
      %v3964 = vunpack.c.l.b16 %v3736
      %v3965 = vunpack.c.l.b16 %v3737
      %v3966 = vpack.c.b16 %v3965, %v3964
      %3967 = vrot.lane.b32.xlu0 %v3816, 96
      %v3968 = vpop.permute.xlu0 %3967
      %3969 = vrot.lane.b32.xlu0 %v3817, 96
      %v3970 = vpop.permute.xlu0 %3969
      %3971 = vrot.lane.b32.xlu0 %v3818, 96
      %v3972 = vpop.permute.xlu0 %3971
      %3973 = vrot.lane.b32.xlu0 %v3819, 96
      %v3974 = vpop.permute.xlu0 %3973
      %3975 = vrot.lane.b32.xlu0 %v3820, 96
      %v3976 = vpop.permute.xlu0 %3975
      %3977 = vrot.lane.b32.xlu0 %v3821, 96
      %v3978 = vpop.permute.xlu0 %3977
      %3979 = vrot.lane.b32.xlu0 %v3919, 96
      %v3980 = vpop.permute.xlu0 %3979
      %3981 = vrot.lane.b32.xlu0 %v3966, 96
      %v3982 = vpop.permute.xlu0 %3981
      %v3985 = vunpack.c.l.b16 %v3740
      %v3986 = vunpack.c.l.b16 %v3741
      %v3987 = vpack.c.b16 %v3986, %v3985
      %v3990 = vsel %vm470, %v3774, %v3823
      %v3993 = vsel %vm470, %v3775, %v3825
      %v3996 = vsel %vm470, %v3776, %v3827
      %v3999 = vsel %vm470, %v3777, %v3829
      %v4002 = vsel %vm470, %v3778, %v3831
      %v4005 = vsel %vm470, %v3779, %v3833
      %v4008 = vsel %vm470, %v3780, %v3835
      %v4011 = vsel %vm470, %v3781, %v3837
      %v4013 = vsel %vm562, %v3990, %v3879
      %v4015 = vsel %vm562, %v3993, %v3881
      %v4017 = vsel %vm562, %v3996, %v3883
      %v4019 = vsel %vm562, %v3999, %v3885
      %v4021 = vsel %vm562, %v4002, %v3887
      %v4023 = vsel %vm562, %v4005, %v3889
      %v4025 = vsel %vm562, %v4008, %v3891
      %v4027 = vsel %vm562, %v4011, %v3893
      %v4029 = vsel %vm3306, %v4013, %v3900
      %v4032 = vsel %vm3306, %v4015, %v3902
      %v4035 = vsel %vm3306, %v4017, %v3904
      %v4038 = vsel %vm3306, %v4019, %v3906
      %v4041 = vsel %vm3306, %v4021, %v3908
      %v4044 = vsel %vm3306, %v4023, %v3910
      %v4047 = vsel %vm3306, %v4025, %v3912
      %v4050 = vsel %vm3306, %v4027, %v3914
      %v4054 = vsel %vm470, %v3815, %v3926
      %v4057 = vsel %vm470, %v3816, %v3928
      %v4060 = vsel %vm470, %v3817, %v3930
      %v4063 = vsel %vm470, %v3818, %v3932
      %v4066 = vsel %vm470, %v3819, %v3934
      %v4069 = vsel %vm470, %v3820, %v3936
      %v4072 = vsel %vm470, %v3821, %v3938
      %v4075 = vsel %vm470, %v3919, %v3940
      %v4077 = vsel %vm562, %v4054, %v3947
      %v4079 = vsel %vm562, %v4057, %v3949
      %v4081 = vsel %vm562, %v4060, %v3951
      %v4083 = vsel %vm562, %v4063, %v3953
      %v4085 = vsel %vm562, %v4066, %v3955
      %v4087 = vsel %vm562, %v4069, %v3957
      %v4089 = vsel %vm562, %v4072, %v3959
      %v4091 = vsel %vm562, %v4075, %v3961
      %v4093 = vsel %vm3306, %v4077, %v3968
      %v4096 = vsel %vm3306, %v4079, %v3970
      %v4099 = vsel %vm3306, %v4081, %v3972
      %v4102 = vsel %vm3306, %v4083, %v3974
      %v4105 = vsel %vm3306, %v4085, %v3976
      %v4108 = vsel %vm3306, %v4087, %v3978
      %v4111 = vsel %vm3306, %v4089, %v3980
      %v4114 = vsel %vm3306, %v4091, %v3982
      %v4116 = vld [vmem:[%s4] sm:$0xf]
      %v4117 = vld [vmem:[%s4 + $0x4] sm:$0xf]
      %v4118 = vld [vmem:[%s4 + $0x8] sm:$0xf]
      %v4119 = vld [vmem:[%s4 + $0xc] sm:$0xf]
      %v4120 = vld [vmem:[%s4 + $0x10] sm:$0xf]
      %v4121 = vld [vmem:[%s4 + $0x14] sm:$0xf]
      %v4122 = vld [vmem:[%s4 + $0x18] sm:$0xf]
      %v4123 = vld [vmem:[%s4 + $0x1c] sm:$0xf]
      %v4124 = vld [vmem:[%s4 + $0x20] sm:$0xf]
      %v4125 = vld [vmem:[%s4 + $0x24] sm:$0xf]
      %v4126 = vld [vmem:[%s4 + $0x28] sm:$0xf]
      %v4127 = vld [vmem:[%s4 + $0x2c] sm:$0xf]
      %v4128 = vld [vmem:[%s4 + $0x30] sm:$0xf]
      %v4129 = vld [vmem:[%s4 + $0x34] sm:$0xf]
      %v4130 = vld [vmem:[%s4 + $0x38] sm:$0xf]
      %v4131 = vld [vmem:[%s4 + $0x3c] sm:$0xf]
      %v4132 = vld [vmem:[%s4 + $0x40] sm:$0xf]
      %v4133 = vld [vmem:[%s4 + $0x44] sm:$0xf]
      %v4134 = vld [vmem:[%s4 + $0x48] sm:$0xf]
      %v4135 = vld [vmem:[%s4 + $0x4c] sm:$0xf]
      %v4136 = vld [vmem:[%s4 + $0x50] sm:$0xf]
      %v4137 = vld [vmem:[%s4 + $0x54] sm:$0xf]
      %v4138 = vld [vmem:[%s4 + $0x58] sm:$0xf]
      %v4139 = vld [vmem:[%s4 + $0x5c] sm:$0xf]
      %v4140 = vld [vmem:[%s4 + $0x60] sm:$0xf]
      %v4141 = vld [vmem:[%s4 + $0x64] sm:$0xf]
      %v4142 = vld [vmem:[%s4 + $0x68] sm:$0xf]
      %v4143 = vld [vmem:[%s4 + $0x6c] sm:$0xf]
      %v4144 = vld [vmem:[%s4 + $0x70] sm:$0xf]
      %v4145 = vld [vmem:[%s4 + $0x74] sm:$0xf]
      %v4146 = vld [vmem:[%s4 + $0x78] sm:$0xf]
      %v4147 = vld [vmem:[%s4 + $0x7c] sm:$0xf]
      %v4148 = vld [vmem:[%s4 + $0x80] sm:$0xf]
      %v4149 = vld [vmem:[%s4 + $0x84] sm:$0xf]
      %v4150 = vld [vmem:[%s4 + $0x88] sm:$0xf]
      %v4151 = vld [vmem:[%s4 + $0x8c] sm:$0xf]
      %v4188 = vunpack.c.l.b16 %v4116
      %v4189 = vunpack.c.l.b16 %v4117
      %v4190 = vunpack.c.l.b16 %v4118
      %v4191 = vunpack.c.l.b16 %v4119
      %v4192 = vunpack.c.l.b16 %v4120
      %v4193 = vunpack.c.l.b16 %v4121
      %v4194 = vunpack.c.l.b16 %v4122
      %v4195 = vunpack.c.l.b16 %v4123
      %v4196 = vunpack.c.l.b16 %v4124
      %v4197 = vunpack.c.l.b16 %v4125
      %v4198 = vunpack.c.l.b16 %v4126
      %v4199 = vunpack.c.l.b16 %v4127
      %v4200 = vunpack.c.l.b16 %v4128
      %v4201 = vunpack.c.l.b16 %v4129
      %v4202 = vunpack.c.l.b16 %v4130
      %v4203 = vunpack.c.l.b16 %v4131
      %v4204 = vunpack.c.l.b16 %v4132
      %v4205 = vunpack.c.l.b16 %v4133
      %v4206 = vunpack.c.l.b16 %v4134
      %v4207 = vunpack.c.l.b16 %v4135
      %v4208 = vunpack.c.l.b16 %v4136
      %v4209 = vunpack.c.l.b16 %v4137
      %v4210 = vunpack.c.l.b16 %v4138
      %v4211 = vunpack.c.l.b16 %v4139
      %v4212 = vunpack.c.l.b16 %v4140
      %v4213 = vunpack.c.l.b16 %v4141
      %v4214 = vunpack.c.l.b16 %v4142
      %v4215 = vunpack.c.l.b16 %v4143
      %v4216 = vunpack.c.l.b16 %v4144
      %v4217 = vunpack.c.l.b16 %v4145
      %v4218 = vunpack.c.l.b16 %v4146
      %v4219 = vunpack.c.l.b16 %v4147
      %v4220 = vunpack.c.l.b16 %v4148
      %v4221 = vunpack.c.l.b16 %v4149
      %v4222 = vunpack.c.l.b16 %v4150
      %v4223 = vunpack.c.l.b16 %v4151
      %v4224 = vpack.c.b16 %v4189, %v4188
      %v4225 = vpack.c.b16 %v4191, %v4190
      %v4226 = vpack.c.b16 %v4193, %v4192
      %v4227 = vpack.c.b16 %v4195, %v4194
      %v4228 = vpack.c.b16 %v4197, %v4196
      %v4229 = vpack.c.b16 %v4199, %v4198
      %v4230 = vpack.c.b16 %v4201, %v4200
      %v4231 = vpack.c.b16 %v4203, %v4202
      %v4232 = vpack.c.b16 %v4205, %v4204
      %v4233 = vpack.c.b16 %v4207, %v4206
      %v4234 = vpack.c.b16 %v4209, %v4208
      %v4235 = vpack.c.b16 %v4211, %v4210
      %v4236 = vpack.c.b16 %v4213, %v4212
      %v4237 = vpack.c.b16 %v4215, %v4214
      %v4238 = vpack.c.b16 %v4217, %v4216
      %v4239 = vpack.c.b16 %v4219, %v4218
      %v4240 = vpack.c.b16 %v4221, %v4220
      %v4241 = vpack.c.b16 %v4223, %v4222
      %4276 = vrot.lane.b32.xlu0 %v3503, 96
      %v4277 = vpop.permute.xlu0 %4276
      %4278 = vrot.lane.b32.xlu0 %v3505, 96
      %v4279 = vpop.permute.xlu0 %4278
      %4280 = vrot.lane.b32.xlu0 %v3508, 96
      %v4281 = vpop.permute.xlu0 %4280
      %4282 = vrot.lane.b32.xlu0 %v3510, 96
      %v4283 = vpop.permute.xlu0 %4282
      %4284 = vrot.lane.b32.xlu0 %v3513, 96
      %v4285 = vpop.permute.xlu0 %4284
      %4286 = vrot.lane.b32.xlu0 %v3515, 96
      %v4287 = vpop.permute.xlu0 %4286
      %4288 = vrot.lane.b32.xlu0 %v3518, 96
      %v4289 = vpop.permute.xlu0 %4288
      %4290 = vrot.lane.b32.xlu0 %v3520, 96
      %v4291 = vpop.permute.xlu0 %4290
      %4292 = vrot.lane.b32.xlu0 %v3523, 96
      %v4293 = vpop.permute.xlu0 %4292
      %4294 = vrot.lane.b32.xlu0 %v3525, 96
      %v4295 = vpop.permute.xlu0 %4294
      %4296 = vrot.lane.b32.xlu0 %v3528, 96
      %v4297 = vpop.permute.xlu0 %4296
      %4298 = vrot.lane.b32.xlu0 %v3530, 96
      %v4299 = vpop.permute.xlu0 %4298
      %4300 = vrot.lane.b32.xlu0 %v3533, 96
      %v4301 = vpop.permute.xlu0 %4300
      %4302 = vrot.lane.b32.xlu0 %v3535, 96
      %v4303 = vpop.permute.xlu0 %4302
      %4304 = vrot.lane.b32.xlu0 %v3538, 96
      %v4305 = vpop.permute.xlu0 %4304
      %4306 = vrot.lane.b32.xlu0 %v3540, 96
      %v4307 = vpop.permute.xlu0 %4306
      %v4325 = vsel %vm470, %v3872, 0
      %v4328 = vsel %vm470, %v3873, 0
      %v4331 = vsel %vm470, %v3874, 0
      %v4334 = vsel %vm470, %v3875, 0
      %v4337 = vsel %vm470, %v3876, 0
      %v4340 = vsel %vm470, %v3877, 0
      %v4343 = vsel %vm470, %v3924, 0
      %v4346 = vsel %vm470, %v3987, 0
      %4348 = vmatpush.bf16.msra.mxu0 %v4231
      %4349 = vmatpush.bf16.msra.mxu0 %v4230
      %4350 = vmatpush.bf16.msra.mxu0 %v4229
      %4351 = vmatpush.bf16.msra.mxu0 %v4228
      %4352 = vmatpush.bf16.msra.mxu0 %v4227
      %4353 = vmatpush.bf16.msra.mxu0 %v4226
      %4354 = vmatpush.bf16.msra.mxu0 %v4225
      %4355 = vmatpush.bf16.msra.mxu0 %v4224
      %4356 = vmatmul.bf16.gmra.mxu0 %v4029
      %v4357 = vpop.f32.mrf.mxu0
      %v4358 = vadd.f32 %v4277, %v4357
      %v4359 = vpop.f32.mrf.mxu0
      %v4360 = vadd.f32 %v4279, %v4359
      %4361 = vmatmul.bf16.gmra.mxu0 %v4032
      %v4362 = vpop.f32.mrf.mxu0
      %v4363 = vadd.f32 %v4281, %v4362
      %v4364 = vpop.f32.mrf.mxu0
      %v4365 = vadd.f32 %v4283, %v4364
      %4366 = vmatmul.bf16.gmra.mxu0 %v4035
      %v4367 = vpop.f32.mrf.mxu0
      %v4368 = vadd.f32 %v4285, %v4367
      %v4369 = vpop.f32.mrf.mxu0
      %v4370 = vadd.f32 %v4287, %v4369
      %4371 = vmatmul.bf16.gmra.mxu0 %v4038
      %v4372 = vpop.f32.mrf.mxu0
      %v4373 = vadd.f32 %v4289, %v4372
      %v4374 = vpop.f32.mrf.mxu0
      %v4375 = vadd.f32 %v4291, %v4374
      %4376 = vmatmul.bf16.gmra.mxu0 %v4041
      %v4377 = vpop.f32.mrf.mxu0
      %v4378 = vadd.f32 %v4293, %v4377
      %v4379 = vpop.f32.mrf.mxu0
      %v4380 = vadd.f32 %v4295, %v4379
      %4381 = vmatmul.bf16.gmra.mxu0 %v4044
      %v4382 = vpop.f32.mrf.mxu0
      %v4383 = vadd.f32 %v4297, %v4382
      %v4384 = vpop.f32.mrf.mxu0
      %v4385 = vadd.f32 %v4299, %v4384
      %4386 = vmatmul.bf16.gmra.mxu0 %v4047
      %v4387 = vpop.f32.mrf.mxu0
      %v4388 = vadd.f32 %v4301, %v4387
      %v4389 = vpop.f32.mrf.mxu0
      %v4390 = vadd.f32 %v4303, %v4389
      %4391 = vmatmul.bf16.gmra.mxu0 %v4050
      %v4392 = vpop.f32.mrf.mxu0
      %v4393 = vadd.f32 %v4305, %v4392
      %v4394 = vpop.f32.mrf.mxu0
      %v4395 = vadd.f32 %v4307, %v4394
      %4396 = vdwg.mxu0
      %4397 = vmatpush.bf16.msra.mxu0 %v4239
      %4398 = vmatpush.bf16.msra.mxu0 %v4238
      %4399 = vmatpush.bf16.msra.mxu0 %v4237
      %4400 = vmatpush.bf16.msra.mxu0 %v4236
      %4401 = vmatpush.bf16.msra.mxu0 %v4235
      %4402 = vmatpush.bf16.msra.mxu0 %v4234
      %4403 = vmatpush.bf16.msra.mxu0 %v4233
      %4404 = vmatpush.bf16.msra.mxu0 %v4232
      %4405 = vmatmul.bf16.gmra.mxu0 %v4093
      %v4406 = vpop.f32.mrf.mxu0
      %v4407 = vadd.f32 %v4358, %v4406
      %v4408 = vpop.f32.mrf.mxu0
      %v4409 = vadd.f32 %v4360, %v4408
      %4410 = vmatmul.bf16.gmra.mxu0 %v4096
      %v4411 = vpop.f32.mrf.mxu0
      %v4412 = vadd.f32 %v4363, %v4411
      %v4413 = vpop.f32.mrf.mxu0
      %v4414 = vadd.f32 %v4365, %v4413
      %4415 = vmatmul.bf16.gmra.mxu0 %v4099
      %v4416 = vpop.f32.mrf.mxu0
      %v4417 = vadd.f32 %v4368, %v4416
      %v4418 = vpop.f32.mrf.mxu0
      %v4419 = vadd.f32 %v4370, %v4418
      %4420 = vmatmul.bf16.gmra.mxu0 %v4102
      %v4421 = vpop.f32.mrf.mxu0
      %v4422 = vadd.f32 %v4373, %v4421
      %v4423 = vpop.f32.mrf.mxu0
      %v4424 = vadd.f32 %v4375, %v4423
      %4425 = vmatmul.bf16.gmra.mxu0 %v4105
      %v4426 = vpop.f32.mrf.mxu0
      %v4427 = vadd.f32 %v4378, %v4426
      %v4428 = vpop.f32.mrf.mxu0
      %v4429 = vadd.f32 %v4380, %v4428
      %4430 = vmatmul.bf16.gmra.mxu0 %v4108
      %v4431 = vpop.f32.mrf.mxu0
      %v4432 = vadd.f32 %v4383, %v4431
      %v4433 = vpop.f32.mrf.mxu0
      %v4434 = vadd.f32 %v4385, %v4433
      %4435 = vmatmul.bf16.gmra.mxu0 %v4111
      %v4436 = vpop.f32.mrf.mxu0
      %v4437 = vadd.f32 %v4388, %v4436
      %v4438 = vpop.f32.mrf.mxu0
      %v4439 = vadd.f32 %v4390, %v4438
      %4440 = vmatmul.bf16.gmra.mxu0 %v4114
      %v4441 = vpop.f32.mrf.mxu0
      %v4442 = vadd.f32 %v4393, %v4441
      %v4443 = vpop.f32.mrf.mxu0
      %v4444 = vadd.f32 %v4395, %v4443
      %4445 = vdwg.mxu0
      %4446 = vmatpush.bf16.msra.mxu0 0
      %4447 = vmatpush.bf16.msra.mxu0 0
      %4448 = vmatpush.bf16.msra.mxu0 0
      %4449 = vmatpush.bf16.msra.mxu0 0
      %4450 = vmatpush.bf16.msra.mxu0 0
      %4451 = vmatpush.bf16.msra.mxu0 0
      %4452 = vmatpush.bf16.msra.mxu0 %v4241
      %4453 = vmatpush.bf16.msra.mxu0 %v4240
      %4454 = vmatmul.bf16.gmra.mxu0 %v4325
      %v4455 = vpop.f32.mrf.mxu0
      %v4456 = vadd.f32 %v4407, %v4455
      %v4457 = vpop.f32.mrf.mxu0
      %v4458 = vadd.f32 %v4409, %v4457
      %4459 = vmatmul.bf16.gmra.mxu0 %v4328
      %v4460 = vpop.f32.mrf.mxu0
      %v4461 = vadd.f32 %v4412, %v4460
      %v4462 = vpop.f32.mrf.mxu0
      %v4463 = vadd.f32 %v4414, %v4462
      %4464 = vmatmul.bf16.gmra.mxu0 %v4331
      %v4465 = vpop.f32.mrf.mxu0
      %v4466 = vadd.f32 %v4417, %v4465
      %v4467 = vpop.f32.mrf.mxu0
      %v4468 = vadd.f32 %v4419, %v4467
      %4469 = vmatmul.bf16.gmra.mxu0 %v4334
      %v4470 = vpop.f32.mrf.mxu0
      %v4471 = vadd.f32 %v4422, %v4470
      %v4472 = vpop.f32.mrf.mxu0
      %v4473 = vadd.f32 %v4424, %v4472
      %4474 = vmatmul.bf16.gmra.mxu0 %v4337
      %v4475 = vpop.f32.mrf.mxu0
      %v4476 = vadd.f32 %v4427, %v4475
      %v4477 = vpop.f32.mrf.mxu0
      %v4478 = vadd.f32 %v4429, %v4477
      %4479 = vmatmul.bf16.gmra.mxu0 %v4340
      %v4480 = vpop.f32.mrf.mxu0
      %v4481 = vadd.f32 %v4432, %v4480
      %v4482 = vpop.f32.mrf.mxu0
      %v4483 = vadd.f32 %v4434, %v4482
      %4484 = vmatmul.bf16.gmra.mxu0 %v4343
      %v4485 = vpop.f32.mrf.mxu0
      %v4486 = vadd.f32 %v4437, %v4485
      %v4487 = vpop.f32.mrf.mxu0
      %v4488 = vadd.f32 %v4439, %v4487
      %4489 = vmatmul.bf16.gmra.mxu0 %v4346
      %v4490 = vpop.f32.mrf.mxu0
      %v4491 = vadd.f32 %v4442, %v4490
      %v4492 = vpop.f32.mrf.mxu0
      %v4493 = vadd.f32 %v4444, %v4492
      %4494 = vdwg.mxu0
      %v4495 = vmax.f32 %v4456, 0.0
      %v4496 = vmax.f32 %v4458, 0.0
      %v4497 = vmax.f32 %v4461, 0.0
      %v4498 = vmax.f32 %v4463, 0.0
      %v4499 = vmax.f32 %v4466, 0.0
      %v4500 = vmax.f32 %v4468, 0.0
      %v4501 = vmax.f32 %v4471, 0.0
      %v4502 = vmax.f32 %v4473, 0.0
      %v4503 = vmax.f32 %v4476, 0.0
      %v4504 = vmax.f32 %v4478, 0.0
      %v4505 = vmax.f32 %v4481, 0.0
      %v4506 = vmax.f32 %v4483, 0.0
      %v4507 = vmax.f32 %v4486, 0.0
      %v4508 = vmax.f32 %v4488, 0.0
      %v4509 = vmax.f32 %v4491, 0.0
      %v4510 = vmax.f32 %v4493, 0.0
      %v4511 = vmax.f32 %v4495, %v4497
      %v4512 = vmax.f32 %v4496, %v4498
      %v4513 = vmax.f32 %v4497, %v4499
      %v4514 = vmax.f32 %v4498, %v4500
      %v4515 = vmax.f32 %v4499, %v4501
      %v4516 = vmax.f32 %v4500, %v4502
      %v4517 = vmax.f32 %v4501, %v4503
      %v4518 = vmax.f32 %v4502, %v4504
      %v4519 = vmax.f32 %v4503, %v4505
      %v4520 = vmax.f32 %v4504, %v4506
      %v4521 = vmax.f32 %v4505, %v4507
      %v4522 = vmax.f32 %v4506, %v4508
      %v4523 = vmax.f32 %v4507, %v4509
      %v4524 = vmax.f32 %v4508, %v4510
      %4525 = vst.msk [vmem:[#allocation10] sm:$0xff] %vm470, %v4511
      %4526 = vst.msk [vmem:[#allocation10 + $0x8] sm:$0xff] %vm470, %v4512
      %4527 = vst.msk [vmem:[#allocation10 + $0x10] sm:$0xff] %vm470, %v4513
      %4528 = vst.msk [vmem:[#allocation10 + $0x18] sm:$0xff] %vm470, %v4514
      %4529 = vst.msk [vmem:[#allocation10 + $0x20] sm:$0xff] %vm470, %v4515
      %4530 = vst.msk [vmem:[#allocation10 + $0x28] sm:$0xff] %vm470, %v4516
      %4531 = vst.msk [vmem:[#allocation10 + $0x30] sm:$0xff] %vm470, %v4517
      %4532 = vst.msk [vmem:[#allocation10 + $0x38] sm:$0xff] %vm470, %v4518
      %4533 = vst.msk [vmem:[#allocation10 + $0x40] sm:$0xff] %vm470, %v4519
      %4534 = vst.msk [vmem:[#allocation10 + $0x48] sm:$0xff] %vm470, %v4520
      %4535 = vst.msk [vmem:[#allocation10 + $0x50] sm:$0xff] %vm470, %v4521
      %4536 = vst.msk [vmem:[#allocation10 + $0x58] sm:$0xff] %vm470, %v4522
      %4537 = vst.msk [vmem:[#allocation10 + $0x60] sm:$0xff] %vm470, %v4523
      %4538 = vst.msk [vmem:[#allocation10 + $0x68] sm:$0xff] %vm470, %v4524
      %s4539 = scalar_lea.vmem [#allocation10], 1
      %v4540 = vld [vmem:[%s4539] ss:$2 sm:$0xf]
      %s4541 = scalar_lea.vmem [#allocation10], 2
      %v4542 = vld [vmem:[%s4541] ss:$2 sm:$0xf]
      %v4543 = vmax.f32 %v4540, %v4542
      %vm4544 = vcmask 257024
      %4545 = vst.msk [vmem:[#allocation4 + $0xa] sm:$0xf] %vm4544, %v4543
      %s4546 = scalar_lea.vmem [#allocation10], 33
      %v4547 = vld [vmem:[%s4546] ss:$2 sm:$0xf]
      %s4548 = scalar_lea.vmem [#allocation10], 34
      %v4549 = vld [vmem:[%s4548] ss:$2 sm:$0xf]
      %v4550 = vmax.f32 %v4547, %v4549
      %4551 = vst.msk [vmem:[#allocation4 + $0x12] sm:$0xf] %vm4544, %v4550
      %s4552 = scalar_lea.vmem [#allocation10], 65
      %v4553 = vld [vmem:[%s4552] ss:$2 sm:$0xf]
      %s4554 = scalar_lea.vmem [#allocation10], 66
      %v4555 = vld [vmem:[%s4554] ss:$2 sm:$0xf]
      %v4556 = vmax.f32 %v4553, %v4555
      %4557 = vst.msk [vmem:[#allocation4 + $0x1a] sm:$0xf] %vm4544, %v4556
      %s4558 = scalar_lea.vmem [#allocation10], 97
      %v4559 = vld [vmem:[%s4558] ss:$2 sm:$0xf]
      %s4560 = scalar_lea.vmem [#allocation10], 98
      %v4561 = vld [vmem:[%s4560] ss:$2 sm:$0xf]
      %v4562 = vmax.f32 %v4559, %v4561
      %4563 = vst.msk [vmem:[#allocation4 + $0x22] sm:$0xf] %vm4544, %v4562
      %vm4564 = vcmp.lt.s32.totalorder %v2579, 0
      %v4565 = vsub.s32 0, %v2579
      %v4566 = vsel %vm4564, %v4565, %v2579
      %v4567 = vshrl.u32 %v4566, 3
      %v4568 = vand.u32 %v4566, 7
      %v4569 = vsub.s32 0, %v4568
      %v4570 = vsel %vm4564, %v4569, %v4568
      %vm4571 = vcmp.lt.s32.totalorder %v2580, 0
      %v4572 = vsub.s32 0, %v2580
      %v4573 = vsel %vm4571, %v4572, %v2580
      %v4574 = vshrl.u32 %v4573, 3
      %v4575 = vand.u32 %v4573, 7
      %v4576 = vsub.s32 0, %v4575
      %v4577 = vsel %vm4571, %v4576, %v4575
      %vm4578 = vcmp.lt.s32.totalorder %v2581, 0
      %v4579 = vsub.s32 0, %v2581
      %v4580 = vsel %vm4578, %v4579, %v2581
      %v4581 = vshrl.u32 %v4580, 3
      %v4582 = vand.u32 %v4580, 7
      %v4583 = vsub.s32 0, %v4582
      %v4584 = vsel %vm4578, %v4583, %v4582
      %vm4585 = vcmp.lt.s32.totalorder %v2582, 0
      %v4586 = vsub.s32 0, %v2582
      %v4587 = vsel %vm4585, %v4586, %v2582
      %v4588 = vshrl.u32 %v4587, 3
      %v4589 = vand.u32 %v4587, 7
      %v4590 = vsub.s32 0, %v4589
      %v4591 = vsel %vm4585, %v4590, %v4589
      %vm4592 = vcmp.ne.s32.totalorder %v4570, 0
      %vm4593 = vcmp.ne.s32.totalorder %v4577, 0
      %vm4594 = vcmp.ne.s32.totalorder %v4584, 0
      %vm4595 = vcmp.ne.s32.totalorder %v4591, 0
      %vm4596 = vcmp.lt.s32.totalorder %v4570, 0
      %vm4597 = vcmp.lt.s32.totalorder %v4577, 0
      %vm4598 = vcmp.lt.s32.totalorder %v4584, 0
      %vm4599 = vcmp.lt.s32.totalorder %v4591, 0
      %vm4600 = vmand %vm4596, %vm4592
      %vm4601 = vmand %vm4597, %vm4593
      %vm4602 = vmand %vm4598, %vm4594
      %vm4603 = vmand %vm4599, %vm4595
      %v4604 = vadd.s32 %v4570, 8
      %v4605 = vadd.s32 %v4577, 8
      %v4606 = vadd.s32 %v4584, 8
      %v4607 = vadd.s32 %v4591, 8
      %v4608 = vsel %vm4600, %v4604, %v4570
      %v4609 = vsel %vm4601, %v4605, %v4577
      %v4610 = vsel %vm4602, %v4606, %v4584
      %v4611 = vsel %vm4603, %v4607, %v4591
      %vm4612 = vcmp.ge.s32.totalorder %v4608, 1
      %vm4613 = vcmp.ge.s32.totalorder %v4609, 1
      %vm4614 = vcmp.ge.s32.totalorder %v4610, 1
      %vm4615 = vcmp.ge.s32.totalorder %v4611, 1
      %vm4616 = vcmp.le.s32.totalorder %v4608, 4
      %vm4617 = vcmp.le.s32.totalorder %v4609, 4
      %vm4618 = vcmp.le.s32.totalorder %v4610, 4
      %vm4619 = vcmp.le.s32.totalorder %v4611, 4
      %vm4620 = vmand %vm4612, %vm4616
      %vm4621 = vmand %vm4613, %vm4617
      %vm4622 = vmand %vm4614, %vm4618
      %vm4623 = vmand %vm4615, %vm4619
      %v4624 = vld [vmem:[#allocation4] sm:$0xff]
      %v4625 = vld [vmem:[#allocation4 + $0x8] sm:$0xff]
      %v4626 = vld [vmem:[#allocation4 + $0x10] sm:$0xff]
      %v4627 = vld [vmem:[#allocation4 + $0x18] sm:$0xff]
      %v4628 = vpack.c.bf16 %v4624, %v4624
      %v4629 = vpack.c.bf16 %v4625, %v4625
      %v4630 = vpack.c.bf16 %v4626, %v4626
      %v4631 = vpack.c.bf16 %v4627, %v4627
      %v4632 = vld [vmem:[#allocation4 + $0x1] sm:$0xff]
      %v4633 = vld [vmem:[#allocation4 + $0x9] sm:$0xff]
      %v4634 = vld [vmem:[#allocation4 + $0x11] sm:$0xff]
      %v4635 = vld [vmem:[#allocation4 + $0x19] sm:$0xff]
      %v4636 = vpack.c.bf16 %v4632, %v4632
      %v4637 = vpack.c.bf16 %v4633, %v4633
      %v4638 = vpack.c.bf16 %v4634, %v4634
      %v4639 = vpack.c.bf16 %v4635, %v4635
      %v4640 = vld [vmem:[#allocation4 + $0x2] sm:$0xff]
      %v4641 = vld [vmem:[#allocation4 + $0xa] sm:$0xff]
      %v4642 = vld [vmem:[#allocation4 + $0x12] sm:$0xff]
      %v4643 = vld [vmem:[#allocation4 + $0x1a] sm:$0xff]
      %v4644 = vpack.c.bf16 %v4640, %v4640
      %v4645 = vpack.c.bf16 %v4641, %v4641
      %v4646 = vpack.c.bf16 %v4642, %v4642
      %v4647 = vpack.c.bf16 %v4643, %v4643
      %v4648 = vld [vmem:[#allocation4 + $0x20] sm:$0xff]
      %v4649 = vpack.c.bf16 %v4648, %v4648
      %v4650 = vld [vmem:[#allocation4 + $0x21] sm:$0xff]
      %v4651 = vpack.c.bf16 %v4650, %v4650
      %v4652 = vld [vmem:[#allocation4 + $0x22] sm:$0xff]
      %v4653 = vpack.c.bf16 %v4652, %v4652
      %v4654 = vld [vmem:[#allocation4 + $0x28] sm:$0xff]
      %v4655 = vpack.c.bf16 %v4654, %v4654
      %v4656 = vld [vmem:[#allocation4 + $0x29] sm:$0xff]
      %v4657 = vpack.c.bf16 %v4656, %v4656
      %v4658 = vld [vmem:[#allocation4 + $0x2a] sm:$0xff]
      %v4659 = vpack.c.bf16 %v4658, %v4658
      %v4664 = vunpack.c.l.b16 %v4628
      %v4665 = vunpack.c.l.b16 %v4629
      %v4666 = vunpack.c.l.b16 %v4630
      %v4667 = vunpack.c.l.b16 %v4631
      %v4668 = vpack.c.b16 %v4665, %v4664
      %v4669 = vpack.c.b16 %v4667, %v4666
      %v4674 = vunpack.c.l.b16 %v4636
      %v4675 = vunpack.c.l.b16 %v4637
      %v4676 = vunpack.c.l.b16 %v4638
      %v4677 = vunpack.c.l.b16 %v4639
      %v4678 = vpack.c.b16 %v4675, %v4674
      %v4679 = vpack.c.b16 %v4677, %v4676
      %4680 = vrot.lane.b32.xlu0 %v4678, 32
      %v4681 = vpop.permute.xlu0 %4680
      %4682 = vrot.lane.b32.xlu0 %v4679, 32
      %v4683 = vpop.permute.xlu0 %4682
      %v4688 = vunpack.c.l.b16 %v4644
      %v4689 = vunpack.c.l.b16 %v4645
      %v4690 = vunpack.c.l.b16 %v4646
      %v4691 = vunpack.c.l.b16 %v4647
      %v4692 = vpack.c.b16 %v4689, %v4688
      %v4693 = vpack.c.b16 %v4691, %v4690
      %4694 = vrot.lane.b32.xlu0 %v4692, 64
      %v4695 = vpop.permute.xlu0 %4694
      %4696 = vrot.lane.b32.xlu0 %v4693, 64
      %v4697 = vpop.permute.xlu0 %4696
      %v4699 = vunpack.c.l.b16 %v4649
      %v4700 = vpack.c.b16 %v4666, %v4665
      %v4701 = vpack.c.b16 %v4699, %v4667
      %4702 = vrot.lane.b32.xlu0 %v4700, 96
      %v4703 = vpop.permute.xlu0 %4702
      %4704 = vrot.lane.b32.xlu0 %v4701, 96
      %v4705 = vpop.permute.xlu0 %4704
      %v4707 = vunpack.c.l.b16 %v4651
      %v4708 = vpack.c.b16 %v4676, %v4675
      %v4709 = vpack.c.b16 %v4707, %v4677
      %v4711 = vunpack.c.l.b16 %v4653
      %v4712 = vpack.c.b16 %v4690, %v4689
      %v4713 = vpack.c.b16 %v4711, %v4691
      %4714 = vrot.lane.b32.xlu0 %v4712, 32
      %v4715 = vpop.permute.xlu0 %4714
      %4716 = vrot.lane.b32.xlu0 %v4713, 32
      %v4717 = vpop.permute.xlu0 %4716
      %v4719 = vunpack.c.l.b16 %v4655
      %v4720 = vpack.c.b16 %v4719, %v4699
      %4721 = vrot.lane.b32.xlu0 %v4669, 64
      %v4722 = vpop.permute.xlu0 %4721
      %4723 = vrot.lane.b32.xlu0 %v4720, 64
      %v4724 = vpop.permute.xlu0 %4723
      %v4726 = vunpack.c.l.b16 %v4657
      %v4727 = vpack.c.b16 %v4726, %v4707
      %4728 = vrot.lane.b32.xlu0 %v4679, 96
      %v4729 = vpop.permute.xlu0 %4728
      %4730 = vrot.lane.b32.xlu0 %v4727, 96
      %v4731 = vpop.permute.xlu0 %4730
      %v4733 = vunpack.c.l.b16 %v4659
      %v4734 = vpack.c.b16 %v4733, %v4711
      %v4737 = vsel %vm470, %v4668, %v4681
      %v4740 = vsel %vm470, %v4669, %v4683
      %v4742 = vsel %vm562, %v4737, %v4695
      %v4744 = vsel %vm562, %v4740, %v4697
      %v4746 = vsel %vm3306, %v4742, %v4703
      %v4749 = vsel %vm3306, %v4744, %v4705
      %v4753 = vsel %vm470, %v4708, %v4715
      %v4756 = vsel %vm470, %v4709, %v4717
      %v4758 = vsel %vm562, %v4753, %v4722
      %v4760 = vsel %vm562, %v4756, %v4724
      %v4762 = vsel %vm3306, %v4758, %v4729
      %v4765 = vsel %vm3306, %v4760, %v4731
      %v4767 = vld [vmem:[%s5] sm:$0xf]
      %v4768 = vld [vmem:[%s5 + $0x4] sm:$0xf]
      %v4769 = vld [vmem:[%s5 + $0x8] sm:$0xf]
      %v4770 = vld [vmem:[%s5 + $0xc] sm:$0xf]
      %v4771 = vld [vmem:[%s5 + $0x10] sm:$0xf]
      %v4772 = vld [vmem:[%s5 + $0x14] sm:$0xf]
      %v4773 = vld [vmem:[%s5 + $0x18] sm:$0xf]
      %v4774 = vld [vmem:[%s5 + $0x1c] sm:$0xf]
      %v4775 = vld [vmem:[%s5 + $0x20] sm:$0xf]
      %v4776 = vld [vmem:[%s5 + $0x24] sm:$0xf]
      %v4777 = vld [vmem:[%s5 + $0x28] sm:$0xf]
      %v4778 = vld [vmem:[%s5 + $0x2c] sm:$0xf]
      %v4779 = vld [vmem:[%s5 + $0x30] sm:$0xf]
      %v4780 = vld [vmem:[%s5 + $0x34] sm:$0xf]
      %v4781 = vld [vmem:[%s5 + $0x38] sm:$0xf]
      %v4782 = vld [vmem:[%s5 + $0x3c] sm:$0xf]
      %v4783 = vld [vmem:[%s5 + $0x40] sm:$0xf]
      %v4784 = vld [vmem:[%s5 + $0x44] sm:$0xf]
      %v4785 = vld [vmem:[%s5 + $0x48] sm:$0xf]
      %v4786 = vld [vmem:[%s5 + $0x4c] sm:$0xf]
      %v4787 = vld [vmem:[%s5 + $0x50] sm:$0xf]
      %v4788 = vld [vmem:[%s5 + $0x54] sm:$0xf]
      %v4789 = vld [vmem:[%s5 + $0x58] sm:$0xf]
      %v4790 = vld [vmem:[%s5 + $0x5c] sm:$0xf]
      %v4791 = vld [vmem:[%s5 + $0x60] sm:$0xf]
      %v4792 = vld [vmem:[%s5 + $0x64] sm:$0xf]
      %v4793 = vld [vmem:[%s5 + $0x68] sm:$0xf]
      %v4794 = vld [vmem:[%s5 + $0x6c] sm:$0xf]
      %v4795 = vld [vmem:[%s5 + $0x70] sm:$0xf]
      %v4796 = vld [vmem:[%s5 + $0x74] sm:$0xf]
      %v4797 = vld [vmem:[%s5 + $0x78] sm:$0xf]
      %v4798 = vld [vmem:[%s5 + $0x7c] sm:$0xf]
      %v4799 = vld [vmem:[%s5 + $0x80] sm:$0xf]
      %v4800 = vld [vmem:[%s5 + $0x84] sm:$0xf]
      %v4801 = vld [vmem:[%s5 + $0x88] sm:$0xf]
      %v4802 = vld [vmem:[%s5 + $0x8c] sm:$0xf]
      %v4839 = vunpack.c.l.b16 %v4767
      %v4840 = vunpack.c.l.b16 %v4768
      %v4841 = vunpack.c.l.b16 %v4769
      %v4842 = vunpack.c.l.b16 %v4770
      %v4843 = vunpack.c.l.b16 %v4771
      %v4844 = vunpack.c.l.b16 %v4772
      %v4845 = vunpack.c.l.b16 %v4773
      %v4846 = vunpack.c.l.b16 %v4774
      %v4847 = vunpack.c.l.b16 %v4775
      %v4848 = vunpack.c.l.b16 %v4776
      %v4849 = vunpack.c.l.b16 %v4777
      %v4850 = vunpack.c.l.b16 %v4778
      %v4851 = vunpack.c.l.b16 %v4779
      %v4852 = vunpack.c.l.b16 %v4780
      %v4853 = vunpack.c.l.b16 %v4781
      %v4854 = vunpack.c.l.b16 %v4782
      %v4855 = vunpack.c.l.b16 %v4783
      %v4856 = vunpack.c.l.b16 %v4784
      %v4857 = vunpack.c.l.b16 %v4785
      %v4858 = vunpack.c.l.b16 %v4786
      %v4859 = vunpack.c.l.b16 %v4787
      %v4860 = vunpack.c.l.b16 %v4788
      %v4861 = vunpack.c.l.b16 %v4789
      %v4862 = vunpack.c.l.b16 %v4790
      %v4863 = vunpack.c.l.b16 %v4791
      %v4864 = vunpack.c.l.b16 %v4792
      %v4865 = vunpack.c.l.b16 %v4793
      %v4866 = vunpack.c.l.b16 %v4794
      %v4867 = vunpack.c.l.b16 %v4795
      %v4868 = vunpack.c.l.b16 %v4796
      %v4869 = vunpack.c.l.b16 %v4797
      %v4870 = vunpack.c.l.b16 %v4798
      %v4871 = vunpack.c.l.b16 %v4799
      %v4872 = vunpack.c.l.b16 %v4800
      %v4873 = vunpack.c.l.b16 %v4801
      %v4874 = vunpack.c.l.b16 %v4802
      %v4875 = vpack.c.b16 %v4840, %v4839
      %v4876 = vpack.c.b16 %v4842, %v4841
      %v4877 = vpack.c.b16 %v4844, %v4843
      %v4878 = vpack.c.b16 %v4846, %v4845
      %v4879 = vpack.c.b16 %v4848, %v4847
      %v4880 = vpack.c.b16 %v4850, %v4849
      %v4881 = vpack.c.b16 %v4852, %v4851
      %v4882 = vpack.c.b16 %v4854, %v4853
      %v4883 = vpack.c.b16 %v4856, %v4855
      %v4884 = vpack.c.b16 %v4858, %v4857
      %v4885 = vpack.c.b16 %v4860, %v4859
      %v4886 = vpack.c.b16 %v4862, %v4861
      %v4887 = vpack.c.b16 %v4864, %v4863
      %v4888 = vpack.c.b16 %v4866, %v4865
      %v4889 = vpack.c.b16 %v4868, %v4867
      %v4890 = vpack.c.b16 %v4870, %v4869
      %v4891 = vpack.c.b16 %v4872, %v4871
      %v4892 = vpack.c.b16 %v4874, %v4873
      %v4912 = vsel %vm470, %v4693, 0
      %v4915 = vsel %vm470, %v4734, 0
      %4917 = vmatpush.bf16.msra.mxu0 %v4882
      %4918 = vmatpush.bf16.msra.mxu0 %v4881
      %4919 = vmatpush.bf16.msra.mxu0 %v4880
      %4920 = vmatpush.bf16.msra.mxu0 %v4879
      %4921 = vmatpush.bf16.msra.mxu0 %v4878
      %4922 = vmatpush.bf16.msra.mxu0 %v4877
      %4923 = vmatpush.bf16.msra.mxu0 %v4876
      %4924 = vmatpush.bf16.msra.mxu0 %v4875
      %4925 = vmatmul.bf16.gmra.mxu0 %v4746
      %v4926 = vpop.f32.mrf.mxu0
      %v4927 = vadd.f32 0.0, %v4926
      %v4928 = vpop.f32.mrf.mxu0
      %v4929 = vadd.f32 0.0, %v4928
      %4930 = vmatmul.bf16.gmra.mxu0 %v4749
      %v4931 = vpop.f32.mrf.mxu0
      %v4932 = vadd.f32 0.0, %v4931
      %v4933 = vpop.f32.mrf.mxu0
      %v4934 = vadd.f32 0.0, %v4933
      %4935 = vdwg.mxu0
      %4936 = vmatpush.bf16.msra.mxu0 %v4890
      %4937 = vmatpush.bf16.msra.mxu0 %v4889
      %4938 = vmatpush.bf16.msra.mxu0 %v4888
      %4939 = vmatpush.bf16.msra.mxu0 %v4887
      %4940 = vmatpush.bf16.msra.mxu0 %v4886
      %4941 = vmatpush.bf16.msra.mxu0 %v4885
      %4942 = vmatpush.bf16.msra.mxu0 %v4884
      %4943 = vmatpush.bf16.msra.mxu0 %v4883
      %4944 = vmatmul.bf16.gmra.mxu0 %v4762
      %v4945 = vpop.f32.mrf.mxu0
      %v4946 = vadd.f32 %v4927, %v4945
      %v4947 = vpop.f32.mrf.mxu0
      %v4948 = vadd.f32 %v4929, %v4947
      %4949 = vmatmul.bf16.gmra.mxu0 %v4765
      %v4950 = vpop.f32.mrf.mxu0
      %v4951 = vadd.f32 %v4932, %v4950
      %v4952 = vpop.f32.mrf.mxu0
      %v4953 = vadd.f32 %v4934, %v4952
      %4954 = vdwg.mxu0
      %4955 = vmatpush.bf16.msra.mxu0 0
      %4956 = vmatpush.bf16.msra.mxu0 0
      %4957 = vmatpush.bf16.msra.mxu0 0
      %4958 = vmatpush.bf16.msra.mxu0 0
      %4959 = vmatpush.bf16.msra.mxu0 0
      %4960 = vmatpush.bf16.msra.mxu0 0
      %4961 = vmatpush.bf16.msra.mxu0 %v4892
      %4962 = vmatpush.bf16.msra.mxu0 %v4891
      %4963 = vmatmul.bf16.gmra.mxu0 %v4912
      %v4964 = vpop.f32.mrf.mxu0
      %v4965 = vadd.f32 %v4946, %v4964
      %v4966 = vpop.f32.mrf.mxu0
      %v4967 = vadd.f32 %v4948, %v4966
      %4968 = vmatmul.bf16.gmra.mxu0 %v4915
      %v4969 = vpop.f32.mrf.mxu0
      %v4970 = vadd.f32 %v4951, %v4969
      %v4971 = vpop.f32.mrf.mxu0
      %v4972 = vadd.f32 %v4953, %v4971
      %4973 = vdwg.mxu0
      %v4974 = vmax.f32 %v4965, 0.0
      %v4975 = vmax.f32 %v4967, 0.0
      %v4976 = vmax.f32 %v4970, 0.0
      %v4977 = vmax.f32 %v4972, 0.0
      %v4978 = vsel %vm4620, 1, 0
      %v4979 = vsel %vm4621, 1, 0
      %v4980 = vsel %vm4622, 1, 0
      %v4981 = vsel %vm4623, 1, 0
      %vm4982 = vcmp.eq.s32.totalorder %v4978, 1
      %vm4983 = vcmp.eq.s32.totalorder %v4979, 1
      %vm4984 = vcmp.eq.s32.totalorder %v4980, 1
      %vm4985 = vcmp.eq.s32.totalorder %v4981, 1
      %v4986 = vsel %vm4982, %v4974, 0.0
      %v4987 = vsel %vm4983, %v4975, 0.0
      %v4988 = vsel %vm4984, %v4976, 0.0
      %v4989 = vsel %vm4985, %v4977, 0.0
      %4990 = vst.msk [vmem:[#allocation5 + $0x9] sm:$0xff] %vm562, %v4986
      %4991 = vst.msk [vmem:[#allocation5 + $0x11] sm:$0xff] %vm562, %v4987
      %4992 = vst.msk [vmem:[#allocation5 + $0x19] sm:$0xff] %vm562, %v4988
      %4993 = vst.msk [vmem:[#allocation5 + $0x21] sm:$0xff] %vm562, %v4989
      %v4994 = vld [vmem:[#allocation5] sm:$0xff]
      %v4995 = vld [vmem:[#allocation5 + $0x8] sm:$0xff]
      %v4996 = vld [vmem:[#allocation5 + $0x10] sm:$0xff]
      %v4997 = vld [vmem:[#allocation5 + $0x18] sm:$0xff]
      %v4998 = vpack.c.bf16 %v4994, %v4994
      %v4999 = vpack.c.bf16 %v4995, %v4995
      %v5000 = vpack.c.bf16 %v4996, %v4996
      %v5001 = vpack.c.bf16 %v4997, %v4997
      %v5002 = vld [vmem:[#allocation5 + $0x1] sm:$0xff]
      %v5003 = vld [vmem:[#allocation5 + $0x9] sm:$0xff]
      %v5004 = vld [vmem:[#allocation5 + $0x11] sm:$0xff]
      %v5005 = vld [vmem:[#allocation5 + $0x19] sm:$0xff]
      %v5006 = vpack.c.bf16 %v5002, %v5002
      %v5007 = vpack.c.bf16 %v5003, %v5003
      %v5008 = vpack.c.bf16 %v5004, %v5004
      %v5009 = vpack.c.bf16 %v5005, %v5005
      %v5010 = vld [vmem:[#allocation5 + $0x2] sm:$0xff]
      %v5011 = vld [vmem:[#allocation5 + $0xa] sm:$0xff]
      %v5012 = vld [vmem:[#allocation5 + $0x12] sm:$0xff]
      %v5013 = vld [vmem:[#allocation5 + $0x1a] sm:$0xff]
      %v5014 = vpack.c.bf16 %v5010, %v5010
      %v5015 = vpack.c.bf16 %v5011, %v5011
      %v5016 = vpack.c.bf16 %v5012, %v5012
      %v5017 = vpack.c.bf16 %v5013, %v5013
      %v5018 = vld [vmem:[#allocation5 + $0x20] sm:$0xff]
      %v5019 = vpack.c.bf16 %v5018, %v5018
      %v5020 = vld [vmem:[#allocation5 + $0x21] sm:$0xff]
      %v5021 = vpack.c.bf16 %v5020, %v5020
      %v5022 = vld [vmem:[#allocation5 + $0x22] sm:$0xff]
      %v5023 = vpack.c.bf16 %v5022, %v5022
      %v5024 = vld [vmem:[#allocation5 + $0x28] sm:$0xff]
      %v5025 = vpack.c.bf16 %v5024, %v5024
      %v5026 = vld [vmem:[#allocation5 + $0x29] sm:$0xff]
      %v5027 = vpack.c.bf16 %v5026, %v5026
      %v5028 = vld [vmem:[#allocation5 + $0x2a] sm:$0xff]
      %v5029 = vpack.c.bf16 %v5028, %v5028
      %v5034 = vunpack.c.l.b16 %v4998
      %v5035 = vunpack.c.l.b16 %v4999
      %v5036 = vunpack.c.l.b16 %v5000
      %v5037 = vunpack.c.l.b16 %v5001
      %v5038 = vpack.c.b16 %v5035, %v5034
      %v5039 = vpack.c.b16 %v5037, %v5036
      %v5044 = vunpack.c.l.b16 %v5006
      %v5045 = vunpack.c.l.b16 %v5007
      %v5046 = vunpack.c.l.b16 %v5008
      %v5047 = vunpack.c.l.b16 %v5009
      %v5048 = vpack.c.b16 %v5045, %v5044
      %v5049 = vpack.c.b16 %v5047, %v5046
      %5050 = vrot.lane.b32.xlu0 %v5048, 64
      %v5051 = vpop.permute.xlu0 %5050
      %5052 = vrot.lane.b32.xlu0 %v5049, 64
      %v5053 = vpop.permute.xlu0 %5052
      %v5058 = vunpack.c.l.b16 %v5014
      %v5059 = vunpack.c.l.b16 %v5015
      %v5060 = vunpack.c.l.b16 %v5016
      %v5061 = vunpack.c.l.b16 %v5017
      %v5062 = vpack.c.b16 %v5059, %v5058
      %v5063 = vpack.c.b16 %v5061, %v5060
      %v5065 = vunpack.c.l.b16 %v5019
      %v5066 = vpack.c.b16 %v5036, %v5035
      %v5067 = vpack.c.b16 %v5065, %v5037
      %5068 = vrot.lane.b32.xlu0 %v5066, 64
      %v5069 = vpop.permute.xlu0 %5068
      %5070 = vrot.lane.b32.xlu0 %v5067, 64
      %v5071 = vpop.permute.xlu0 %5070
      %v5073 = vunpack.c.l.b16 %v5021
      %v5074 = vpack.c.b16 %v5046, %v5045
      %v5075 = vpack.c.b16 %v5073, %v5047
      %v5077 = vunpack.c.l.b16 %v5023
      %v5078 = vpack.c.b16 %v5060, %v5059
      %v5079 = vpack.c.b16 %v5077, %v5061
      %5080 = vrot.lane.b32.xlu0 %v5078, 64
      %v5081 = vpop.permute.xlu0 %5080
      %5082 = vrot.lane.b32.xlu0 %v5079, 64
      %v5083 = vpop.permute.xlu0 %5082
      %v5085 = vunpack.c.l.b16 %v5025
      %v5086 = vpack.c.b16 %v5085, %v5065
      %v5088 = vunpack.c.l.b16 %v5027
      %v5089 = vpack.c.b16 %v5088, %v5073
      %5090 = vrot.lane.b32.xlu0 %v5089, 64
      %v5091 = vpop.permute.xlu0 %5090
      %v5093 = vunpack.c.l.b16 %v5029
      %v5094 = vpack.c.b16 %v5093, %v5077
      %v5097 = vsel %vm562, %v5038, %v5051
      %v5101 = vsel %vm562, %v5039, %v5053
      %v5105 = vsel %vm562, %v5062, %v5069
      %v5109 = vsel %vm562, %v5063, %v5071
      %v5113 = vsel %vm562, %v5074, %v5081
      %v5117 = vsel %vm562, %v5075, %v5083
      %v5121 = vsel %vm562, %v5086, %v5091
      %v5123 = vld [vmem:[%s6] sm:$0xf]
      %v5124 = vld [vmem:[%s6 + $0x4] sm:$0xf]
      %v5125 = vld [vmem:[%s6 + $0x8] sm:$0xf]
      %v5126 = vld [vmem:[%s6 + $0xc] sm:$0xf]
      %v5127 = vld [vmem:[%s6 + $0x10] sm:$0xf]
      %v5128 = vld [vmem:[%s6 + $0x14] sm:$0xf]
      %v5129 = vld [vmem:[%s6 + $0x18] sm:$0xf]
      %v5130 = vld [vmem:[%s6 + $0x1c] sm:$0xf]
      %v5131 = vld [vmem:[%s6 + $0x20] sm:$0xf]
      %v5132 = vld [vmem:[%s6 + $0x24] sm:$0xf]
      %v5133 = vld [vmem:[%s6 + $0x28] sm:$0xf]
      %v5134 = vld [vmem:[%s6 + $0x2c] sm:$0xf]
      %v5135 = vld [vmem:[%s6 + $0x30] sm:$0xf]
      %v5136 = vld [vmem:[%s6 + $0x34] sm:$0xf]
      %v5137 = vld [vmem:[%s6 + $0x38] sm:$0xf]
      %v5138 = vld [vmem:[%s6 + $0x3c] sm:$0xf]
      %v5139 = vld [vmem:[%s6 + $0x40] sm:$0xf]
      %v5140 = vld [vmem:[%s6 + $0x44] sm:$0xf]
      %v5141 = vld [vmem:[%s6 + $0x48] sm:$0xf]
      %v5142 = vld [vmem:[%s6 + $0x4c] sm:$0xf]
      %v5143 = vld [vmem:[%s6 + $0x50] sm:$0xf]
      %v5144 = vld [vmem:[%s6 + $0x54] sm:$0xf]
      %v5145 = vld [vmem:[%s6 + $0x58] sm:$0xf]
      %v5146 = vld [vmem:[%s6 + $0x5c] sm:$0xf]
      %v5147 = vld [vmem:[%s6 + $0x60] sm:$0xf]
      %v5148 = vld [vmem:[%s6 + $0x64] sm:$0xf]
      %v5149 = vld [vmem:[%s6 + $0x68] sm:$0xf]
      %v5150 = vld [vmem:[%s6 + $0x6c] sm:$0xf]
      %v5151 = vld [vmem:[%s6 + $0x70] sm:$0xf]
      %v5152 = vld [vmem:[%s6 + $0x74] sm:$0xf]
      %v5153 = vld [vmem:[%s6 + $0x78] sm:$0xf]
      %v5154 = vld [vmem:[%s6 + $0x7c] sm:$0xf]
      %v5155 = vld [vmem:[%s6 + $0x80] sm:$0xf]
      %v5156 = vld [vmem:[%s6 + $0x84] sm:$0xf]
      %v5157 = vld [vmem:[%s6 + $0x88] sm:$0xf]
      %v5158 = vld [vmem:[%s6 + $0x8c] sm:$0xf]
      %v5159 = vld [vmem:[%s6 + $0x90] sm:$0xf]
      %v5160 = vld [vmem:[%s6 + $0x94] sm:$0xf]
      %v5161 = vld [vmem:[%s6 + $0x98] sm:$0xf]
      %v5162 = vld [vmem:[%s6 + $0x9c] sm:$0xf]
      %v5163 = vld [vmem:[%s6 + $0xa0] sm:$0xf]
      %v5164 = vld [vmem:[%s6 + $0xa4] sm:$0xf]
      %v5165 = vld [vmem:[%s6 + $0xa8] sm:$0xf]
      %v5166 = vld [vmem:[%s6 + $0xac] sm:$0xf]
      %v5167 = vld [vmem:[%s6 + $0xb0] sm:$0xf]
      %v5168 = vld [vmem:[%s6 + $0xb4] sm:$0xf]
      %v5169 = vld [vmem:[%s6 + $0xb8] sm:$0xf]
      %v5170 = vld [vmem:[%s6 + $0xbc] sm:$0xf]
      %v5171 = vld [vmem:[%s6 + $0xc0] sm:$0xf]
      %v5172 = vld [vmem:[%s6 + $0xc4] sm:$0xf]
      %v5173 = vld [vmem:[%s6 + $0xc8] sm:$0xf]
      %v5174 = vld [vmem:[%s6 + $0xcc] sm:$0xf]
      %v5175 = vld [vmem:[%s6 + $0xd0] sm:$0xf]
      %v5176 = vld [vmem:[%s6 + $0xd4] sm:$0xf]
      %v5177 = vld [vmem:[%s6 + $0xd8] sm:$0xf]
      %v5178 = vld [vmem:[%s6 + $0xdc] sm:$0xf]
      %v5179 = vld [vmem:[%s6 + $0xe0] sm:$0xf]
      %v5180 = vld [vmem:[%s6 + $0xe4] sm:$0xf]
      %v5181 = vld [vmem:[%s6 + $0xe8] sm:$0xf]
      %v5182 = vld [vmem:[%s6 + $0xec] sm:$0xf]
      %v5183 = vld [vmem:[%s6 + $0xf0] sm:$0xf]
      %v5184 = vld [vmem:[%s6 + $0xf4] sm:$0xf]
      %v5185 = vld [vmem:[%s6 + $0xf8] sm:$0xf]
      %v5186 = vld [vmem:[%s6 + $0xfc] sm:$0xf]
      %v5187 = vld [vmem:[%s6 + $0x100] sm:$0xf]
      %v5188 = vld [vmem:[%s6 + $0x104] sm:$0xf]
      %v5189 = vld [vmem:[%s6 + $0x108] sm:$0xf]
      %v5190 = vld [vmem:[%s6 + $0x10c] sm:$0xf]
      %v5191 = vld [vmem:[%s6 + $0x110] sm:$0xf]
      %v5192 = vld [vmem:[%s6 + $0x114] sm:$0xf]
      %v5193 = vld [vmem:[%s6 + $0x118] sm:$0xf]
      %v5194 = vld [vmem:[%s6 + $0x11c] sm:$0xf]
      %v5267 = vunpack.c.l.b16 %v5123
      %v5268 = vunpack.c.l.b16 %v5124
      %v5269 = vunpack.c.l.b16 %v5125
      %v5270 = vunpack.c.l.b16 %v5126
      %v5271 = vunpack.c.l.b16 %v5127
      %v5272 = vunpack.c.l.b16 %v5128
      %v5273 = vunpack.c.l.b16 %v5129
      %v5274 = vunpack.c.l.b16 %v5130
      %v5275 = vunpack.c.l.b16 %v5131
      %v5276 = vunpack.c.l.b16 %v5132
      %v5277 = vunpack.c.l.b16 %v5133
      %v5278 = vunpack.c.l.b16 %v5134
      %v5279 = vunpack.c.l.b16 %v5135
      %v5280 = vunpack.c.l.b16 %v5136
      %v5281 = vunpack.c.l.b16 %v5137
      %v5282 = vunpack.c.l.b16 %v5138
      %v5283 = vunpack.c.l.b16 %v5139
      %v5284 = vunpack.c.l.b16 %v5140
      %v5285 = vunpack.c.l.b16 %v5141
      %v5286 = vunpack.c.l.b16 %v5142
      %v5287 = vunpack.c.l.b16 %v5143
      %v5288 = vunpack.c.l.b16 %v5144
      %v5289 = vunpack.c.l.b16 %v5145
      %v5290 = vunpack.c.l.b16 %v5146
      %v5291 = vunpack.c.l.b16 %v5147
      %v5292 = vunpack.c.l.b16 %v5148
      %v5293 = vunpack.c.l.b16 %v5149
      %v5294 = vunpack.c.l.b16 %v5150
      %v5295 = vunpack.c.l.b16 %v5151
      %v5296 = vunpack.c.l.b16 %v5152
      %v5297 = vunpack.c.l.b16 %v5153
      %v5298 = vunpack.c.l.b16 %v5154
      %v5299 = vunpack.c.l.b16 %v5155
      %v5300 = vunpack.c.l.b16 %v5156
      %v5301 = vunpack.c.l.b16 %v5157
      %v5302 = vunpack.c.l.b16 %v5158
      %v5303 = vunpack.c.l.b16 %v5159
      %v5304 = vunpack.c.l.b16 %v5160
      %v5305 = vunpack.c.l.b16 %v5161
      %v5306 = vunpack.c.l.b16 %v5162
      %v5307 = vunpack.c.l.b16 %v5163
      %v5308 = vunpack.c.l.b16 %v5164
      %v5309 = vunpack.c.l.b16 %v5165
      %v5310 = vunpack.c.l.b16 %v5166
      %v5311 = vunpack.c.l.b16 %v5167
      %v5312 = vunpack.c.l.b16 %v5168
      %v5313 = vunpack.c.l.b16 %v5169
      %v5314 = vunpack.c.l.b16 %v5170
      %v5315 = vunpack.c.l.b16 %v5171
      %v5316 = vunpack.c.l.b16 %v5172
      %v5317 = vunpack.c.l.b16 %v5173
      %v5318 = vunpack.c.l.b16 %v5174
      %v5319 = vunpack.c.l.b16 %v5175
      %v5320 = vunpack.c.l.b16 %v5176
      %v5321 = vunpack.c.l.b16 %v5177
      %v5322 = vunpack.c.l.b16 %v5178
      %v5323 = vunpack.c.l.b16 %v5179
      %v5324 = vunpack.c.l.b16 %v5180
      %v5325 = vunpack.c.l.b16 %v5181
      %v5326 = vunpack.c.l.b16 %v5182
      %v5327 = vunpack.c.l.b16 %v5183
      %v5328 = vunpack.c.l.b16 %v5184
      %v5329 = vunpack.c.l.b16 %v5185
      %v5330 = vunpack.c.l.b16 %v5186
      %v5331 = vunpack.c.l.b16 %v5187
      %v5332 = vunpack.c.l.b16 %v5188
      %v5333 = vunpack.c.l.b16 %v5189
      %v5334 = vunpack.c.l.b16 %v5190
      %v5335 = vunpack.c.l.b16 %v5191
      %v5336 = vunpack.c.l.b16 %v5192
      %v5337 = vunpack.c.l.b16 %v5193
      %v5338 = vunpack.c.l.b16 %v5194
      %v5339 = vpack.c.b16 %v5268, %v5267
      %v5340 = vpack.c.b16 %v5270, %v5269
      %v5341 = vpack.c.b16 %v5272, %v5271
      %v5342 = vpack.c.b16 %v5274, %v5273
      %v5343 = vpack.c.b16 %v5276, %v5275
      %v5344 = vpack.c.b16 %v5278, %v5277
      %v5345 = vpack.c.b16 %v5280, %v5279
      %v5346 = vpack.c.b16 %v5282, %v5281
      %v5347 = vpack.c.b16 %v5284, %v5283
      %v5348 = vpack.c.b16 %v5286, %v5285
      %v5349 = vpack.c.b16 %v5288, %v5287
      %v5350 = vpack.c.b16 %v5290, %v5289
      %v5351 = vpack.c.b16 %v5292, %v5291
      %v5352 = vpack.c.b16 %v5294, %v5293
      %v5353 = vpack.c.b16 %v5296, %v5295
      %v5354 = vpack.c.b16 %v5298, %v5297
      %v5355 = vpack.c.b16 %v5300, %v5299
      %v5356 = vpack.c.b16 %v5302, %v5301
      %v5357 = vpack.c.b16 %v5304, %v5303
      %v5358 = vpack.c.b16 %v5306, %v5305
      %v5359 = vpack.c.b16 %v5308, %v5307
      %v5360 = vpack.c.b16 %v5310, %v5309
      %v5361 = vpack.c.b16 %v5312, %v5311
      %v5362 = vpack.c.b16 %v5314, %v5313
      %v5363 = vpack.c.b16 %v5316, %v5315
      %v5364 = vpack.c.b16 %v5318, %v5317
      %v5365 = vpack.c.b16 %v5320, %v5319
      %v5366 = vpack.c.b16 %v5322, %v5321
      %v5367 = vpack.c.b16 %v5324, %v5323
      %v5368 = vpack.c.b16 %v5326, %v5325
      %v5369 = vpack.c.b16 %v5328, %v5327
      %v5370 = vpack.c.b16 %v5330, %v5329
      %v5371 = vpack.c.b16 %v5332, %v5331
      %v5372 = vpack.c.b16 %v5334, %v5333
      %v5373 = vpack.c.b16 %v5336, %v5335
      %v5374 = vpack.c.b16 %v5338, %v5337
      %5415 = vrot.lane.b32.xlu0 %v4965, 64
      %v5416 = vpop.permute.xlu0 %5415
      %5417 = vrot.lane.b32.xlu0 %v4967, 64
      %v5418 = vpop.permute.xlu0 %5417
      %5419 = vrot.lane.b32.xlu0 %v4970, 64
      %v5420 = vpop.permute.xlu0 %5419
      %5421 = vrot.lane.b32.xlu0 %v4972, 64
      %v5422 = vpop.permute.xlu0 %5421
      %v5427 = vsel %vm562, %v5063, 0
      %v5430 = vsel %vm562, %v5094, 0
      %5432 = vmatpush.bf16.msra.mxu0 %v5346
      %5433 = vmatpush.bf16.msra.mxu0 %v5345
      %5434 = vmatpush.bf16.msra.mxu0 %v5344
      %5435 = vmatpush.bf16.msra.mxu0 %v5343
      %5436 = vmatpush.bf16.msra.mxu0 %v5342
      %5437 = vmatpush.bf16.msra.mxu0 %v5341
      %5438 = vmatpush.bf16.msra.mxu0 %v5340
      %5439 = vmatpush.bf16.msra.mxu0 %v5339
      %5440 = vmatmul.bf16.gmra.mxu0 %v5097
      %v5441 = vpop.f32.mrf.mxu0
      %v5442 = vadd.f32 %v5416, %v5441
      %v5443 = vpop.f32.mrf.mxu0
      %v5444 = vadd.f32 %v5418, %v5443
      %5445 = vmatmul.bf16.gmra.mxu0 %v5101
      %v5446 = vpop.f32.mrf.mxu0
      %v5447 = vadd.f32 %v5420, %v5446
      %v5448 = vpop.f32.mrf.mxu0
      %v5449 = vadd.f32 %v5422, %v5448
      %5450 = vdwg.mxu0
      %5451 = vmatpush.bf16.msra.mxu0 %v5354
      %5452 = vmatpush.bf16.msra.mxu0 %v5353
      %5453 = vmatpush.bf16.msra.mxu0 %v5352
      %5454 = vmatpush.bf16.msra.mxu0 %v5351
      %5455 = vmatpush.bf16.msra.mxu0 %v5350
      %5456 = vmatpush.bf16.msra.mxu0 %v5349
      %5457 = vmatpush.bf16.msra.mxu0 %v5348
      %5458 = vmatpush.bf16.msra.mxu0 %v5347
      %5459 = vmatmul.bf16.gmra.mxu0 %v5105
      %v5460 = vpop.f32.mrf.mxu0
      %v5461 = vadd.f32 %v5442, %v5460
      %v5462 = vpop.f32.mrf.mxu0
      %v5463 = vadd.f32 %v5444, %v5462
      %5464 = vmatmul.bf16.gmra.mxu0 %v5109
      %v5465 = vpop.f32.mrf.mxu0
      %v5466 = vadd.f32 %v5447, %v5465
      %v5467 = vpop.f32.mrf.mxu0
      %v5468 = vadd.f32 %v5449, %v5467
      %5469 = vdwg.mxu0
      %5470 = vmatpush.bf16.msra.mxu0 %v5362
      %5471 = vmatpush.bf16.msra.mxu0 %v5361
      %5472 = vmatpush.bf16.msra.mxu0 %v5360
      %5473 = vmatpush.bf16.msra.mxu0 %v5359
      %5474 = vmatpush.bf16.msra.mxu0 %v5358
      %5475 = vmatpush.bf16.msra.mxu0 %v5357
      %5476 = vmatpush.bf16.msra.mxu0 %v5356
      %5477 = vmatpush.bf16.msra.mxu0 %v5355
      %5478 = vmatmul.bf16.gmra.mxu0 %v5113
      %v5479 = vpop.f32.mrf.mxu0
      %v5480 = vadd.f32 %v5461, %v5479
      %v5481 = vpop.f32.mrf.mxu0
      %v5482 = vadd.f32 %v5463, %v5481
      %5483 = vmatmul.bf16.gmra.mxu0 %v5117
      %v5484 = vpop.f32.mrf.mxu0
      %v5485 = vadd.f32 %v5466, %v5484
      %v5486 = vpop.f32.mrf.mxu0
      %v5487 = vadd.f32 %v5468, %v5486
      %5488 = vdwg.mxu0
      %5489 = vmatpush.bf16.msra.mxu0 %v5370
      %5490 = vmatpush.bf16.msra.mxu0 %v5369
      %5491 = vmatpush.bf16.msra.mxu0 %v5368
      %5492 = vmatpush.bf16.msra.mxu0 %v5367
      %5493 = vmatpush.bf16.msra.mxu0 %v5366
      %5494 = vmatpush.bf16.msra.mxu0 %v5365
      %5495 = vmatpush.bf16.msra.mxu0 %v5364
      %5496 = vmatpush.bf16.msra.mxu0 %v5363
      %5497 = vmatmul.bf16.gmra.mxu0 %v5101
      %v5498 = vpop.f32.mrf.mxu0
      %v5499 = vadd.f32 %v5480, %v5498
      %v5500 = vpop.f32.mrf.mxu0
      %v5501 = vadd.f32 %v5482, %v5500
      %5502 = vmatmul.bf16.gmra.mxu0 %v5121
      %v5503 = vpop.f32.mrf.mxu0
      %v5504 = vadd.f32 %v5485, %v5503
      %v5505 = vpop.f32.mrf.mxu0
      %v5506 = vadd.f32 %v5487, %v5505
      %5507 = vdwg.mxu0
      %5508 = vmatpush.bf16.msra.mxu0 0
      %5509 = vmatpush.bf16.msra.mxu0 0
      %5510 = vmatpush.bf16.msra.mxu0 0
      %5511 = vmatpush.bf16.msra.mxu0 0
      %5512 = vmatpush.bf16.msra.mxu0 %v5374
      %5513 = vmatpush.bf16.msra.mxu0 %v5373
      %5514 = vmatpush.bf16.msra.mxu0 %v5372
      %5515 = vmatpush.bf16.msra.mxu0 %v5371
      %5516 = vmatmul.bf16.gmra.mxu0 %v5427
      %v5517 = vpop.f32.mrf.mxu0
      %v5518 = vadd.f32 %v5499, %v5517
      %v5519 = vpop.f32.mrf.mxu0
      %v5520 = vadd.f32 %v5501, %v5519
      %5521 = vmatmul.bf16.gmra.mxu0 %v5430
      %v5522 = vpop.f32.mrf.mxu0
      %v5523 = vadd.f32 %v5504, %v5522
      %v5524 = vpop.f32.mrf.mxu0
      %v5525 = vadd.f32 %v5506, %v5524
      %5526 = vdwg.mxu0
      %v5527 = vmax.f32 %v5518, 0.0
      %v5528 = vmax.f32 %v5520, 0.0
      %v5529 = vmax.f32 %v5523, 0.0
      %v5530 = vmax.f32 %v5525, 0.0
      %v5531 = vsel %vm4982, %v5527, 0.0
      %v5532 = vsel %vm4983, %v5528, 0.0
      %v5533 = vsel %vm4984, %v5529, 0.0
      %v5534 = vsel %vm4985, %v5530, 0.0
      %5535 = vst.msk [vmem:[#allocation6 + $0x9] sm:$0xff] %vm562, %v5531
      %5536 = vst.msk [vmem:[#allocation6 + $0x11] sm:$0xff] %vm562, %v5532
      %5537 = vst.msk [vmem:[#allocation6 + $0x19] sm:$0xff] %vm562, %v5533
      %5538 = vst.msk [vmem:[#allocation6 + $0x21] sm:$0xff] %vm562, %v5534
      %v5539 = vld [vmem:[#allocation6] sm:$0xff]
      %v5540 = vld [vmem:[#allocation6 + $0x8] sm:$0xff]
      %v5541 = vld [vmem:[#allocation6 + $0x10] sm:$0xff]
      %v5542 = vld [vmem:[#allocation6 + $0x18] sm:$0xff]
      %v5543 = vpack.c.bf16 %v5539, %v5539
      %v5544 = vpack.c.bf16 %v5540, %v5540
      %v5545 = vpack.c.bf16 %v5541, %v5541
      %v5546 = vpack.c.bf16 %v5542, %v5542
      %v5547 = vld [vmem:[#allocation6 + $0x1] sm:$0xff]
      %v5548 = vld [vmem:[#allocation6 + $0x9] sm:$0xff]
      %v5549 = vld [vmem:[#allocation6 + $0x11] sm:$0xff]
      %v5550 = vld [vmem:[#allocation6 + $0x19] sm:$0xff]
      %v5551 = vpack.c.bf16 %v5547, %v5547
      %v5552 = vpack.c.bf16 %v5548, %v5548
      %v5553 = vpack.c.bf16 %v5549, %v5549
      %v5554 = vpack.c.bf16 %v5550, %v5550
      %v5555 = vld [vmem:[#allocation6 + $0x2] sm:$0xff]
      %v5556 = vld [vmem:[#allocation6 + $0xa] sm:$0xff]
      %v5557 = vld [vmem:[#allocation6 + $0x12] sm:$0xff]
      %v5558 = vld [vmem:[#allocation6 + $0x1a] sm:$0xff]
      %v5559 = vpack.c.bf16 %v5555, %v5555
      %v5560 = vpack.c.bf16 %v5556, %v5556
      %v5561 = vpack.c.bf16 %v5557, %v5557
      %v5562 = vpack.c.bf16 %v5558, %v5558
      %v5563 = vld [vmem:[#allocation6 + $0x20] sm:$0xff]
      %v5564 = vpack.c.bf16 %v5563, %v5563
      %v5565 = vld [vmem:[#allocation6 + $0x21] sm:$0xff]
      %v5566 = vpack.c.bf16 %v5565, %v5565
      %v5567 = vld [vmem:[#allocation6 + $0x22] sm:$0xff]
      %v5568 = vpack.c.bf16 %v5567, %v5567
      %v5569 = vld [vmem:[#allocation6 + $0x28] sm:$0xff]
      %v5570 = vpack.c.bf16 %v5569, %v5569
      %v5571 = vld [vmem:[#allocation6 + $0x29] sm:$0xff]
      %v5572 = vpack.c.bf16 %v5571, %v5571
      %v5573 = vld [vmem:[#allocation6 + $0x2a] sm:$0xff]
      %v5574 = vpack.c.bf16 %v5573, %v5573
      %v5579 = vunpack.c.l.b16 %v5543
      %v5580 = vunpack.c.l.b16 %v5544
      %v5581 = vunpack.c.l.b16 %v5545
      %v5582 = vunpack.c.l.b16 %v5546
      %v5583 = vpack.c.b16 %v5580, %v5579
      %v5584 = vpack.c.b16 %v5582, %v5581
      %v5589 = vunpack.c.l.b16 %v5551
      %v5590 = vunpack.c.l.b16 %v5552
      %v5591 = vunpack.c.l.b16 %v5553
      %v5592 = vunpack.c.l.b16 %v5554
      %v5593 = vpack.c.b16 %v5590, %v5589
      %v5594 = vpack.c.b16 %v5592, %v5591
      %5595 = vrot.lane.b32.xlu0 %v5593, 64
      %v5596 = vpop.permute.xlu0 %5595
      %5597 = vrot.lane.b32.xlu0 %v5594, 64
      %v5598 = vpop.permute.xlu0 %5597
      %v5603 = vunpack.c.l.b16 %v5559
      %v5604 = vunpack.c.l.b16 %v5560
      %v5605 = vunpack.c.l.b16 %v5561
      %v5606 = vunpack.c.l.b16 %v5562
      %v5607 = vpack.c.b16 %v5604, %v5603
      %v5608 = vpack.c.b16 %v5606, %v5605
      %v5610 = vunpack.c.l.b16 %v5564
      %v5611 = vpack.c.b16 %v5581, %v5580
      %v5612 = vpack.c.b16 %v5610, %v5582
      %5613 = vrot.lane.b32.xlu0 %v5611, 64
      %v5614 = vpop.permute.xlu0 %5613
      %5615 = vrot.lane.b32.xlu0 %v5612, 64
      %v5616 = vpop.permute.xlu0 %5615
      %v5618 = vunpack.c.l.b16 %v5566
      %v5619 = vpack.c.b16 %v5591, %v5590
      %v5620 = vpack.c.b16 %v5618, %v5592
      %v5622 = vunpack.c.l.b16 %v5568
      %v5623 = vpack.c.b16 %v5605, %v5604
      %v5624 = vpack.c.b16 %v5622, %v5606
      %5625 = vrot.lane.b32.xlu0 %v5623, 64
      %v5626 = vpop.permute.xlu0 %5625
      %5627 = vrot.lane.b32.xlu0 %v5624, 64
      %v5628 = vpop.permute.xlu0 %5627
      %v5630 = vunpack.c.l.b16 %v5570
      %v5631 = vpack.c.b16 %v5630, %v5610
      %v5633 = vunpack.c.l.b16 %v5572
      %v5634 = vpack.c.b16 %v5633, %v5618
      %5635 = vrot.lane.b32.xlu0 %v5634, 64
      %v5636 = vpop.permute.xlu0 %5635
      %v5638 = vunpack.c.l.b16 %v5574
      %v5639 = vpack.c.b16 %v5638, %v5622
      %v5642 = vsel %vm562, %v5583, %v5596
      %v5646 = vsel %vm562, %v5584, %v5598
      %v5650 = vsel %vm562, %v5607, %v5614
      %v5654 = vsel %vm562, %v5608, %v5616
      %v5658 = vsel %vm562, %v5619, %v5626
      %v5662 = vsel %vm562, %v5620, %v5628
      %v5666 = vsel %vm562, %v5631, %v5636
      %v5668 = vld [vmem:[%s7] sm:$0xf]
      %v5669 = vld [vmem:[%s7 + $0x4] sm:$0xf]
      %v5670 = vld [vmem:[%s7 + $0x8] sm:$0xf]
      %v5671 = vld [vmem:[%s7 + $0xc] sm:$0xf]
      %v5672 = vld [vmem:[%s7 + $0x10] sm:$0xf]
      %v5673 = vld [vmem:[%s7 + $0x14] sm:$0xf]
      %v5674 = vld [vmem:[%s7 + $0x18] sm:$0xf]
      %v5675 = vld [vmem:[%s7 + $0x1c] sm:$0xf]
      %v5676 = vld [vmem:[%s7 + $0x20] sm:$0xf]
      %v5677 = vld [vmem:[%s7 + $0x24] sm:$0xf]
      %v5678 = vld [vmem:[%s7 + $0x28] sm:$0xf]
      %v5679 = vld [vmem:[%s7 + $0x2c] sm:$0xf]
      %v5680 = vld [vmem:[%s7 + $0x30] sm:$0xf]
      %v5681 = vld [vmem:[%s7 + $0x34] sm:$0xf]
      %v5682 = vld [vmem:[%s7 + $0x38] sm:$0xf]
      %v5683 = vld [vmem:[%s7 + $0x3c] sm:$0xf]
      %v5684 = vld [vmem:[%s7 + $0x40] sm:$0xf]
      %v5685 = vld [vmem:[%s7 + $0x44] sm:$0xf]
      %v5686 = vld [vmem:[%s7 + $0x48] sm:$0xf]
      %v5687 = vld [vmem:[%s7 + $0x4c] sm:$0xf]
      %v5688 = vld [vmem:[%s7 + $0x50] sm:$0xf]
      %v5689 = vld [vmem:[%s7 + $0x54] sm:$0xf]
      %v5690 = vld [vmem:[%s7 + $0x58] sm:$0xf]
      %v5691 = vld [vmem:[%s7 + $0x5c] sm:$0xf]
      %v5692 = vld [vmem:[%s7 + $0x60] sm:$0xf]
      %v5693 = vld [vmem:[%s7 + $0x64] sm:$0xf]
      %v5694 = vld [vmem:[%s7 + $0x68] sm:$0xf]
      %v5695 = vld [vmem:[%s7 + $0x6c] sm:$0xf]
      %v5696 = vld [vmem:[%s7 + $0x70] sm:$0xf]
      %v5697 = vld [vmem:[%s7 + $0x74] sm:$0xf]
      %v5698 = vld [vmem:[%s7 + $0x78] sm:$0xf]
      %v5699 = vld [vmem:[%s7 + $0x7c] sm:$0xf]
      %v5700 = vld [vmem:[%s7 + $0x80] sm:$0xf]
      %v5701 = vld [vmem:[%s7 + $0x84] sm:$0xf]
      %v5702 = vld [vmem:[%s7 + $0x88] sm:$0xf]
      %v5703 = vld [vmem:[%s7 + $0x8c] sm:$0xf]
      %v5704 = vld [vmem:[%s7 + $0x90] sm:$0xf]
      %v5705 = vld [vmem:[%s7 + $0x94] sm:$0xf]
      %v5706 = vld [vmem:[%s7 + $0x98] sm:$0xf]
      %v5707 = vld [vmem:[%s7 + $0x9c] sm:$0xf]
      %v5708 = vld [vmem:[%s7 + $0xa0] sm:$0xf]
      %v5709 = vld [vmem:[%s7 + $0xa4] sm:$0xf]
      %v5710 = vld [vmem:[%s7 + $0xa8] sm:$0xf]
      %v5711 = vld [vmem:[%s7 + $0xac] sm:$0xf]
      %v5712 = vld [vmem:[%s7 + $0xb0] sm:$0xf]
      %v5713 = vld [vmem:[%s7 + $0xb4] sm:$0xf]
      %v5714 = vld [vmem:[%s7 + $0xb8] sm:$0xf]
      %v5715 = vld [vmem:[%s7 + $0xbc] sm:$0xf]
      %v5716 = vld [vmem:[%s7 + $0xc0] sm:$0xf]
      %v5717 = vld [vmem:[%s7 + $0xc4] sm:$0xf]
      %v5718 = vld [vmem:[%s7 + $0xc8] sm:$0xf]
      %v5719 = vld [vmem:[%s7 + $0xcc] sm:$0xf]
      %v5720 = vld [vmem:[%s7 + $0xd0] sm:$0xf]
      %v5721 = vld [vmem:[%s7 + $0xd4] sm:$0xf]
      %v5722 = vld [vmem:[%s7 + $0xd8] sm:$0xf]
      %v5723 = vld [vmem:[%s7 + $0xdc] sm:$0xf]
      %v5724 = vld [vmem:[%s7 + $0xe0] sm:$0xf]
      %v5725 = vld [vmem:[%s7 + $0xe4] sm:$0xf]
      %v5726 = vld [vmem:[%s7 + $0xe8] sm:$0xf]
      %v5727 = vld [vmem:[%s7 + $0xec] sm:$0xf]
      %v5728 = vld [vmem:[%s7 + $0xf0] sm:$0xf]
      %v5729 = vld [vmem:[%s7 + $0xf4] sm:$0xf]
      %v5730 = vld [vmem:[%s7 + $0xf8] sm:$0xf]
      %v5731 = vld [vmem:[%s7 + $0xfc] sm:$0xf]
      %v5732 = vld [vmem:[%s7 + $0x100] sm:$0xf]
      %v5733 = vld [vmem:[%s7 + $0x104] sm:$0xf]
      %v5734 = vld [vmem:[%s7 + $0x108] sm:$0xf]
      %v5735 = vld [vmem:[%s7 + $0x10c] sm:$0xf]
      %v5736 = vld [vmem:[%s7 + $0x110] sm:$0xf]
      %v5737 = vld [vmem:[%s7 + $0x114] sm:$0xf]
      %v5738 = vld [vmem:[%s7 + $0x118] sm:$0xf]
      %v5739 = vld [vmem:[%s7 + $0x11c] sm:$0xf]
      %v5740 = vld [vmem:[%s8] sm:$0x1]
      %v5742 = vperm.slane %v5740, 0
      %v5816 = vunpack.c.l.b16 %v5668
      %v5817 = vunpack.c.l.b16 %v5669
      %v5818 = vunpack.c.l.b16 %v5670
      %v5819 = vunpack.c.l.b16 %v5671
      %v5820 = vunpack.c.l.b16 %v5672
      %v5821 = vunpack.c.l.b16 %v5673
      %v5822 = vunpack.c.l.b16 %v5674
      %v5823 = vunpack.c.l.b16 %v5675
      %v5824 = vunpack.c.l.b16 %v5676
      %v5825 = vunpack.c.l.b16 %v5677
      %v5826 = vunpack.c.l.b16 %v5678
      %v5827 = vunpack.c.l.b16 %v5679
      %v5828 = vunpack.c.l.b16 %v5680
      %v5829 = vunpack.c.l.b16 %v5681
      %v5830 = vunpack.c.l.b16 %v5682
      %v5831 = vunpack.c.l.b16 %v5683
      %v5832 = vunpack.c.l.b16 %v5684
      %v5833 = vunpack.c.l.b16 %v5685
      %v5834 = vunpack.c.l.b16 %v5686
      %v5835 = vunpack.c.l.b16 %v5687
      %v5836 = vunpack.c.l.b16 %v5688
      %v5837 = vunpack.c.l.b16 %v5689
      %v5838 = vunpack.c.l.b16 %v5690
      %v5839 = vunpack.c.l.b16 %v5691
      %v5840 = vunpack.c.l.b16 %v5692
      %v5841 = vunpack.c.l.b16 %v5693
      %v5842 = vunpack.c.l.b16 %v5694
      %v5843 = vunpack.c.l.b16 %v5695
      %v5844 = vunpack.c.l.b16 %v5696
      %v5845 = vunpack.c.l.b16 %v5697
      %v5846 = vunpack.c.l.b16 %v5698
      %v5847 = vunpack.c.l.b16 %v5699
      %v5848 = vunpack.c.l.b16 %v5700
      %v5849 = vunpack.c.l.b16 %v5701
      %v5850 = vunpack.c.l.b16 %v5702
      %v5851 = vunpack.c.l.b16 %v5703
      %v5852 = vunpack.c.l.b16 %v5704
      %v5853 = vunpack.c.l.b16 %v5705
      %v5854 = vunpack.c.l.b16 %v5706
      %v5855 = vunpack.c.l.b16 %v5707
      %v5856 = vunpack.c.l.b16 %v5708
      %v5857 = vunpack.c.l.b16 %v5709
      %v5858 = vunpack.c.l.b16 %v5710
      %v5859 = vunpack.c.l.b16 %v5711
      %v5860 = vunpack.c.l.b16 %v5712
      %v5861 = vunpack.c.l.b16 %v5713
      %v5862 = vunpack.c.l.b16 %v5714
      %v5863 = vunpack.c.l.b16 %v5715
      %v5864 = vunpack.c.l.b16 %v5716
      %v5865 = vunpack.c.l.b16 %v5717
      %v5866 = vunpack.c.l.b16 %v5718
      %v5867 = vunpack.c.l.b16 %v5719
      %v5868 = vunpack.c.l.b16 %v5720
      %v5869 = vunpack.c.l.b16 %v5721
      %v5870 = vunpack.c.l.b16 %v5722
      %v5871 = vunpack.c.l.b16 %v5723
      %v5872 = vunpack.c.l.b16 %v5724
      %v5873 = vunpack.c.l.b16 %v5725
      %v5874 = vunpack.c.l.b16 %v5726
      %v5875 = vunpack.c.l.b16 %v5727
      %v5876 = vunpack.c.l.b16 %v5728
      %v5877 = vunpack.c.l.b16 %v5729
      %v5878 = vunpack.c.l.b16 %v5730
      %v5879 = vunpack.c.l.b16 %v5731
      %v5880 = vunpack.c.l.b16 %v5732
      %v5881 = vunpack.c.l.b16 %v5733
      %v5882 = vunpack.c.l.b16 %v5734
      %v5883 = vunpack.c.l.b16 %v5735
      %v5884 = vunpack.c.l.b16 %v5736
      %v5885 = vunpack.c.l.b16 %v5737
      %v5886 = vunpack.c.l.b16 %v5738
      %v5887 = vunpack.c.l.b16 %v5739
      %v5888 = vpack.c.b16 %v5817, %v5816
      %v5889 = vpack.c.b16 %v5819, %v5818
      %v5890 = vpack.c.b16 %v5821, %v5820
      %v5891 = vpack.c.b16 %v5823, %v5822
      %v5892 = vpack.c.b16 %v5825, %v5824
      %v5893 = vpack.c.b16 %v5827, %v5826
      %v5894 = vpack.c.b16 %v5829, %v5828
      %v5895 = vpack.c.b16 %v5831, %v5830
      %v5896 = vpack.c.b16 %v5833, %v5832
      %v5897 = vpack.c.b16 %v5835, %v5834
      %v5898 = vpack.c.b16 %v5837, %v5836
      %v5899 = vpack.c.b16 %v5839, %v5838
      %v5900 = vpack.c.b16 %v5841, %v5840
      %v5901 = vpack.c.b16 %v5843, %v5842
      %v5902 = vpack.c.b16 %v5845, %v5844
      %v5903 = vpack.c.b16 %v5847, %v5846
      %v5904 = vpack.c.b16 %v5849, %v5848
      %v5905 = vpack.c.b16 %v5851, %v5850
      %v5906 = vpack.c.b16 %v5853, %v5852
      %v5907 = vpack.c.b16 %v5855, %v5854
      %v5908 = vpack.c.b16 %v5857, %v5856
      %v5909 = vpack.c.b16 %v5859, %v5858
      %v5910 = vpack.c.b16 %v5861, %v5860
      %v5911 = vpack.c.b16 %v5863, %v5862
      %v5912 = vpack.c.b16 %v5865, %v5864
      %v5913 = vpack.c.b16 %v5867, %v5866
      %v5914 = vpack.c.b16 %v5869, %v5868
      %v5915 = vpack.c.b16 %v5871, %v5870
      %v5916 = vpack.c.b16 %v5873, %v5872
      %v5917 = vpack.c.b16 %v5875, %v5874
      %v5918 = vpack.c.b16 %v5877, %v5876
      %v5919 = vpack.c.b16 %v5879, %v5878
      %v5920 = vpack.c.b16 %v5881, %v5880
      %v5921 = vpack.c.b16 %v5883, %v5882
      %v5922 = vpack.c.b16 %v5885, %v5884
      %v5923 = vpack.c.b16 %v5887, %v5886
      %v5960 = vsel %vm562, %v5608, 0
      %v5963 = vsel %vm562, %v5639, 0
      %5965 = vmatpush.bf16.msra.mxu0 %v5895
      %5966 = vmatpush.bf16.msra.mxu0 %v5894
      %5967 = vmatpush.bf16.msra.mxu0 %v5893
      %5968 = vmatpush.bf16.msra.mxu0 %v5892
      %5969 = vmatpush.bf16.msra.mxu0 %v5891
      %5970 = vmatpush.bf16.msra.mxu0 %v5890
      %5971 = vmatpush.bf16.msra.mxu0 %v5889
      %5972 = vmatpush.bf16.msra.mxu0 %v5888
      %5973 = vmatmul.bf16.gmra.mxu0 %v5642
      %v5974 = vpop.f32.mrf.mxu0
      %v5975 = vadd.f32 %v5742, %v5974
      %v5976 = vpop.f32.mrf.mxu0
      %v5977 = vadd.f32 %v5742, %v5976
      %5978 = vmatmul.bf16.gmra.mxu0 %v5646
      %v5979 = vpop.f32.mrf.mxu0
      %v5980 = vadd.f32 %v5742, %v5979
      %v5981 = vpop.f32.mrf.mxu0
      %v5982 = vadd.f32 %v5742, %v5981
      %5983 = vdwg.mxu0
      %5984 = vmatpush.bf16.msra.mxu0 %v5903
      %5985 = vmatpush.bf16.msra.mxu0 %v5902
      %5986 = vmatpush.bf16.msra.mxu0 %v5901
      %5987 = vmatpush.bf16.msra.mxu0 %v5900
      %5988 = vmatpush.bf16.msra.mxu0 %v5899
      %5989 = vmatpush.bf16.msra.mxu0 %v5898
      %5990 = vmatpush.bf16.msra.mxu0 %v5897
      %5991 = vmatpush.bf16.msra.mxu0 %v5896
      %5992 = vmatmul.bf16.gmra.mxu0 %v5650
      %v5993 = vpop.f32.mrf.mxu0
      %v5994 = vadd.f32 %v5975, %v5993
      %v5995 = vpop.f32.mrf.mxu0
      %v5996 = vadd.f32 %v5977, %v5995
      %5997 = vmatmul.bf16.gmra.mxu0 %v5654
      %v5998 = vpop.f32.mrf.mxu0
      %v5999 = vadd.f32 %v5980, %v5998
      %v6000 = vpop.f32.mrf.mxu0
      %v6001 = vadd.f32 %v5982, %v6000
      %6002 = vdwg.mxu0
      %6003 = vmatpush.bf16.msra.mxu0 %v5911
      %6004 = vmatpush.bf16.msra.mxu0 %v5910
      %6005 = vmatpush.bf16.msra.mxu0 %v5909
      %6006 = vmatpush.bf16.msra.mxu0 %v5908
      %6007 = vmatpush.bf16.msra.mxu0 %v5907
      %6008 = vmatpush.bf16.msra.mxu0 %v5906
      %6009 = vmatpush.bf16.msra.mxu0 %v5905
      %6010 = vmatpush.bf16.msra.mxu0 %v5904
      %6011 = vmatmul.bf16.gmra.mxu0 %v5658
      %v6012 = vpop.f32.mrf.mxu0
      %v6013 = vadd.f32 %v5994, %v6012
      %v6014 = vpop.f32.mrf.mxu0
      %v6015 = vadd.f32 %v5996, %v6014
      %6016 = vmatmul.bf16.gmra.mxu0 %v5662
      %v6017 = vpop.f32.mrf.mxu0
      %v6018 = vadd.f32 %v5999, %v6017
      %v6019 = vpop.f32.mrf.mxu0
      %v6020 = vadd.f32 %v6001, %v6019
      %6021 = vdwg.mxu0
      %6022 = vmatpush.bf16.msra.mxu0 %v5919
      %6023 = vmatpush.bf16.msra.mxu0 %v5918
      %6024 = vmatpush.bf16.msra.mxu0 %v5917
      %6025 = vmatpush.bf16.msra.mxu0 %v5916
      %6026 = vmatpush.bf16.msra.mxu0 %v5915
      %6027 = vmatpush.bf16.msra.mxu0 %v5914
      %6028 = vmatpush.bf16.msra.mxu0 %v5913
      %6029 = vmatpush.bf16.msra.mxu0 %v5912
      %6030 = vmatmul.bf16.gmra.mxu0 %v5646
      %v6031 = vpop.f32.mrf.mxu0
      %v6032 = vadd.f32 %v6013, %v6031
      %v6033 = vpop.f32.mrf.mxu0
      %v6034 = vadd.f32 %v6015, %v6033
      %6035 = vmatmul.bf16.gmra.mxu0 %v5666
      %v6036 = vpop.f32.mrf.mxu0
      %v6037 = vadd.f32 %v6018, %v6036
      %v6038 = vpop.f32.mrf.mxu0
      %v6039 = vadd.f32 %v6020, %v6038
      %6040 = vdwg.mxu0
      %6041 = vmatpush.bf16.msra.mxu0 0
      %6042 = vmatpush.bf16.msra.mxu0 0
      %6043 = vmatpush.bf16.msra.mxu0 0
      %6044 = vmatpush.bf16.msra.mxu0 0
      %6045 = vmatpush.bf16.msra.mxu0 %v5923
      %6046 = vmatpush.bf16.msra.mxu0 %v5922
      %6047 = vmatpush.bf16.msra.mxu0 %v5921
      %6048 = vmatpush.bf16.msra.mxu0 %v5920
      %6049 = vmatmul.bf16.gmra.mxu0 %v5960
      %v6050 = vpop.f32.mrf.mxu0
      %v6051 = vadd.f32 %v6032, %v6050
      %v6052 = vpop.f32.mrf.mxu0
      %v6053 = vadd.f32 %v6034, %v6052
      %6054 = vmatmul.bf16.gmra.mxu0 %v5963
      %v6055 = vpop.f32.mrf.mxu0
      %v6056 = vadd.f32 %v6037, %v6055
      %v6057 = vpop.f32.mrf.mxu0
      %v6058 = vadd.f32 %v6039, %v6057
      %6059 = vdwg.mxu0
      %v6060 = vmax.f32 %v6051, 0.0
      %v6061 = vmax.f32 %v6053, 0.0
      %v6062 = vmax.f32 %v6056, 0.0
      %v6063 = vmax.f32 %v6058, 0.0
      %v6065 = vrot.slane %v6060, 1
      %s6067 = scalar_lea.vmem [#allocation7], 18
      %6068 = vst [vmem:[%s6067] ss:$2 sm:$0xf] %v6065
      %v6070 = vrot.slane %v6061, 1
      %s6072 = scalar_lea.vmem [#allocation7], 50
      %6073 = vst [vmem:[%s6072] ss:$2 sm:$0xf] %v6070
      %v6075 = vrot.slane %v6062, 1
      %s6077 = scalar_lea.vmem [#allocation7], 82
      %6078 = vst [vmem:[%s6077] ss:$2 sm:$0xf] %v6075
      %v6080 = vrot.slane %v6063, 1
      %s6082 = scalar_lea.vmem [#allocation7], 114
      %6083 = vst [vmem:[%s6082] ss:$2 sm:$0xf] %v6080
      %6084 = vrot.lane.b32.xlu0 %v6065, 96
      %v6085 = vpop.permute.xlu0 %6084
      %s6087 = scalar_lea.vmem [#allocation7], 19
      %6088 = vst [vmem:[%s6087] ss:$2 sm:$0xf] %v6085
      %6089 = vrot.lane.b32.xlu0 %v6070, 96
      %v6090 = vpop.permute.xlu0 %6089
      %s6092 = scalar_lea.vmem [#allocation7], 51
      %6093 = vst [vmem:[%s6092] ss:$2 sm:$0xf] %v6090
      %6094 = vrot.lane.b32.xlu0 %v6075, 96
      %v6095 = vpop.permute.xlu0 %6094
      %s6097 = scalar_lea.vmem [#allocation7], 83
      %6098 = vst [vmem:[%s6097] ss:$2 sm:$0xf] %v6095
      %6099 = vrot.lane.b32.xlu0 %v6080, 96
      %v6100 = vpop.permute.xlu0 %6099
      %s6102 = scalar_lea.vmem [#allocation7], 115
      %6103 = vst [vmem:[%s6102] ss:$2 sm:$0xf] %v6100
      %6104 = vrot.lane.b32.xlu0 %v6065, 64
      %v6105 = vpop.permute.xlu0 %6104
      %s6107 = scalar_lea.vmem [#allocation7], 34
      %6108 = vst [vmem:[%s6107] ss:$2 sm:$0xf] %v6105
      %6109 = vrot.lane.b32.xlu0 %v6070, 64
      %v6110 = vpop.permute.xlu0 %6109
      %s6112 = scalar_lea.vmem [#allocation7], 66
      %6113 = vst [vmem:[%s6112] ss:$2 sm:$0xf] %v6110
      %6114 = vrot.lane.b32.xlu0 %v6075, 64
      %v6115 = vpop.permute.xlu0 %6114
      %s6117 = scalar_lea.vmem [#allocation7], 98
      %6118 = vst [vmem:[%s6117] ss:$2 sm:$0xf] %v6115
      %6119 = vrot.lane.b32.xlu0 %v6080, 64
      %v6120 = vpop.permute.xlu0 %6119
      %s6122 = scalar_lea.vmem [#allocation7], 130
      %6123 = vst [vmem:[%s6122] ss:$2 sm:$0xf] %v6120
      %6124 = vrot.lane.b32.xlu0 %v6065, 32
      %v6125 = vpop.permute.xlu0 %6124
      %s6127 = scalar_lea.vmem [#allocation7], 35
      %6128 = vst [vmem:[%s6127] ss:$2 sm:$0xf] %v6125
      %6129 = vrot.lane.b32.xlu0 %v6070, 32
      %v6130 = vpop.permute.xlu0 %6129
      %s6132 = scalar_lea.vmem [#allocation7], 67
      %6133 = vst [vmem:[%s6132] ss:$2 sm:$0xf] %v6130
      %6134 = vrot.lane.b32.xlu0 %v6075, 32
      %v6135 = vpop.permute.xlu0 %6134
      %s6137 = scalar_lea.vmem [#allocation7], 99
      %6138 = vst [vmem:[%s6137] ss:$2 sm:$0xf] %v6135
      %6139 = vrot.lane.b32.xlu0 %v6080, 32
      %v6140 = vpop.permute.xlu0 %6139
      %s6142 = scalar_lea.vmem [#allocation7], 131
      %6143 = vst [vmem:[%s6142] ss:$2 sm:$0xf] %v6140
      %v6144 = vld [vmem:[#allocation7] sm:$0xff]
      %v6145 = vld [vmem:[#allocation7 + $0x8] sm:$0xff]
      %v6146 = vld [vmem:[#allocation7 + $0x10] sm:$0xff]
      %v6147 = vld [vmem:[#allocation7 + $0x18] sm:$0xff]
      %v6148 = vld [vmem:[#allocation7 + $0x20] sm:$0xff]
      %v6149 = vld [vmem:[#allocation7 + $0x28] sm:$0xff]
      %v6150 = vld [vmem:[#allocation7 + $0x30] sm:$0xff]
      %v6151 = vld [vmem:[#allocation7 + $0x38] sm:$0xff]
      %v6152 = vld [vmem:[#allocation7 + $0x40] sm:$0xff]
      %v6153 = vld [vmem:[#allocation7 + $0x48] sm:$0xff]
      %v6154 = vld [vmem:[#allocation7 + $0x50] sm:$0xff]
      %v6155 = vld [vmem:[#allocation7 + $0x58] sm:$0xff]
      %v6156 = vld [vmem:[#allocation7 + $0x60] sm:$0xff]
      %v6157 = vld [vmem:[#allocation7 + $0x68] sm:$0xff]
      %v6158 = vld [vmem:[#allocation7 + $0x70] sm:$0xff]
      %v6159 = vld [vmem:[#allocation7 + $0x78] sm:$0xff]
      %v6160 = vpack.c.bf16 %v6144, %v6144
      %v6161 = vpack.c.bf16 %v6145, %v6145
      %v6162 = vpack.c.bf16 %v6146, %v6146
      %v6163 = vpack.c.bf16 %v6147, %v6147
      %v6164 = vpack.c.bf16 %v6148, %v6148
      %v6165 = vpack.c.bf16 %v6149, %v6149
      %v6166 = vpack.c.bf16 %v6150, %v6150
      %v6167 = vpack.c.bf16 %v6151, %v6151
      %v6168 = vpack.c.bf16 %v6152, %v6152
      %v6169 = vpack.c.bf16 %v6153, %v6153
      %v6170 = vpack.c.bf16 %v6154, %v6154
      %v6171 = vpack.c.bf16 %v6155, %v6155
      %v6172 = vpack.c.bf16 %v6156, %v6156
      %v6173 = vpack.c.bf16 %v6157, %v6157
      %v6174 = vpack.c.bf16 %v6158, %v6158
      %v6175 = vpack.c.bf16 %v6159, %v6159
      %v6176 = vld [vmem:[#allocation7 + $0x1] sm:$0xff]
      %v6177 = vld [vmem:[#allocation7 + $0x9] sm:$0xff]
      %v6178 = vld [vmem:[#allocation7 + $0x11] sm:$0xff]
      %v6179 = vld [vmem:[#allocation7 + $0x19] sm:$0xff]
      %v6180 = vld [vmem:[#allocation7 + $0x21] sm:$0xff]
      %v6181 = vld [vmem:[#allocation7 + $0x29] sm:$0xff]
      %v6182 = vld [vmem:[#allocation7 + $0x31] sm:$0xff]
      %v6183 = vld [vmem:[#allocation7 + $0x39] sm:$0xff]
      %v6184 = vld [vmem:[#allocation7 + $0x41] sm:$0xff]
      %v6185 = vld [vmem:[#allocation7 + $0x49] sm:$0xff]
      %v6186 = vld [vmem:[#allocation7 + $0x51] sm:$0xff]
      %v6187 = vld [vmem:[#allocation7 + $0x59] sm:$0xff]
      %v6188 = vld [vmem:[#allocation7 + $0x61] sm:$0xff]
      %v6189 = vld [vmem:[#allocation7 + $0x69] sm:$0xff]
      %v6190 = vld [vmem:[#allocation7 + $0x71] sm:$0xff]
      %v6191 = vld [vmem:[#allocation7 + $0x79] sm:$0xff]
      %v6192 = vpack.c.bf16 %v6176, %v6176
      %v6193 = vpack.c.bf16 %v6177, %v6177
      %v6194 = vpack.c.bf16 %v6178, %v6178
      %v6195 = vpack.c.bf16 %v6179, %v6179
      %v6196 = vpack.c.bf16 %v6180, %v6180
      %v6197 = vpack.c.bf16 %v6181, %v6181
      %v6198 = vpack.c.bf16 %v6182, %v6182
      %v6199 = vpack.c.bf16 %v6183, %v6183
      %v6200 = vpack.c.bf16 %v6184, %v6184
      %v6201 = vpack.c.bf16 %v6185, %v6185
      %v6202 = vpack.c.bf16 %v6186, %v6186
      %v6203 = vpack.c.bf16 %v6187, %v6187
      %v6204 = vpack.c.bf16 %v6188, %v6188
      %v6205 = vpack.c.bf16 %v6189, %v6189
      %v6206 = vpack.c.bf16 %v6190, %v6190
      %v6207 = vpack.c.bf16 %v6191, %v6191
      %v6208 = vld [vmem:[#allocation7 + $0x2] sm:$0xff]
      %v6209 = vld [vmem:[#allocation7 + $0xa] sm:$0xff]
      %v6210 = vld [vmem:[#allocation7 + $0x12] sm:$0xff]
      %v6211 = vld [vmem:[#allocation7 + $0x1a] sm:$0xff]
      %v6212 = vld [vmem:[#allocation7 + $0x22] sm:$0xff]
      %v6213 = vld [vmem:[#allocation7 + $0x2a] sm:$0xff]
      %v6214 = vld [vmem:[#allocation7 + $0x32] sm:$0xff]
      %v6215 = vld [vmem:[#allocation7 + $0x3a] sm:$0xff]
      %v6216 = vld [vmem:[#allocation7 + $0x42] sm:$0xff]
      %v6217 = vld [vmem:[#allocation7 + $0x4a] sm:$0xff]
      %v6218 = vld [vmem:[#allocation7 + $0x52] sm:$0xff]
      %v6219 = vld [vmem:[#allocation7 + $0x5a] sm:$0xff]
      %v6220 = vld [vmem:[#allocation7 + $0x62] sm:$0xff]
      %v6221 = vld [vmem:[#allocation7 + $0x6a] sm:$0xff]
      %v6222 = vld [vmem:[#allocation7 + $0x72] sm:$0xff]
      %v6223 = vld [vmem:[#allocation7 + $0x7a] sm:$0xff]
      %v6224 = vpack.c.bf16 %v6208, %v6208
      %v6225 = vpack.c.bf16 %v6209, %v6209
      %v6226 = vpack.c.bf16 %v6210, %v6210
      %v6227 = vpack.c.bf16 %v6211, %v6211
      %v6228 = vpack.c.bf16 %v6212, %v6212
      %v6229 = vpack.c.bf16 %v6213, %v6213
      %v6230 = vpack.c.bf16 %v6214, %v6214
      %v6231 = vpack.c.bf16 %v6215, %v6215
      %v6232 = vpack.c.bf16 %v6216, %v6216
      %v6233 = vpack.c.bf16 %v6217, %v6217
      %v6234 = vpack.c.bf16 %v6218, %v6218
      %v6235 = vpack.c.bf16 %v6219, %v6219
      %v6236 = vpack.c.bf16 %v6220, %v6220
      %v6237 = vpack.c.bf16 %v6221, %v6221
      %v6238 = vpack.c.bf16 %v6222, %v6222
      %v6239 = vpack.c.bf16 %v6223, %v6223
      %v6240 = vld [vmem:[#allocation7 + $0x80] sm:$0xff]
      %v6241 = vld [vmem:[#allocation7 + $0x88] sm:$0xff]
      %v6242 = vpack.c.bf16 %v6240, %v6240
      %v6243 = vpack.c.bf16 %v6241, %v6241
      %v6244 = vld [vmem:[#allocation7 + $0x81] sm:$0xff]
      %v6245 = vld [vmem:[#allocation7 + $0x89] sm:$0xff]
      %v6246 = vpack.c.bf16 %v6244, %v6244
      %v6247 = vpack.c.bf16 %v6245, %v6245
      %v6248 = vld [vmem:[#allocation7 + $0x82] sm:$0xff]
      %v6249 = vld [vmem:[#allocation7 + $0x8a] sm:$0xff]
      %v6250 = vpack.c.bf16 %v6248, %v6248
      %v6251 = vpack.c.bf16 %v6249, %v6249
      %v6252 = vld [vmem:[#allocation7 + $0x90] sm:$0xff]
      %v6253 = vld [vmem:[#allocation7 + $0x98] sm:$0xff]
      %v6254 = vpack.c.bf16 %v6252, %v6252
      %v6255 = vpack.c.bf16 %v6253, %v6253
      %v6256 = vld [vmem:[#allocation7 + $0x91] sm:$0xff]
      %v6257 = vld [vmem:[#allocation7 + $0x99] sm:$0xff]
      %v6258 = vpack.c.bf16 %v6256, %v6256
      %v6259 = vpack.c.bf16 %v6257, %v6257
      %v6260 = vld [vmem:[#allocation7 + $0x92] sm:$0xff]
      %v6261 = vld [vmem:[#allocation7 + $0x9a] sm:$0xff]
      %v6262 = vpack.c.bf16 %v6260, %v6260
      %v6263 = vpack.c.bf16 %v6261, %v6261
      %v6280 = vunpack.c.l.b16 %v6160
      %v6281 = vunpack.c.l.b16 %v6161
      %v6282 = vunpack.c.l.b16 %v6162
      %v6283 = vunpack.c.l.b16 %v6163
      %v6284 = vunpack.c.l.b16 %v6164
      %v6285 = vunpack.c.l.b16 %v6165
      %v6286 = vunpack.c.l.b16 %v6166
      %v6287 = vunpack.c.l.b16 %v6167
      %v6288 = vunpack.c.l.b16 %v6168
      %v6289 = vunpack.c.l.b16 %v6169
      %v6290 = vunpack.c.l.b16 %v6170
      %v6291 = vunpack.c.l.b16 %v6171
      %v6292 = vunpack.c.l.b16 %v6172
      %v6293 = vunpack.c.l.b16 %v6173
      %v6294 = vunpack.c.l.b16 %v6174
      %v6295 = vunpack.c.l.b16 %v6175
      %v6296 = vpack.c.b16 %v6281, %v6280
      %v6297 = vpack.c.b16 %v6283, %v6282
      %v6298 = vpack.c.b16 %v6285, %v6284
      %v6299 = vpack.c.b16 %v6287, %v6286
      %v6300 = vpack.c.b16 %v6289, %v6288
      %v6301 = vpack.c.b16 %v6291, %v6290
      %v6302 = vpack.c.b16 %v6293, %v6292
      %v6303 = vpack.c.b16 %v6295, %v6294
      %v6320 = vunpack.c.l.b16 %v6192
      %v6321 = vunpack.c.l.b16 %v6193
      %v6322 = vunpack.c.l.b16 %v6194
      %v6323 = vunpack.c.l.b16 %v6195
      %v6324 = vunpack.c.l.b16 %v6196
      %v6325 = vunpack.c.l.b16 %v6197
      %v6326 = vunpack.c.l.b16 %v6198
      %v6327 = vunpack.c.l.b16 %v6199
      %v6328 = vunpack.c.l.b16 %v6200
      %v6329 = vunpack.c.l.b16 %v6201
      %v6330 = vunpack.c.l.b16 %v6202
      %v6331 = vunpack.c.l.b16 %v6203
      %v6332 = vunpack.c.l.b16 %v6204
      %v6333 = vunpack.c.l.b16 %v6205
      %v6334 = vunpack.c.l.b16 %v6206
      %v6335 = vunpack.c.l.b16 %v6207
      %v6336 = vpack.c.b16 %v6321, %v6320
      %v6337 = vpack.c.b16 %v6323, %v6322
      %v6338 = vpack.c.b16 %v6325, %v6324
      %v6339 = vpack.c.b16 %v6327, %v6326
      %v6340 = vpack.c.b16 %v6329, %v6328
      %v6341 = vpack.c.b16 %v6331, %v6330
      %v6342 = vpack.c.b16 %v6333, %v6332
      %v6343 = vpack.c.b16 %v6335, %v6334
      %6344 = vrot.lane.b32.xlu0 %v6336, 32
      %v6345 = vpop.permute.xlu0 %6344
      %6346 = vrot.lane.b32.xlu0 %v6337, 32
      %v6347 = vpop.permute.xlu0 %6346
      %6348 = vrot.lane.b32.xlu0 %v6338, 32
      %v6349 = vpop.permute.xlu0 %6348
      %6350 = vrot.lane.b32.xlu0 %v6339, 32
      %v6351 = vpop.permute.xlu0 %6350
      %6352 = vrot.lane.b32.xlu0 %v6340, 32
      %v6353 = vpop.permute.xlu0 %6352
      %6354 = vrot.lane.b32.xlu0 %v6341, 32
      %v6355 = vpop.permute.xlu0 %6354
      %6356 = vrot.lane.b32.xlu0 %v6342, 32
      %v6357 = vpop.permute.xlu0 %6356
      %6358 = vrot.lane.b32.xlu0 %v6343, 32
      %v6359 = vpop.permute.xlu0 %6358
      %v6376 = vunpack.c.l.b16 %v6224
      %v6377 = vunpack.c.l.b16 %v6225
      %v6378 = vunpack.c.l.b16 %v6226
      %v6379 = vunpack.c.l.b16 %v6227
      %v6380 = vunpack.c.l.b16 %v6228
      %v6381 = vunpack.c.l.b16 %v6229
      %v6382 = vunpack.c.l.b16 %v6230
      %v6383 = vunpack.c.l.b16 %v6231
      %v6384 = vunpack.c.l.b16 %v6232
      %v6385 = vunpack.c.l.b16 %v6233
      %v6386 = vunpack.c.l.b16 %v6234
      %v6387 = vunpack.c.l.b16 %v6235
      %v6388 = vunpack.c.l.b16 %v6236
      %v6389 = vunpack.c.l.b16 %v6237
      %v6390 = vunpack.c.l.b16 %v6238
      %v6391 = vunpack.c.l.b16 %v6239
      %v6392 = vpack.c.b16 %v6377, %v6376
      %v6393 = vpack.c.b16 %v6379, %v6378
      %v6394 = vpack.c.b16 %v6381, %v6380
      %v6395 = vpack.c.b16 %v6383, %v6382
      %v6396 = vpack.c.b16 %v6385, %v6384
      %v6397 = vpack.c.b16 %v6387, %v6386
      %v6398 = vpack.c.b16 %v6389, %v6388
      %v6399 = vpack.c.b16 %v6391, %v6390
      %6400 = vrot.lane.b32.xlu0 %v6392, 64
      %v6401 = vpop.permute.xlu0 %6400
      %6402 = vrot.lane.b32.xlu0 %v6393, 64
      %v6403 = vpop.permute.xlu0 %6402
      %6404 = vrot.lane.b32.xlu0 %v6394, 64
      %v6405 = vpop.permute.xlu0 %6404
      %6406 = vrot.lane.b32.xlu0 %v6395, 64
      %v6407 = vpop.permute.xlu0 %6406
      %6408 = vrot.lane.b32.xlu0 %v6396, 64
      %v6409 = vpop.permute.xlu0 %6408
      %6410 = vrot.lane.b32.xlu0 %v6397, 64
      %v6411 = vpop.permute.xlu0 %6410
      %6412 = vrot.lane.b32.xlu0 %v6398, 64
      %v6413 = vpop.permute.xlu0 %6412
      %6414 = vrot.lane.b32.xlu0 %v6399, 64
      %v6415 = vpop.permute.xlu0 %6414
      %v6418 = vunpack.c.l.b16 %v6242
      %v6419 = vunpack.c.l.b16 %v6243
      %v6420 = vpack.c.b16 %v6419, %v6418
      %6421 = vrot.lane.b32.xlu0 %v6297, 96
      %v6422 = vpop.permute.xlu0 %6421
      %6423 = vrot.lane.b32.xlu0 %v6298, 96
      %v6424 = vpop.permute.xlu0 %6423
      %6425 = vrot.lane.b32.xlu0 %v6299, 96
      %v6426 = vpop.permute.xlu0 %6425
      %6427 = vrot.lane.b32.xlu0 %v6300, 96
      %v6428 = vpop.permute.xlu0 %6427
      %6429 = vrot.lane.b32.xlu0 %v6301, 96
      %v6430 = vpop.permute.xlu0 %6429
      %6431 = vrot.lane.b32.xlu0 %v6302, 96
      %v6432 = vpop.permute.xlu0 %6431
      %6433 = vrot.lane.b32.xlu0 %v6303, 96
      %v6434 = vpop.permute.xlu0 %6433
      %6435 = vrot.lane.b32.xlu0 %v6420, 96
      %v6436 = vpop.permute.xlu0 %6435
      %v6439 = vunpack.c.l.b16 %v6246
      %v6440 = vunpack.c.l.b16 %v6247
      %v6441 = vpack.c.b16 %v6440, %v6439
      %v6444 = vunpack.c.l.b16 %v6250
      %v6445 = vunpack.c.l.b16 %v6251
      %v6446 = vpack.c.b16 %v6445, %v6444
      %6447 = vrot.lane.b32.xlu0 %v6393, 32
      %v6448 = vpop.permute.xlu0 %6447
      %6449 = vrot.lane.b32.xlu0 %v6394, 32
      %v6450 = vpop.permute.xlu0 %6449
      %6451 = vrot.lane.b32.xlu0 %v6395, 32
      %v6452 = vpop.permute.xlu0 %6451
      %6453 = vrot.lane.b32.xlu0 %v6396, 32
      %v6454 = vpop.permute.xlu0 %6453
      %6455 = vrot.lane.b32.xlu0 %v6397, 32
      %v6456 = vpop.permute.xlu0 %6455
      %6457 = vrot.lane.b32.xlu0 %v6398, 32
      %v6458 = vpop.permute.xlu0 %6457
      %6459 = vrot.lane.b32.xlu0 %v6399, 32
      %v6460 = vpop.permute.xlu0 %6459
      %6461 = vrot.lane.b32.xlu0 %v6446, 32
      %v6462 = vpop.permute.xlu0 %6461
      %v6465 = vunpack.c.l.b16 %v6254
      %v6466 = vunpack.c.l.b16 %v6255
      %v6467 = vpack.c.b16 %v6466, %v6465
      %6468 = vrot.lane.b32.xlu0 %v6298, 64
      %v6469 = vpop.permute.xlu0 %6468
      %6470 = vrot.lane.b32.xlu0 %v6299, 64
      %v6471 = vpop.permute.xlu0 %6470
      %6472 = vrot.lane.b32.xlu0 %v6300, 64
      %v6473 = vpop.permute.xlu0 %6472
      %6474 = vrot.lane.b32.xlu0 %v6301, 64
      %v6475 = vpop.permute.xlu0 %6474
      %6476 = vrot.lane.b32.xlu0 %v6302, 64
      %v6477 = vpop.permute.xlu0 %6476
      %6478 = vrot.lane.b32.xlu0 %v6303, 64
      %v6479 = vpop.permute.xlu0 %6478
      %6480 = vrot.lane.b32.xlu0 %v6420, 64
      %v6481 = vpop.permute.xlu0 %6480
      %6482 = vrot.lane.b32.xlu0 %v6467, 64
      %v6483 = vpop.permute.xlu0 %6482
      %v6486 = vunpack.c.l.b16 %v6258
      %v6487 = vunpack.c.l.b16 %v6259
      %v6488 = vpack.c.b16 %v6487, %v6486
      %6489 = vrot.lane.b32.xlu0 %v6338, 96
      %v6490 = vpop.permute.xlu0 %6489
      %6491 = vrot.lane.b32.xlu0 %v6339, 96
      %v6492 = vpop.permute.xlu0 %6491
      %6493 = vrot.lane.b32.xlu0 %v6340, 96
      %v6494 = vpop.permute.xlu0 %6493
      %6495 = vrot.lane.b32.xlu0 %v6341, 96
      %v6496 = vpop.permute.xlu0 %6495
      %6497 = vrot.lane.b32.xlu0 %v6342, 96
      %v6498 = vpop.permute.xlu0 %6497
      %6499 = vrot.lane.b32.xlu0 %v6343, 96
      %v6500 = vpop.permute.xlu0 %6499
      %6501 = vrot.lane.b32.xlu0 %v6441, 96
      %v6502 = vpop.permute.xlu0 %6501
      %6503 = vrot.lane.b32.xlu0 %v6488, 96
      %v6504 = vpop.permute.xlu0 %6503
      %v6507 = vunpack.c.l.b16 %v6262
      %v6508 = vunpack.c.l.b16 %v6263
      %v6509 = vpack.c.b16 %v6508, %v6507
      %v6512 = vsel %vm470, %v6296, %v6345
      %v6515 = vsel %vm470, %v6297, %v6347
      %v6518 = vsel %vm470, %v6298, %v6349
      %v6521 = vsel %vm470, %v6299, %v6351
      %v6524 = vsel %vm470, %v6300, %v6353
      %v6527 = vsel %vm470, %v6301, %v6355
      %v6530 = vsel %vm470, %v6302, %v6357
      %v6533 = vsel %vm470, %v6303, %v6359
      %v6535 = vsel %vm562, %v6512, %v6401
      %v6537 = vsel %vm562, %v6515, %v6403
      %v6539 = vsel %vm562, %v6518, %v6405
      %v6541 = vsel %vm562, %v6521, %v6407
      %v6543 = vsel %vm562, %v6524, %v6409
      %v6545 = vsel %vm562, %v6527, %v6411
      %v6547 = vsel %vm562, %v6530, %v6413
      %v6549 = vsel %vm562, %v6533, %v6415
      %v6551 = vsel %vm3306, %v6535, %v6422
      %v6554 = vsel %vm3306, %v6537, %v6424
      %v6557 = vsel %vm3306, %v6539, %v6426
      %v6560 = vsel %vm3306, %v6541, %v6428
      %v6563 = vsel %vm3306, %v6543, %v6430
      %v6566 = vsel %vm3306, %v6545, %v6432
      %v6569 = vsel %vm3306, %v6547, %v6434
      %v6572 = vsel %vm3306, %v6549, %v6436
      %v6576 = vsel %vm470, %v6337, %v6448
      %v6579 = vsel %vm470, %v6338, %v6450
      %v6582 = vsel %vm470, %v6339, %v6452
      %v6585 = vsel %vm470, %v6340, %v6454
      %v6588 = vsel %vm470, %v6341, %v6456
      %v6591 = vsel %vm470, %v6342, %v6458
      %v6594 = vsel %vm470, %v6343, %v6460
      %v6597 = vsel %vm470, %v6441, %v6462
      %v6599 = vsel %vm562, %v6576, %v6469
      %v6601 = vsel %vm562, %v6579, %v6471
      %v6603 = vsel %vm562, %v6582, %v6473
      %v6605 = vsel %vm562, %v6585, %v6475
      %v6607 = vsel %vm562, %v6588, %v6477
      %v6609 = vsel %vm562, %v6591, %v6479
      %v6611 = vsel %vm562, %v6594, %v6481
      %v6613 = vsel %vm562, %v6597, %v6483
      %v6615 = vsel %vm3306, %v6599, %v6490
      %v6618 = vsel %vm3306, %v6601, %v6492
      %v6621 = vsel %vm3306, %v6603, %v6494
      %v6624 = vsel %vm3306, %v6605, %v6496
      %v6627 = vsel %vm3306, %v6607, %v6498
      %v6630 = vsel %vm3306, %v6609, %v6500
      %v6633 = vsel %vm3306, %v6611, %v6502
      %v6636 = vsel %vm3306, %v6613, %v6504
      %v6638 = vld [vmem:[%s9] sm:$0xf]
      %v6639 = vld [vmem:[%s9 + $0x4] sm:$0xf]
      %v6640 = vld [vmem:[%s9 + $0x8] sm:$0xf]
      %v6641 = vld [vmem:[%s9 + $0xc] sm:$0xf]
      %v6642 = vld [vmem:[%s9 + $0x10] sm:$0xf]
      %v6643 = vld [vmem:[%s9 + $0x14] sm:$0xf]
      %v6644 = vld [vmem:[%s9 + $0x18] sm:$0xf]
      %v6645 = vld [vmem:[%s9 + $0x1c] sm:$0xf]
      %v6646 = vld [vmem:[%s9 + $0x20] sm:$0xf]
      %v6647 = vld [vmem:[%s9 + $0x24] sm:$0xf]
      %v6648 = vld [vmem:[%s9 + $0x28] sm:$0xf]
      %v6649 = vld [vmem:[%s9 + $0x2c] sm:$0xf]
      %v6650 = vld [vmem:[%s9 + $0x30] sm:$0xf]
      %v6651 = vld [vmem:[%s9 + $0x34] sm:$0xf]
      %v6652 = vld [vmem:[%s9 + $0x38] sm:$0xf]
      %v6653 = vld [vmem:[%s9 + $0x3c] sm:$0xf]
      %v6654 = vld [vmem:[%s9 + $0x40] sm:$0xf]
      %v6655 = vld [vmem:[%s9 + $0x44] sm:$0xf]
      %v6656 = vld [vmem:[%s9 + $0x48] sm:$0xf]
      %v6657 = vld [vmem:[%s9 + $0x4c] sm:$0xf]
      %v6658 = vld [vmem:[%s9 + $0x50] sm:$0xf]
      %v6659 = vld [vmem:[%s9 + $0x54] sm:$0xf]
      %v6660 = vld [vmem:[%s9 + $0x58] sm:$0xf]
      %v6661 = vld [vmem:[%s9 + $0x5c] sm:$0xf]
      %v6662 = vld [vmem:[%s9 + $0x60] sm:$0xf]
      %v6663 = vld [vmem:[%s9 + $0x64] sm:$0xf]
      %v6664 = vld [vmem:[%s9 + $0x68] sm:$0xf]
      %v6665 = vld [vmem:[%s9 + $0x6c] sm:$0xf]
      %v6666 = vld [vmem:[%s9 + $0x70] sm:$0xf]
      %v6667 = vld [vmem:[%s9 + $0x74] sm:$0xf]
      %v6668 = vld [vmem:[%s9 + $0x78] sm:$0xf]
      %v6669 = vld [vmem:[%s9 + $0x7c] sm:$0xf]
      %v6670 = vld [vmem:[%s9 + $0x80] sm:$0xf]
      %v6671 = vld [vmem:[%s9 + $0x84] sm:$0xf]
      %v6672 = vld [vmem:[%s9 + $0x88] sm:$0xf]
      %v6673 = vld [vmem:[%s9 + $0x8c] sm:$0xf]
      %v6674 = vld [vmem:[%s10] sm:$0x1]
      %v6676 = vperm.slane %v6674, 0
      %v6714 = vunpack.c.l.b16 %v6638
      %v6715 = vunpack.c.l.b16 %v6639
      %v6716 = vunpack.c.l.b16 %v6640
      %v6717 = vunpack.c.l.b16 %v6641
      %v6718 = vunpack.c.l.b16 %v6642
      %v6719 = vunpack.c.l.b16 %v6643
      %v6720 = vunpack.c.l.b16 %v6644
      %v6721 = vunpack.c.l.b16 %v6645
      %v6722 = vunpack.c.l.b16 %v6646
      %v6723 = vunpack.c.l.b16 %v6647
      %v6724 = vunpack.c.l.b16 %v6648
      %v6725 = vunpack.c.l.b16 %v6649
      %v6726 = vunpack.c.l.b16 %v6650
      %v6727 = vunpack.c.l.b16 %v6651
      %v6728 = vunpack.c.l.b16 %v6652
      %v6729 = vunpack.c.l.b16 %v6653
      %v6730 = vunpack.c.l.b16 %v6654
      %v6731 = vunpack.c.l.b16 %v6655
      %v6732 = vunpack.c.l.b16 %v6656
      %v6733 = vunpack.c.l.b16 %v6657
      %v6734 = vunpack.c.l.b16 %v6658
      %v6735 = vunpack.c.l.b16 %v6659
      %v6736 = vunpack.c.l.b16 %v6660
      %v6737 = vunpack.c.l.b16 %v6661
      %v6738 = vunpack.c.l.b16 %v6662
      %v6739 = vunpack.c.l.b16 %v6663
      %v6740 = vunpack.c.l.b16 %v6664
      %v6741 = vunpack.c.l.b16 %v6665
      %v6742 = vunpack.c.l.b16 %v6666
      %v6743 = vunpack.c.l.b16 %v6667
      %v6744 = vunpack.c.l.b16 %v6668
      %v6745 = vunpack.c.l.b16 %v6669
      %v6746 = vunpack.c.l.b16 %v6670
      %v6747 = vunpack.c.l.b16 %v6671
      %v6748 = vunpack.c.l.b16 %v6672
      %v6749 = vunpack.c.l.b16 %v6673
      %v6750 = vpack.c.b16 %v6715, %v6714
      %v6751 = vpack.c.b16 %v6717, %v6716
      %v6752 = vpack.c.b16 %v6719, %v6718
      %v6753 = vpack.c.b16 %v6721, %v6720
      %v6754 = vpack.c.b16 %v6723, %v6722
      %v6755 = vpack.c.b16 %v6725, %v6724
      %v6756 = vpack.c.b16 %v6727, %v6726
      %v6757 = vpack.c.b16 %v6729, %v6728
      %v6758 = vpack.c.b16 %v6731, %v6730
      %v6759 = vpack.c.b16 %v6733, %v6732
      %v6760 = vpack.c.b16 %v6735, %v6734
      %v6761 = vpack.c.b16 %v6737, %v6736
      %v6762 = vpack.c.b16 %v6739, %v6738
      %v6763 = vpack.c.b16 %v6741, %v6740
      %v6764 = vpack.c.b16 %v6743, %v6742
      %v6765 = vpack.c.b16 %v6745, %v6744
      %v6766 = vpack.c.b16 %v6747, %v6746
      %v6767 = vpack.c.b16 %v6749, %v6748
      %v6787 = vsel %vm470, %v6394, 0
      %v6790 = vsel %vm470, %v6395, 0
      %v6793 = vsel %vm470, %v6396, 0
      %v6796 = vsel %vm470, %v6397, 0
      %v6799 = vsel %vm470, %v6398, 0
      %v6802 = vsel %vm470, %v6399, 0
      %v6805 = vsel %vm470, %v6446, 0
      %v6808 = vsel %vm470, %v6509, 0
      %6810 = vmatpush.bf16.msra.mxu0 %v6757
      %6811 = vmatpush.bf16.msra.mxu0 %v6756
      %6812 = vmatpush.bf16.msra.mxu0 %v6755
      %6813 = vmatpush.bf16.msra.mxu0 %v6754
      %6814 = vmatpush.bf16.msra.mxu0 %v6753
      %6815 = vmatpush.bf16.msra.mxu0 %v6752
      %6816 = vmatpush.bf16.msra.mxu0 %v6751
      %6817 = vmatpush.bf16.msra.mxu0 %v6750
      %6818 = vmatmul.bf16.gmra.mxu0 %v6551
      %v6819 = vpop.f32.mrf.mxu0
      %v6820 = vadd.f32 %v6676, %v6819
      %v6821 = vpop.f32.mrf.mxu0
      %v6822 = vadd.f32 %v6676, %v6821
      %6823 = vmatmul.bf16.gmra.mxu0 %v6554
      %v6824 = vpop.f32.mrf.mxu0
      %v6825 = vadd.f32 %v6676, %v6824
      %v6826 = vpop.f32.mrf.mxu0
      %v6827 = vadd.f32 %v6676, %v6826
      %6828 = vmatmul.bf16.gmra.mxu0 %v6557
      %v6829 = vpop.f32.mrf.mxu0
      %v6830 = vadd.f32 %v6676, %v6829
      %v6831 = vpop.f32.mrf.mxu0
      %v6832 = vadd.f32 %v6676, %v6831
      %6833 = vmatmul.bf16.gmra.mxu0 %v6560
      %v6834 = vpop.f32.mrf.mxu0
      %v6835 = vadd.f32 %v6676, %v6834
      %v6836 = vpop.f32.mrf.mxu0
      %v6837 = vadd.f32 %v6676, %v6836
      %6838 = vmatmul.bf16.gmra.mxu0 %v6563
      %v6839 = vpop.f32.mrf.mxu0
      %v6840 = vadd.f32 %v6676, %v6839
      %v6841 = vpop.f32.mrf.mxu0
      %v6842 = vadd.f32 %v6676, %v6841
      %6843 = vmatmul.bf16.gmra.mxu0 %v6566
      %v6844 = vpop.f32.mrf.mxu0
      %v6845 = vadd.f32 %v6676, %v6844
      %v6846 = vpop.f32.mrf.mxu0
      %v6847 = vadd.f32 %v6676, %v6846
      %6848 = vmatmul.bf16.gmra.mxu0 %v6569
      %v6849 = vpop.f32.mrf.mxu0
      %v6850 = vadd.f32 %v6676, %v6849
      %v6851 = vpop.f32.mrf.mxu0
      %v6852 = vadd.f32 %v6676, %v6851
      %6853 = vmatmul.bf16.gmra.mxu0 %v6572
      %v6854 = vpop.f32.mrf.mxu0
      %v6855 = vadd.f32 %v6676, %v6854
      %v6856 = vpop.f32.mrf.mxu0
      %v6857 = vadd.f32 %v6676, %v6856
      %6858 = vdwg.mxu0
      %6859 = vmatpush.bf16.msra.mxu0 %v6765
      %6860 = vmatpush.bf16.msra.mxu0 %v6764
      %6861 = vmatpush.bf16.msra.mxu0 %v6763
      %6862 = vmatpush.bf16.msra.mxu0 %v6762
      %6863 = vmatpush.bf16.msra.mxu0 %v6761
      %6864 = vmatpush.bf16.msra.mxu0 %v6760
      %6865 = vmatpush.bf16.msra.mxu0 %v6759
      %6866 = vmatpush.bf16.msra.mxu0 %v6758
      %6867 = vmatmul.bf16.gmra.mxu0 %v6615
      %v6868 = vpop.f32.mrf.mxu0
      %v6869 = vadd.f32 %v6820, %v6868
      %v6870 = vpop.f32.mrf.mxu0
      %v6871 = vadd.f32 %v6822, %v6870
      %6872 = vmatmul.bf16.gmra.mxu0 %v6618
      %v6873 = vpop.f32.mrf.mxu0
      %v6874 = vadd.f32 %v6825, %v6873
      %v6875 = vpop.f32.mrf.mxu0
      %v6876 = vadd.f32 %v6827, %v6875
      %6877 = vmatmul.bf16.gmra.mxu0 %v6621
      %v6878 = vpop.f32.mrf.mxu0
      %v6879 = vadd.f32 %v6830, %v6878
      %v6880 = vpop.f32.mrf.mxu0
      %v6881 = vadd.f32 %v6832, %v6880
      %6882 = vmatmul.bf16.gmra.mxu0 %v6624
      %v6883 = vpop.f32.mrf.mxu0
      %v6884 = vadd.f32 %v6835, %v6883
      %v6885 = vpop.f32.mrf.mxu0
      %v6886 = vadd.f32 %v6837, %v6885
      %6887 = vmatmul.bf16.gmra.mxu0 %v6627
      %v6888 = vpop.f32.mrf.mxu0
      %v6889 = vadd.f32 %v6840, %v6888
      %v6890 = vpop.f32.mrf.mxu0
      %v6891 = vadd.f32 %v6842, %v6890
      %6892 = vmatmul.bf16.gmra.mxu0 %v6630
      %v6893 = vpop.f32.mrf.mxu0
      %v6894 = vadd.f32 %v6845, %v6893
      %v6895 = vpop.f32.mrf.mxu0
      %v6896 = vadd.f32 %v6847, %v6895
      %6897 = vmatmul.bf16.gmra.mxu0 %v6633
      %v6898 = vpop.f32.mrf.mxu0
      %v6899 = vadd.f32 %v6850, %v6898
      %v6900 = vpop.f32.mrf.mxu0
      %v6901 = vadd.f32 %v6852, %v6900
      %6902 = vmatmul.bf16.gmra.mxu0 %v6636
      %v6903 = vpop.f32.mrf.mxu0
      %v6904 = vadd.f32 %v6855, %v6903
      %v6905 = vpop.f32.mrf.mxu0
      %v6906 = vadd.f32 %v6857, %v6905
      %6907 = vdwg.mxu0
      %6908 = vmatpush.bf16.msra.mxu0 0
      %6909 = vmatpush.bf16.msra.mxu0 0
      %6910 = vmatpush.bf16.msra.mxu0 0
      %6911 = vmatpush.bf16.msra.mxu0 0
      %6912 = vmatpush.bf16.msra.mxu0 0
      %6913 = vmatpush.bf16.msra.mxu0 0
      %6914 = vmatpush.bf16.msra.mxu0 %v6767
      %6915 = vmatpush.bf16.msra.mxu0 %v6766
      %6916 = vmatmul.bf16.gmra.mxu0 %v6787
      %v6917 = vpop.f32.mrf.mxu0
      %v6918 = vadd.f32 %v6869, %v6917
      %v6919 = vpop.f32.mrf.mxu0
      %v6920 = vadd.f32 %v6871, %v6919
      %6921 = vmatmul.bf16.gmra.mxu0 %v6790
      %v6922 = vpop.f32.mrf.mxu0
      %v6923 = vadd.f32 %v6874, %v6922
      %v6924 = vpop.f32.mrf.mxu0
      %v6925 = vadd.f32 %v6876, %v6924
      %6926 = vmatmul.bf16.gmra.mxu0 %v6793
      %v6927 = vpop.f32.mrf.mxu0
      %v6928 = vadd.f32 %v6879, %v6927
      %v6929 = vpop.f32.mrf.mxu0
      %v6930 = vadd.f32 %v6881, %v6929
      %6931 = vmatmul.bf16.gmra.mxu0 %v6796
      %v6932 = vpop.f32.mrf.mxu0
      %v6933 = vadd.f32 %v6884, %v6932
      %v6934 = vpop.f32.mrf.mxu0
      %v6935 = vadd.f32 %v6886, %v6934
      %6936 = vmatmul.bf16.gmra.mxu0 %v6799
      %v6937 = vpop.f32.mrf.mxu0
      %v6938 = vadd.f32 %v6889, %v6937
      %v6939 = vpop.f32.mrf.mxu0
      %v6940 = vadd.f32 %v6891, %v6939
      %6941 = vmatmul.bf16.gmra.mxu0 %v6802
      %v6942 = vpop.f32.mrf.mxu0
      %v6943 = vadd.f32 %v6894, %v6942
      %v6944 = vpop.f32.mrf.mxu0
      %v6945 = vadd.f32 %v6896, %v6944
      %6946 = vmatmul.bf16.gmra.mxu0 %v6805
      %v6947 = vpop.f32.mrf.mxu0
      %v6948 = vadd.f32 %v6899, %v6947
      %v6949 = vpop.f32.mrf.mxu0
      %v6950 = vadd.f32 %v6901, %v6949
      %6951 = vmatmul.bf16.gmra.mxu0 %v6808
      %v6952 = vpop.f32.mrf.mxu0
      %v6953 = vadd.f32 %v6904, %v6952
      %v6954 = vpop.f32.mrf.mxu0
      %v6955 = vadd.f32 %v6906, %v6954
      %6956 = vdwg.mxu0
      %v6957 = vmax.f32 %v6918, 0.0
      %v6958 = vmax.f32 %v6920, 0.0
      %v6959 = vmax.f32 %v6923, 0.0
      %v6960 = vmax.f32 %v6925, 0.0
      %v6961 = vmax.f32 %v6928, 0.0
      %v6962 = vmax.f32 %v6930, 0.0
      %v6963 = vmax.f32 %v6933, 0.0
      %v6964 = vmax.f32 %v6935, 0.0
      %v6965 = vmax.f32 %v6938, 0.0
      %v6966 = vmax.f32 %v6940, 0.0
      %v6967 = vmax.f32 %v6943, 0.0
      %v6968 = vmax.f32 %v6945, 0.0
      %v6969 = vmax.f32 %v6948, 0.0
      %v6970 = vmax.f32 %v6950, 0.0
      %v6971 = vmax.f32 %v6953, 0.0
      %v6972 = vmax.f32 %v6955, 0.0
      %vm6975 = vcmask 1046528
      %v6976 = vrot.slane %v6957, 1
      %v6977 = vrot.slane %v6958, 1
      %v6978 = vsel %vm6975, %v6976, %v6977
      %s6980 = scalar_lea.vmem [#allocation8], 26
      %6981 = vst [vmem:[%s6980] ss:$2 sm:$0xff] %v6978
      %v6984 = vrot.slane %v6959, 1
      %v6985 = vrot.slane %v6960, 1
      %v6986 = vsel %vm6975, %v6984, %v6985
      %s6988 = scalar_lea.vmem [#allocation8], 74
      %6989 = vst [vmem:[%s6988] ss:$2 sm:$0xff] %v6986
      %v6992 = vrot.slane %v6961, 1
      %v6993 = vrot.slane %v6962, 1
      %v6994 = vsel %vm6975, %v6992, %v6993
      %s6996 = scalar_lea.vmem [#allocation8], 122
      %6997 = vst [vmem:[%s6996] ss:$2 sm:$0xff] %v6994
      %v7000 = vrot.slane %v6963, 1
      %v7001 = vrot.slane %v6964, 1
      %v7002 = vsel %vm6975, %v7000, %v7001
      %s7004 = scalar_lea.vmem [#allocation8], 170
      %7005 = vst [vmem:[%s7004] ss:$2 sm:$0xff] %v7002
      %v7008 = vrot.slane %v6965, 1
      %v7009 = vrot.slane %v6966, 1
      %v7010 = vsel %vm6975, %v7008, %v7009
      %s7012 = scalar_lea.vmem [#allocation8], 218
      %7013 = vst [vmem:[%s7012] ss:$2 sm:$0xff] %v7010
      %v7016 = vrot.slane %v6967, 1
      %v7017 = vrot.slane %v6968, 1
      %v7018 = vsel %vm6975, %v7016, %v7017
      %s7020 = scalar_lea.vmem [#allocation8], 266
      %7021 = vst [vmem:[%s7020] ss:$2 sm:$0xff] %v7018
      %v7024 = vrot.slane %v6969, 1
      %v7025 = vrot.slane %v6970, 1
      %v7026 = vsel %vm6975, %v7024, %v7025
      %s7028 = scalar_lea.vmem [#allocation8], 314
      %7029 = vst [vmem:[%s7028] ss:$2 sm:$0xff] %v7026
      %v7032 = vrot.slane %v6971, 1
      %v7033 = vrot.slane %v6972, 1
      %v7034 = vsel %vm6975, %v7032, %v7033
      %s7036 = scalar_lea.vmem [#allocation8], 362
      %7037 = vst [vmem:[%s7036] ss:$2 sm:$0xff] %v7034
      %7038 = vrot.lane.b32.xlu0 %v6978, 112
      %v7039 = vpop.permute.xlu0 %7038
      %s7041 = scalar_lea.vmem [#allocation8], 27
      %7042 = vst [vmem:[%s7041] ss:$2 sm:$0xff] %v7039
      %7043 = vrot.lane.b32.xlu0 %v6986, 112
      %v7044 = vpop.permute.xlu0 %7043
      %s7046 = scalar_lea.vmem [#allocation8], 75
      %7047 = vst [vmem:[%s7046] ss:$2 sm:$0xff] %v7044
      %7048 = vrot.lane.b32.xlu0 %v6994, 112
      %v7049 = vpop.permute.xlu0 %7048
      %s7051 = scalar_lea.vmem [#allocation8], 123
      %7052 = vst [vmem:[%s7051] ss:$2 sm:$0xff] %v7049
      %7053 = vrot.lane.b32.xlu0 %v7002, 112
      %v7054 = vpop.permute.xlu0 %7053
      %s7056 = scalar_lea.vmem [#allocation8], 171
      %7057 = vst [vmem:[%s7056] ss:$2 sm:$0xff] %v7054
      %7058 = vrot.lane.b32.xlu0 %v7010, 112
      %v7059 = vpop.permute.xlu0 %7058
      %s7061 = scalar_lea.vmem [#allocation8], 219
      %7062 = vst [vmem:[%s7061] ss:$2 sm:$0xff] %v7059
      %7063 = vrot.lane.b32.xlu0 %v7018, 112
      %v7064 = vpop.permute.xlu0 %7063
      %s7066 = scalar_lea.vmem [#allocation8], 267
      %7067 = vst [vmem:[%s7066] ss:$2 sm:$0xff] %v7064
      %7068 = vrot.lane.b32.xlu0 %v7026, 112
      %v7069 = vpop.permute.xlu0 %7068
      %s7071 = scalar_lea.vmem [#allocation8], 315
      %7072 = vst [vmem:[%s7071] ss:$2 sm:$0xff] %v7069
      %7073 = vrot.lane.b32.xlu0 %v7034, 112
      %v7074 = vpop.permute.xlu0 %7073
      %s7076 = scalar_lea.vmem [#allocation8], 363
      %7077 = vst [vmem:[%s7076] ss:$2 sm:$0xff] %v7074
      %7078 = vrot.lane.b32.xlu0 %v6978, 96
      %v7079 = vpop.permute.xlu0 %7078
      %s7081 = scalar_lea.vmem [#allocation8], 50
      %7082 = vst [vmem:[%s7081] ss:$2 sm:$0xff] %v7079
      %7083 = vrot.lane.b32.xlu0 %v6986, 96
      %v7084 = vpop.permute.xlu0 %7083
      %s7086 = scalar_lea.vmem [#allocation8], 98
      %7087 = vst [vmem:[%s7086] ss:$2 sm:$0xff] %v7084
      %7088 = vrot.lane.b32.xlu0 %v6994, 96
      %v7089 = vpop.permute.xlu0 %7088
      %s7091 = scalar_lea.vmem [#allocation8], 146
      %7092 = vst [vmem:[%s7091] ss:$2 sm:$0xff] %v7089
      %7093 = vrot.lane.b32.xlu0 %v7002, 96
      %v7094 = vpop.permute.xlu0 %7093
      %s7096 = scalar_lea.vmem [#allocation8], 194
      %7097 = vst [vmem:[%s7096] ss:$2 sm:$0xff] %v7094
      %7098 = vrot.lane.b32.xlu0 %v7010, 96
      %v7099 = vpop.permute.xlu0 %7098
      %s7101 = scalar_lea.vmem [#allocation8], 242
      %7102 = vst [vmem:[%s7101] ss:$2 sm:$0xff] %v7099
      %7103 = vrot.lane.b32.xlu0 %v7018, 96
      %v7104 = vpop.permute.xlu0 %7103
      %s7106 = scalar_lea.vmem [#allocation8], 290
      %7107 = vst [vmem:[%s7106] ss:$2 sm:$0xff] %v7104
      %7108 = vrot.lane.b32.xlu0 %v7026, 96
      %v7109 = vpop.permute.xlu0 %7108
      %s7111 = scalar_lea.vmem [#allocation8], 338
      %7112 = vst [vmem:[%s7111] ss:$2 sm:$0xff] %v7109
      %7113 = vrot.lane.b32.xlu0 %v7034, 96
      %v7114 = vpop.permute.xlu0 %7113
      %s7116 = scalar_lea.vmem [#allocation8], 386
      %7117 = vst [vmem:[%s7116] ss:$2 sm:$0xff] %v7114
      %7118 = vrot.lane.b32.xlu0 %v6978, 80
      %v7119 = vpop.permute.xlu0 %7118
      %s7121 = scalar_lea.vmem [#allocation8], 51
      %7122 = vst [vmem:[%s7121] ss:$2 sm:$0xff] %v7119
      %7123 = vrot.lane.b32.xlu0 %v6986, 80
      %v7124 = vpop.permute.xlu0 %7123
      %s7126 = scalar_lea.vmem [#allocation8], 99
      %7127 = vst [vmem:[%s7126] ss:$2 sm:$0xff] %v7124
      %7128 = vrot.lane.b32.xlu0 %v6994, 80
      %v7129 = vpop.permute.xlu0 %7128
      %s7131 = scalar_lea.vmem [#allocation8], 147
      %7132 = vst [vmem:[%s7131] ss:$2 sm:$0xff] %v7129
      %7133 = vrot.lane.b32.xlu0 %v7002, 80
      %v7134 = vpop.permute.xlu0 %7133
      %s7136 = scalar_lea.vmem [#allocation8], 195
      %7137 = vst [vmem:[%s7136] ss:$2 sm:$0xff] %v7134
      %7138 = vrot.lane.b32.xlu0 %v7010, 80
      %v7139 = vpop.permute.xlu0 %7138
      %s7141 = scalar_lea.vmem [#allocation8], 243
      %7142 = vst [vmem:[%s7141] ss:$2 sm:$0xff] %v7139
      %7143 = vrot.lane.b32.xlu0 %v7018, 80
      %v7144 = vpop.permute.xlu0 %7143
      %s7146 = scalar_lea.vmem [#allocation8], 291
      %7147 = vst [vmem:[%s7146] ss:$2 sm:$0xff] %v7144
      %7148 = vrot.lane.b32.xlu0 %v7026, 80
      %v7149 = vpop.permute.xlu0 %7148
      %s7151 = scalar_lea.vmem [#allocation8], 339
      %7152 = vst [vmem:[%s7151] ss:$2 sm:$0xff] %v7149
      %7153 = vrot.lane.b32.xlu0 %v7034, 80
      %v7154 = vpop.permute.xlu0 %7153
      %s7156 = scalar_lea.vmem [#allocation8], 387
      %7157 = vst [vmem:[%s7156] ss:$2 sm:$0xff] %v7154
      %v7158 = vld [vmem:[#allocation8] sm:$0xff]
      %v7159 = vld [vmem:[#allocation8 + $0x8] sm:$0xff]
      %v7160 = vld [vmem:[#allocation8 + $0x10] sm:$0xff]
      %v7161 = vld [vmem:[#allocation8 + $0x18] sm:$0xff]
      %v7162 = vld [vmem:[#allocation8 + $0x20] sm:$0xff]
      %v7163 = vld [vmem:[#allocation8 + $0x28] sm:$0xff]
      %v7164 = vld [vmem:[#allocation8 + $0x30] sm:$0xff]
      %v7165 = vld [vmem:[#allocation8 + $0x38] sm:$0xff]
      %v7166 = vld [vmem:[#allocation8 + $0x40] sm:$0xff]
      %v7167 = vld [vmem:[#allocation8 + $0x48] sm:$0xff]
      %v7168 = vld [vmem:[#allocation8 + $0x50] sm:$0xff]
      %v7169 = vld [vmem:[#allocation8 + $0x58] sm:$0xff]
      %v7170 = vld [vmem:[#allocation8 + $0x60] sm:$0xff]
      %v7171 = vld [vmem:[#allocation8 + $0x68] sm:$0xff]
      %v7172 = vld [vmem:[#allocation8 + $0x70] sm:$0xff]
      %v7173 = vld [vmem:[#allocation8 + $0x78] sm:$0xff]
      %v7174 = vld [vmem:[#allocation8 + $0x80] sm:$0xff]
      %v7175 = vld [vmem:[#allocation8 + $0x88] sm:$0xff]
      %v7176 = vld [vmem:[#allocation8 + $0x90] sm:$0xff]
      %v7177 = vld [vmem:[#allocation8 + $0x98] sm:$0xff]
      %v7178 = vld [vmem:[#allocation8 + $0xa0] sm:$0xff]
      %v7179 = vld [vmem:[#allocation8 + $0xa8] sm:$0xff]
      %v7180 = vld [vmem:[#allocation8 + $0xb0] sm:$0xff]
      %v7181 = vld [vmem:[#allocation8 + $0xb8] sm:$0xff]
      %v7182 = vld [vmem:[#allocation8 + $0xc0] sm:$0xff]
      %v7183 = vld [vmem:[#allocation8 + $0xc8] sm:$0xff]
      %v7184 = vld [vmem:[#allocation8 + $0xd0] sm:$0xff]
      %v7185 = vld [vmem:[#allocation8 + $0xd8] sm:$0xff]
      %v7186 = vld [vmem:[#allocation8 + $0xe0] sm:$0xff]
      %v7187 = vld [vmem:[#allocation8 + $0xe8] sm:$0xff]
      %v7188 = vld [vmem:[#allocation8 + $0xf0] sm:$0xff]
      %v7189 = vld [vmem:[#allocation8 + $0xf8] sm:$0xff]
      %v7190 = vld [vmem:[#allocation8 + $0x100] sm:$0xff]
      %v7191 = vld [vmem:[#allocation8 + $0x108] sm:$0xff]
      %v7192 = vld [vmem:[#allocation8 + $0x110] sm:$0xff]
      %v7193 = vld [vmem:[#allocation8 + $0x118] sm:$0xff]
      %v7194 = vld [vmem:[#allocation8 + $0x120] sm:$0xff]
      %v7195 = vld [vmem:[#allocation8 + $0x128] sm:$0xff]
      %v7196 = vld [vmem:[#allocation8 + $0x130] sm:$0xff]
      %v7197 = vld [vmem:[#allocation8 + $0x138] sm:$0xff]
      %v7198 = vld [vmem:[#allocation8 + $0x140] sm:$0xff]
      %v7199 = vld [vmem:[#allocation8 + $0x148] sm:$0xff]
      %v7200 = vld [vmem:[#allocation8 + $0x150] sm:$0xff]
      %v7201 = vld [vmem:[#allocation8 + $0x158] sm:$0xff]
      %v7202 = vld [vmem:[#allocation8 + $0x160] sm:$0xff]
      %v7203 = vld [vmem:[#allocation8 + $0x168] sm:$0xff]
      %v7204 = vld [vmem:[#allocation8 + $0x170] sm:$0xff]
      %v7205 = vld [vmem:[#allocation8 + $0x178] sm:$0xff]
      %v7206 = vpack.c.bf16 %v7158, %v7158
      %v7207 = vpack.c.bf16 %v7159, %v7159
      %v7208 = vpack.c.bf16 %v7160, %v7160
      %v7209 = vpack.c.bf16 %v7161, %v7161
      %v7210 = vpack.c.bf16 %v7162, %v7162
      %v7211 = vpack.c.bf16 %v7163, %v7163
      %v7212 = vpack.c.bf16 %v7164, %v7164
      %v7213 = vpack.c.bf16 %v7165, %v7165
      %v7214 = vpack.c.bf16 %v7166, %v7166
      %v7215 = vpack.c.bf16 %v7167, %v7167
      %v7216 = vpack.c.bf16 %v7168, %v7168
      %v7217 = vpack.c.bf16 %v7169, %v7169
      %v7218 = vpack.c.bf16 %v7170, %v7170
      %v7219 = vpack.c.bf16 %v7171, %v7171
      %v7220 = vpack.c.bf16 %v7172, %v7172
      %v7221 = vpack.c.bf16 %v7173, %v7173
      %v7222 = vpack.c.bf16 %v7174, %v7174
      %v7223 = vpack.c.bf16 %v7175, %v7175
      %v7224 = vpack.c.bf16 %v7176, %v7176
      %v7225 = vpack.c.bf16 %v7177, %v7177
      %v7226 = vpack.c.bf16 %v7178, %v7178
      %v7227 = vpack.c.bf16 %v7179, %v7179
      %v7228 = vpack.c.bf16 %v7180, %v7180
      %v7229 = vpack.c.bf16 %v7181, %v7181
      %v7230 = vpack.c.bf16 %v7182, %v7182
      %v7231 = vpack.c.bf16 %v7183, %v7183
      %v7232 = vpack.c.bf16 %v7184, %v7184
      %v7233 = vpack.c.bf16 %v7185, %v7185
      %v7234 = vpack.c.bf16 %v7186, %v7186
      %v7235 = vpack.c.bf16 %v7187, %v7187
      %v7236 = vpack.c.bf16 %v7188, %v7188
      %v7237 = vpack.c.bf16 %v7189, %v7189
      %v7238 = vpack.c.bf16 %v7190, %v7190
      %v7239 = vpack.c.bf16 %v7191, %v7191
      %v7240 = vpack.c.bf16 %v7192, %v7192
      %v7241 = vpack.c.bf16 %v7193, %v7193
      %v7242 = vpack.c.bf16 %v7194, %v7194
      %v7243 = vpack.c.bf16 %v7195, %v7195
      %v7244 = vpack.c.bf16 %v7196, %v7196
      %v7245 = vpack.c.bf16 %v7197, %v7197
      %v7246 = vpack.c.bf16 %v7198, %v7198
      %v7247 = vpack.c.bf16 %v7199, %v7199
      %v7248 = vpack.c.bf16 %v7200, %v7200
      %v7249 = vpack.c.bf16 %v7201, %v7201
      %v7250 = vpack.c.bf16 %v7202, %v7202
      %v7251 = vpack.c.bf16 %v7203, %v7203
      %v7252 = vpack.c.bf16 %v7204, %v7204
      %v7253 = vpack.c.bf16 %v7205, %v7205
      %v7254 = vld [vmem:[#allocation8 + $0x1] sm:$0xff]
      %v7255 = vld [vmem:[#allocation8 + $0x9] sm:$0xff]
      %v7256 = vld [vmem:[#allocation8 + $0x11] sm:$0xff]
      %v7257 = vld [vmem:[#allocation8 + $0x19] sm:$0xff]
      %v7258 = vld [vmem:[#allocation8 + $0x21] sm:$0xff]
      %v7259 = vld [vmem:[#allocation8 + $0x29] sm:$0xff]
      %v7260 = vld [vmem:[#allocation8 + $0x31] sm:$0xff]
      %v7261 = vld [vmem:[#allocation8 + $0x39] sm:$0xff]
      %v7262 = vld [vmem:[#allocation8 + $0x41] sm:$0xff]
      %v7263 = vld [vmem:[#allocation8 + $0x49] sm:$0xff]
      %v7264 = vld [vmem:[#allocation8 + $0x51] sm:$0xff]
      %v7265 = vld [vmem:[#allocation8 + $0x59] sm:$0xff]
      %v7266 = vld [vmem:[#allocation8 + $0x61] sm:$0xff]
      %v7267 = vld [vmem:[#allocation8 + $0x69] sm:$0xff]
      %v7268 = vld [vmem:[#allocation8 + $0x71] sm:$0xff]
      %v7269 = vld [vmem:[#allocation8 + $0x79] sm:$0xff]
      %v7270 = vld [vmem:[#allocation8 + $0x81] sm:$0xff]
      %v7271 = vld [vmem:[#allocation8 + $0x89] sm:$0xff]
      %v7272 = vld [vmem:[#allocation8 + $0x91] sm:$0xff]
      %v7273 = vld [vmem:[#allocation8 + $0x99] sm:$0xff]
      %v7274 = vld [vmem:[#allocation8 + $0xa1] sm:$0xff]
      %v7275 = vld [vmem:[#allocation8 + $0xa9] sm:$0xff]
      %v7276 = vld [vmem:[#allocation8 + $0xb1] sm:$0xff]
      %v7277 = vld [vmem:[#allocation8 + $0xb9] sm:$0xff]
      %v7278 = vld [vmem:[#allocation8 + $0xc1] sm:$0xff]
      %v7279 = vld [vmem:[#allocation8 + $0xc9] sm:$0xff]
      %v7280 = vld [vmem:[#allocation8 + $0xd1] sm:$0xff]
      %v7281 = vld [vmem:[#allocation8 + $0xd9] sm:$0xff]
      %v7282 = vld [vmem:[#allocation8 + $0xe1] sm:$0xff]
      %v7283 = vld [vmem:[#allocation8 + $0xe9] sm:$0xff]
      %v7284 = vld [vmem:[#allocation8 + $0xf1] sm:$0xff]
      %v7285 = vld [vmem:[#allocation8 + $0xf9] sm:$0xff]
      %v7286 = vld [vmem:[#allocation8 + $0x101] sm:$0xff]
      %v7287 = vld [vmem:[#allocation8 + $0x109] sm:$0xff]
      %v7288 = vld [vmem:[#allocation8 + $0x111] sm:$0xff]
      %v7289 = vld [vmem:[#allocation8 + $0x119] sm:$0xff]
      %v7290 = vld [vmem:[#allocation8 + $0x121] sm:$0xff]
      %v7291 = vld [vmem:[#allocation8 + $0x129] sm:$0xff]
      %v7292 = vld [vmem:[#allocation8 + $0x131] sm:$0xff]
      %v7293 = vld [vmem:[#allocation8 + $0x139] sm:$0xff]
      %v7294 = vld [vmem:[#allocation8 + $0x141] sm:$0xff]
      %v7295 = vld [vmem:[#allocation8 + $0x149] sm:$0xff]
      %v7296 = vld [vmem:[#allocation8 + $0x151] sm:$0xff]
      %v7297 = vld [vmem:[#allocation8 + $0x159] sm:$0xff]
      %v7298 = vld [vmem:[#allocation8 + $0x161] sm:$0xff]
      %v7299 = vld [vmem:[#allocation8 + $0x169] sm:$0xff]
      %v7300 = vld [vmem:[#allocation8 + $0x171] sm:$0xff]
      %v7301 = vld [vmem:[#allocation8 + $0x179] sm:$0xff]
      %v7302 = vpack.c.bf16 %v7254, %v7254
      %v7303 = vpack.c.bf16 %v7255, %v7255
      %v7304 = vpack.c.bf16 %v7256, %v7256
      %v7305 = vpack.c.bf16 %v7257, %v7257
      %v7306 = vpack.c.bf16 %v7258, %v7258
      %v7307 = vpack.c.bf16 %v7259, %v7259
      %v7308 = vpack.c.bf16 %v7260, %v7260
      %v7309 = vpack.c.bf16 %v7261, %v7261
      %v7310 = vpack.c.bf16 %v7262, %v7262
      %v7311 = vpack.c.bf16 %v7263, %v7263
      %v7312 = vpack.c.bf16 %v7264, %v7264
      %v7313 = vpack.c.bf16 %v7265, %v7265
      %v7314 = vpack.c.bf16 %v7266, %v7266
      %v7315 = vpack.c.bf16 %v7267, %v7267
      %v7316 = vpack.c.bf16 %v7268, %v7268
      %v7317 = vpack.c.bf16 %v7269, %v7269
      %v7318 = vpack.c.bf16 %v7270, %v7270
      %v7319 = vpack.c.bf16 %v7271, %v7271
      %v7320 = vpack.c.bf16 %v7272, %v7272
      %v7321 = vpack.c.bf16 %v7273, %v7273
      %v7322 = vpack.c.bf16 %v7274, %v7274
      %v7323 = vpack.c.bf16 %v7275, %v7275
      %v7324 = vpack.c.bf16 %v7276, %v7276
      %v7325 = vpack.c.bf16 %v7277, %v7277
      %v7326 = vpack.c.bf16 %v7278, %v7278
      %v7327 = vpack.c.bf16 %v7279, %v7279
      %v7328 = vpack.c.bf16 %v7280, %v7280
      %v7329 = vpack.c.bf16 %v7281, %v7281
      %v7330 = vpack.c.bf16 %v7282, %v7282
      %v7331 = vpack.c.bf16 %v7283, %v7283
      %v7332 = vpack.c.bf16 %v7284, %v7284
      %v7333 = vpack.c.bf16 %v7285, %v7285
      %v7334 = vpack.c.bf16 %v7286, %v7286
      %v7335 = vpack.c.bf16 %v7287, %v7287
      %v7336 = vpack.c.bf16 %v7288, %v7288
      %v7337 = vpack.c.bf16 %v7289, %v7289
      %v7338 = vpack.c.bf16 %v7290, %v7290
      %v7339 = vpack.c.bf16 %v7291, %v7291
      %v7340 = vpack.c.bf16 %v7292, %v7292
      %v7341 = vpack.c.bf16 %v7293, %v7293
      %v7342 = vpack.c.bf16 %v7294, %v7294
      %v7343 = vpack.c.bf16 %v7295, %v7295
      %v7344 = vpack.c.bf16 %v7296, %v7296
      %v7345 = vpack.c.bf16 %v7297, %v7297
      %v7346 = vpack.c.bf16 %v7298, %v7298
      %v7347 = vpack.c.bf16 %v7299, %v7299
      %v7348 = vpack.c.bf16 %v7300, %v7300
      %v7349 = vpack.c.bf16 %v7301, %v7301
      %v7350 = vld [vmem:[#allocation8 + $0x2] sm:$0xff]
      %v7351 = vld [vmem:[#allocation8 + $0xa] sm:$0xff]
      %v7352 = vld [vmem:[#allocation8 + $0x12] sm:$0xff]
      %v7353 = vld [vmem:[#allocation8 + $0x1a] sm:$0xff]
      %v7354 = vld [vmem:[#allocation8 + $0x22] sm:$0xff]
      %v7355 = vld [vmem:[#allocation8 + $0x2a] sm:$0xff]
      %v7356 = vld [vmem:[#allocation8 + $0x32] sm:$0xff]
      %v7357 = vld [vmem:[#allocation8 + $0x3a] sm:$0xff]
      %v7358 = vld [vmem:[#allocation8 + $0x42] sm:$0xff]
      %v7359 = vld [vmem:[#allocation8 + $0x4a] sm:$0xff]
      %v7360 = vld [vmem:[#allocation8 + $0x52] sm:$0xff]
      %v7361 = vld [vmem:[#allocation8 + $0x5a] sm:$0xff]
      %v7362 = vld [vmem:[#allocation8 + $0x62] sm:$0xff]
      %v7363 = vld [vmem:[#allocation8 + $0x6a] sm:$0xff]
      %v7364 = vld [vmem:[#allocation8 + $0x72] sm:$0xff]
      %v7365 = vld [vmem:[#allocation8 + $0x7a] sm:$0xff]
      %v7366 = vld [vmem:[#allocation8 + $0x82] sm:$0xff]
      %v7367 = vld [vmem:[#allocation8 + $0x8a] sm:$0xff]
      %v7368 = vld [vmem:[#allocation8 + $0x92] sm:$0xff]
      %v7369 = vld [vmem:[#allocation8 + $0x9a] sm:$0xff]
      %v7370 = vld [vmem:[#allocation8 + $0xa2] sm:$0xff]
      %v7371 = vld [vmem:[#allocation8 + $0xaa] sm:$0xff]
      %v7372 = vld [vmem:[#allocation8 + $0xb2] sm:$0xff]
      %v7373 = vld [vmem:[#allocation8 + $0xba] sm:$0xff]
      %v7374 = vld [vmem:[#allocation8 + $0xc2] sm:$0xff]
      %v7375 = vld [vmem:[#allocation8 + $0xca] sm:$0xff]
      %v7376 = vld [vmem:[#allocation8 + $0xd2] sm:$0xff]
      %v7377 = vld [vmem:[#allocation8 + $0xda] sm:$0xff]
      %v7378 = vld [vmem:[#allocation8 + $0xe2] sm:$0xff]
      %v7379 = vld [vmem:[#allocation8 + $0xea] sm:$0xff]
      %v7380 = vld [vmem:[#allocation8 + $0xf2] sm:$0xff]
      %v7381 = vld [vmem:[#allocation8 + $0xfa] sm:$0xff]
      %v7382 = vld [vmem:[#allocation8 + $0x102] sm:$0xff]
      %v7383 = vld [vmem:[#allocation8 + $0x10a] sm:$0xff]
      %v7384 = vld [vmem:[#allocation8 + $0x112] sm:$0xff]
      %v7385 = vld [vmem:[#allocation8 + $0x11a] sm:$0xff]
      %v7386 = vld [vmem:[#allocation8 + $0x122] sm:$0xff]
      %v7387 = vld [vmem:[#allocation8 + $0x12a] sm:$0xff]
      %v7388 = vld [vmem:[#allocation8 + $0x132] sm:$0xff]
      %v7389 = vld [vmem:[#allocation8 + $0x13a] sm:$0xff]
      %v7390 = vld [vmem:[#allocation8 + $0x142] sm:$0xff]
      %v7391 = vld [vmem:[#allocation8 + $0x14a] sm:$0xff]
      %v7392 = vld [vmem:[#allocation8 + $0x152] sm:$0xff]
      %v7393 = vld [vmem:[#allocation8 + $0x15a] sm:$0xff]
      %v7394 = vld [vmem:[#allocation8 + $0x162] sm:$0xff]
      %v7395 = vld [vmem:[#allocation8 + $0x16a] sm:$0xff]
      %v7396 = vld [vmem:[#allocation8 + $0x172] sm:$0xff]
      %v7397 = vld [vmem:[#allocation8 + $0x17a] sm:$0xff]
      %v7398 = vpack.c.bf16 %v7350, %v7350
      %v7399 = vpack.c.bf16 %v7351, %v7351
      %v7400 = vpack.c.bf16 %v7352, %v7352
      %v7401 = vpack.c.bf16 %v7353, %v7353
      %v7402 = vpack.c.bf16 %v7354, %v7354
      %v7403 = vpack.c.bf16 %v7355, %v7355
      %v7404 = vpack.c.bf16 %v7356, %v7356
      %v7405 = vpack.c.bf16 %v7357, %v7357
      %v7406 = vpack.c.bf16 %v7358, %v7358
      %v7407 = vpack.c.bf16 %v7359, %v7359
      %v7408 = vpack.c.bf16 %v7360, %v7360
      %v7409 = vpack.c.bf16 %v7361, %v7361
      %v7410 = vpack.c.bf16 %v7362, %v7362
      %v7411 = vpack.c.bf16 %v7363, %v7363
      %v7412 = vpack.c.bf16 %v7364, %v7364
      %v7413 = vpack.c.bf16 %v7365, %v7365
      %v7414 = vpack.c.bf16 %v7366, %v7366
      %v7415 = vpack.c.bf16 %v7367, %v7367
      %v7416 = vpack.c.bf16 %v7368, %v7368
      %v7417 = vpack.c.bf16 %v7369, %v7369
      %v7418 = vpack.c.bf16 %v7370, %v7370
      %v7419 = vpack.c.bf16 %v7371, %v7371
      %v7420 = vpack.c.bf16 %v7372, %v7372
      %v7421 = vpack.c.bf16 %v7373, %v7373
      %v7422 = vpack.c.bf16 %v7374, %v7374
      %v7423 = vpack.c.bf16 %v7375, %v7375
      %v7424 = vpack.c.bf16 %v7376, %v7376
      %v7425 = vpack.c.bf16 %v7377, %v7377
      %v7426 = vpack.c.bf16 %v7378, %v7378
      %v7427 = vpack.c.bf16 %v7379, %v7379
      %v7428 = vpack.c.bf16 %v7380, %v7380
      %v7429 = vpack.c.bf16 %v7381, %v7381
      %v7430 = vpack.c.bf16 %v7382, %v7382
      %v7431 = vpack.c.bf16 %v7383, %v7383
      %v7432 = vpack.c.bf16 %v7384, %v7384
      %v7433 = vpack.c.bf16 %v7385, %v7385
      %v7434 = vpack.c.bf16 %v7386, %v7386
      %v7435 = vpack.c.bf16 %v7387, %v7387
      %v7436 = vpack.c.bf16 %v7388, %v7388
      %v7437 = vpack.c.bf16 %v7389, %v7389
      %v7438 = vpack.c.bf16 %v7390, %v7390
      %v7439 = vpack.c.bf16 %v7391, %v7391
      %v7440 = vpack.c.bf16 %v7392, %v7392
      %v7441 = vpack.c.bf16 %v7393, %v7393
      %v7442 = vpack.c.bf16 %v7394, %v7394
      %v7443 = vpack.c.bf16 %v7395, %v7395
      %v7444 = vpack.c.bf16 %v7396, %v7396
      %v7445 = vpack.c.bf16 %v7397, %v7397
      %v7446 = vld [vmem:[#allocation8 + $0x180] sm:$0xff]
      %v7447 = vld [vmem:[#allocation8 + $0x188] sm:$0xff]
      %v7448 = vld [vmem:[#allocation8 + $0x190] sm:$0xff]
      %v7449 = vpack.c.bf16 %v7446, %v7446
      %v7450 = vpack.c.bf16 %v7447, %v7447
      %v7451 = vpack.c.bf16 %v7448, %v7448
      %v7452 = vld [vmem:[#allocation8 + $0x181] sm:$0xff]
      %v7453 = vld [vmem:[#allocation8 + $0x189] sm:$0xff]
      %v7454 = vld [vmem:[#allocation8 + $0x191] sm:$0xff]
      %v7455 = vpack.c.bf16 %v7452, %v7452
      %v7456 = vpack.c.bf16 %v7453, %v7453
      %v7457 = vpack.c.bf16 %v7454, %v7454
      %v7458 = vld [vmem:[#allocation8 + $0x182] sm:$0xff]
      %v7459 = vld [vmem:[#allocation8 + $0x18a] sm:$0xff]
      %v7460 = vld [vmem:[#allocation8 + $0x192] sm:$0xff]
      %v7461 = vpack.c.bf16 %v7458, %v7458
      %v7462 = vpack.c.bf16 %v7459, %v7459
      %v7463 = vpack.c.bf16 %v7460, %v7460
      %v7464 = vld [vmem:[#allocation8 + $0x198] sm:$0xff]
      %v7465 = vld [vmem:[#allocation8 + $0x1a0] sm:$0xff]
      %v7466 = vld [vmem:[#allocation8 + $0x1a8] sm:$0xff]
      %v7467 = vpack.c.bf16 %v7464, %v7464
      %v7468 = vpack.c.bf16 %v7465, %v7465
      %v7469 = vpack.c.bf16 %v7466, %v7466
      %v7470 = vld [vmem:[#allocation8 + $0x199] sm:$0xff]
      %v7471 = vld [vmem:[#allocation8 + $0x1a1] sm:$0xff]
      %v7472 = vld [vmem:[#allocation8 + $0x1a9] sm:$0xff]
      %v7473 = vpack.c.bf16 %v7470, %v7470
      %v7474 = vpack.c.bf16 %v7471, %v7471
      %v7475 = vpack.c.bf16 %v7472, %v7472
      %v7476 = vld [vmem:[#allocation8 + $0x19a] sm:$0xff]
      %v7477 = vld [vmem:[#allocation8 + $0x1a2] sm:$0xff]
      %v7478 = vld [vmem:[#allocation8 + $0x1aa] sm:$0xff]
      %v7479 = vpack.c.bf16 %v7476, %v7476
      %v7480 = vpack.c.bf16 %v7477, %v7477
      %v7481 = vpack.c.bf16 %v7478, %v7478
      %v7530 = vunpack.c.l.b16 %v7206
      %v7531 = vunpack.c.l.b16 %v7207
      %v7532 = vunpack.c.l.b16 %v7208
      %v7533 = vunpack.c.l.b16 %v7209
      %v7534 = vunpack.c.l.b16 %v7210
      %v7535 = vunpack.c.l.b16 %v7211
      %v7536 = vunpack.c.l.b16 %v7212
      %v7537 = vunpack.c.l.b16 %v7213
      %v7538 = vunpack.c.l.b16 %v7214
      %v7539 = vunpack.c.l.b16 %v7215
      %v7540 = vunpack.c.l.b16 %v7216
      %v7541 = vunpack.c.l.b16 %v7217
      %v7542 = vunpack.c.l.b16 %v7218
      %v7543 = vunpack.c.l.b16 %v7219
      %v7544 = vunpack.c.l.b16 %v7220
      %v7545 = vunpack.c.l.b16 %v7221
      %v7546 = vunpack.c.l.b16 %v7222
      %v7547 = vunpack.c.l.b16 %v7223
      %v7548 = vunpack.c.l.b16 %v7224
      %v7549 = vunpack.c.l.b16 %v7225
      %v7550 = vunpack.c.l.b16 %v7226
      %v7551 = vunpack.c.l.b16 %v7227
      %v7552 = vunpack.c.l.b16 %v7228
      %v7553 = vunpack.c.l.b16 %v7229
      %v7554 = vunpack.c.l.b16 %v7230
      %v7555 = vunpack.c.l.b16 %v7231
      %v7556 = vunpack.c.l.b16 %v7232
      %v7557 = vunpack.c.l.b16 %v7233
      %v7558 = vunpack.c.l.b16 %v7234
      %v7559 = vunpack.c.l.b16 %v7235
      %v7560 = vunpack.c.l.b16 %v7236
      %v7561 = vunpack.c.l.b16 %v7237
      %v7562 = vunpack.c.l.b16 %v7238
      %v7563 = vunpack.c.l.b16 %v7239
      %v7564 = vunpack.c.l.b16 %v7240
      %v7565 = vunpack.c.l.b16 %v7241
      %v7566 = vunpack.c.l.b16 %v7242
      %v7567 = vunpack.c.l.b16 %v7243
      %v7568 = vunpack.c.l.b16 %v7244
      %v7569 = vunpack.c.l.b16 %v7245
      %v7570 = vunpack.c.l.b16 %v7246
      %v7571 = vunpack.c.l.b16 %v7247
      %v7572 = vunpack.c.l.b16 %v7248
      %v7573 = vunpack.c.l.b16 %v7249
      %v7574 = vunpack.c.l.b16 %v7250
      %v7575 = vunpack.c.l.b16 %v7251
      %v7576 = vunpack.c.l.b16 %v7252
      %v7577 = vunpack.c.l.b16 %v7253
      %v7578 = vpack.c.b16 %v7531, %v7530
      %v7579 = vpack.c.b16 %v7533, %v7532
      %v7580 = vpack.c.b16 %v7535, %v7534
      %v7581 = vpack.c.b16 %v7537, %v7536
      %v7582 = vpack.c.b16 %v7539, %v7538
      %v7583 = vpack.c.b16 %v7541, %v7540
      %v7584 = vpack.c.b16 %v7543, %v7542
      %v7585 = vpack.c.b16 %v7545, %v7544
      %v7586 = vpack.c.b16 %v7547, %v7546
      %v7587 = vpack.c.b16 %v7549, %v7548
      %v7588 = vpack.c.b16 %v7551, %v7550
      %v7589 = vpack.c.b16 %v7553, %v7552
      %v7590 = vpack.c.b16 %v7555, %v7554
      %v7591 = vpack.c.b16 %v7557, %v7556
      %v7592 = vpack.c.b16 %v7559, %v7558
      %v7593 = vpack.c.b16 %v7561, %v7560
      %v7594 = vpack.c.b16 %v7563, %v7562
      %v7595 = vpack.c.b16 %v7565, %v7564
      %v7596 = vpack.c.b16 %v7567, %v7566
      %v7597 = vpack.c.b16 %v7569, %v7568
      %v7598 = vpack.c.b16 %v7571, %v7570
      %v7599 = vpack.c.b16 %v7573, %v7572
      %v7600 = vpack.c.b16 %v7575, %v7574
      %v7601 = vpack.c.b16 %v7577, %v7576
      %v7650 = vunpack.c.l.b16 %v7302
      %v7651 = vunpack.c.l.b16 %v7303
      %v7652 = vunpack.c.l.b16 %v7304
      %v7653 = vunpack.c.l.b16 %v7305
      %v7654 = vunpack.c.l.b16 %v7306
      %v7655 = vunpack.c.l.b16 %v7307
      %v7656 = vunpack.c.l.b16 %v7308
      %v7657 = vunpack.c.l.b16 %v7309
      %v7658 = vunpack.c.l.b16 %v7310
      %v7659 = vunpack.c.l.b16 %v7311
      %v7660 = vunpack.c.l.b16 %v7312
      %v7661 = vunpack.c.l.b16 %v7313
      %v7662 = vunpack.c.l.b16 %v7314
      %v7663 = vunpack.c.l.b16 %v7315
      %v7664 = vunpack.c.l.b16 %v7316
      %v7665 = vunpack.c.l.b16 %v7317
      %v7666 = vunpack.c.l.b16 %v7318
      %v7667 = vunpack.c.l.b16 %v7319
      %v7668 = vunpack.c.l.b16 %v7320
      %v7669 = vunpack.c.l.b16 %v7321
      %v7670 = vunpack.c.l.b16 %v7322
      %v7671 = vunpack.c.l.b16 %v7323
      %v7672 = vunpack.c.l.b16 %v7324
      %v7673 = vunpack.c.l.b16 %v7325
      %v7674 = vunpack.c.l.b16 %v7326
      %v7675 = vunpack.c.l.b16 %v7327
      %v7676 = vunpack.c.l.b16 %v7328
      %v7677 = vunpack.c.l.b16 %v7329
      %v7678 = vunpack.c.l.b16 %v7330
      %v7679 = vunpack.c.l.b16 %v7331
      %v7680 = vunpack.c.l.b16 %v7332
      %v7681 = vunpack.c.l.b16 %v7333
      %v7682 = vunpack.c.l.b16 %v7334
      %v7683 = vunpack.c.l.b16 %v7335
      %v7684 = vunpack.c.l.b16 %v7336
      %v7685 = vunpack.c.l.b16 %v7337
      %v7686 = vunpack.c.l.b16 %v7338
      %v7687 = vunpack.c.l.b16 %v7339
      %v7688 = vunpack.c.l.b16 %v7340
      %v7689 = vunpack.c.l.b16 %v7341
      %v7690 = vunpack.c.l.b16 %v7342
      %v7691 = vunpack.c.l.b16 %v7343
      %v7692 = vunpack.c.l.b16 %v7344
      %v7693 = vunpack.c.l.b16 %v7345
      %v7694 = vunpack.c.l.b16 %v7346
      %v7695 = vunpack.c.l.b16 %v7347
      %v7696 = vunpack.c.l.b16 %v7348
      %v7697 = vunpack.c.l.b16 %v7349
      %v7698 = vpack.c.b16 %v7651, %v7650
      %v7699 = vpack.c.b16 %v7653, %v7652
      %v7700 = vpack.c.b16 %v7655, %v7654
      %v7701 = vpack.c.b16 %v7657, %v7656
      %v7702 = vpack.c.b16 %v7659, %v7658
      %v7703 = vpack.c.b16 %v7661, %v7660
      %v7704 = vpack.c.b16 %v7663, %v7662
      %v7705 = vpack.c.b16 %v7665, %v7664
      %v7706 = vpack.c.b16 %v7667, %v7666
      %v7707 = vpack.c.b16 %v7669, %v7668
      %v7708 = vpack.c.b16 %v7671, %v7670
      %v7709 = vpack.c.b16 %v7673, %v7672
      %v7710 = vpack.c.b16 %v7675, %v7674
      %v7711 = vpack.c.b16 %v7677, %v7676
      %v7712 = vpack.c.b16 %v7679, %v7678
      %v7713 = vpack.c.b16 %v7681, %v7680
      %v7714 = vpack.c.b16 %v7683, %v7682
      %v7715 = vpack.c.b16 %v7685, %v7684
      %v7716 = vpack.c.b16 %v7687, %v7686
      %v7717 = vpack.c.b16 %v7689, %v7688
      %v7718 = vpack.c.b16 %v7691, %v7690
      %v7719 = vpack.c.b16 %v7693, %v7692
      %v7720 = vpack.c.b16 %v7695, %v7694
      %v7721 = vpack.c.b16 %v7697, %v7696
      %7722 = vrot.lane.b32.xlu0 %v7698, 16
      %v7723 = vpop.permute.xlu0 %7722
      %7724 = vrot.lane.b32.xlu0 %v7699, 16
      %v7725 = vpop.permute.xlu0 %7724
      %7726 = vrot.lane.b32.xlu0 %v7700, 16
      %v7727 = vpop.permute.xlu0 %7726
      %7728 = vrot.lane.b32.xlu0 %v7701, 16
      %v7729 = vpop.permute.xlu0 %7728
      %7730 = vrot.lane.b32.xlu0 %v7702, 16
      %v7731 = vpop.permute.xlu0 %7730
      %7732 = vrot.lane.b32.xlu0 %v7703, 16
      %v7733 = vpop.permute.xlu0 %7732
      %7734 = vrot.lane.b32.xlu0 %v7704, 16
      %v7735 = vpop.permute.xlu0 %7734
      %7736 = vrot.lane.b32.xlu0 %v7705, 16
      %v7737 = vpop.permute.xlu0 %7736
      %7738 = vrot.lane.b32.xlu0 %v7706, 16
      %v7739 = vpop.permute.xlu0 %7738
      %7740 = vrot.lane.b32.xlu0 %v7707, 16
      %v7741 = vpop.permute.xlu0 %7740
      %7742 = vrot.lane.b32.xlu0 %v7708, 16
      %v7743 = vpop.permute.xlu0 %7742
      %7744 = vrot.lane.b32.xlu0 %v7709, 16
      %v7745 = vpop.permute.xlu0 %7744
      %7746 = vrot.lane.b32.xlu0 %v7710, 16
      %v7747 = vpop.permute.xlu0 %7746
      %7748 = vrot.lane.b32.xlu0 %v7711, 16
      %v7749 = vpop.permute.xlu0 %7748
      %7750 = vrot.lane.b32.xlu0 %v7712, 16
      %v7751 = vpop.permute.xlu0 %7750
      %7752 = vrot.lane.b32.xlu0 %v7713, 16
      %v7753 = vpop.permute.xlu0 %7752
      %7754 = vrot.lane.b32.xlu0 %v7714, 16
      %v7755 = vpop.permute.xlu0 %7754
      %7756 = vrot.lane.b32.xlu0 %v7715, 16
      %v7757 = vpop.permute.xlu0 %7756
      %7758 = vrot.lane.b32.xlu0 %v7716, 16
      %v7759 = vpop.permute.xlu0 %7758
      %7760 = vrot.lane.b32.xlu0 %v7717, 16
      %v7761 = vpop.permute.xlu0 %7760
      %7762 = vrot.lane.b32.xlu0 %v7718, 16
      %v7763 = vpop.permute.xlu0 %7762
      %7764 = vrot.lane.b32.xlu0 %v7719, 16
      %v7765 = vpop.permute.xlu0 %7764
      %7766 = vrot.lane.b32.xlu0 %v7720, 16
      %v7767 = vpop.permute.xlu0 %7766
      %7768 = vrot.lane.b32.xlu0 %v7721, 16
      %v7769 = vpop.permute.xlu0 %7768
      %v7818 = vunpack.c.l.b16 %v7398
      %v7819 = vunpack.c.l.b16 %v7399
      %v7820 = vunpack.c.l.b16 %v7400
      %v7821 = vunpack.c.l.b16 %v7401
      %v7822 = vunpack.c.l.b16 %v7402
      %v7823 = vunpack.c.l.b16 %v7403
      %v7824 = vunpack.c.l.b16 %v7404
      %v7825 = vunpack.c.l.b16 %v7405
      %v7826 = vunpack.c.l.b16 %v7406
      %v7827 = vunpack.c.l.b16 %v7407
      %v7828 = vunpack.c.l.b16 %v7408
      %v7829 = vunpack.c.l.b16 %v7409
      %v7830 = vunpack.c.l.b16 %v7410
      %v7831 = vunpack.c.l.b16 %v7411
      %v7832 = vunpack.c.l.b16 %v7412
      %v7833 = vunpack.c.l.b16 %v7413
      %v7834 = vunpack.c.l.b16 %v7414
      %v7835 = vunpack.c.l.b16 %v7415
      %v7836 = vunpack.c.l.b16 %v7416
      %v7837 = vunpack.c.l.b16 %v7417
      %v7838 = vunpack.c.l.b16 %v7418
      %v7839 = vunpack.c.l.b16 %v7419
      %v7840 = vunpack.c.l.b16 %v7420
      %v7841 = vunpack.c.l.b16 %v7421
      %v7842 = vunpack.c.l.b16 %v7422
      %v7843 = vunpack.c.l.b16 %v7423
      %v7844 = vunpack.c.l.b16 %v7424
      %v7845 = vunpack.c.l.b16 %v7425
      %v7846 = vunpack.c.l.b16 %v7426
      %v7847 = vunpack.c.l.b16 %v7427
      %v7848 = vunpack.c.l.b16 %v7428
      %v7849 = vunpack.c.l.b16 %v7429
      %v7850 = vunpack.c.l.b16 %v7430
      %v7851 = vunpack.c.l.b16 %v7431
      %v7852 = vunpack.c.l.b16 %v7432
      %v7853 = vunpack.c.l.b16 %v7433
      %v7854 = vunpack.c.l.b16 %v7434
      %v7855 = vunpack.c.l.b16 %v7435
      %v7856 = vunpack.c.l.b16 %v7436
      %v7857 = vunpack.c.l.b16 %v7437
      %v7858 = vunpack.c.l.b16 %v7438
      %v7859 = vunpack.c.l.b16 %v7439
      %v7860 = vunpack.c.l.b16 %v7440
      %v7861 = vunpack.c.l.b16 %v7441
      %v7862 = vunpack.c.l.b16 %v7442
      %v7863 = vunpack.c.l.b16 %v7443
      %v7864 = vunpack.c.l.b16 %v7444
      %v7865 = vunpack.c.l.b16 %v7445
      %v7866 = vpack.c.b16 %v7819, %v7818
      %v7867 = vpack.c.b16 %v7821, %v7820
      %v7868 = vpack.c.b16 %v7823, %v7822
      %v7869 = vpack.c.b16 %v7825, %v7824
      %v7870 = vpack.c.b16 %v7827, %v7826
      %v7871 = vpack.c.b16 %v7829, %v7828
      %v7872 = vpack.c.b16 %v7831, %v7830
      %v7873 = vpack.c.b16 %v7833, %v7832
      %v7874 = vpack.c.b16 %v7835, %v7834
      %v7875 = vpack.c.b16 %v7837, %v7836
      %v7876 = vpack.c.b16 %v7839, %v7838
      %v7877 = vpack.c.b16 %v7841, %v7840
      %v7878 = vpack.c.b16 %v7843, %v7842
      %v7879 = vpack.c.b16 %v7845, %v7844
      %v7880 = vpack.c.b16 %v7847, %v7846
      %v7881 = vpack.c.b16 %v7849, %v7848
      %v7882 = vpack.c.b16 %v7851, %v7850
      %v7883 = vpack.c.b16 %v7853, %v7852
      %v7884 = vpack.c.b16 %v7855, %v7854
      %v7885 = vpack.c.b16 %v7857, %v7856
      %v7886 = vpack.c.b16 %v7859, %v7858
      %v7887 = vpack.c.b16 %v7861, %v7860
      %v7888 = vpack.c.b16 %v7863, %v7862
      %v7889 = vpack.c.b16 %v7865, %v7864
      %7890 = vrot.lane.b32.xlu0 %v7866, 32
      %v7891 = vpop.permute.xlu0 %7890
      %7892 = vrot.lane.b32.xlu0 %v7867, 32
      %v7893 = vpop.permute.xlu0 %7892
      %7894 = vrot.lane.b32.xlu0 %v7868, 32
      %v7895 = vpop.permute.xlu0 %7894
      %7896 = vrot.lane.b32.xlu0 %v7869, 32
      %v7897 = vpop.permute.xlu0 %7896
      %7898 = vrot.lane.b32.xlu0 %v7870, 32
      %v7899 = vpop.permute.xlu0 %7898
      %7900 = vrot.lane.b32.xlu0 %v7871, 32
      %v7901 = vpop.permute.xlu0 %7900
      %7902 = vrot.lane.b32.xlu0 %v7872, 32
      %v7903 = vpop.permute.xlu0 %7902
      %7904 = vrot.lane.b32.xlu0 %v7873, 32
      %v7905 = vpop.permute.xlu0 %7904
      %7906 = vrot.lane.b32.xlu0 %v7874, 32
      %v7907 = vpop.permute.xlu0 %7906
      %7908 = vrot.lane.b32.xlu0 %v7875, 32
      %v7909 = vpop.permute.xlu0 %7908
      %7910 = vrot.lane.b32.xlu0 %v7876, 32
      %v7911 = vpop.permute.xlu0 %7910
      %7912 = vrot.lane.b32.xlu0 %v7877, 32
      %v7913 = vpop.permute.xlu0 %7912
      %7914 = vrot.lane.b32.xlu0 %v7878, 32
      %v7915 = vpop.permute.xlu0 %7914
      %7916 = vrot.lane.b32.xlu0 %v7879, 32
      %v7917 = vpop.permute.xlu0 %7916
      %7918 = vrot.lane.b32.xlu0 %v7880, 32
      %v7919 = vpop.permute.xlu0 %7918
      %7920 = vrot.lane.b32.xlu0 %v7881, 32
      %v7921 = vpop.permute.xlu0 %7920
      %7922 = vrot.lane.b32.xlu0 %v7882, 32
      %v7923 = vpop.permute.xlu0 %7922
      %7924 = vrot.lane.b32.xlu0 %v7883, 32
      %v7925 = vpop.permute.xlu0 %7924
      %7926 = vrot.lane.b32.xlu0 %v7884, 32
      %v7927 = vpop.permute.xlu0 %7926
      %7928 = vrot.lane.b32.xlu0 %v7885, 32
      %v7929 = vpop.permute.xlu0 %7928
      %7930 = vrot.lane.b32.xlu0 %v7886, 32
      %v7931 = vpop.permute.xlu0 %7930
      %7932 = vrot.lane.b32.xlu0 %v7887, 32
      %v7933 = vpop.permute.xlu0 %7932
      %7934 = vrot.lane.b32.xlu0 %v7888, 32
      %v7935 = vpop.permute.xlu0 %7934
      %7936 = vrot.lane.b32.xlu0 %v7889, 32
      %v7937 = vpop.permute.xlu0 %7936
      %v7941 = vunpack.c.l.b16 %v7449
      %v7942 = vunpack.c.l.b16 %v7450
      %v7943 = vunpack.c.l.b16 %v7451
      %v7944 = vpack.c.b16 %v7534, %v7533
      %v7945 = vpack.c.b16 %v7536, %v7535
      %v7946 = vpack.c.b16 %v7538, %v7537
      %v7947 = vpack.c.b16 %v7540, %v7539
      %v7948 = vpack.c.b16 %v7542, %v7541
      %v7949 = vpack.c.b16 %v7544, %v7543
      %v7950 = vpack.c.b16 %v7546, %v7545
      %v7951 = vpack.c.b16 %v7548, %v7547
      %v7952 = vpack.c.b16 %v7550, %v7549
      %v7953 = vpack.c.b16 %v7552, %v7551
      %v7954 = vpack.c.b16 %v7554, %v7553
      %v7955 = vpack.c.b16 %v7556, %v7555
      %v7956 = vpack.c.b16 %v7558, %v7557
      %v7957 = vpack.c.b16 %v7560, %v7559
      %v7958 = vpack.c.b16 %v7562, %v7561
      %v7959 = vpack.c.b16 %v7564, %v7563
      %v7960 = vpack.c.b16 %v7566, %v7565
      %v7961 = vpack.c.b16 %v7568, %v7567
      %v7962 = vpack.c.b16 %v7570, %v7569
      %v7963 = vpack.c.b16 %v7572, %v7571
      %v7964 = vpack.c.b16 %v7574, %v7573
      %v7965 = vpack.c.b16 %v7576, %v7575
      %v7966 = vpack.c.b16 %v7941, %v7577
      %v7967 = vpack.c.b16 %v7943, %v7942
      %7968 = vrot.lane.b32.xlu0 %v7944, 48
      %v7969 = vpop.permute.xlu0 %7968
      %7970 = vrot.lane.b32.xlu0 %v7945, 48
      %v7971 = vpop.permute.xlu0 %7970
      %7972 = vrot.lane.b32.xlu0 %v7946, 48
      %v7973 = vpop.permute.xlu0 %7972
      %7974 = vrot.lane.b32.xlu0 %v7947, 48
      %v7975 = vpop.permute.xlu0 %7974
      %7976 = vrot.lane.b32.xlu0 %v7948, 48
      %v7977 = vpop.permute.xlu0 %7976
      %7978 = vrot.lane.b32.xlu0 %v7949, 48
      %v7979 = vpop.permute.xlu0 %7978
      %7980 = vrot.lane.b32.xlu0 %v7950, 48
      %v7981 = vpop.permute.xlu0 %7980
      %7982 = vrot.lane.b32.xlu0 %v7951, 48
      %v7983 = vpop.permute.xlu0 %7982
      %7984 = vrot.lane.b32.xlu0 %v7952, 48
      %v7985 = vpop.permute.xlu0 %7984
      %7986 = vrot.lane.b32.xlu0 %v7953, 48
      %v7987 = vpop.permute.xlu0 %7986
      %7988 = vrot.lane.b32.xlu0 %v7954, 48
      %v7989 = vpop.permute.xlu0 %7988
      %7990 = vrot.lane.b32.xlu0 %v7955, 48
      %v7991 = vpop.permute.xlu0 %7990
      %7992 = vrot.lane.b32.xlu0 %v7956, 48
      %v7993 = vpop.permute.xlu0 %7992
      %7994 = vrot.lane.b32.xlu0 %v7957, 48
      %v7995 = vpop.permute.xlu0 %7994
      %7996 = vrot.lane.b32.xlu0 %v7958, 48
      %v7997 = vpop.permute.xlu0 %7996
      %7998 = vrot.lane.b32.xlu0 %v7959, 48
      %v7999 = vpop.permute.xlu0 %7998
      %8000 = vrot.lane.b32.xlu0 %v7960, 48
      %v8001 = vpop.permute.xlu0 %8000
      %8002 = vrot.lane.b32.xlu0 %v7961, 48
      %v8003 = vpop.permute.xlu0 %8002
      %8004 = vrot.lane.b32.xlu0 %v7962, 48
      %v8005 = vpop.permute.xlu0 %8004
      %8006 = vrot.lane.b32.xlu0 %v7963, 48
      %v8007 = vpop.permute.xlu0 %8006
      %8008 = vrot.lane.b32.xlu0 %v7964, 48
      %v8009 = vpop.permute.xlu0 %8008
      %8010 = vrot.lane.b32.xlu0 %v7965, 48
      %v8011 = vpop.permute.xlu0 %8010
      %8012 = vrot.lane.b32.xlu0 %v7966, 48
      %v8013 = vpop.permute.xlu0 %8012
      %8014 = vrot.lane.b32.xlu0 %v7967, 48
      %v8015 = vpop.permute.xlu0 %8014
      %v8019 = vunpack.c.l.b16 %v7455
      %v8020 = vunpack.c.l.b16 %v7456
      %v8021 = vunpack.c.l.b16 %v7457
      %v8022 = vpack.c.b16 %v7654, %v7653
      %v8023 = vpack.c.b16 %v7656, %v7655
      %v8024 = vpack.c.b16 %v7658, %v7657
      %v8025 = vpack.c.b16 %v7660, %v7659
      %v8026 = vpack.c.b16 %v7662, %v7661
      %v8027 = vpack.c.b16 %v7664, %v7663
      %v8028 = vpack.c.b16 %v7666, %v7665
      %v8029 = vpack.c.b16 %v7668, %v7667
      %v8030 = vpack.c.b16 %v7670, %v7669
      %v8031 = vpack.c.b16 %v7672, %v7671
      %v8032 = vpack.c.b16 %v7674, %v7673
      %v8033 = vpack.c.b16 %v7676, %v7675
      %v8034 = vpack.c.b16 %v7678, %v7677
      %v8035 = vpack.c.b16 %v7680, %v7679
      %v8036 = vpack.c.b16 %v7682, %v7681
      %v8037 = vpack.c.b16 %v7684, %v7683
      %v8038 = vpack.c.b16 %v7686, %v7685
      %v8039 = vpack.c.b16 %v7688, %v7687
      %v8040 = vpack.c.b16 %v7690, %v7689
      %v8041 = vpack.c.b16 %v7692, %v7691
      %v8042 = vpack.c.b16 %v7694, %v7693
      %v8043 = vpack.c.b16 %v7696, %v7695
      %v8044 = vpack.c.b16 %v8019, %v7697
      %v8045 = vpack.c.b16 %v8021, %v8020
      %8046 = vrot.lane.b32.xlu0 %v8022, 64
      %v8047 = vpop.permute.xlu0 %8046
      %8048 = vrot.lane.b32.xlu0 %v8023, 64
      %v8049 = vpop.permute.xlu0 %8048
      %8050 = vrot.lane.b32.xlu0 %v8024, 64
      %v8051 = vpop.permute.xlu0 %8050
      %8052 = vrot.lane.b32.xlu0 %v8025, 64
      %v8053 = vpop.permute.xlu0 %8052
      %8054 = vrot.lane.b32.xlu0 %v8026, 64
      %v8055 = vpop.permute.xlu0 %8054
      %8056 = vrot.lane.b32.xlu0 %v8027, 64
      %v8057 = vpop.permute.xlu0 %8056
      %8058 = vrot.lane.b32.xlu0 %v8028, 64
      %v8059 = vpop.permute.xlu0 %8058
      %8060 = vrot.lane.b32.xlu0 %v8029, 64
      %v8061 = vpop.permute.xlu0 %8060
      %8062 = vrot.lane.b32.xlu0 %v8030, 64
      %v8063 = vpop.permute.xlu0 %8062
      %8064 = vrot.lane.b32.xlu0 %v8031, 64
      %v8065 = vpop.permute.xlu0 %8064
      %8066 = vrot.lane.b32.xlu0 %v8032, 64
      %v8067 = vpop.permute.xlu0 %8066
      %8068 = vrot.lane.b32.xlu0 %v8033, 64
      %v8069 = vpop.permute.xlu0 %8068
      %8070 = vrot.lane.b32.xlu0 %v8034, 64
      %v8071 = vpop.permute.xlu0 %8070
      %8072 = vrot.lane.b32.xlu0 %v8035, 64
      %v8073 = vpop.permute.xlu0 %8072
      %8074 = vrot.lane.b32.xlu0 %v8036, 64
      %v8075 = vpop.permute.xlu0 %8074
      %8076 = vrot.lane.b32.xlu0 %v8037, 64
      %v8077 = vpop.permute.xlu0 %8076
      %8078 = vrot.lane.b32.xlu0 %v8038, 64
      %v8079 = vpop.permute.xlu0 %8078
      %8080 = vrot.lane.b32.xlu0 %v8039, 64
      %v8081 = vpop.permute.xlu0 %8080
      %8082 = vrot.lane.b32.xlu0 %v8040, 64
      %v8083 = vpop.permute.xlu0 %8082
      %8084 = vrot.lane.b32.xlu0 %v8041, 64
      %v8085 = vpop.permute.xlu0 %8084
      %8086 = vrot.lane.b32.xlu0 %v8042, 64
      %v8087 = vpop.permute.xlu0 %8086
      %8088 = vrot.lane.b32.xlu0 %v8043, 64
      %v8089 = vpop.permute.xlu0 %8088
      %8090 = vrot.lane.b32.xlu0 %v8044, 64
      %v8091 = vpop.permute.xlu0 %8090
      %8092 = vrot.lane.b32.xlu0 %v8045, 64
      %v8093 = vpop.permute.xlu0 %8092
      %v8097 = vunpack.c.l.b16 %v7461
      %v8098 = vunpack.c.l.b16 %v7462
      %v8099 = vunpack.c.l.b16 %v7463
      %v8100 = vpack.c.b16 %v7822, %v7821
      %v8101 = vpack.c.b16 %v7824, %v7823
      %v8102 = vpack.c.b16 %v7826, %v7825
      %v8103 = vpack.c.b16 %v7828, %v7827
      %v8104 = vpack.c.b16 %v7830, %v7829
      %v8105 = vpack.c.b16 %v7832, %v7831
      %v8106 = vpack.c.b16 %v7834, %v7833
      %v8107 = vpack.c.b16 %v7836, %v7835
      %v8108 = vpack.c.b16 %v7838, %v7837
      %v8109 = vpack.c.b16 %v7840, %v7839
      %v8110 = vpack.c.b16 %v7842, %v7841
      %v8111 = vpack.c.b16 %v7844, %v7843
      %v8112 = vpack.c.b16 %v7846, %v7845
      %v8113 = vpack.c.b16 %v7848, %v7847
      %v8114 = vpack.c.b16 %v7850, %v7849
      %v8115 = vpack.c.b16 %v7852, %v7851
      %v8116 = vpack.c.b16 %v7854, %v7853
      %v8117 = vpack.c.b16 %v7856, %v7855
      %v8118 = vpack.c.b16 %v7858, %v7857
      %v8119 = vpack.c.b16 %v7860, %v7859
      %v8120 = vpack.c.b16 %v7862, %v7861
      %v8121 = vpack.c.b16 %v7864, %v7863
      %v8122 = vpack.c.b16 %v8097, %v7865
      %v8123 = vpack.c.b16 %v8099, %v8098
      %8124 = vrot.lane.b32.xlu0 %v8100, 80
      %v8125 = vpop.permute.xlu0 %8124
      %8126 = vrot.lane.b32.xlu0 %v8101, 80
      %v8127 = vpop.permute.xlu0 %8126
      %8128 = vrot.lane.b32.xlu0 %v8102, 80
      %v8129 = vpop.permute.xlu0 %8128
      %8130 = vrot.lane.b32.xlu0 %v8103, 80
      %v8131 = vpop.permute.xlu0 %8130
      %8132 = vrot.lane.b32.xlu0 %v8104, 80
      %v8133 = vpop.permute.xlu0 %8132
      %8134 = vrot.lane.b32.xlu0 %v8105, 80
      %v8135 = vpop.permute.xlu0 %8134
      %8136 = vrot.lane.b32.xlu0 %v8106, 80
      %v8137 = vpop.permute.xlu0 %8136
      %8138 = vrot.lane.b32.xlu0 %v8107, 80
      %v8139 = vpop.permute.xlu0 %8138
      %8140 = vrot.lane.b32.xlu0 %v8108, 80
      %v8141 = vpop.permute.xlu0 %8140
      %8142 = vrot.lane.b32.xlu0 %v8109, 80
      %v8143 = vpop.permute.xlu0 %8142
      %8144 = vrot.lane.b32.xlu0 %v8110, 80
      %v8145 = vpop.permute.xlu0 %8144
      %8146 = vrot.lane.b32.xlu0 %v8111, 80
      %v8147 = vpop.permute.xlu0 %8146
      %8148 = vrot.lane.b32.xlu0 %v8112, 80
      %v8149 = vpop.permute.xlu0 %8148
      %8150 = vrot.lane.b32.xlu0 %v8113, 80
      %v8151 = vpop.permute.xlu0 %8150
      %8152 = vrot.lane.b32.xlu0 %v8114, 80
      %v8153 = vpop.permute.xlu0 %8152
      %8154 = vrot.lane.b32.xlu0 %v8115, 80
      %v8155 = vpop.permute.xlu0 %8154
      %8156 = vrot.lane.b32.xlu0 %v8116, 80
      %v8157 = vpop.permute.xlu0 %8156
      %8158 = vrot.lane.b32.xlu0 %v8117, 80
      %v8159 = vpop.permute.xlu0 %8158
      %8160 = vrot.lane.b32.xlu0 %v8118, 80
      %v8161 = vpop.permute.xlu0 %8160
      %8162 = vrot.lane.b32.xlu0 %v8119, 80
      %v8163 = vpop.permute.xlu0 %8162
      %8164 = vrot.lane.b32.xlu0 %v8120, 80
      %v8165 = vpop.permute.xlu0 %8164
      %8166 = vrot.lane.b32.xlu0 %v8121, 80
      %v8167 = vpop.permute.xlu0 %8166
      %8168 = vrot.lane.b32.xlu0 %v8122, 80
      %v8169 = vpop.permute.xlu0 %8168
      %8170 = vrot.lane.b32.xlu0 %v8123, 80
      %v8171 = vpop.permute.xlu0 %8170
      %v8175 = vunpack.c.l.b16 %v7467
      %v8176 = vunpack.c.l.b16 %v7468
      %v8177 = vunpack.c.l.b16 %v7469
      %v8178 = vpack.c.b16 %v7942, %v7941
      %v8179 = vpack.c.b16 %v8175, %v7943
      %v8180 = vpack.c.b16 %v8177, %v8176
      %8181 = vrot.lane.b32.xlu0 %v7581, 96
      %v8182 = vpop.permute.xlu0 %8181
      %8183 = vrot.lane.b32.xlu0 %v7582, 96
      %v8184 = vpop.permute.xlu0 %8183
      %8185 = vrot.lane.b32.xlu0 %v7583, 96
      %v8186 = vpop.permute.xlu0 %8185
      %8187 = vrot.lane.b32.xlu0 %v7584, 96
      %v8188 = vpop.permute.xlu0 %8187
      %8189 = vrot.lane.b32.xlu0 %v7585, 96
      %v8190 = vpop.permute.xlu0 %8189
      %8191 = vrot.lane.b32.xlu0 %v7586, 96
      %v8192 = vpop.permute.xlu0 %8191
      %8193 = vrot.lane.b32.xlu0 %v7587, 96
      %v8194 = vpop.permute.xlu0 %8193
      %8195 = vrot.lane.b32.xlu0 %v7588, 96
      %v8196 = vpop.permute.xlu0 %8195
      %8197 = vrot.lane.b32.xlu0 %v7589, 96
      %v8198 = vpop.permute.xlu0 %8197
      %8199 = vrot.lane.b32.xlu0 %v7590, 96
      %v8200 = vpop.permute.xlu0 %8199
      %8201 = vrot.lane.b32.xlu0 %v7591, 96
      %v8202 = vpop.permute.xlu0 %8201
      %8203 = vrot.lane.b32.xlu0 %v7592, 96
      %v8204 = vpop.permute.xlu0 %8203
      %8205 = vrot.lane.b32.xlu0 %v7593, 96
      %v8206 = vpop.permute.xlu0 %8205
      %8207 = vrot.lane.b32.xlu0 %v7594, 96
      %v8208 = vpop.permute.xlu0 %8207
      %8209 = vrot.lane.b32.xlu0 %v7595, 96
      %v8210 = vpop.permute.xlu0 %8209
      %8211 = vrot.lane.b32.xlu0 %v7596, 96
      %v8212 = vpop.permute.xlu0 %8211
      %8213 = vrot.lane.b32.xlu0 %v7597, 96
      %v8214 = vpop.permute.xlu0 %8213
      %8215 = vrot.lane.b32.xlu0 %v7598, 96
      %v8216 = vpop.permute.xlu0 %8215
      %8217 = vrot.lane.b32.xlu0 %v7599, 96
      %v8218 = vpop.permute.xlu0 %8217
      %8219 = vrot.lane.b32.xlu0 %v7600, 96
      %v8220 = vpop.permute.xlu0 %8219
      %8221 = vrot.lane.b32.xlu0 %v7601, 96
      %v8222 = vpop.permute.xlu0 %8221
      %8223 = vrot.lane.b32.xlu0 %v8178, 96
      %v8224 = vpop.permute.xlu0 %8223
      %8225 = vrot.lane.b32.xlu0 %v8179, 96
      %v8226 = vpop.permute.xlu0 %8225
      %8227 = vrot.lane.b32.xlu0 %v8180, 96
      %v8228 = vpop.permute.xlu0 %8227
      %v8232 = vunpack.c.l.b16 %v7473
      %v8233 = vunpack.c.l.b16 %v7474
      %v8234 = vunpack.c.l.b16 %v7475
      %v8235 = vpack.c.b16 %v8020, %v8019
      %v8236 = vpack.c.b16 %v8232, %v8021
      %v8237 = vpack.c.b16 %v8234, %v8233
      %8238 = vrot.lane.b32.xlu0 %v7701, 112
      %v8239 = vpop.permute.xlu0 %8238
      %8240 = vrot.lane.b32.xlu0 %v7702, 112
      %v8241 = vpop.permute.xlu0 %8240
      %8242 = vrot.lane.b32.xlu0 %v7703, 112
      %v8243 = vpop.permute.xlu0 %8242
      %8244 = vrot.lane.b32.xlu0 %v7704, 112
      %v8245 = vpop.permute.xlu0 %8244
      %8246 = vrot.lane.b32.xlu0 %v7705, 112
      %v8247 = vpop.permute.xlu0 %8246
      %8248 = vrot.lane.b32.xlu0 %v7706, 112
      %v8249 = vpop.permute.xlu0 %8248
      %8250 = vrot.lane.b32.xlu0 %v7707, 112
      %v8251 = vpop.permute.xlu0 %8250
      %8252 = vrot.lane.b32.xlu0 %v7708, 112
      %v8253 = vpop.permute.xlu0 %8252
      %8254 = vrot.lane.b32.xlu0 %v7709, 112
      %v8255 = vpop.permute.xlu0 %8254
      %8256 = vrot.lane.b32.xlu0 %v7710, 112
      %v8257 = vpop.permute.xlu0 %8256
      %8258 = vrot.lane.b32.xlu0 %v7711, 112
      %v8259 = vpop.permute.xlu0 %8258
      %8260 = vrot.lane.b32.xlu0 %v7712, 112
      %v8261 = vpop.permute.xlu0 %8260
      %8262 = vrot.lane.b32.xlu0 %v7713, 112
      %v8263 = vpop.permute.xlu0 %8262
      %8264 = vrot.lane.b32.xlu0 %v7714, 112
      %v8265 = vpop.permute.xlu0 %8264
      %8266 = vrot.lane.b32.xlu0 %v7715, 112
      %v8267 = vpop.permute.xlu0 %8266
      %8268 = vrot.lane.b32.xlu0 %v7716, 112
      %v8269 = vpop.permute.xlu0 %8268
      %8270 = vrot.lane.b32.xlu0 %v7717, 112
      %v8271 = vpop.permute.xlu0 %8270
      %8272 = vrot.lane.b32.xlu0 %v7718, 112
      %v8273 = vpop.permute.xlu0 %8272
      %8274 = vrot.lane.b32.xlu0 %v7719, 112
      %v8275 = vpop.permute.xlu0 %8274
      %8276 = vrot.lane.b32.xlu0 %v7720, 112
      %v8277 = vpop.permute.xlu0 %8276
      %8278 = vrot.lane.b32.xlu0 %v7721, 112
      %v8279 = vpop.permute.xlu0 %8278
      %8280 = vrot.lane.b32.xlu0 %v8235, 112
      %v8281 = vpop.permute.xlu0 %8280
      %8282 = vrot.lane.b32.xlu0 %v8236, 112
      %v8283 = vpop.permute.xlu0 %8282
      %8284 = vrot.lane.b32.xlu0 %v8237, 112
      %v8285 = vpop.permute.xlu0 %8284
      %v8289 = vunpack.c.l.b16 %v7479
      %v8290 = vunpack.c.l.b16 %v7480
      %v8291 = vunpack.c.l.b16 %v7481
      %v8292 = vpack.c.b16 %v8098, %v8097
      %v8293 = vpack.c.b16 %v8289, %v8099
      %v8294 = vpack.c.b16 %v8291, %v8290
      %v8297 = vsel %vm447, %v7578, %v7723
      %v8300 = vsel %vm447, %v7579, %v7725
      %v8303 = vsel %vm447, %v7580, %v7727
      %v8306 = vsel %vm447, %v7581, %v7729
      %v8309 = vsel %vm447, %v7582, %v7731
      %v8312 = vsel %vm447, %v7583, %v7733
      %v8315 = vsel %vm447, %v7584, %v7735
      %v8318 = vsel %vm447, %v7585, %v7737
      %v8321 = vsel %vm447, %v7586, %v7739
      %v8324 = vsel %vm447, %v7587, %v7741
      %v8327 = vsel %vm447, %v7588, %v7743
      %v8330 = vsel %vm447, %v7589, %v7745
      %v8333 = vsel %vm447, %v7590, %v7747
      %v8336 = vsel %vm447, %v7591, %v7749
      %v8339 = vsel %vm447, %v7592, %v7751
      %v8342 = vsel %vm447, %v7593, %v7753
      %v8345 = vsel %vm447, %v7594, %v7755
      %v8348 = vsel %vm447, %v7595, %v7757
      %v8351 = vsel %vm447, %v7596, %v7759
      %v8354 = vsel %vm447, %v7597, %v7761
      %v8357 = vsel %vm447, %v7598, %v7763
      %v8360 = vsel %vm447, %v7599, %v7765
      %v8363 = vsel %vm447, %v7600, %v7767
      %v8366 = vsel %vm447, %v7601, %v7769
      %v8368 = vsel %vm470, %v8297, %v7891
      %v8370 = vsel %vm470, %v8300, %v7893
      %v8372 = vsel %vm470, %v8303, %v7895
      %v8374 = vsel %vm470, %v8306, %v7897
      %v8376 = vsel %vm470, %v8309, %v7899
      %v8378 = vsel %vm470, %v8312, %v7901
      %v8380 = vsel %vm470, %v8315, %v7903
      %v8382 = vsel %vm470, %v8318, %v7905
      %v8384 = vsel %vm470, %v8321, %v7907
      %v8386 = vsel %vm470, %v8324, %v7909
      %v8388 = vsel %vm470, %v8327, %v7911
      %v8390 = vsel %vm470, %v8330, %v7913
      %v8392 = vsel %vm470, %v8333, %v7915
      %v8394 = vsel %vm470, %v8336, %v7917
      %v8396 = vsel %vm470, %v8339, %v7919
      %v8398 = vsel %vm470, %v8342, %v7921
      %v8400 = vsel %vm470, %v8345, %v7923
      %v8402 = vsel %vm470, %v8348, %v7925
      %v8404 = vsel %vm470, %v8351, %v7927
      %v8406 = vsel %vm470, %v8354, %v7929
      %v8408 = vsel %vm470, %v8357, %v7931
      %v8410 = vsel %vm470, %v8360, %v7933
      %v8412 = vsel %vm470, %v8363, %v7935
      %v8414 = vsel %vm470, %v8366, %v7937
      %v8416 = vsel %vm2024, %v8368, %v7969
      %v8418 = vsel %vm2024, %v8370, %v7971
      %v8420 = vsel %vm2024, %v8372, %v7973
      %v8422 = vsel %vm2024, %v8374, %v7975
      %v8424 = vsel %vm2024, %v8376, %v7977
      %v8426 = vsel %vm2024, %v8378, %v7979
      %v8428 = vsel %vm2024, %v8380, %v7981
      %v8430 = vsel %vm2024, %v8382, %v7983
      %v8432 = vsel %vm2024, %v8384, %v7985
      %v8434 = vsel %vm2024, %v8386, %v7987
      %v8436 = vsel %vm2024, %v8388, %v7989
      %v8438 = vsel %vm2024, %v8390, %v7991
      %v8440 = vsel %vm2024, %v8392, %v7993
      %v8442 = vsel %vm2024, %v8394, %v7995
      %v8444 = vsel %vm2024, %v8396, %v7997
      %v8446 = vsel %vm2024, %v8398, %v7999
      %v8448 = vsel %vm2024, %v8400, %v8001
      %v8450 = vsel %vm2024, %v8402, %v8003
      %v8452 = vsel %vm2024, %v8404, %v8005
      %v8454 = vsel %vm2024, %v8406, %v8007
      %v8456 = vsel %vm2024, %v8408, %v8009
      %v8458 = vsel %vm2024, %v8410, %v8011
      %v8460 = vsel %vm2024, %v8412, %v8013
      %v8462 = vsel %vm2024, %v8414, %v8015
      %v8464 = vsel %vm562, %v8416, %v8047
      %v8466 = vsel %vm562, %v8418, %v8049
      %v8468 = vsel %vm562, %v8420, %v8051
      %v8470 = vsel %vm562, %v8422, %v8053
      %v8472 = vsel %vm562, %v8424, %v8055
      %v8474 = vsel %vm562, %v8426, %v8057
      %v8476 = vsel %vm562, %v8428, %v8059
      %v8478 = vsel %vm562, %v8430, %v8061
      %v8480 = vsel %vm562, %v8432, %v8063
      %v8482 = vsel %vm562, %v8434, %v8065
      %v8484 = vsel %vm562, %v8436, %v8067
      %v8486 = vsel %vm562, %v8438, %v8069
      %v8488 = vsel %vm562, %v8440, %v8071
      %v8490 = vsel %vm562, %v8442, %v8073
      %v8492 = vsel %vm562, %v8444, %v8075
      %v8494 = vsel %vm562, %v8446, %v8077
      %v8496 = vsel %vm562, %v8448, %v8079
      %v8498 = vsel %vm562, %v8450, %v8081
      %v8500 = vsel %vm562, %v8452, %v8083
      %v8502 = vsel %vm562, %v8454, %v8085
      %v8504 = vsel %vm562, %v8456, %v8087
      %v8506 = vsel %vm562, %v8458, %v8089
      %v8508 = vsel %vm562, %v8460, %v8091
      %v8510 = vsel %vm562, %v8462, %v8093
      %v8512 = vsel %vm3289, %v8464, %v8125
      %v8514 = vsel %vm3289, %v8466, %v8127
      %v8516 = vsel %vm3289, %v8468, %v8129
      %v8518 = vsel %vm3289, %v8470, %v8131
      %v8520 = vsel %vm3289, %v8472, %v8133
      %v8522 = vsel %vm3289, %v8474, %v8135
      %v8524 = vsel %vm3289, %v8476, %v8137
      %v8526 = vsel %vm3289, %v8478, %v8139
      %v8528 = vsel %vm3289, %v8480, %v8141
      %v8530 = vsel %vm3289, %v8482, %v8143
      %v8532 = vsel %vm3289, %v8484, %v8145
      %v8534 = vsel %vm3289, %v8486, %v8147
      %v8536 = vsel %vm3289, %v8488, %v8149
      %v8538 = vsel %vm3289, %v8490, %v8151
      %v8540 = vsel %vm3289, %v8492, %v8153
      %v8542 = vsel %vm3289, %v8494, %v8155
      %v8544 = vsel %vm3289, %v8496, %v8157
      %v8546 = vsel %vm3289, %v8498, %v8159
      %v8548 = vsel %vm3289, %v8500, %v8161
      %v8550 = vsel %vm3289, %v8502, %v8163
      %v8552 = vsel %vm3289, %v8504, %v8165
      %v8554 = vsel %vm3289, %v8506, %v8167
      %v8556 = vsel %vm3289, %v8508, %v8169
      %v8558 = vsel %vm3289, %v8510, %v8171
      %v8560 = vsel %vm3306, %v8512, %v8182
      %v8562 = vsel %vm3306, %v8514, %v8184
      %v8564 = vsel %vm3306, %v8516, %v8186
      %v8566 = vsel %vm3306, %v8518, %v8188
      %v8568 = vsel %vm3306, %v8520, %v8190
      %v8570 = vsel %vm3306, %v8522, %v8192
      %v8572 = vsel %vm3306, %v8524, %v8194
      %v8574 = vsel %vm3306, %v8526, %v8196
      %v8576 = vsel %vm3306, %v8528, %v8198
      %v8578 = vsel %vm3306, %v8530, %v8200
      %v8580 = vsel %vm3306, %v8532, %v8202
      %v8582 = vsel %vm3306, %v8534, %v8204
      %v8584 = vsel %vm3306, %v8536, %v8206
      %v8586 = vsel %vm3306, %v8538, %v8208
      %v8588 = vsel %vm3306, %v8540, %v8210
      %v8590 = vsel %vm3306, %v8542, %v8212
      %v8592 = vsel %vm3306, %v8544, %v8214
      %v8594 = vsel %vm3306, %v8546, %v8216
      %v8596 = vsel %vm3306, %v8548, %v8218
      %v8598 = vsel %vm3306, %v8550, %v8220
      %v8600 = vsel %vm3306, %v8552, %v8222
      %v8602 = vsel %vm3306, %v8554, %v8224
      %v8604 = vsel %vm3306, %v8556, %v8226
      %v8606 = vsel %vm3306, %v8558, %v8228
      %v8608 = vsel %vm3323, %v8560, %v8239
      %v8611 = vsel %vm3323, %v8562, %v8241
      %v8614 = vsel %vm3323, %v8564, %v8243
      %v8617 = vsel %vm3323, %v8566, %v8245
      %v8620 = vsel %vm3323, %v8568, %v8247
      %v8623 = vsel %vm3323, %v8570, %v8249
      %v8626 = vsel %vm3323, %v8572, %v8251
      %v8629 = vsel %vm3323, %v8574, %v8253
      %v8632 = vsel %vm3323, %v8576, %v8255
      %v8635 = vsel %vm3323, %v8578, %v8257
      %v8638 = vsel %vm3323, %v8580, %v8259
      %v8641 = vsel %vm3323, %v8582, %v8261
      %v8644 = vsel %vm3323, %v8584, %v8263
      %v8647 = vsel %vm3323, %v8586, %v8265
      %v8650 = vsel %vm3323, %v8588, %v8267
      %v8653 = vsel %vm3323, %v8590, %v8269
      %v8656 = vsel %vm3323, %v8592, %v8271
      %v8659 = vsel %vm3323, %v8594, %v8273
      %v8662 = vsel %vm3323, %v8596, %v8275
      %v8665 = vsel %vm3323, %v8598, %v8277
      %v8668 = vsel %vm3323, %v8600, %v8279
      %v8671 = vsel %vm3323, %v8602, %v8281
      %v8674 = vsel %vm3323, %v8604, %v8283
      %v8677 = vsel %vm3323, %v8606, %v8285
      %v8679 = vld [vmem:[%s11] sm:$0xf]
      %v8680 = vld [vmem:[%s11 + $0x4] sm:$0xf]
      %v8681 = vld [vmem:[%s11 + $0x8] sm:$0xf]
      %v8682 = vld [vmem:[%s11 + $0xc] sm:$0xf]
      %v8683 = vld [vmem:[%s11 + $0x10] sm:$0xf]
      %v8684 = vld [vmem:[%s11 + $0x14] sm:$0xf]
      %v8685 = vld [vmem:[%s11 + $0x18] sm:$0xf]
      %v8686 = vld [vmem:[%s11 + $0x1c] sm:$0xf]
      %v8687 = vld [vmem:[%s11 + $0x20] sm:$0xf]
      %v8688 = vld [vmem:[%s11 + $0x24] sm:$0xf]
      %v8689 = vld [vmem:[%s11 + $0x28] sm:$0xf]
      %v8690 = vld [vmem:[%s11 + $0x2c] sm:$0xf]
      %v8691 = vld [vmem:[%s11 + $0x30] sm:$0xf]
      %v8692 = vld [vmem:[%s11 + $0x34] sm:$0xf]
      %v8693 = vld [vmem:[%s11 + $0x38] sm:$0xf]
      %v8694 = vld [vmem:[%s11 + $0x3c] sm:$0xf]
      %v8695 = vld [vmem:[%s11 + $0x40] sm:$0xf]
      %v8696 = vld [vmem:[%s11 + $0x44] sm:$0xf]
      %v8697 = vld [vmem:[#allocation11] sm:$0x1]
      %v8699 = vperm.slane %v8697, 0
      %v8719 = vunpack.c.l.b16 %v8679
      %v8720 = vunpack.c.l.b16 %v8680
      %v8721 = vunpack.c.l.b16 %v8681
      %v8722 = vunpack.c.l.b16 %v8682
      %v8723 = vunpack.c.l.b16 %v8683
      %v8724 = vunpack.c.l.b16 %v8684
      %v8725 = vunpack.c.l.b16 %v8685
      %v8726 = vunpack.c.l.b16 %v8686
      %v8727 = vunpack.c.l.b16 %v8687
      %v8728 = vunpack.c.l.b16 %v8688
      %v8729 = vunpack.c.l.b16 %v8689
      %v8730 = vunpack.c.l.b16 %v8690
      %v8731 = vunpack.c.l.b16 %v8691
      %v8732 = vunpack.c.l.b16 %v8692
      %v8733 = vunpack.c.l.b16 %v8693
      %v8734 = vunpack.c.l.b16 %v8694
      %v8735 = vunpack.c.l.b16 %v8695
      %v8736 = vunpack.c.l.b16 %v8696
      %v8737 = vpack.c.b16 %v8720, %v8719
      %v8738 = vpack.c.b16 %v8722, %v8721
      %v8739 = vpack.c.b16 %v8724, %v8723
      %v8740 = vpack.c.b16 %v8726, %v8725
      %v8741 = vpack.c.b16 %v8728, %v8727
      %v8742 = vpack.c.b16 %v8730, %v8729
      %v8743 = vpack.c.b16 %v8732, %v8731
      %v8744 = vpack.c.b16 %v8734, %v8733
      %v8745 = vpack.c.b16 %v8736, %v8735
      %v8756 = vsel %vm447, %v7869, 0
      %v8759 = vsel %vm447, %v7870, 0
      %v8762 = vsel %vm447, %v7871, 0
      %v8765 = vsel %vm447, %v7872, 0
      %v8768 = vsel %vm447, %v7873, 0
      %v8771 = vsel %vm447, %v7874, 0
      %v8774 = vsel %vm447, %v7875, 0
      %v8777 = vsel %vm447, %v7876, 0
      %v8780 = vsel %vm447, %v7877, 0
      %v8783 = vsel %vm447, %v7878, 0
      %v8786 = vsel %vm447, %v7879, 0
      %v8789 = vsel %vm447, %v7880, 0
      %v8792 = vsel %vm447, %v7881, 0
      %v8795 = vsel %vm447, %v7882, 0
      %v8798 = vsel %vm447, %v7883, 0
      %v8801 = vsel %vm447, %v7884, 0
      %v8804 = vsel %vm447, %v7885, 0
      %v8807 = vsel %vm447, %v7886, 0
      %v8810 = vsel %vm447, %v7887, 0
      %v8813 = vsel %vm447, %v7888, 0
      %v8816 = vsel %vm447, %v7889, 0
      %v8819 = vsel %vm447, %v8292, 0
      %v8822 = vsel %vm447, %v8293, 0
      %v8825 = vsel %vm447, %v8294, 0
      %8827 = vmatpush.bf16.msra.mxu0 %v8744
      %8828 = vmatpush.bf16.msra.mxu0 %v8743
      %8829 = vmatpush.bf16.msra.mxu0 %v8742
      %8830 = vmatpush.bf16.msra.mxu0 %v8741
      %8831 = vmatpush.bf16.msra.mxu0 %v8740
      %8832 = vmatpush.bf16.msra.mxu0 %v8739
      %8833 = vmatpush.bf16.msra.mxu0 %v8738
      %8834 = vmatpush.bf16.msra.mxu0 %v8737
      %8835 = vmatmul.bf16.gmra.mxu0 %v8608
      %v8836 = vpop.f32.mrf.mxu0
      %v8837 = vadd.f32 %v8699, %v8836
      %v8838 = vpop.f32.mrf.mxu0
      %v8839 = vadd.f32 %v8699, %v8838
      %8840 = vmatmul.bf16.gmra.mxu0 %v8611
      %v8841 = vpop.f32.mrf.mxu0
      %v8842 = vadd.f32 %v8699, %v8841
      %v8843 = vpop.f32.mrf.mxu0
      %v8844 = vadd.f32 %v8699, %v8843
      %8845 = vmatmul.bf16.gmra.mxu0 %v8614
      %v8846 = vpop.f32.mrf.mxu0
      %v8847 = vadd.f32 %v8699, %v8846
      %v8848 = vpop.f32.mrf.mxu0
      %v8849 = vadd.f32 %v8699, %v8848
      %8850 = vmatmul.bf16.gmra.mxu0 %v8617
      %v8851 = vpop.f32.mrf.mxu0
      %v8852 = vadd.f32 %v8699, %v8851
      %v8853 = vpop.f32.mrf.mxu0
      %v8854 = vadd.f32 %v8699, %v8853
      %8855 = vmatmul.bf16.gmra.mxu0 %v8620
      %v8856 = vpop.f32.mrf.mxu0
      %v8857 = vadd.f32 %v8699, %v8856
      %v8858 = vpop.f32.mrf.mxu0
      %v8859 = vadd.f32 %v8699, %v8858
      %8860 = vmatmul.bf16.gmra.mxu0 %v8623
      %v8861 = vpop.f32.mrf.mxu0
      %v8862 = vadd.f32 %v8699, %v8861
      %v8863 = vpop.f32.mrf.mxu0
      %v8864 = vadd.f32 %v8699, %v8863
      %8865 = vmatmul.bf16.gmra.mxu0 %v8626
      %v8866 = vpop.f32.mrf.mxu0
      %v8867 = vadd.f32 %v8699, %v8866
      %v8868 = vpop.f32.mrf.mxu0
      %v8869 = vadd.f32 %v8699, %v8868
      %8870 = vmatmul.bf16.gmra.mxu0 %v8629
      %v8871 = vpop.f32.mrf.mxu0
      %v8872 = vadd.f32 %v8699, %v8871
      %v8873 = vpop.f32.mrf.mxu0
      %v8874 = vadd.f32 %v8699, %v8873
      %8875 = vmatmul.bf16.gmra.mxu0 %v8632
      %v8876 = vpop.f32.mrf.mxu0
      %v8877 = vadd.f32 %v8699, %v8876
      %v8878 = vpop.f32.mrf.mxu0
      %v8879 = vadd.f32 %v8699, %v8878
      %8880 = vmatmul.bf16.gmra.mxu0 %v8635
      %v8881 = vpop.f32.mrf.mxu0
      %v8882 = vadd.f32 %v8699, %v8881
      %v8883 = vpop.f32.mrf.mxu0
      %v8884 = vadd.f32 %v8699, %v8883
      %8885 = vmatmul.bf16.gmra.mxu0 %v8638
      %v8886 = vpop.f32.mrf.mxu0
      %v8887 = vadd.f32 %v8699, %v8886
      %v8888 = vpop.f32.mrf.mxu0
      %v8889 = vadd.f32 %v8699, %v8888
      %8890 = vmatmul.bf16.gmra.mxu0 %v8641
      %v8891 = vpop.f32.mrf.mxu0
      %v8892 = vadd.f32 %v8699, %v8891
      %v8893 = vpop.f32.mrf.mxu0
      %v8894 = vadd.f32 %v8699, %v8893
      %8895 = vmatmul.bf16.gmra.mxu0 %v8644
      %v8896 = vpop.f32.mrf.mxu0
      %v8897 = vadd.f32 %v8699, %v8896
      %v8898 = vpop.f32.mrf.mxu0
      %v8899 = vadd.f32 %v8699, %v8898
      %8900 = vmatmul.bf16.gmra.mxu0 %v8647
      %v8901 = vpop.f32.mrf.mxu0
      %v8902 = vadd.f32 %v8699, %v8901
      %v8903 = vpop.f32.mrf.mxu0
      %v8904 = vadd.f32 %v8699, %v8903
      %8905 = vmatmul.bf16.gmra.mxu0 %v8650
      %v8906 = vpop.f32.mrf.mxu0
      %v8907 = vadd.f32 %v8699, %v8906
      %v8908 = vpop.f32.mrf.mxu0
      %v8909 = vadd.f32 %v8699, %v8908
      %8910 = vmatmul.bf16.gmra.mxu0 %v8653
      %v8911 = vpop.f32.mrf.mxu0
      %v8912 = vadd.f32 %v8699, %v8911
      %v8913 = vpop.f32.mrf.mxu0
      %v8914 = vadd.f32 %v8699, %v8913
      %8915 = vmatmul.bf16.gmra.mxu0 %v8656
      %v8916 = vpop.f32.mrf.mxu0
      %v8917 = vadd.f32 %v8699, %v8916
      %v8918 = vpop.f32.mrf.mxu0
      %v8919 = vadd.f32 %v8699, %v8918
      %8920 = vmatmul.bf16.gmra.mxu0 %v8659
      %v8921 = vpop.f32.mrf.mxu0
      %v8922 = vadd.f32 %v8699, %v8921
      %v8923 = vpop.f32.mrf.mxu0
      %v8924 = vadd.f32 %v8699, %v8923
      %8925 = vmatmul.bf16.gmra.mxu0 %v8662
      %v8926 = vpop.f32.mrf.mxu0
      %v8927 = vadd.f32 %v8699, %v8926
      %v8928 = vpop.f32.mrf.mxu0
      %v8929 = vadd.f32 %v8699, %v8928
      %8930 = vmatmul.bf16.gmra.mxu0 %v8665
      %v8931 = vpop.f32.mrf.mxu0
      %v8932 = vadd.f32 %v8699, %v8931
      %v8933 = vpop.f32.mrf.mxu0
      %v8934 = vadd.f32 %v8699, %v8933
      %8935 = vmatmul.bf16.gmra.mxu0 %v8668
      %v8936 = vpop.f32.mrf.mxu0
      %v8937 = vadd.f32 %v8699, %v8936
      %v8938 = vpop.f32.mrf.mxu0
      %v8939 = vadd.f32 %v8699, %v8938
      %8940 = vmatmul.bf16.gmra.mxu0 %v8671
      %v8941 = vpop.f32.mrf.mxu0
      %v8942 = vadd.f32 %v8699, %v8941
      %v8943 = vpop.f32.mrf.mxu0
      %v8944 = vadd.f32 %v8699, %v8943
      %8945 = vmatmul.bf16.gmra.mxu0 %v8674
      %v8946 = vpop.f32.mrf.mxu0
      %v8947 = vadd.f32 %v8699, %v8946
      %v8948 = vpop.f32.mrf.mxu0
      %v8949 = vadd.f32 %v8699, %v8948
      %8950 = vmatmul.bf16.gmra.mxu0 %v8677
      %v8951 = vpop.f32.mrf.mxu0
      %v8952 = vadd.f32 %v8699, %v8951
      %v8953 = vpop.f32.mrf.mxu0
      %v8954 = vadd.f32 %v8699, %v8953
      %8955 = vdwg.mxu0
      %8956 = vmatpush.bf16.msra.mxu0 0
      %8957 = vmatpush.bf16.msra.mxu0 0
      %8958 = vmatpush.bf16.msra.mxu0 0
      %8959 = vmatpush.bf16.msra.mxu0 0
      %8960 = vmatpush.bf16.msra.mxu0 0
      %8961 = vmatpush.bf16.msra.mxu0 0
      %8962 = vmatpush.bf16.msra.mxu0 0
      %8963 = vmatpush.bf16.msra.mxu0 %v8745
      %8964 = vmatmul.bf16.gmra.mxu0 %v8756
      %v8965 = vpop.f32.mrf.mxu0
      %v8966 = vadd.f32 %v8837, %v8965
      %v8967 = vpop.f32.mrf.mxu0
      %v8968 = vadd.f32 %v8839, %v8967
      %8969 = vmatmul.bf16.gmra.mxu0 %v8759
      %v8970 = vpop.f32.mrf.mxu0
      %v8971 = vadd.f32 %v8842, %v8970
      %v8972 = vpop.f32.mrf.mxu0
      %v8973 = vadd.f32 %v8844, %v8972
      %8974 = vmatmul.bf16.gmra.mxu0 %v8762
      %v8975 = vpop.f32.mrf.mxu0
      %v8976 = vadd.f32 %v8847, %v8975
      %v8977 = vpop.f32.mrf.mxu0
      %v8978 = vadd.f32 %v8849, %v8977
      %8979 = vmatmul.bf16.gmra.mxu0 %v8765
      %v8980 = vpop.f32.mrf.mxu0
      %v8981 = vadd.f32 %v8852, %v8980
      %v8982 = vpop.f32.mrf.mxu0
      %v8983 = vadd.f32 %v8854, %v8982
      %8984 = vmatmul.bf16.gmra.mxu0 %v8768
      %v8985 = vpop.f32.mrf.mxu0
      %v8986 = vadd.f32 %v8857, %v8985
      %v8987 = vpop.f32.mrf.mxu0
      %v8988 = vadd.f32 %v8859, %v8987
      %8989 = vmatmul.bf16.gmra.mxu0 %v8771
      %v8990 = vpop.f32.mrf.mxu0
      %v8991 = vadd.f32 %v8862, %v8990
      %v8992 = vpop.f32.mrf.mxu0
      %v8993 = vadd.f32 %v8864, %v8992
      %8994 = vmatmul.bf16.gmra.mxu0 %v8774
      %v8995 = vpop.f32.mrf.mxu0
      %v8996 = vadd.f32 %v8867, %v8995
      %v8997 = vpop.f32.mrf.mxu0
      %v8998 = vadd.f32 %v8869, %v8997
      %8999 = vmatmul.bf16.gmra.mxu0 %v8777
      %v9000 = vpop.f32.mrf.mxu0
      %v9001 = vadd.f32 %v8872, %v9000
      %v9002 = vpop.f32.mrf.mxu0
      %v9003 = vadd.f32 %v8874, %v9002
      %9004 = vmatmul.bf16.gmra.mxu0 %v8780
      %v9005 = vpop.f32.mrf.mxu0
      %v9006 = vadd.f32 %v8877, %v9005
      %v9007 = vpop.f32.mrf.mxu0
      %v9008 = vadd.f32 %v8879, %v9007
      %9009 = vmatmul.bf16.gmra.mxu0 %v8783
      %v9010 = vpop.f32.mrf.mxu0
      %v9011 = vadd.f32 %v8882, %v9010
      %v9012 = vpop.f32.mrf.mxu0
      %v9013 = vadd.f32 %v8884, %v9012
      %9014 = vmatmul.bf16.gmra.mxu0 %v8786
      %v9015 = vpop.f32.mrf.mxu0
      %v9016 = vadd.f32 %v8887, %v9015
      %v9017 = vpop.f32.mrf.mxu0
      %v9018 = vadd.f32 %v8889, %v9017
      %9019 = vmatmul.bf16.gmra.mxu0 %v8789
      %v9020 = vpop.f32.mrf.mxu0
      %v9021 = vadd.f32 %v8892, %v9020
      %v9022 = vpop.f32.mrf.mxu0
      %v9023 = vadd.f32 %v8894, %v9022
      %9024 = vmatmul.bf16.gmra.mxu0 %v8792
      %v9025 = vpop.f32.mrf.mxu0
      %v9026 = vadd.f32 %v8897, %v9025
      %v9027 = vpop.f32.mrf.mxu0
      %v9028 = vadd.f32 %v8899, %v9027
      %9029 = vmatmul.bf16.gmra.mxu0 %v8795
      %v9030 = vpop.f32.mrf.mxu0
      %v9031 = vadd.f32 %v8902, %v9030
      %v9032 = vpop.f32.mrf.mxu0
      %v9033 = vadd.f32 %v8904, %v9032
      %9034 = vmatmul.bf16.gmra.mxu0 %v8798
      %v9035 = vpop.f32.mrf.mxu0
      %v9036 = vadd.f32 %v8907, %v9035
      %v9037 = vpop.f32.mrf.mxu0
      %v9038 = vadd.f32 %v8909, %v9037
      %9039 = vmatmul.bf16.gmra.mxu0 %v8801
      %v9040 = vpop.f32.mrf.mxu0
      %v9041 = vadd.f32 %v8912, %v9040
      %v9042 = vpop.f32.mrf.mxu0
      %v9043 = vadd.f32 %v8914, %v9042
      %9044 = vmatmul.bf16.gmra.mxu0 %v8804
      %v9045 = vpop.f32.mrf.mxu0
      %v9046 = vadd.f32 %v8917, %v9045
      %v9047 = vpop.f32.mrf.mxu0
      %v9048 = vadd.f32 %v8919, %v9047
      %9049 = vmatmul.bf16.gmra.mxu0 %v8807
      %v9050 = vpop.f32.mrf.mxu0
      %v9051 = vadd.f32 %v8922, %v9050
      %v9052 = vpop.f32.mrf.mxu0
      %v9053 = vadd.f32 %v8924, %v9052
      %9054 = vmatmul.bf16.gmra.mxu0 %v8810
      %v9055 = vpop.f32.mrf.mxu0
      %v9056 = vadd.f32 %v8927, %v9055
      %v9057 = vpop.f32.mrf.mxu0
      %v9058 = vadd.f32 %v8929, %v9057
      %9059 = vmatmul.bf16.gmra.mxu0 %v8813
      %v9060 = vpop.f32.mrf.mxu0
      %v9061 = vadd.f32 %v8932, %v9060
      %v9062 = vpop.f32.mrf.mxu0
      %v9063 = vadd.f32 %v8934, %v9062
      %9064 = vmatmul.bf16.gmra.mxu0 %v8816
      %v9065 = vpop.f32.mrf.mxu0
      %v9066 = vadd.f32 %v8937, %v9065
      %v9067 = vpop.f32.mrf.mxu0
      %v9068 = vadd.f32 %v8939, %v9067
      %9069 = vmatmul.bf16.gmra.mxu0 %v8819
      %v9070 = vpop.f32.mrf.mxu0
      %v9071 = vadd.f32 %v8942, %v9070
      %v9072 = vpop.f32.mrf.mxu0
      %v9073 = vadd.f32 %v8944, %v9072
      %9074 = vmatmul.bf16.gmra.mxu0 %v8822
      %v9075 = vpop.f32.mrf.mxu0
      %v9076 = vadd.f32 %v8947, %v9075
      %v9077 = vpop.f32.mrf.mxu0
      %v9078 = vadd.f32 %v8949, %v9077
      %9079 = vmatmul.bf16.gmra.mxu0 %v8825
      %v9080 = vpop.f32.mrf.mxu0
      %v9081 = vadd.f32 %v8952, %v9080
      %v9082 = vpop.f32.mrf.mxu0
      %v9083 = vadd.f32 %v8954, %v9082
      %9084 = vdwg.mxu0
      %vm9085 = vcmask 7168
      %9086 = vst.msk [vmem:[%s444] sm:$0xff] %vm9085, %v8966
      %9087 = vst.msk [vmem:[%s444 + $0x8] sm:$0xff] %vm9085, %v8968
      %9088 = vst.msk [vmem:[%s444 + $0x10] sm:$0xff] %vm9085, %v8971
      %9089 = vst.msk [vmem:[%s444 + $0x18] sm:$0xff] %vm9085, %v8973
      %9090 = vst.msk [vmem:[%s444 + $0x20] sm:$0xff] %vm9085, %v8976
      %9091 = vst.msk [vmem:[%s444 + $0x28] sm:$0xff] %vm9085, %v8978
      %9092 = vst.msk [vmem:[%s444 + $0x30] sm:$0xff] %vm9085, %v8981
      %9093 = vst.msk [vmem:[%s444 + $0x38] sm:$0xff] %vm9085, %v8983
      %9094 = vst.msk [vmem:[%s444 + $0x40] sm:$0xff] %vm9085, %v8986
      %9095 = vst.msk [vmem:[%s444 + $0x48] sm:$0xff] %vm9085, %v8988
      %9096 = vst.msk [vmem:[%s444 + $0x50] sm:$0xff] %vm9085, %v8991
      %9097 = vst.msk [vmem:[%s444 + $0x58] sm:$0xff] %vm9085, %v8993
      %9098 = vst.msk [vmem:[%s444 + $0x60] sm:$0xff] %vm9085, %v8996
      %9099 = vst.msk [vmem:[%s444 + $0x68] sm:$0xff] %vm9085, %v8998
      %9100 = vst.msk [vmem:[%s444 + $0x70] sm:$0xff] %vm9085, %v9001
      %9101 = vst.msk [vmem:[%s444 + $0x78] sm:$0xff] %vm9085, %v9003
      %9102 = vst.msk [vmem:[%s444 + $0x80] sm:$0xff] %vm9085, %v9006
      %9103 = vst.msk [vmem:[%s444 + $0x88] sm:$0xff] %vm9085, %v9008
      %9104 = vst.msk [vmem:[%s444 + $0x90] sm:$0xff] %vm9085, %v9011
      %9105 = vst.msk [vmem:[%s444 + $0x98] sm:$0xff] %vm9085, %v9013
      %9106 = vst.msk [vmem:[%s444 + $0xa0] sm:$0xff] %vm9085, %v9016
      %9107 = vst.msk [vmem:[%s444 + $0xa8] sm:$0xff] %vm9085, %v9018
      %9108 = vst.msk [vmem:[%s444 + $0xb0] sm:$0xff] %vm9085, %v9021
      %9109 = vst.msk [vmem:[%s444 + $0xb8] sm:$0xff] %vm9085, %v9023
      %9110 = vst.msk [vmem:[%s444 + $0xc0] sm:$0xff] %vm9085, %v9026
      %9111 = vst.msk [vmem:[%s444 + $0xc8] sm:$0xff] %vm9085, %v9028
      %9112 = vst.msk [vmem:[%s444 + $0xd0] sm:$0xff] %vm9085, %v9031
      %9113 = vst.msk [vmem:[%s444 + $0xd8] sm:$0xff] %vm9085, %v9033
      %9114 = vst.msk [vmem:[%s444 + $0xe0] sm:$0xff] %vm9085, %v9036
      %9115 = vst.msk [vmem:[%s444 + $0xe8] sm:$0xff] %vm9085, %v9038
      %9116 = vst.msk [vmem:[%s444 + $0xf0] sm:$0xff] %vm9085, %v9041
      %9117 = vst.msk [vmem:[%s444 + $0xf8] sm:$0xff] %vm9085, %v9043
      %9118 = vst.msk [vmem:[%s444 + $0x100] sm:$0xff] %vm9085, %v9046
      %9119 = vst.msk [vmem:[%s444 + $0x108] sm:$0xff] %vm9085, %v9048
      %9120 = vst.msk [vmem:[%s444 + $0x110] sm:$0xff] %vm9085, %v9051
      %9121 = vst.msk [vmem:[%s444 + $0x118] sm:$0xff] %vm9085, %v9053
      %9122 = vst.msk [vmem:[%s444 + $0x120] sm:$0xff] %vm9085, %v9056
      %9123 = vst.msk [vmem:[%s444 + $0x128] sm:$0xff] %vm9085, %v9058
      %9124 = vst.msk [vmem:[%s444 + $0x130] sm:$0xff] %vm9085, %v9061
      %9125 = vst.msk [vmem:[%s444 + $0x138] sm:$0xff] %vm9085, %v9063
      %9126 = vst.msk [vmem:[%s444 + $0x140] sm:$0xff] %vm9085, %v9066
      %9127 = vst.msk [vmem:[%s444 + $0x148] sm:$0xff] %vm9085, %v9068
      %9128 = vst.msk [vmem:[%s444 + $0x150] sm:$0xff] %vm9085, %v9071
      %9129 = vst.msk [vmem:[%s444 + $0x158] sm:$0xff] %vm9085, %v9073
      %9130 = vst.msk [vmem:[%s444 + $0x160] sm:$0xff] %vm9085, %v9076
      %9131 = vst.msk [vmem:[%s444 + $0x168] sm:$0xff] %vm9085, %v9078
      %9132 = vst.msk [vmem:[%s444 + $0x170] sm:$0xff] %vm9085, %v9081
      %9133 = vst.msk [vmem:[%s444 + $0x178] sm:$0xff] %vm9085, %v9083
      %s9134 = smul.u32 48, %s26
      %p9135 = scmp.lt.s32.totalorder %s9134, 95
      %s9136 = scalar_select %p9135, %s9134, 95
      %s9137 = smul.addr %s9136, 8
      %s9138 = scalar_lea.vmem %s13, %s9137
      // Predicated region
      $region73: #{resnet_forward.1} parent=71 // pred_check
        %p9139 = pneg %p322
      $region74: #{resnet_forward.1} parent=71 // pred_check_branch
        %9141 = sbr.rel (%p9139) target = $region76
      $region75: #{resnet_forward.1} parent=71 // pred_region
        %s9142 = smul.u32 48, %s26
      $region76: #{resnet_forward.1} parent=71 // pred_fallthru
        _
    $region72: #{resnet_forward.1} parent=5 // pred_fallthru
      _
    %p9143 = scmp.le.s32.totalorder 2, %s21
    // Predicated region
    $region77: #{resnet_forward.1} parent=5 // pred_check
      %p9144 = pneg %p9143
    $region78: #{resnet_forward.1} parent=5 // pred_check_branch
      %9146 = sbr.rel (%p9144) target = $region80
    $region79: #{resnet_forward.1} parent=5 // pred_region
      %s9147 = ssub.s32 %s21, 2
      // Predicated region
      $region81: #{resnet_forward.1} parent=79 // pred_check
        %p9148 = pneg %p328
      $region82: #{resnet_forward.1} parent=79 // pred_check_branch
        %9150 = sbr.rel (%p9148) target = $region84
      $region83: #{resnet_forward.1} parent=79 // pred_region
        %s9151 = smul.u32 48, %s27
        %p9152 = scmp.lt.s32.totalorder %s9151, 95
        %s9153 = scalar_select %p9152, %s9151, 95
        %s9154 = smul.addr %s9153, 8
        %s9155 = scalar_lea.vmem %s13, %s9154
      $region84: #{resnet_forward.1} parent=79 // pred_fallthru
        _
    $region80: #{resnet_forward.1} parent=5 // pred_fallthru
      _
  $region6: #{resnet_forward.1} parent=0 // loop_footer
    %s25 = sadd.s32 1, %s21
  $region7: #{resnet_forward.1} parent=0 // loop_footer_branch
    %20 = sbr.rel target = $region3
  $region8: #{resnet_forward.1} parent=0 // loop_exit
    _

</llo_original>
